<compile_context>
chip_gen: v6e
topology: v6e:2x2x1
jax: 0.10.0
libtpu: 0.0.40
codegen_flags: <defaults>
</compile_context>

<pallas_src>
import functools

import numpy as np

import jax
import jax.numpy as jnp
from jax.experimental import pallas as pl
from jax.experimental.pallas import tpu as pltpu

_LANE = 128
_BN_EPS = 1e-5


def _round_up(x, m):
    return ((x + m - 1) // m) * m


# ----------------------------------------------------------------------------
# Fused generator kernel
# ----------------------------------------------------------------------------
def _make_kernel(n_batch, lanes):
    hi_list = (4, 8, 16)  # input heights of the three stride-2 ConvT blocks

    def kernel(z_ref, w0_ref, m_ref, k1_ref, gb_ref, wh_ref, o_ref,
               raw_ref, b1_ref, b2_ref, b3_ref):
        b_refs = (b1_ref, b2_ref, b3_ref)

        # Zero the y-interleaved (dilated + padded) row buffers; only the
        # interior even rows are filled by the producing block.
        for b in b_refs:
            b[...] = jnp.zeros(b.shape, b.dtype)

        def bn_scale_shift(s1, s2, blk, count):
            # Per-channel batch statistics.  k1 is a 0/1 matrix with
            # k1[l1, l2] = (lane l1 and l2 share a channel); one GEMM both
            # folds the per-lane sums into channel sums and broadcasts the
            # result back to every lane -> no in-kernel lane reshapes.
            k1 = k1_ref[blk]                                    # (lanes, lanes) f32
            inv = 1.0 / float(count)
            mean = jnp.dot(s1, k1, preferred_element_type=jnp.float32) * inv
            ex2 = jnp.dot(s2, k1, preferred_element_type=jnp.float32) * inv
            var = ex2 - mean * mean
            gb = gb_ref[blk]                                    # (2, lanes) f32
            scale = gb[0:1, :] * jax.lax.rsqrt(var + _BN_EPS)
            shift = gb[1:2, :] - mean * scale
            return scale, shift

        # ---- block 0: ConvT(dim_z -> 8*ngf, k=4, s=1, p=0) on a 1x1 input ----
        # out_row(y) = z @ W0[y]  (one GEMM per output row, batched over n).
        s1 = jnp.zeros((1, lanes), jnp.float32)
        s2 = jnp.zeros((1, lanes), jnp.float32)
        for y in range(4):
            r = jnp.dot(z_ref[...], w0_ref[y],
                        preferred_element_type=jnp.float32)     # (N, lanes)
            raw_ref[pl.ds(y * n_batch, n_batch), :] = r
            s1 = s1 + jnp.sum(r, axis=0, keepdims=True)
            s2 = s2 + jnp.sum(r * r, axis=0, keepdims=True)
        scale, shift = bn_scale_shift(s1, s2, 0, n_batch * 16)

        # BN + ReLU, scatter rows into block 1's zero-interleaved buffer.
        p1 = 2 * 4 + 3
        for n in range(n_batch):
            for iy in range(4):
                row = raw_ref[pl.ds(iy * n_batch + n, 1), :]
                row = jnp.maximum(row * scale + shift, 0.0)
                b1_ref[pl.ds(n * p1 + 2 + 2 * iy, 1), :] = row.astype(b1_ref.dtype)

        # ---- blocks 1..3: ConvT(k=4, s=2, p=1) as 4 per-tap row GEMMs --------
        # out_row[oy] = sum_ky B[oy + 3 - ky] @ M[ky] ; B holds the real input
        # rows at positions 2 + 2*iy (zeros elsewhere handle padding/stride).
        for l, hi in enumerate(hi_list):
            ho = 2 * hi
            p_in = 2 * hi + 3
            b_in = b_refs[l]
            s1 = jnp.zeros((1, lanes), jnp.float32)
            s2 = jnp.zeros((1, lanes), jnp.float32)
            for n in range(n_batch):
                acc = jnp.zeros((ho, lanes), jnp.float32)
                for ky in range(4):
                    lhs = b_in[pl.ds(n * p_in + 3 - ky, ho), :]     # (ho, lanes) bf16
                    acc = acc + jnp.dot(lhs, m_ref[l, ky],
                                        preferred_element_type=jnp.float32)
                raw_ref[pl.ds(n * ho, ho), :] = acc
                s1 = s1 + jnp.sum(acc, axis=0, keepdims=True)
                s2 = s2 + jnp.sum(acc * acc, axis=0, keepdims=True)
            scale, shift = bn_scale_shift(s1, s2, l + 1, n_batch * ho * ho)

            if l < 2:
                # BN + ReLU + scatter into the next block's interleaved buffer.
                p_next = 2 * ho + 3
                b_out = b_refs[l + 1]
                for n in range(n_batch):
                    for iy in range(ho):
                        row = raw_ref[pl.ds(n * ho + iy, 1), :]
                        row = jnp.maximum(row * scale + shift, 0.0)
                        b_out[pl.ds(n * p_next + 2 + 2 * iy, 1), :] = (
                            row.astype(b_out.dtype))
            else:
                # Block-3 BN + ReLU fused with the 1x1 ConvTranspose head + Tanh.
                for n in range(n_batch):
                    h = jnp.maximum(
                        raw_ref[pl.ds(n * ho, ho), :] * scale + shift, 0.0)
                    zh = jnp.dot(h.astype(wh_ref.dtype), wh_ref[...],
                                 preferred_element_type=jnp.float32)
                    o_ref[pl.ds(n * ho, ho), :] = jnp.tanh(zh)

    return kernel


# ----------------------------------------------------------------------------
# Parameter preparation (host-side, one-time): build the row-GEMM matrices.
# ----------------------------------------------------------------------------
def prepare_params(params):
    blocks = params["blocks"]
    w_last = np.asarray(params["w_last"], np.float32)          # (ngf, nc, 1, 1)

    # Block 0: one (dim_z, 4*C0) matrix per output row y.
    w0 = np.asarray(blocks[0][0], np.float32)                  # (dim_z, C0, 4, 4)
    dim_z, c0 = w0.shape[0], w0.shape[1]
    lanes = 4 * c0
    w0_rows = np.zeros((4, dim_z, lanes), np.float32)
    for y in range(4):
        for x in range(4):
            w0_rows[y, :, x * c0:(x + 1) * c0] = w0[:, :, y, x]

    # Blocks 1..3: 4 per-y-tap row matrices (Wi*Cin, Wo*Cout), x-structure
    # (stride-2 zero insertion, padding, kernel support) folded in exactly.
    m_list = []
    for li in range(3):
        w = np.asarray(blocks[li + 1][0], np.float32)          # (Cin, Cout, 4, 4)
        cin, cout = w.shape[0], w.shape[1]
        wi, wo = 4 * (2 ** li), 8 * (2 ** li)
        assert wi * cin == lanes and wo * cout == lanes, "row-GEMM width mismatch"
        m = np.zeros((4, lanes, lanes), np.float32)
        for ky in range(4):
            for ix in range(wi):
                for kx in range(4):
                    ox = 2 * ix - 1 + kx                       # oy/ox = 2*i - 1 + k
                    if 0 <= ox < wo:
                        m[ky, ix * cin:(ix + 1) * cin,
                          ox * cout:(ox + 1) * cout] = w[:, :, ky, kx]
        m_list.append(m)
    m_all = np.stack(m_list, 0)                                # (3, 4, lanes, lanes)

    # BN fold/broadcast matrices + per-lane gamma/beta (output (x, c) layout).
    k1_list, gb_list = [], []
    for li in range(4):
        cout = np.asarray(blocks[li][0]).shape[1]
        wo = 4 * (2 ** li)
        assert wo * cout == lanes
        ch = np.arange(lanes) % cout
        k1_list.append((ch[:, None] == ch[None, :]).astype(np.float32))
        gamma = np.asarray(blocks[li][1], np.float32).reshape(-1)
        beta = np.asarray(blocks[li][2], np.float32).reshape(-1)
        gb_list.append(np.stack([np.tile(gamma, wo), np.tile(beta, wo)], 0))
    k1_all = np.stack(k1_list, 0)                              # (4, lanes, lanes)
    gb_all = np.stack(gb_list, 0)                              # (4, 2, lanes)

    # Head: 1x1 ConvTranspose as a block-diagonal row matrix, lane-padded to 128.
    ngf, nc = w_last.shape[0], w_last.shape[1]
    assert 32 * ngf == lanes
    out_lanes = 32 * nc
    out_pad = _round_up(out_lanes, _LANE)
    wh = np.zeros((lanes, out_pad), np.float32)
    for x in range(32):
        wh[x * ngf:(x + 1) * ngf, x * nc:(x + 1) * nc] = w_last[:, :, 0, 0]

    return dict(
        w0=jnp.asarray(w0_rows, jnp.bfloat16),
        m_all=jnp.asarray(m_all, jnp.bfloat16),
        k1_all=jnp.asarray(k1_all, jnp.float32),
        gb_all=jnp.asarray(gb_all, jnp.float32),
        w_head=jnp.asarray(wh, jnp.bfloat16),
        lanes=lanes, nc=nc, out_lanes=out_lanes)


# ----------------------------------------------------------------------------
# Generator forward (single fused pallas_call + tiny output reshape glue)
# ----------------------------------------------------------------------------
def generator_forward(z, prep):
    """z: (N, dim_z, 1, 1) float32 -> (N, nc, 32, 32) float32 in [-1, 1]."""
    n = z.shape[0]
    lanes = prep["lanes"]
    out_pad = prep["w_head"].shape[1]
    zf = z.reshape(n, -1).astype(jnp.bfloat16)

    vmem = pl.BlockSpec(memory_space=pltpu.MemorySpace.VMEM)
    flops = 2 * n * 4 * zf.shape[1] * lanes                      # block 0
    for hi in (4, 8, 16):
        flops += 2 * 4 * n * (2 * hi) * lanes * lanes            # per-tap GEMMs
    flops += 2 * n * 32 * lanes * out_pad                        # fused head
    bytes_accessed = (int(prep["w0"].size) * 2 + int(prep["m_all"].size) * 2 +
                      int(prep["k1_all"].size) * 4 + int(prep["gb_all"].size) * 4 +
                      int(prep["w_head"].size) * 2 + int(zf.size) * 2 +
                      n * 32 * out_pad * 4)

    out = pl.pallas_call(
        _make_kernel(n, lanes),
        out_shape=jax.ShapeDtypeStruct((n * 32, out_pad), jnp.float32),
        in_specs=[vmem] * 6,
        out_specs=vmem,
        scratch_shapes=[
            pltpu.VMEM((n * 32, lanes), jnp.float32),    # raw conv output (reused)
            pltpu.VMEM((n * 11, lanes), jnp.bfloat16),   # block-1 interleaved rows
            pltpu.VMEM((n * 19, lanes), jnp.bfloat16),   # block-2 interleaved rows
            pltpu.VMEM((n * 35, lanes), jnp.bfloat16),   # block-3 interleaved rows
        ],
        cost_estimate=pl.CostEstimate(flops=flops,
                                      bytes_accessed=bytes_accessed,
                                      transcendentals=n * 32 * out_pad),
    )(zf, prep["w0"], prep["m_all"], prep["k1_all"], prep["gb_all"],
      prep["w_head"])

    img = out[:, :prep["out_lanes"]].reshape(n, 32, 32, prep["nc"])
    return jnp.transpose(img, (0, 3, 1, 2))                      # NCHW


# ----------------------------------------------------------------------------
# Pure-JAX f32 reference (PyTorch semantics) for tolerance validation
# ----------------------------------------------------------------------------
def _convt_ref(x, w, stride, pad):
    n_, cin, h, wdt = x.shape
    _, cout, k, _ = w.shape
    full = jnp.zeros((n_, cout, (h - 1) * stride + k, (wdt - 1) * stride + k),
                     jnp.float32)
    prod = jnp.einsum('nihw,iokl->nohwkl', x, w)
    for ky in range(k):
        for kx in range(k):
            full = full.at[:, :, ky:ky + (h - 1) * stride + 1:stride,
                           kx:kx + (wdt - 1) * stride + 1:stride].add(
                               prod[..., ky, kx])
    ho = (h - 1) * stride - 2 * pad + k
    wo = (wdt - 1) * stride - 2 * pad + k
    return full[:, :, pad:pad + ho, pad:pad + wo]


def _bn_relu_ref(x, gamma, beta):
    mean = jnp.mean(x, axis=(0, 2, 3), keepdims=True)
    var = jnp.mean((x - mean) ** 2, axis=(0, 2, 3), keepdims=True)
    y = (x - mean) * jax.lax.rsqrt(var + _BN_EPS)
    return jnp.maximum(y * gamma.reshape(1, -1, 1, 1) +
                       beta.reshape(1, -1, 1, 1), 0.0)


def generator_reference(z, params):
    cfgs = [(1, 0), (2, 1), (2, 1), (2, 1)]
    x = z
    for (w, gamma, beta), (s, p) in zip(params["blocks"], cfgs):
        x = _convt_ref(x, w, s, p)
        x = _bn_relu_ref(x, gamma, beta)
    wl = params["w_last"][:, :, 0, 0]
    return jnp.tanh(jnp.einsum('nchw,cd->ndhw', x, wl))


# ----------------------------------------------------------------------------
# Deterministic synthetic parameters with the module's structure (small config)
# ----------------------------------------------------------------------------
def init_params(key, nc=3, dim_z=16, ngf=8):
    channels = [dim_z, ngf * 8, ngf * 4, ngf * 2, ngf]
    blocks = []
    keys = jax.random.split(key, 16)
    ki = 0
    for i in range(4):
        cin, cout = channels[i], channels[i + 1]
        w = 0.02 * jax.random.normal(keys[ki], (cin, cout, 4, 4), jnp.float32); ki += 1
        gamma = 1.0 + 0.1 * jax.random.normal(keys[ki], (cout,), jnp.float32); ki += 1
        beta = 0.05 * jax.random.normal(keys[ki], (cout,), jnp.float32); ki += 1
        blocks.append((w, gamma, beta))
    w_last = 0.02 * jax.random.normal(keys[ki], (ngf, nc, 1, 1), jnp.float32)
    return {"blocks": blocks, "w_last": w_last}


if __name__ == "__main__":
    nc, dim_z, ngf, batch = 3, 16, 8, 2

    key = jax.random.PRNGKey(0)
    k_param, k_z = jax.random.split(key)
    params = init_params(k_param, nc=nc, dim_z=dim_z, ngf=ngf)
    prep = prepare_params(params)
    z = jax.random.normal(k_z, (batch, dim_z, 1, 1), jnp.float32)

    fwd = jax.jit(functools.partial(generator_forward, prep=prep))
    out = jax.block_until_ready(fwd(z))

    assert out.shape == (batch, nc, 32, 32), out.shape
    assert bool(jnp.all(jnp.isfinite(out)))
    assert bool(jnp.all(jnp.abs(out) <= 1.0 + 1e-6))          # tanh range

    # Explicit tolerance check vs a pure-JAX f32 reference (bf16 MXU operands
    # + batch-stat BN make a small, bounded deviation).
    ref = generator_reference(z, params)
    max_err = float(jnp.max(jnp.abs(out - ref)))
    mean_err = float(jnp.mean(jnp.abs(out - ref)))
    assert max_err < 5e-2 and mean_err < 1e-2, (max_err, mean_err)

    print("KERNEL_OK")
</pallas_src>

<mosaic_0001>
module attributes {stable_mosaic.version = 11 : i64} {
  func.func @kernel(%arg0: memref<2x16xbf16, #tpu.memory_space<vmem>>, %arg1: memref<4x16x256xbf16, #tpu.memory_space<vmem>>, %arg2: memref<3x4x256x256xbf16, #tpu.memory_space<vmem>>, %arg3: memref<4x256x256xf32, #tpu.memory_space<vmem>>, %arg4: memref<4x2x256xf32, #tpu.memory_space<vmem>>, %arg5: memref<256x128xbf16, #tpu.memory_space<vmem>>, %arg6: memref<64x128xf32, #tpu.memory_space<vmem>>, %arg7: memref<64x256xf32, #tpu.memory_space<vmem>>, %arg8: memref<22x256xbf16, #tpu.memory_space<vmem>>, %arg9: memref<38x256xbf16, #tpu.memory_space<vmem>>, %arg10: memref<70x256xbf16, #tpu.memory_space<vmem>>) attributes {dimension_semantics = [], scalar_prefetch = 0 : i64, scratch_operands = 4 : i64, tpu.core_type = #tpu.core_type<tc>} {
    %cst = arith.constant 0.000000e+00 : bf16
    %0 = vector.broadcast %cst : bf16 to vector<22x256xbf16>
    %c0 = arith.constant 0 : index
    %c0_0 = arith.constant 0 : index
    %1 = vector.load %arg8[%c0, %c0_0] : memref<22x256xbf16, #tpu.memory_space<vmem>>, vector<22x256xbf16>
    tpu.vector_store %arg8[%c0, %c0_0], %0 {strides = array<i32>} : memref<22x256xbf16, #tpu.memory_space<vmem>>, vector<22x256xbf16>,
    %cst_1 = arith.constant 0.000000e+00 : bf16
    %2 = vector.broadcast %cst_1 : bf16 to vector<38x256xbf16>
    %c0_2 = arith.constant 0 : index
    %c0_3 = arith.constant 0 : index
    %3 = vector.load %arg9[%c0_2, %c0_3] : memref<38x256xbf16, #tpu.memory_space<vmem>>, vector<38x256xbf16>
    tpu.vector_store %arg9[%c0_2, %c0_3], %2 {strides = array<i32>} : memref<38x256xbf16, #tpu.memory_space<vmem>>, vector<38x256xbf16>,
    %cst_4 = arith.constant 0.000000e+00 : bf16
    %4 = vector.broadcast %cst_4 : bf16 to vector<70x256xbf16>
    %c0_5 = arith.constant 0 : index
    %c0_6 = arith.constant 0 : index
    %5 = vector.load %arg10[%c0_5, %c0_6] : memref<70x256xbf16, #tpu.memory_space<vmem>>, vector<70x256xbf16>
    tpu.vector_store %arg10[%c0_5, %c0_6], %4 {strides = array<i32>} : memref<70x256xbf16, #tpu.memory_space<vmem>>, vector<70x256xbf16>,
    %cst_7 = arith.constant 0.000000e+00 : f32
    %6 = vector.broadcast %cst_7 : f32 to vector<1x256xf32>
    %cst_8 = arith.constant 0.000000e+00 : f32
    %7 = vector.broadcast %cst_8 : f32 to vector<1x256xf32>
    %c0_9 = arith.constant 0 : index
    %c0_10 = arith.constant 0 : index
    %8 = vector.load %arg0[%c0_9, %c0_10] : memref<2x16xbf16, #tpu.memory_space<vmem>>, vector<2x16xbf16>
    %c0_11 = arith.constant 0 : index
    %c0_12 = arith.constant 0 : index
    %c0_13 = arith.constant 0 : index
    %9 = vector.load %arg1[%c0_11, %c0_12, %c0_13] : memref<4x16x256xbf16, #tpu.memory_space<vmem>>, vector<1x16x256xbf16>
    %10 = vector.shape_cast %9 : vector<1x16x256xbf16> to vector<16x256xbf16>
    %cst_14 = arith.constant dense<0.000000e+00> : vector<2x256xf32>
    %11 = tpu.matmul %8, %10, %cst_14 {dimension_numbers = #tpu.dot_dimension_numbers<[1], [0], [0], [1], [0, 0, 1, 1], [], []>} : vector<2x16xbf16>, vector<16x256xbf16>, vector<2x256xf32> -> vector<2x256xf32>
    %c0_15 = arith.constant 0 : index
    %c0_16 = arith.constant 0 : index
    %12 = vector.load %arg7[%c0_15, %c0_16] : memref<64x256xf32, #tpu.memory_space<vmem>>, vector<2x256xf32>
    tpu.vector_store %arg7[%c0_15, %c0_16], %11 {strides = array<i32>} : memref<64x256xf32, #tpu.memory_space<vmem>>, vector<2x256xf32>,
    %cst_17 = arith.constant dense<0.000000e+00> : vector<256xf32>
    %13 = vector.multi_reduction <add>, %11, %cst_17 [0] : vector<2x256xf32> to vector<256xf32>
    %14 = vector.shape_cast %13 : vector<256xf32> to vector<1x256xf32>
    %15 = arith.addf %6, %14 : vector<1x256xf32>
    %16 = arith.mulf %11, %11 : vector<2x256xf32>
    %cst_18 = arith.constant dense<0.000000e+00> : vector<256xf32>
    %17 = vector.multi_reduction <add>, %16, %cst_18 [0] : vector<2x256xf32> to vector<256xf32>
    %18 = vector.shape_cast %17 : vector<256xf32> to vector<1x256xf32>
    %19 = arith.addf %7, %18 : vector<1x256xf32>
    %c0_19 = arith.constant 0 : index
    %c0_20 = arith.constant 0 : index
    %20 = vector.load %arg0[%c0_19, %c0_20] : memref<2x16xbf16, #tpu.memory_space<vmem>>, vector<2x16xbf16>
    %c1 = arith.constant 1 : index
    %c0_21 = arith.constant 0 : index
    %c0_22 = arith.constant 0 : index
    %21 = vector.load %arg1[%c1, %c0_21, %c0_22] : memref<4x16x256xbf16, #tpu.memory_space<vmem>>, vector<1x16x256xbf16>
    %22 = vector.shape_cast %21 : vector<1x16x256xbf16> to vector<16x256xbf16>
    %cst_23 = arith.constant dense<0.000000e+00> : vector<2x256xf32>
    %23 = tpu.matmul %20, %22, %cst_23 {dimension_numbers = #tpu.dot_dimension_numbers<[1], [0], [0], [1], [0, 0, 1, 1], [], []>} : vector<2x16xbf16>, vector<16x256xbf16>, vector<2x256xf32> -> vector<2x256xf32>
    %c2 = arith.constant 2 : index
    %c0_24 = arith.constant 0 : index
    %24 = vector.load %arg7[%c2, %c0_24] : memref<64x256xf32, #tpu.memory_space<vmem>>, vector<2x256xf32>
    tpu.vector_store %arg7[%c2, %c0_24], %23 {strides = array<i32>} : memref<64x256xf32, #tpu.memory_space<vmem>>, vector<2x256xf32>,
    %cst_25 = arith.constant dense<0.000000e+00> : vector<256xf32>
    %25 = vector.multi_reduction <add>, %23, %cst_25 [0] : vector<2x256xf32> to vector<256xf32>
    %26 = vector.shape_cast %25 : vector<256xf32> to vector<1x256xf32>
    %27 = arith.addf %15, %26 : vector<1x256xf32>
    %28 = arith.mulf %23, %23 : vector<2x256xf32>
    %cst_26 = arith.constant dense<0.000000e+00> : vector<256xf32>
    %29 = vector.multi_reduction <add>, %28, %cst_26 [0] : vector<2x256xf32> to vector<256xf32>
    %30 = vector.shape_cast %29 : vector<256xf32> to vector<1x256xf32>
    %31 = arith.addf %19, %30 : vector<1x256xf32>
    %c0_27 = arith.constant 0 : index
    %c0_28 = arith.constant 0 : index
    %32 = vector.load %arg0[%c0_27, %c0_28] : memref<2x16xbf16, #tpu.memory_space<vmem>>, vector<2x16xbf16>
    %c2_29 = arith.constant 2 : index
    %c0_30 = arith.constant 0 : index
    %c0_31 = arith.constant 0 : index
    %33 = vector.load %arg1[%c2_29, %c0_30, %c0_31] : memref<4x16x256xbf16, #tpu.memory_space<vmem>>, vector<1x16x256xbf16>
    %34 = vector.shape_cast %33 : vector<1x16x256xbf16> to vector<16x256xbf16>
    %cst_32 = arith.constant dense<0.000000e+00> : vector<2x256xf32>
    %35 = tpu.matmul %32, %34, %cst_32 {dimension_numbers = #tpu.dot_dimension_numbers<[1], [0], [0], [1], [0, 0, 1, 1], [], []>} : vector<2x16xbf16>, vector<16x256xbf16>, vector<2x256xf32> -> vector<2x256xf32>
    %c4 = arith.constant 4 : index
    %c0_33 = arith.constant 0 : index
    %36 = vector.load %arg7[%c4, %c0_33] : memref<64x256xf32, #tpu.memory_space<vmem>>, vector<2x256xf32>
    tpu.vector_store %arg7[%c4, %c0_33], %35 {strides = array<i32>} : memref<64x256xf32, #tpu.memory_space<vmem>>, vector<2x256xf32>,
    %cst_34 = arith.constant dense<0.000000e+00> : vector<256xf32>
    %37 = vector.multi_reduction <add>, %35, %cst_34 [0] : vector<2x256xf32> to vector<256xf32>
    %38 = vector.shape_cast %37 : vector<256xf32> to vector<1x256xf32>
    %39 = arith.addf %27, %38 : vector<1x256xf32>
    %40 = arith.mulf %35, %35 : vector<2x256xf32>
    %cst_35 = arith.constant dense<0.000000e+00> : vector<256xf32>
    %41 = vector.multi_reduction <add>, %40, %cst_35 [0] : vector<2x256xf32> to vector<256xf32>
    %42 = vector.shape_cast %41 : vector<256xf32> to vector<1x256xf32>
    %43 = arith.addf %31, %42 : vector<1x256xf32>
    %c0_36 = arith.constant 0 : index
    %c0_37 = arith.constant 0 : index
    %44 = vector.load %arg0[%c0_36, %c0_37] : memref<2x16xbf16, #tpu.memory_space<vmem>>, vector<2x16xbf16>
    %c3 = arith.constant 3 : index
    %c0_38 = arith.constant 0 : index
    %c0_39 = arith.constant 0 : index
    %45 = vector.load %arg1[%c3, %c0_38, %c0_39] : memref<4x16x256xbf16, #tpu.memory_space<vmem>>, vector<1x16x256xbf16>
    %46 = vector.shape_cast %45 : vector<1x16x256xbf16> to vector<16x256xbf16>
    %cst_40 = arith.constant dense<0.000000e+00> : vector<2x256xf32>
    %47 = tpu.matmul %44, %46, %cst_40 {dimension_numbers = #tpu.dot_dimension_numbers<[1], [0], [0], [1], [0, 0, 1, 1], [], []>} : vector<2x16xbf16>, vector<16x256xbf16>, vector<2x256xf32> -> vector<2x256xf32>
    %c6 = arith.constant 6 : index
    %c0_41 = arith.constant 0 : index
    %48 = vector.load %arg7[%c6, %c0_41] : memref<64x256xf32, #tpu.memory_space<vmem>>, vector<2x256xf32>
    tpu.vector_store %arg7[%c6, %c0_41], %47 {strides = array<i32>} : memref<64x256xf32, #tpu.memory_space<vmem>>, vector<2x256xf32>,
    %cst_42 = arith.constant dense<0.000000e+00> : vector<256xf32>
    %49 = vector.multi_reduction <add>, %47, %cst_42 [0] : vector<2x256xf32> to vector<256xf32>
    %50 = vector.shape_cast %49 : vector<256xf32> to vector<1x256xf32>
    %51 = arith.addf %39, %50 : vector<1x256xf32>
    %52 = arith.mulf %47, %47 : vector<2x256xf32>
    %cst_43 = arith.constant dense<0.000000e+00> : vector<256xf32>
    %53 = vector.multi_reduction <add>, %52, %cst_43 [0] : vector<2x256xf32> to vector<256xf32>
    %54 = vector.shape_cast %53 : vector<256xf32> to vector<1x256xf32>
    %55 = arith.addf %43, %54 : vector<1x256xf32>
    %c0_44 = arith.constant 0 : index
    %c0_45 = arith.constant 0 : index
    %c0_46 = arith.constant 0 : index
    %56 = vector.load %arg3[%c0_44, %c0_45, %c0_46] : memref<4x256x256xf32, #tpu.memory_space<vmem>>, vector<1x256x256xf32>
    %57 = vector.shape_cast %56 : vector<1x256x256xf32> to vector<256x256xf32>
    %cst_47 = arith.constant dense<0.000000e+00> : vector<1x256xf32>
    %58 = tpu.matmul %51, %57, %cst_47 {dimension_numbers = #tpu.dot_dimension_numbers<[1], [0], [0], [1], [0, 0, 1, 1], [], []>} : vector<1x256xf32>, vector<256x256xf32>, vector<1x256xf32> -> vector<1x256xf32>
    %cst_48 = arith.constant 3.125000e-02 : f32
    %59 = vector.broadcast %cst_48 : f32 to vector<1x256xf32>
    %60 = arith.mulf %58, %59 : vector<1x256xf32>
    %cst_49 = arith.constant dense<0.000000e+00> : vector<1x256xf32>
    %61 = tpu.matmul %55, %57, %cst_49 {dimension_numbers = #tpu.dot_dimension_numbers<[1], [0], [0], [1], [0, 0, 1, 1], [], []>} : vector<1x256xf32>, vector<256x256xf32>, vector<1x256xf32> -> vector<1x256xf32>
    %cst_50 = arith.constant 3.125000e-02 : f32
    %62 = vector.broadcast %cst_50 : f32 to vector<1x256xf32>
    %63 = arith.mulf %61, %62 : vector<1x256xf32>
    %64 = arith.mulf %60, %60 : vector<1x256xf32>
    %65 = arith.subf %63, %64 : vector<1x256xf32>
    %c0_51 = arith.constant 0 : index
    %c0_52 = arith.constant 0 : index
    %c0_53 = arith.constant 0 : index
    %66 = vector.load %arg4[%c0_51, %c0_52, %c0_53] : memref<4x2x256xf32, #tpu.memory_space<vmem>>, vector<1x2x256xf32>
    %67 = vector.shape_cast %66 : vector<1x2x256xf32> to vector<2x256xf32>
    %68 = vector.extract_strided_slice %67 {offsets = [0, 0], sizes = [1, 256], strides = [1, 1]} : vector<2x256xf32> to vector<1x256xf32>
    %cst_54 = arith.constant 9.99999974E-6 : f32
    %69 = vector.broadcast %cst_54 : f32 to vector<1x256xf32>
    %70 = arith.addf %65, %69 : vector<1x256xf32>
    %71 = math.rsqrt %70 : vector<1x256xf32>
    %72 = arith.mulf %68, %71 : vector<1x256xf32>
    %73 = vector.extract_strided_slice %67 {offsets = [1, 0], sizes = [1, 256], strides = [1, 1]} : vector<2x256xf32> to vector<1x256xf32>
    %74 = arith.mulf %60, %72 : vector<1x256xf32>
    %75 = arith.subf %73, %74 : vector<1x256xf32>
    %c0_55 = arith.constant 0 : index
    %c0_56 = arith.constant 0 : index
    %76 = vector.load %arg7[%c0_55, %c0_56] : memref<64x256xf32, #tpu.memory_space<vmem>>, vector<1x256xf32>
    %77 = arith.mulf %76, %72 : vector<1x256xf32>
    %78 = arith.addf %77, %75 : vector<1x256xf32>
    %cst_57 = arith.constant 0.000000e+00 : f32
    %79 = vector.broadcast %cst_57 : f32 to vector<1x256xf32>
    %80 = arith.maximumf %78, %79 : vector<1x256xf32>
    %81 = arith.truncf %80 : vector<1x256xf32> to vector<1x256xbf16>
    %c2_58 = arith.constant 2 : index
    %c0_59 = arith.constant 0 : index
    %82 = vector.load %arg8[%c2_58, %c0_59] : memref<22x256xbf16, #tpu.memory_space<vmem>>, vector<1x256xbf16>
    tpu.vector_store %arg8[%c2_58, %c0_59], %81 {strides = array<i32>} : memref<22x256xbf16, #tpu.memory_space<vmem>>, vector<1x256xbf16>,
    %c2_60 = arith.constant 2 : index
    %c0_61 = arith.constant 0 : index
    %83 = vector.load %arg7[%c2_60, %c0_61] : memref<64x256xf32, #tpu.memory_space<vmem>>, vector<1x256xf32>
    %84 = arith.mulf %83, %72 : vector<1x256xf32>
    %85 = arith.addf %84, %75 : vector<1x256xf32>
    %cst_62 = arith.constant 0.000000e+00 : f32
    %86 = vector.broadcast %cst_62 : f32 to vector<1x256xf32>
    %87 = arith.maximumf %85, %86 : vector<1x256xf32>
    %88 = arith.truncf %87 : vector<1x256xf32> to vector<1x256xbf16>
    %c4_63 = arith.constant 4 : index
    %c0_64 = arith.constant 0 : index
    %89 = vector.load %arg8[%c4_63, %c0_64] : memref<22x256xbf16, #tpu.memory_space<vmem>>, vector<1x256xbf16>
    tpu.vector_store %arg8[%c4_63, %c0_64], %88 {strides = array<i32>} : memref<22x256xbf16, #tpu.memory_space<vmem>>, vector<1x256xbf16>,
    %c4_65 = arith.constant 4 : index
    %c0_66 = arith.constant 0 : index
    %90 = vector.load %arg7[%c4_65, %c0_66] : memref<64x256xf32, #tpu.memory_space<vmem>>, vector<1x256xf32>
    %91 = arith.mulf %90, %72 : vector<1x256xf32>
    %92 = arith.addf %91, %75 : vector<1x256xf32>
    %cst_67 = arith.constant 0.000000e+00 : f32
    %93 = vector.broadcast %cst_67 : f32 to vector<1x256xf32>
    %94 = arith.maximumf %92, %93 : vector<1x256xf32>
    %95 = arith.truncf %94 : vector<1x256xf32> to vector<1x256xbf16>
    %c6_68 = arith.constant 6 : index
    %c0_69 = arith.constant 0 : index
    %96 = vector.load %arg8[%c6_68, %c0_69] : memref<22x256xbf16, #tpu.memory_space<vmem>>, vector<1x256xbf16>
    tpu.vector_store %arg8[%c6_68, %c0_69], %95 {strides = array<i32>} : memref<22x256xbf16, #tpu.memory_space<vmem>>, vector<1x256xbf16>,
    %c6_70 = arith.constant 6 : index
    %c0_71 = arith.constant 0 : index
    %97 = vector.load %arg7[%c6_70, %c0_71] : memref<64x256xf32, #tpu.memory_space<vmem>>, vector<1x256xf32>
    %98 = arith.mulf %97, %72 : vector<1x256xf32>
    %99 = arith.addf %98, %75 : vector<1x256xf32>
    %cst_72 = arith.constant 0.000000e+00 : f32
    %100 = vector.broadcast %cst_72 : f32 to vector<1x256xf32>
    %101 = arith.maximumf %99, %100 : vector<1x256xf32>
    %102 = arith.truncf %101 : vector<1x256xf32> to vector<1x256xbf16>
    %c8 = arith.constant 8 : index
    %c0_73 = arith.constant 0 : index
    %103 = vector.load %arg8[%c8, %c0_73] : memref<22x256xbf16, #tpu.memory_space<vmem>>, vector<1x256xbf16>
    tpu.vector_store %arg8[%c8, %c0_73], %102 {strides = array<i32>} : memref<22x256xbf16, #tpu.memory_space<vmem>>, vector<1x256xbf16>,
    %c1_74 = arith.constant 1 : index
    %c0_75 = arith.constant 0 : index
    %104 = vector.load %arg7[%c1_74, %c0_75] : memref<64x256xf32, #tpu.memory_space<vmem>>, vector<1x256xf32>
    %105 = arith.mulf %104, %72 : vector<1x256xf32>
    %106 = arith.addf %105, %75 : vector<1x256xf32>
    %cst_76 = arith.constant 0.000000e+00 : f32
    %107 = vector.broadcast %cst_76 : f32 to vector<1x256xf32>
    %108 = arith.maximumf %106, %107 : vector<1x256xf32>
    %109 = arith.truncf %108 : vector<1x256xf32> to vector<1x256xbf16>
    %c13 = arith.constant 13 : index
    %c0_77 = arith.constant 0 : index
    %110 = vector.load %arg8[%c13, %c0_77] : memref<22x256xbf16, #tpu.memory_space<vmem>>, vector<1x256xbf16>
    tpu.vector_store %arg8[%c13, %c0_77], %109 {strides = array<i32>} : memref<22x256xbf16, #tpu.memory_space<vmem>>, vector<1x256xbf16>,
    %c3_78 = arith.constant 3 : index
    %c0_79 = arith.constant 0 : index
    %111 = vector.load %arg7[%c3_78, %c0_79] : memref<64x256xf32, #tpu.memory_space<vmem>>, vector<1x256xf32>
    %112 = arith.mulf %111, %72 : vector<1x256xf32>
    %113 = arith.addf %112, %75 : vector<1x256xf32>
    %cst_80 = arith.constant 0.000000e+00 : f32
    %114 = vector.broadcast %cst_80 : f32 to vector<1x256xf32>
    %115 = arith.maximumf %113, %114 : vector<1x256xf32>
    %116 = arith.truncf %115 : vector<1x256xf32> to vector<1x256xbf16>
    %c15 = arith.constant 15 : index
    %c0_81 = arith.constant 0 : index
    %117 = vector.load %arg8[%c15, %c0_81] : memref<22x256xbf16, #tpu.memory_space<vmem>>, vector<1x256xbf16>
    tpu.vector_store %arg8[%c15, %c0_81], %116 {strides = array<i32>} : memref<22x256xbf16, #tpu.memory_space<vmem>>, vector<1x256xbf16>,
    %c5 = arith.constant 5 : index
    %c0_82 = arith.constant 0 : index
    %118 = vector.load %arg7[%c5, %c0_82] : memref<64x256xf32, #tpu.memory_space<vmem>>, vector<1x256xf32>
    %119 = arith.mulf %118, %72 : vector<1x256xf32>
    %120 = arith.addf %119, %75 : vector<1x256xf32>
    %cst_83 = arith.constant 0.000000e+00 : f32
    %121 = vector.broadcast %cst_83 : f32 to vector<1x256xf32>
    %122 = arith.maximumf %120, %121 : vector<1x256xf32>
    %123 = arith.truncf %122 : vector<1x256xf32> to vector<1x256xbf16>
    %c17 = arith.constant 17 : index
    %c0_84 = arith.constant 0 : index
    %124 = vector.load %arg8[%c17, %c0_84] : memref<22x256xbf16, #tpu.memory_space<vmem>>, vector<1x256xbf16>
    tpu.vector_store %arg8[%c17, %c0_84], %123 {strides = array<i32>} : memref<22x256xbf16, #tpu.memory_space<vmem>>, vector<1x256xbf16>,
    %c7 = arith.constant 7 : index
    %c0_85 = arith.constant 0 : index
    %125 = vector.load %arg7[%c7, %c0_85] : memref<64x256xf32, #tpu.memory_space<vmem>>, vector<1x256xf32>
    %126 = arith.mulf %125, %72 : vector<1x256xf32>
    %127 = arith.addf %126, %75 : vector<1x256xf32>
    %cst_86 = arith.constant 0.000000e+00 : f32
    %128 = vector.broadcast %cst_86 : f32 to vector<1x256xf32>
    %129 = arith.maximumf %127, %128 : vector<1x256xf32>
    %130 = arith.truncf %129 : vector<1x256xf32> to vector<1x256xbf16>
    %c19 = arith.constant 19 : index
    %c0_87 = arith.constant 0 : index
    %131 = vector.load %arg8[%c19, %c0_87] : memref<22x256xbf16, #tpu.memory_space<vmem>>, vector<1x256xbf16>
    tpu.vector_store %arg8[%c19, %c0_87], %130 {strides = array<i32>} : memref<22x256xbf16, #tpu.memory_space<vmem>>, vector<1x256xbf16>,
    %cst_88 = arith.constant 0.000000e+00 : f32
    %132 = vector.broadcast %cst_88 : f32 to vector<1x256xf32>
    %cst_89 = arith.constant 0.000000e+00 : f32
    %133 = vector.broadcast %cst_89 : f32 to vector<1x256xf32>
    %cst_90 = arith.constant 0.000000e+00 : f32
    %134 = vector.broadcast %cst_90 : f32 to vector<8x256xf32>
    %c3_91 = arith.constant 3 : index
    %c0_92 = arith.constant 0 : index
    %135 = vector.load %arg8[%c3_91, %c0_92] : memref<22x256xbf16, #tpu.memory_space<vmem>>, vector<8x256xbf16>
    %c0_93 = arith.constant 0 : index
    %c0_94 = arith.constant 0 : index
    %c0_95 = arith.constant 0 : index
    %c0_96 = arith.constant 0 : index
    %136 = vector.load %arg2[%c0_93, %c0_94, %c0_95, %c0_96] : memref<3x4x256x256xbf16, #tpu.memory_space<vmem>>, vector<1x1x256x256xbf16>
    %137 = vector.shape_cast %136 : vector<1x1x256x256xbf16> to vector<256x256xbf16>
    %cst_97 = arith.constant dense<0.000000e+00> : vector<8x256xf32>
    %138 = tpu.matmul %135, %137, %cst_97 {dimension_numbers = #tpu.dot_dimension_numbers<[1], [0], [0], [1], [0, 0, 1, 1], [], []>} : vector<8x256xbf16>, vector<256x256xbf16>, vector<8x256xf32> -> vector<8x256xf32>
    %139 = arith.addf %134, %138 : vector<8x256xf32>
    %c2_98 = arith.constant 2 : index
    %c0_99 = arith.constant 0 : index
    %140 = vector.load %arg8[%c2_98, %c0_99] : memref<22x256xbf16, #tpu.memory_space<vmem>>, vector<8x256xbf16>
    %c0_100 = arith.constant 0 : index
    %c1_101 = arith.constant 1 : index
    %c0_102 = arith.constant 0 : index
    %c0_103 = arith.constant 0 : index
    %141 = vector.load %arg2[%c0_100, %c1_101, %c0_102, %c0_103] : memref<3x4x256x256xbf16, #tpu.memory_space<vmem>>, vector<1x1x256x256xbf16>
    %142 = vector.shape_cast %141 : vector<1x1x256x256xbf16> to vector<256x256xbf16>
    %cst_104 = arith.constant dense<0.000000e+00> : vector<8x256xf32>
    %143 = tpu.matmul %140, %142, %cst_104 {dimension_numbers = #tpu.dot_dimension_numbers<[1], [0], [0], [1], [0, 0, 1, 1], [], []>} : vector<8x256xbf16>, vector<256x256xbf16>, vector<8x256xf32> -> vector<8x256xf32>
    %144 = arith.addf %139, %143 : vector<8x256xf32>
    %c1_105 = arith.constant 1 : index
    %c0_106 = arith.constant 0 : index
    %145 = vector.load %arg8[%c1_105, %c0_106] : memref<22x256xbf16, #tpu.memory_space<vmem>>, vector<8x256xbf16>
    %c0_107 = arith.constant 0 : index
    %c2_108 = arith.constant 2 : index
    %c0_109 = arith.constant 0 : index
    %c0_110 = arith.constant 0 : index
    %146 = vector.load %arg2[%c0_107, %c2_108, %c0_109, %c0_110] : memref<3x4x256x256xbf16, #tpu.memory_space<vmem>>, vector<1x1x256x256xbf16>
    %147 = vector.shape_cast %146 : vector<1x1x256x256xbf16> to vector<256x256xbf16>
    %cst_111 = arith.constant dense<0.000000e+00> : vector<8x256xf32>
    %148 = tpu.matmul %145, %147, %cst_111 {dimension_numbers = #tpu.dot_dimension_numbers<[1], [0], [0], [1], [0, 0, 1, 1], [], []>} : vector<8x256xbf16>, vector<256x256xbf16>, vector<8x256xf32> -> vector<8x256xf32>
    %149 = arith.addf %144, %148 : vector<8x256xf32>
    %c0_112 = arith.constant 0 : index
    %c0_113 = arith.constant 0 : index
    %150 = vector.load %arg8[%c0_112, %c0_113] : memref<22x256xbf16, #tpu.memory_space<vmem>>, vector<8x256xbf16>
    %c0_114 = arith.constant 0 : index
    %c3_115 = arith.constant 3 : index
    %c0_116 = arith.constant 0 : index
    %c0_117 = arith.constant 0 : index
    %151 = vector.load %arg2[%c0_114, %c3_115, %c0_116, %c0_117] : memref<3x4x256x256xbf16, #tpu.memory_space<vmem>>, vector<1x1x256x256xbf16>
    %152 = vector.shape_cast %151 : vector<1x1x256x256xbf16> to vector<256x256xbf16>
    %cst_118 = arith.constant dense<0.000000e+00> : vector<8x256xf32>
    %153 = tpu.matmul %150, %152, %cst_118 {dimension_numbers = #tpu.dot_dimension_numbers<[1], [0], [0], [1], [0, 0, 1, 1], [], []>} : vector<8x256xbf16>, vector<256x256xbf16>, vector<8x256xf32> -> vector<8x256xf32>
    %154 = arith.addf %149, %153 : vector<8x256xf32>
    %c0_119 = arith.constant 0 : index
    %c0_120 = arith.constant 0 : index
    %155 = vector.load %arg7[%c0_119, %c0_120] : memref<64x256xf32, #tpu.memory_space<vmem>>, vector<8x256xf32>
    tpu.vector_store %arg7[%c0_119, %c0_120], %154 {strides = array<i32>} : memref<64x256xf32, #tpu.memory_space<vmem>>, vector<8x256xf32>,
    %cst_121 = arith.constant dense<0.000000e+00> : vector<256xf32>
    %156 = vector.multi_reduction <add>, %154, %cst_121 [0] : vector<8x256xf32> to vector<256xf32>
    %157 = vector.shape_cast %156 : vector<256xf32> to vector<1x256xf32>
    %158 = arith.addf %132, %157 : vector<1x256xf32>
    %159 = arith.mulf %154, %154 : vector<8x256xf32>
    %cst_122 = arith.constant dense<0.000000e+00> : vector<256xf32>
    %160 = vector.multi_reduction <add>, %159, %cst_122 [0] : vector<8x256xf32> to vector<256xf32>
    %161 = vector.shape_cast %160 : vector<256xf32> to vector<1x256xf32>
    %162 = arith.addf %133, %161 : vector<1x256xf32>
    %cst_123 = arith.constant 0.000000e+00 : f32
    %163 = vector.broadcast %cst_123 : f32 to vector<8x256xf32>
    %c14 = arith.constant 14 : index
    %c0_124 = arith.constant 0 : index
    %164 = vector.load %arg8[%c14, %c0_124] : memref<22x256xbf16, #tpu.memory_space<vmem>>, vector<8x256xbf16>
    %c0_125 = arith.constant 0 : index
    %c0_126 = arith.constant 0 : index
    %c0_127 = arith.constant 0 : index
    %c0_128 = arith.constant 0 : index
    %165 = vector.load %arg2[%c0_125, %c0_126, %c0_127, %c0_128] : memref<3x4x256x256xbf16, #tpu.memory_space<vmem>>, vector<1x1x256x256xbf16>
    %166 = vector.shape_cast %165 : vector<1x1x256x256xbf16> to vector<256x256xbf16>
    %cst_129 = arith.constant dense<0.000000e+00> : vector<8x256xf32>
    %167 = tpu.matmul %164, %166, %cst_129 {dimension_numbers = #tpu.dot_dimension_numbers<[1], [0], [0], [1], [0, 0, 1, 1], [], []>} : vector<8x256xbf16>, vector<256x256xbf16>, vector<8x256xf32> -> vector<8x256xf32>
    %168 = arith.addf %163, %167 : vector<8x256xf32>
    %c13_130 = arith.constant 13 : index
    %c0_131 = arith.constant 0 : index
    %169 = vector.load %arg8[%c13_130, %c0_131] : memref<22x256xbf16, #tpu.memory_space<vmem>>, vector<8x256xbf16>
    %c0_132 = arith.constant 0 : index
    %c1_133 = arith.constant 1 : index
    %c0_134 = arith.constant 0 : index
    %c0_135 = arith.constant 0 : index
    %170 = vector.load %arg2[%c0_132, %c1_133, %c0_134, %c0_135] : memref<3x4x256x256xbf16, #tpu.memory_space<vmem>>, vector<1x1x256x256xbf16>
    %171 = vector.shape_cast %170 : vector<1x1x256x256xbf16> to vector<256x256xbf16>
    %cst_136 = arith.constant dense<0.000000e+00> : vector<8x256xf32>
    %172 = tpu.matmul %169, %171, %cst_136 {dimension_numbers = #tpu.dot_dimension_numbers<[1], [0], [0], [1], [0, 0, 1, 1], [], []>} : vector<8x256xbf16>, vector<256x256xbf16>, vector<8x256xf32> -> vector<8x256xf32>
    %173 = arith.addf %168, %172 : vector<8x256xf32>
    %c12 = arith.constant 12 : index
    %c0_137 = arith.constant 0 : index
    %174 = vector.load %arg8[%c12, %c0_137] : memref<22x256xbf16, #tpu.memory_space<vmem>>, vector<8x256xbf16>
    %c0_138 = arith.constant 0 : index
    %c2_139 = arith.constant 2 : index
    %c0_140 = arith.constant 0 : index
    %c0_141 = arith.constant 0 : index
    %175 = vector.load %arg2[%c0_138, %c2_139, %c0_140, %c0_141] : memref<3x4x256x256xbf16, #tpu.memory_space<vmem>>, vector<1x1x256x256xbf16>
    %176 = vector.shape_cast %175 : vector<1x1x256x256xbf16> to vector<256x256xbf16>
    %cst_142 = arith.constant dense<0.000000e+00> : vector<8x256xf32>
    %177 = tpu.matmul %174, %176, %cst_142 {dimension_numbers = #tpu.dot_dimension_numbers<[1], [0], [0], [1], [0, 0, 1, 1], [], []>} : vector<8x256xbf16>, vector<256x256xbf16>, vector<8x256xf32> -> vector<8x256xf32>
    %178 = arith.addf %173, %177 : vector<8x256xf32>
    %c11 = arith.constant 11 : index
    %c0_143 = arith.constant 0 : index
    %179 = vector.load %arg8[%c11, %c0_143] : memref<22x256xbf16, #tpu.memory_space<vmem>>, vector<8x256xbf16>
    %c0_144 = arith.constant 0 : index
    %c3_145 = arith.constant 3 : index
    %c0_146 = arith.constant 0 : index
    %c0_147 = arith.constant 0 : index
    %180 = vector.load %arg2[%c0_144, %c3_145, %c0_146, %c0_147] : memref<3x4x256x256xbf16, #tpu.memory_space<vmem>>, vector<1x1x256x256xbf16>
    %181 = vector.shape_cast %180 : vector<1x1x256x256xbf16> to vector<256x256xbf16>
    %cst_148 = arith.constant dense<0.000000e+00> : vector<8x256xf32>
    %182 = tpu.matmul %179, %181, %cst_148 {dimension_numbers = #tpu.dot_dimension_numbers<[1], [0], [0], [1], [0, 0, 1, 1], [], []>} : vector<8x256xbf16>, vector<256x256xbf16>, vector<8x256xf32> -> vector<8x256xf32>
    %183 = arith.addf %178, %182 : vector<8x256xf32>
    %c8_149 = arith.constant 8 : index
    %c0_150 = arith.constant 0 : index
    %184 = vector.load %arg7[%c8_149, %c0_150] : memref<64x256xf32, #tpu.memory_space<vmem>>, vector<8x256xf32>
    tpu.vector_store %arg7[%c8_149, %c0_150], %183 {strides = array<i32>} : memref<64x256xf32, #tpu.memory_space<vmem>>, vector<8x256xf32>,
    %cst_151 = arith.constant dense<0.000000e+00> : vector<256xf32>
    %185 = vector.multi_reduction <add>, %183, %cst_151 [0] : vector<8x256xf32> to vector<256xf32>
    %186 = vector.shape_cast %185 : vector<256xf32> to vector<1x256xf32>
    %187 = arith.addf %158, %186 : vector<1x256xf32>
    %188 = arith.mulf %183, %183 : vector<8x256xf32>
    %cst_152 = arith.constant dense<0.000000e+00> : vector<256xf32>
    %189 = vector.multi_reduction <add>, %188, %cst_152 [0] : vector<8x256xf32> to vector<256xf32>
    %190 = vector.shape_cast %189 : vector<256xf32> to vector<1x256xf32>
    %191 = arith.addf %162, %190 : vector<1x256xf32>
    %c1_153 = arith.constant 1 : index
    %c0_154 = arith.constant 0 : index
    %c0_155 = arith.constant 0 : index
    %192 = vector.load %arg3[%c1_153, %c0_154, %c0_155] : memref<4x256x256xf32, #tpu.memory_space<vmem>>, vector<1x256x256xf32>
    %193 = vector.shape_cast %192 : vector<1x256x256xf32> to vector<256x256xf32>
    %cst_156 = arith.constant dense<0.000000e+00> : vector<1x256xf32>
    %194 = tpu.matmul %187, %193, %cst_156 {dimension_numbers = #tpu.dot_dimension_numbers<[1], [0], [0], [1], [0, 0, 1, 1], [], []>} : vector<1x256xf32>, vector<256x256xf32>, vector<1x256xf32> -> vector<1x256xf32>
    %cst_157 = arith.constant 7.812500e-03 : f32
    %195 = vector.broadcast %cst_157 : f32 to vector<1x256xf32>
    %196 = arith.mulf %194, %195 : vector<1x256xf32>
    %cst_158 = arith.constant dense<0.000000e+00> : vector<1x256xf32>
    %197 = tpu.matmul %191, %193, %cst_158 {dimension_numbers = #tpu.dot_dimension_numbers<[1], [0], [0], [1], [0, 0, 1, 1], [], []>} : vector<1x256xf32>, vector<256x256xf32>, vector<1x256xf32> -> vector<1x256xf32>
    %cst_159 = arith.constant 7.812500e-03 : f32
    %198 = vector.broadcast %cst_159 : f32 to vector<1x256xf32>
    %199 = arith.mulf %197, %198 : vector<1x256xf32>
    %200 = arith.mulf %196, %196 : vector<1x256xf32>
    %201 = arith.subf %199, %200 : vector<1x256xf32>
    %c1_160 = arith.constant 1 : index
    %c0_161 = arith.constant 0 : index
    %c0_162 = arith.constant 0 : index
    %202 = vector.load %arg4[%c1_160, %c0_161, %c0_162] : memref<4x2x256xf32, #tpu.memory_space<vmem>>, vector<1x2x256xf32>
    %203 = vector.shape_cast %202 : vector<1x2x256xf32> to vector<2x256xf32>
    %204 = vector.extract_strided_slice %203 {offsets = [0, 0], sizes = [1, 256], strides = [1, 1]} : vector<2x256xf32> to vector<1x256xf32>
    %cst_163 = arith.constant 9.99999974E-6 : f32
    %205 = vector.broadcast %cst_163 : f32 to vector<1x256xf32>
    %206 = arith.addf %201, %205 : vector<1x256xf32>
    %207 = math.rsqrt %206 : vector<1x256xf32>
    %208 = arith.mulf %204, %207 : vector<1x256xf32>
    %209 = vector.extract_strided_slice %203 {offsets = [1, 0], sizes = [1, 256], strides = [1, 1]} : vector<2x256xf32> to vector<1x256xf32>
    %210 = arith.mulf %196, %208 : vector<1x256xf32>
    %211 = arith.subf %209, %210 : vector<1x256xf32>
    %c0_164 = arith.constant 0 : index
    %c0_165 = arith.constant 0 : index
    %212 = vector.load %arg7[%c0_164, %c0_165] : memref<64x256xf32, #tpu.memory_space<vmem>>, vector<1x256xf32>
    %213 = arith.mulf %212, %208 : vector<1x256xf32>
    %214 = arith.addf %213, %211 : vector<1x256xf32>
    %cst_166 = arith.constant 0.000000e+00 : f32
    %215 = vector.broadcast %cst_166 : f32 to vector<1x256xf32>
    %216 = arith.maximumf %214, %215 : vector<1x256xf32>
    %217 = arith.truncf %216 : vector<1x256xf32> to vector<1x256xbf16>
    %c2_167 = arith.constant 2 : index
    %c0_168 = arith.constant 0 : index
    %218 = vector.load %arg9[%c2_167, %c0_168] : memref<38x256xbf16, #tpu.memory_space<vmem>>, vector<1x256xbf16>
    tpu.vector_store %arg9[%c2_167, %c0_168], %217 {strides = array<i32>} : memref<38x256xbf16, #tpu.memory_space<vmem>>, vector<1x256xbf16>,
    %c1_169 = arith.constant 1 : index
    %c0_170 = arith.constant 0 : index
    %219 = vector.load %arg7[%c1_169, %c0_170] : memref<64x256xf32, #tpu.memory_space<vmem>>, vector<1x256xf32>
    %220 = arith.mulf %219, %208 : vector<1x256xf32>
    %221 = arith.addf %220, %211 : vector<1x256xf32>
    %cst_171 = arith.constant 0.000000e+00 : f32
    %222 = vector.broadcast %cst_171 : f32 to vector<1x256xf32>
    %223 = arith.maximumf %221, %222 : vector<1x256xf32>
    %224 = arith.truncf %223 : vector<1x256xf32> to vector<1x256xbf16>
    %c4_172 = arith.constant 4 : index
    %c0_173 = arith.constant 0 : index
    %225 = vector.load %arg9[%c4_172, %c0_173] : memref<38x256xbf16, #tpu.memory_space<vmem>>, vector<1x256xbf16>
    tpu.vector_store %arg9[%c4_172, %c0_173], %224 {strides = array<i32>} : memref<38x256xbf16, #tpu.memory_space<vmem>>, vector<1x256xbf16>,
    %c2_174 = arith.constant 2 : index
    %c0_175 = arith.constant 0 : index
    %226 = vector.load %arg7[%c2_174, %c0_175] : memref<64x256xf32, #tpu.memory_space<vmem>>, vector<1x256xf32>
    %227 = arith.mulf %226, %208 : vector<1x256xf32>
    %228 = arith.addf %227, %211 : vector<1x256xf32>
    %cst_176 = arith.constant 0.000000e+00 : f32
    %229 = vector.broadcast %cst_176 : f32 to vector<1x256xf32>
    %230 = arith.maximumf %228, %229 : vector<1x256xf32>
    %231 = arith.truncf %230 : vector<1x256xf32> to vector<1x256xbf16>
    %c6_177 = arith.constant 6 : index
    %c0_178 = arith.constant 0 : index
    %232 = vector.load %arg9[%c6_177, %c0_178] : memref<38x256xbf16, #tpu.memory_space<vmem>>, vector<1x256xbf16>
    tpu.vector_store %arg9[%c6_177, %c0_178], %231 {strides = array<i32>} : memref<38x256xbf16, #tpu.memory_space<vmem>>, vector<1x256xbf16>,
    %c3_179 = arith.constant 3 : index
    %c0_180 = arith.constant 0 : index
    %233 = vector.load %arg7[%c3_179, %c0_180] : memref<64x256xf32, #tpu.memory_space<vmem>>, vector<1x256xf32>
    %234 = arith.mulf %233, %208 : vector<1x256xf32>
    %235 = arith.addf %234, %211 : vector<1x256xf32>
    %cst_181 = arith.constant 0.000000e+00 : f32
    %236 = vector.broadcast %cst_181 : f32 to vector<1x256xf32>
    %237 = arith.maximumf %235, %236 : vector<1x256xf32>
    %238 = arith.truncf %237 : vector<1x256xf32> to vector<1x256xbf16>
    %c8_182 = arith.constant 8 : index
    %c0_183 = arith.constant 0 : index
    %239 = vector.load %arg9[%c8_182, %c0_183] : memref<38x256xbf16, #tpu.memory_space<vmem>>, vector<1x256xbf16>
    tpu.vector_store %arg9[%c8_182, %c0_183], %238 {strides = array<i32>} : memref<38x256xbf16, #tpu.memory_space<vmem>>, vector<1x256xbf16>,
    %c4_184 = arith.constant 4 : index
    %c0_185 = arith.constant 0 : index
    %240 = vector.load %arg7[%c4_184, %c0_185] : memref<64x256xf32, #tpu.memory_space<vmem>>, vector<1x256xf32>
    %241 = arith.mulf %240, %208 : vector<1x256xf32>
    %242 = arith.addf %241, %211 : vector<1x256xf32>
    %cst_186 = arith.constant 0.000000e+00 : f32
    %243 = vector.broadcast %cst_186 : f32 to vector<1x256xf32>
    %244 = arith.maximumf %242, %243 : vector<1x256xf32>
    %245 = arith.truncf %244 : vector<1x256xf32> to vector<1x256xbf16>
    %c10 = arith.constant 10 : index
    %c0_187 = arith.constant 0 : index
    %246 = vector.load %arg9[%c10, %c0_187] : memref<38x256xbf16, #tpu.memory_space<vmem>>, vector<1x256xbf16>
    tpu.vector_store %arg9[%c10, %c0_187], %245 {strides = array<i32>} : memref<38x256xbf16, #tpu.memory_space<vmem>>, vector<1x256xbf16>,
    %c5_188 = arith.constant 5 : index
    %c0_189 = arith.constant 0 : index
    %247 = vector.load %arg7[%c5_188, %c0_189] : memref<64x256xf32, #tpu.memory_space<vmem>>, vector<1x256xf32>
    %248 = arith.mulf %247, %208 : vector<1x256xf32>
    %249 = arith.addf %248, %211 : vector<1x256xf32>
    %cst_190 = arith.constant 0.000000e+00 : f32
    %250 = vector.broadcast %cst_190 : f32 to vector<1x256xf32>
    %251 = arith.maximumf %249, %250 : vector<1x256xf32>
    %252 = arith.truncf %251 : vector<1x256xf32> to vector<1x256xbf16>
    %c12_191 = arith.constant 12 : index
    %c0_192 = arith.constant 0 : index
    %253 = vector.load %arg9[%c12_191, %c0_192] : memref<38x256xbf16, #tpu.memory_space<vmem>>, vector<1x256xbf16>
    tpu.vector_store %arg9[%c12_191, %c0_192], %252 {strides = array<i32>} : memref<38x256xbf16, #tpu.memory_space<vmem>>, vector<1x256xbf16>,
    %c6_193 = arith.constant 6 : index
    %c0_194 = arith.constant 0 : index
    %254 = vector.load %arg7[%c6_193, %c0_194] : memref<64x256xf32, #tpu.memory_space<vmem>>, vector<1x256xf32>
    %255 = arith.mulf %254, %208 : vector<1x256xf32>
    %256 = arith.addf %255, %211 : vector<1x256xf32>
    %cst_195 = arith.constant 0.000000e+00 : f32
    %257 = vector.broadcast %cst_195 : f32 to vector<1x256xf32>
    %258 = arith.maximumf %256, %257 : vector<1x256xf32>
    %259 = arith.truncf %258 : vector<1x256xf32> to vector<1x256xbf16>
    %c14_196 = arith.constant 14 : index
    %c0_197 = arith.constant 0 : index
    %260 = vector.load %arg9[%c14_196, %c0_197] : memref<38x256xbf16, #tpu.memory_space<vmem>>, vector<1x256xbf16>
    tpu.vector_store %arg9[%c14_196, %c0_197], %259 {strides = array<i32>} : memref<38x256xbf16, #tpu.memory_space<vmem>>, vector<1x256xbf16>,
    %c7_198 = arith.constant 7 : index
    %c0_199 = arith.constant 0 : index
    %261 = vector.load %arg7[%c7_198, %c0_199] : memref<64x256xf32, #tpu.memory_space<vmem>>, vector<1x256xf32>
    %262 = arith.mulf %261, %208 : vector<1x256xf32>
    %263 = arith.addf %262, %211 : vector<1x256xf32>
    %cst_200 = arith.constant 0.000000e+00 : f32
    %264 = vector.broadcast %cst_200 : f32 to vector<1x256xf32>
    %265 = arith.maximumf %263, %264 : vector<1x256xf32>
    %266 = arith.truncf %265 : vector<1x256xf32> to vector<1x256xbf16>
    %c16 = arith.constant 16 : index
    %c0_201 = arith.constant 0 : index
    %267 = vector.load %arg9[%c16, %c0_201] : memref<38x256xbf16, #tpu.memory_space<vmem>>, vector<1x256xbf16>
    tpu.vector_store %arg9[%c16, %c0_201], %266 {strides = array<i32>} : memref<38x256xbf16, #tpu.memory_space<vmem>>, vector<1x256xbf16>,
    %c8_202 = arith.constant 8 : index
    %c0_203 = arith.constant 0 : index
    %268 = vector.load %arg7[%c8_202, %c0_203] : memref<64x256xf32, #tpu.memory_space<vmem>>, vector<1x256xf32>
    %269 = arith.mulf %268, %208 : vector<1x256xf32>
    %270 = arith.addf %269, %211 : vector<1x256xf32>
    %cst_204 = arith.constant 0.000000e+00 : f32
    %271 = vector.broadcast %cst_204 : f32 to vector<1x256xf32>
    %272 = arith.maximumf %270, %271 : vector<1x256xf32>
    %273 = arith.truncf %272 : vector<1x256xf32> to vector<1x256xbf16>
    %c21 = arith.constant 21 : index
    %c0_205 = arith.constant 0 : index
    %274 = vector.load %arg9[%c21, %c0_205] : memref<38x256xbf16, #tpu.memory_space<vmem>>, vector<1x256xbf16>
    tpu.vector_store %arg9[%c21, %c0_205], %273 {strides = array<i32>} : memref<38x256xbf16, #tpu.memory_space<vmem>>, vector<1x256xbf16>,
    %c9 = arith.constant 9 : index
    %c0_206 = arith.constant 0 : index
    %275 = vector.load %arg7[%c9, %c0_206] : memref<64x256xf32, #tpu.memory_space<vmem>>, vector<1x256xf32>
    %276 = arith.mulf %275, %208 : vector<1x256xf32>
    %277 = arith.addf %276, %211 : vector<1x256xf32>
    %cst_207 = arith.constant 0.000000e+00 : f32
    %278 = vector.broadcast %cst_207 : f32 to vector<1x256xf32>
    %279 = arith.maximumf %277, %278 : vector<1x256xf32>
    %280 = arith.truncf %279 : vector<1x256xf32> to vector<1x256xbf16>
    %c23 = arith.constant 23 : index
    %c0_208 = arith.constant 0 : index
    %281 = vector.load %arg9[%c23, %c0_208] : memref<38x256xbf16, #tpu.memory_space<vmem>>, vector<1x256xbf16>
    tpu.vector_store %arg9[%c23, %c0_208], %280 {strides = array<i32>} : memref<38x256xbf16, #tpu.memory_space<vmem>>, vector<1x256xbf16>,
    %c10_209 = arith.constant 10 : index
    %c0_210 = arith.constant 0 : index
    %282 = vector.load %arg7[%c10_209, %c0_210] : memref<64x256xf32, #tpu.memory_space<vmem>>, vector<1x256xf32>
    %283 = arith.mulf %282, %208 : vector<1x256xf32>
    %284 = arith.addf %283, %211 : vector<1x256xf32>
    %cst_211 = arith.constant 0.000000e+00 : f32
    %285 = vector.broadcast %cst_211 : f32 to vector<1x256xf32>
    %286 = arith.maximumf %284, %285 : vector<1x256xf32>
    %287 = arith.truncf %286 : vector<1x256xf32> to vector<1x256xbf16>
    %c25 = arith.constant 25 : index
    %c0_212 = arith.constant 0 : index
    %288 = vector.load %arg9[%c25, %c0_212] : memref<38x256xbf16, #tpu.memory_space<vmem>>, vector<1x256xbf16>
    tpu.vector_store %arg9[%c25, %c0_212], %287 {strides = array<i32>} : memref<38x256xbf16, #tpu.memory_space<vmem>>, vector<1x256xbf16>,
    %c11_213 = arith.constant 11 : index
    %c0_214 = arith.constant 0 : index
    %289 = vector.load %arg7[%c11_213, %c0_214] : memref<64x256xf32, #tpu.memory_space<vmem>>, vector<1x256xf32>
    %290 = arith.mulf %289, %208 : vector<1x256xf32>
    %291 = arith.addf %290, %211 : vector<1x256xf32>
    %cst_215 = arith.constant 0.000000e+00 : f32
    %292 = vector.broadcast %cst_215 : f32 to vector<1x256xf32>
    %293 = arith.maximumf %291, %292 : vector<1x256xf32>
    %294 = arith.truncf %293 : vector<1x256xf32> to vector<1x256xbf16>
    %c27 = arith.constant 27 : index
    %c0_216 = arith.constant 0 : index
    %295 = vector.load %arg9[%c27, %c0_216] : memref<38x256xbf16, #tpu.memory_space<vmem>>, vector<1x256xbf16>
    tpu.vector_store %arg9[%c27, %c0_216], %294 {strides = array<i32>} : memref<38x256xbf16, #tpu.memory_space<vmem>>, vector<1x256xbf16>,
    %c12_217 = arith.constant 12 : index
    %c0_218 = arith.constant 0 : index
    %296 = vector.load %arg7[%c12_217, %c0_218] : memref<64x256xf32, #tpu.memory_space<vmem>>, vector<1x256xf32>
    %297 = arith.mulf %296, %208 : vector<1x256xf32>
    %298 = arith.addf %297, %211 : vector<1x256xf32>
    %cst_219 = arith.constant 0.000000e+00 : f32
    %299 = vector.broadcast %cst_219 : f32 to vector<1x256xf32>
    %300 = arith.maximumf %298, %299 : vector<1x256xf32>
    %301 = arith.truncf %300 : vector<1x256xf32> to vector<1x256xbf16>
    %c29 = arith.constant 29 : index
    %c0_220 = arith.constant 0 : index
    %302 = vector.load %arg9[%c29, %c0_220] : memref<38x256xbf16, #tpu.memory_space<vmem>>, vector<1x256xbf16>
    tpu.vector_store %arg9[%c29, %c0_220], %301 {strides = array<i32>} : memref<38x256xbf16, #tpu.memory_space<vmem>>, vector<1x256xbf16>,
    %c13_221 = arith.constant 13 : index
    %c0_222 = arith.constant 0 : index
    %303 = vector.load %arg7[%c13_221, %c0_222] : memref<64x256xf32, #tpu.memory_space<vmem>>, vector<1x256xf32>
    %304 = arith.mulf %303, %208 : vector<1x256xf32>
    %305 = arith.addf %304, %211 : vector<1x256xf32>
    %cst_223 = arith.constant 0.000000e+00 : f32
    %306 = vector.broadcast %cst_223 : f32 to vector<1x256xf32>
    %307 = arith.maximumf %305, %306 : vector<1x256xf32>
    %308 = arith.truncf %307 : vector<1x256xf32> to vector<1x256xbf16>
    %c31 = arith.constant 31 : index
    %c0_224 = arith.constant 0 : index
    %309 = vector.load %arg9[%c31, %c0_224] : memref<38x256xbf16, #tpu.memory_space<vmem>>, vector<1x256xbf16>
    tpu.vector_store %arg9[%c31, %c0_224], %308 {strides = array<i32>} : memref<38x256xbf16, #tpu.memory_space<vmem>>, vector<1x256xbf16>,
    %c14_225 = arith.constant 14 : index
    %c0_226 = arith.constant 0 : index
    %310 = vector.load %arg7[%c14_225, %c0_226] : memref<64x256xf32, #tpu.memory_space<vmem>>, vector<1x256xf32>
    %311 = arith.mulf %310, %208 : vector<1x256xf32>
    %312 = arith.addf %311, %211 : vector<1x256xf32>
    %cst_227 = arith.constant 0.000000e+00 : f32
    %313 = vector.broadcast %cst_227 : f32 to vector<1x256xf32>
    %314 = arith.maximumf %312, %313 : vector<1x256xf32>
    %315 = arith.truncf %314 : vector<1x256xf32> to vector<1x256xbf16>
    %c33 = arith.constant 33 : index
    %c0_228 = arith.constant 0 : index
    %316 = vector.load %arg9[%c33, %c0_228] : memref<38x256xbf16, #tpu.memory_space<vmem>>, vector<1x256xbf16>
    tpu.vector_store %arg9[%c33, %c0_228], %315 {strides = array<i32>} : memref<38x256xbf16, #tpu.memory_space<vmem>>, vector<1x256xbf16>,
    %c15_229 = arith.constant 15 : index
    %c0_230 = arith.constant 0 : index
    %317 = vector.load %arg7[%c15_229, %c0_230] : memref<64x256xf32, #tpu.memory_space<vmem>>, vector<1x256xf32>
    %318 = arith.mulf %317, %208 : vector<1x256xf32>
    %319 = arith.addf %318, %211 : vector<1x256xf32>
    %cst_231 = arith.constant 0.000000e+00 : f32
    %320 = vector.broadcast %cst_231 : f32 to vector<1x256xf32>
    %321 = arith.maximumf %319, %320 : vector<1x256xf32>
    %322 = arith.truncf %321 : vector<1x256xf32> to vector<1x256xbf16>
    %c35 = arith.constant 35 : index
    %c0_232 = arith.constant 0 : index
    %323 = vector.load %arg9[%c35, %c0_232] : memref<38x256xbf16, #tpu.memory_space<vmem>>, vector<1x256xbf16>
    tpu.vector_store %arg9[%c35, %c0_232], %322 {strides = array<i32>} : memref<38x256xbf16, #tpu.memory_space<vmem>>, vector<1x256xbf16>,
    %cst_233 = arith.constant 0.000000e+00 : f32
    %324 = vector.broadcast %cst_233 : f32 to vector<1x256xf32>
    %cst_234 = arith.constant 0.000000e+00 : f32
    %325 = vector.broadcast %cst_234 : f32 to vector<1x256xf32>
    %cst_235 = arith.constant 0.000000e+00 : f32
    %326 = vector.broadcast %cst_235 : f32 to vector<16x256xf32>
    %c3_236 = arith.constant 3 : index
    %c0_237 = arith.constant 0 : index
    %327 = vector.load %arg9[%c3_236, %c0_237] : memref<38x256xbf16, #tpu.memory_space<vmem>>, vector<16x256xbf16>
    %c1_238 = arith.constant 1 : index
    %c0_239 = arith.constant 0 : index
    %c0_240 = arith.constant 0 : index
    %c0_241 = arith.constant 0 : index
    %328 = vector.load %arg2[%c1_238, %c0_239, %c0_240, %c0_241] : memref<3x4x256x256xbf16, #tpu.memory_space<vmem>>, vector<1x1x256x256xbf16>
    %329 = vector.shape_cast %328 : vector<1x1x256x256xbf16> to vector<256x256xbf16>
    %cst_242 = arith.constant dense<0.000000e+00> : vector<16x256xf32>
    %330 = tpu.matmul %327, %329, %cst_242 {dimension_numbers = #tpu.dot_dimension_numbers<[1], [0], [0], [1], [0, 0, 1, 1], [], []>} : vector<16x256xbf16>, vector<256x256xbf16>, vector<16x256xf32> -> vector<16x256xf32>
    %331 = arith.addf %326, %330 : vector<16x256xf32>
    %c2_243 = arith.constant 2 : index
    %c0_244 = arith.constant 0 : index
    %332 = vector.load %arg9[%c2_243, %c0_244] : memref<38x256xbf16, #tpu.memory_space<vmem>>, vector<16x256xbf16>
    %c1_245 = arith.constant 1 : index
    %c1_246 = arith.constant 1 : index
    %c0_247 = arith.constant 0 : index
    %c0_248 = arith.constant 0 : index
    %333 = vector.load %arg2[%c1_245, %c1_246, %c0_247, %c0_248] : memref<3x4x256x256xbf16, #tpu.memory_space<vmem>>, vector<1x1x256x256xbf16>
    %334 = vector.shape_cast %333 : vector<1x1x256x256xbf16> to vector<256x256xbf16>
    %cst_249 = arith.constant dense<0.000000e+00> : vector<16x256xf32>
    %335 = tpu.matmul %332, %334, %cst_249 {dimension_numbers = #tpu.dot_dimension_numbers<[1], [0], [0], [1], [0, 0, 1, 1], [], []>} : vector<16x256xbf16>, vector<256x256xbf16>, vector<16x256xf32> -> vector<16x256xf32>
    %336 = arith.addf %331, %335 : vector<16x256xf32>
    %c1_250 = arith.constant 1 : index
    %c0_251 = arith.constant 0 : index
    %337 = vector.load %arg9[%c1_250, %c0_251] : memref<38x256xbf16, #tpu.memory_space<vmem>>, vector<16x256xbf16>
    %c1_252 = arith.constant 1 : index
    %c2_253 = arith.constant 2 : index
    %c0_254 = arith.constant 0 : index
    %c0_255 = arith.constant 0 : index
    %338 = vector.load %arg2[%c1_252, %c2_253, %c0_254, %c0_255] : memref<3x4x256x256xbf16, #tpu.memory_space<vmem>>, vector<1x1x256x256xbf16>
    %339 = vector.shape_cast %338 : vector<1x1x256x256xbf16> to vector<256x256xbf16>
    %cst_256 = arith.constant dense<0.000000e+00> : vector<16x256xf32>
    %340 = tpu.matmul %337, %339, %cst_256 {dimension_numbers = #tpu.dot_dimension_numbers<[1], [0], [0], [1], [0, 0, 1, 1], [], []>} : vector<16x256xbf16>, vector<256x256xbf16>, vector<16x256xf32> -> vector<16x256xf32>
    %341 = arith.addf %336, %340 : vector<16x256xf32>
    %c0_257 = arith.constant 0 : index
    %c0_258 = arith.constant 0 : index
    %342 = vector.load %arg9[%c0_257, %c0_258] : memref<38x256xbf16, #tpu.memory_space<vmem>>, vector<16x256xbf16>
    %c1_259 = arith.constant 1 : index
    %c3_260 = arith.constant 3 : index
    %c0_261 = arith.constant 0 : index
    %c0_262 = arith.constant 0 : index
    %343 = vector.load %arg2[%c1_259, %c3_260, %c0_261, %c0_262] : memref<3x4x256x256xbf16, #tpu.memory_space<vmem>>, vector<1x1x256x256xbf16>
    %344 = vector.shape_cast %343 : vector<1x1x256x256xbf16> to vector<256x256xbf16>
    %cst_263 = arith.constant dense<0.000000e+00> : vector<16x256xf32>
    %345 = tpu.matmul %342, %344, %cst_263 {dimension_numbers = #tpu.dot_dimension_numbers<[1], [0], [0], [1], [0, 0, 1, 1], [], []>} : vector<16x256xbf16>, vector<256x256xbf16>, vector<16x256xf32> -> vector<16x256xf32>
    %346 = arith.addf %341, %345 : vector<16x256xf32>
    %c0_264 = arith.constant 0 : index
    %c0_265 = arith.constant 0 : index
    %347 = vector.load %arg7[%c0_264, %c0_265] : memref<64x256xf32, #tpu.memory_space<vmem>>, vector<16x256xf32>
    tpu.vector_store %arg7[%c0_264, %c0_265], %346 {strides = array<i32>} : memref<64x256xf32, #tpu.memory_space<vmem>>, vector<16x256xf32>,
    %cst_266 = arith.constant dense<0.000000e+00> : vector<256xf32>
    %348 = vector.multi_reduction <add>, %346, %cst_266 [0] : vector<16x256xf32> to vector<256xf32>
    %349 = vector.shape_cast %348 : vector<256xf32> to vector<1x256xf32>
    %350 = arith.addf %324, %349 : vector<1x256xf32>
    %351 = arith.mulf %346, %346 : vector<16x256xf32>
    %cst_267 = arith.constant dense<0.000000e+00> : vector<256xf32>
    %352 = vector.multi_reduction <add>, %351, %cst_267 [0] : vector<16x256xf32> to vector<256xf32>
    %353 = vector.shape_cast %352 : vector<256xf32> to vector<1x256xf32>
    %354 = arith.addf %325, %353 : vector<1x256xf32>
    %cst_268 = arith.constant 0.000000e+00 : f32
    %355 = vector.broadcast %cst_268 : f32 to vector<16x256xf32>
    %c22 = arith.constant 22 : index
    %c0_269 = arith.constant 0 : index
    %356 = vector.load %arg9[%c22, %c0_269] : memref<38x256xbf16, #tpu.memory_space<vmem>>, vector<16x256xbf16>
    %c1_270 = arith.constant 1 : index
    %c0_271 = arith.constant 0 : index
    %c0_272 = arith.constant 0 : index
    %c0_273 = arith.constant 0 : index
    %357 = vector.load %arg2[%c1_270, %c0_271, %c0_272, %c0_273] : memref<3x4x256x256xbf16, #tpu.memory_space<vmem>>, vector<1x1x256x256xbf16>
    %358 = vector.shape_cast %357 : vector<1x1x256x256xbf16> to vector<256x256xbf16>
    %cst_274 = arith.constant dense<0.000000e+00> : vector<16x256xf32>
    %359 = tpu.matmul %356, %358, %cst_274 {dimension_numbers = #tpu.dot_dimension_numbers<[1], [0], [0], [1], [0, 0, 1, 1], [], []>} : vector<16x256xbf16>, vector<256x256xbf16>, vector<16x256xf32> -> vector<16x256xf32>
    %360 = arith.addf %355, %359 : vector<16x256xf32>
    %c21_275 = arith.constant 21 : index
    %c0_276 = arith.constant 0 : index
    %361 = vector.load %arg9[%c21_275, %c0_276] : memref<38x256xbf16, #tpu.memory_space<vmem>>, vector<16x256xbf16>
    %c1_277 = arith.constant 1 : index
    %c1_278 = arith.constant 1 : index
    %c0_279 = arith.constant 0 : index
    %c0_280 = arith.constant 0 : index
    %362 = vector.load %arg2[%c1_277, %c1_278, %c0_279, %c0_280] : memref<3x4x256x256xbf16, #tpu.memory_space<vmem>>, vector<1x1x256x256xbf16>
    %363 = vector.shape_cast %362 : vector<1x1x256x256xbf16> to vector<256x256xbf16>
    %cst_281 = arith.constant dense<0.000000e+00> : vector<16x256xf32>
    %364 = tpu.matmul %361, %363, %cst_281 {dimension_numbers = #tpu.dot_dimension_numbers<[1], [0], [0], [1], [0, 0, 1, 1], [], []>} : vector<16x256xbf16>, vector<256x256xbf16>, vector<16x256xf32> -> vector<16x256xf32>
    %365 = arith.addf %360, %364 : vector<16x256xf32>
    %c20 = arith.constant 20 : index
    %c0_282 = arith.constant 0 : index
    %366 = vector.load %arg9[%c20, %c0_282] : memref<38x256xbf16, #tpu.memory_space<vmem>>, vector<16x256xbf16>
    %c1_283 = arith.constant 1 : index
    %c2_284 = arith.constant 2 : index
    %c0_285 = arith.constant 0 : index
    %c0_286 = arith.constant 0 : index
    %367 = vector.load %arg2[%c1_283, %c2_284, %c0_285, %c0_286] : memref<3x4x256x256xbf16, #tpu.memory_space<vmem>>, vector<1x1x256x256xbf16>
    %368 = vector.shape_cast %367 : vector<1x1x256x256xbf16> to vector<256x256xbf16>
    %cst_287 = arith.constant dense<0.000000e+00> : vector<16x256xf32>
    %369 = tpu.matmul %366, %368, %cst_287 {dimension_numbers = #tpu.dot_dimension_numbers<[1], [0], [0], [1], [0, 0, 1, 1], [], []>} : vector<16x256xbf16>, vector<256x256xbf16>, vector<16x256xf32> -> vector<16x256xf32>
    %370 = arith.addf %365, %369 : vector<16x256xf32>
    %c19_288 = arith.constant 19 : index
    %c0_289 = arith.constant 0 : index
    %371 = vector.load %arg9[%c19_288, %c0_289] : memref<38x256xbf16, #tpu.memory_space<vmem>>, vector<16x256xbf16>
    %c1_290 = arith.constant 1 : index
    %c3_291 = arith.constant 3 : index
    %c0_292 = arith.constant 0 : index
    %c0_293 = arith.constant 0 : index
    %372 = vector.load %arg2[%c1_290, %c3_291, %c0_292, %c0_293] : memref<3x4x256x256xbf16, #tpu.memory_space<vmem>>, vector<1x1x256x256xbf16>
    %373 = vector.shape_cast %372 : vector<1x1x256x256xbf16> to vector<256x256xbf16>
    %cst_294 = arith.constant dense<0.000000e+00> : vector<16x256xf32>
    %374 = tpu.matmul %371, %373, %cst_294 {dimension_numbers = #tpu.dot_dimension_numbers<[1], [0], [0], [1], [0, 0, 1, 1], [], []>} : vector<16x256xbf16>, vector<256x256xbf16>, vector<16x256xf32> -> vector<16x256xf32>
    %375 = arith.addf %370, %374 : vector<16x256xf32>
    %c16_295 = arith.constant 16 : index
    %c0_296 = arith.constant 0 : index
    %376 = vector.load %arg7[%c16_295, %c0_296] : memref<64x256xf32, #tpu.memory_space<vmem>>, vector<16x256xf32>
    tpu.vector_store %arg7[%c16_295, %c0_296], %375 {strides = array<i32>} : memref<64x256xf32, #tpu.memory_space<vmem>>, vector<16x256xf32>,
    %cst_297 = arith.constant dense<0.000000e+00> : vector<256xf32>
    %377 = vector.multi_reduction <add>, %375, %cst_297 [0] : vector<16x256xf32> to vector<256xf32>
    %378 = vector.shape_cast %377 : vector<256xf32> to vector<1x256xf32>
    %379 = arith.addf %350, %378 : vector<1x256xf32>
    %380 = arith.mulf %375, %375 : vector<16x256xf32>
    %cst_298 = arith.constant dense<0.000000e+00> : vector<256xf32>
    %381 = vector.multi_reduction <add>, %380, %cst_298 [0] : vector<16x256xf32> to vector<256xf32>
    %382 = vector.shape_cast %381 : vector<256xf32> to vector<1x256xf32>
    %383 = arith.addf %354, %382 : vector<1x256xf32>
    %c2_299 = arith.constant 2 : index
    %c0_300 = arith.constant 0 : index
    %c0_301 = arith.constant 0 : index
    %384 = vector.load %arg3[%c2_299, %c0_300, %c0_301] : memref<4x256x256xf32, #tpu.memory_space<vmem>>, vector<1x256x256xf32>
    %385 = vector.shape_cast %384 : vector<1x256x256xf32> to vector<256x256xf32>
    %cst_302 = arith.constant dense<0.000000e+00> : vector<1x256xf32>
    %386 = tpu.matmul %379, %385, %cst_302 {dimension_numbers = #tpu.dot_dimension_numbers<[1], [0], [0], [1], [0, 0, 1, 1], [], []>} : vector<1x256xf32>, vector<256x256xf32>, vector<1x256xf32> -> vector<1x256xf32>
    %cst_303 = arith.constant 0.001953125 : f32
    %387 = vector.broadcast %cst_303 : f32 to vector<1x256xf32>
    %388 = arith.mulf %386, %387 : vector<1x256xf32>
    %cst_304 = arith.constant dense<0.000000e+00> : vector<1x256xf32>
    %389 = tpu.matmul %383, %385, %cst_304 {dimension_numbers = #tpu.dot_dimension_numbers<[1], [0], [0], [1], [0, 0, 1, 1], [], []>} : vector<1x256xf32>, vector<256x256xf32>, vector<1x256xf32> -> vector<1x256xf32>
    %cst_305 = arith.constant 0.001953125 : f32
    %390 = vector.broadcast %cst_305 : f32 to vector<1x256xf32>
    %391 = arith.mulf %389, %390 : vector<1x256xf32>
    %392 = arith.mulf %388, %388 : vector<1x256xf32>
    %393 = arith.subf %391, %392 : vector<1x256xf32>
    %c2_306 = arith.constant 2 : index
    %c0_307 = arith.constant 0 : index
    %c0_308 = arith.constant 0 : index
    %394 = vector.load %arg4[%c2_306, %c0_307, %c0_308] : memref<4x2x256xf32, #tpu.memory_space<vmem>>, vector<1x2x256xf32>
    %395 = vector.shape_cast %394 : vector<1x2x256xf32> to vector<2x256xf32>
    %396 = vector.extract_strided_slice %395 {offsets = [0, 0], sizes = [1, 256], strides = [1, 1]} : vector<2x256xf32> to vector<1x256xf32>
    %cst_309 = arith.constant 9.99999974E-6 : f32
    %397 = vector.broadcast %cst_309 : f32 to vector<1x256xf32>
    %398 = arith.addf %393, %397 : vector<1x256xf32>
    %399 = math.rsqrt %398 : vector<1x256xf32>
    %400 = arith.mulf %396, %399 : vector<1x256xf32>
    %401 = vector.extract_strided_slice %395 {offsets = [1, 0], sizes = [1, 256], strides = [1, 1]} : vector<2x256xf32> to vector<1x256xf32>
    %402 = arith.mulf %388, %400 : vector<1x256xf32>
    %403 = arith.subf %401, %402 : vector<1x256xf32>
    %c0_310 = arith.constant 0 : index
    %c0_311 = arith.constant 0 : index
    %404 = vector.load %arg7[%c0_310, %c0_311] : memref<64x256xf32, #tpu.memory_space<vmem>>, vector<1x256xf32>
    %405 = arith.mulf %404, %400 : vector<1x256xf32>
    %406 = arith.addf %405, %403 : vector<1x256xf32>
    %cst_312 = arith.constant 0.000000e+00 : f32
    %407 = vector.broadcast %cst_312 : f32 to vector<1x256xf32>
    %408 = arith.maximumf %406, %407 : vector<1x256xf32>
    %409 = arith.truncf %408 : vector<1x256xf32> to vector<1x256xbf16>
    %c2_313 = arith.constant 2 : index
    %c0_314 = arith.constant 0 : index
    %410 = vector.load %arg10[%c2_313, %c0_314] : memref<70x256xbf16, #tpu.memory_space<vmem>>, vector<1x256xbf16>
    tpu.vector_store %arg10[%c2_313, %c0_314], %409 {strides = array<i32>} : memref<70x256xbf16, #tpu.memory_space<vmem>>, vector<1x256xbf16>,
    %c1_315 = arith.constant 1 : index
    %c0_316 = arith.constant 0 : index
    %411 = vector.load %arg7[%c1_315, %c0_316] : memref<64x256xf32, #tpu.memory_space<vmem>>, vector<1x256xf32>
    %412 = arith.mulf %411, %400 : vector<1x256xf32>
    %413 = arith.addf %412, %403 : vector<1x256xf32>
    %cst_317 = arith.constant 0.000000e+00 : f32
    %414 = vector.broadcast %cst_317 : f32 to vector<1x256xf32>
    %415 = arith.maximumf %413, %414 : vector<1x256xf32>
    %416 = arith.truncf %415 : vector<1x256xf32> to vector<1x256xbf16>
    %c4_318 = arith.constant 4 : index
    %c0_319 = arith.constant 0 : index
    %417 = vector.load %arg10[%c4_318, %c0_319] : memref<70x256xbf16, #tpu.memory_space<vmem>>, vector<1x256xbf16>
    tpu.vector_store %arg10[%c4_318, %c0_319], %416 {strides = array<i32>} : memref<70x256xbf16, #tpu.memory_space<vmem>>, vector<1x256xbf16>,
    %c2_320 = arith.constant 2 : index
    %c0_321 = arith.constant 0 : index
    %418 = vector.load %arg7[%c2_320, %c0_321] : memref<64x256xf32, #tpu.memory_space<vmem>>, vector<1x256xf32>
    %419 = arith.mulf %418, %400 : vector<1x256xf32>
    %420 = arith.addf %419, %403 : vector<1x256xf32>
    %cst_322 = arith.constant 0.000000e+00 : f32
    %421 = vector.broadcast %cst_322 : f32 to vector<1x256xf32>
    %422 = arith.maximumf %420, %421 : vector<1x256xf32>
    %423 = arith.truncf %422 : vector<1x256xf32> to vector<1x256xbf16>
    %c6_323 = arith.constant 6 : index
    %c0_324 = arith.constant 0 : index
    %424 = vector.load %arg10[%c6_323, %c0_324] : memref<70x256xbf16, #tpu.memory_space<vmem>>, vector<1x256xbf16>
    tpu.vector_store %arg10[%c6_323, %c0_324], %423 {strides = array<i32>} : memref<70x256xbf16, #tpu.memory_space<vmem>>, vector<1x256xbf16>,
    %c3_325 = arith.constant 3 : index
    %c0_326 = arith.constant 0 : index
    %425 = vector.load %arg7[%c3_325, %c0_326] : memref<64x256xf32, #tpu.memory_space<vmem>>, vector<1x256xf32>
    %426 = arith.mulf %425, %400 : vector<1x256xf32>
    %427 = arith.addf %426, %403 : vector<1x256xf32>
    %cst_327 = arith.constant 0.000000e+00 : f32
    %428 = vector.broadcast %cst_327 : f32 to vector<1x256xf32>
    %429 = arith.maximumf %427, %428 : vector<1x256xf32>
    %430 = arith.truncf %429 : vector<1x256xf32> to vector<1x256xbf16>
    %c8_328 = arith.constant 8 : index
    %c0_329 = arith.constant 0 : index
    %431 = vector.load %arg10[%c8_328, %c0_329] : memref<70x256xbf16, #tpu.memory_space<vmem>>, vector<1x256xbf16>
    tpu.vector_store %arg10[%c8_328, %c0_329], %430 {strides = array<i32>} : memref<70x256xbf16, #tpu.memory_space<vmem>>, vector<1x256xbf16>,
    %c4_330 = arith.constant 4 : index
    %c0_331 = arith.constant 0 : index
    %432 = vector.load %arg7[%c4_330, %c0_331] : memref<64x256xf32, #tpu.memory_space<vmem>>, vector<1x256xf32>
    %433 = arith.mulf %432, %400 : vector<1x256xf32>
    %434 = arith.addf %433, %403 : vector<1x256xf32>
    %cst_332 = arith.constant 0.000000e+00 : f32
    %435 = vector.broadcast %cst_332 : f32 to vector<1x256xf32>
    %436 = arith.maximumf %434, %435 : vector<1x256xf32>
    %437 = arith.truncf %436 : vector<1x256xf32> to vector<1x256xbf16>
    %c10_333 = arith.constant 10 : index
    %c0_334 = arith.constant 0 : index
    %438 = vector.load %arg10[%c10_333, %c0_334] : memref<70x256xbf16, #tpu.memory_space<vmem>>, vector<1x256xbf16>
    tpu.vector_store %arg10[%c10_333, %c0_334], %437 {strides = array<i32>} : memref<70x256xbf16, #tpu.memory_space<vmem>>, vector<1x256xbf16>,
    %c5_335 = arith.constant 5 : index
    %c0_336 = arith.constant 0 : index
    %439 = vector.load %arg7[%c5_335, %c0_336] : memref<64x256xf32, #tpu.memory_space<vmem>>, vector<1x256xf32>
    %440 = arith.mulf %439, %400 : vector<1x256xf32>
    %441 = arith.addf %440, %403 : vector<1x256xf32>
    %cst_337 = arith.constant 0.000000e+00 : f32
    %442 = vector.broadcast %cst_337 : f32 to vector<1x256xf32>
    %443 = arith.maximumf %441, %442 : vector<1x256xf32>
    %444 = arith.truncf %443 : vector<1x256xf32> to vector<1x256xbf16>
    %c12_338 = arith.constant 12 : index
    %c0_339 = arith.constant 0 : index
    %445 = vector.load %arg10[%c12_338, %c0_339] : memref<70x256xbf16, #tpu.memory_space<vmem>>, vector<1x256xbf16>
    tpu.vector_store %arg10[%c12_338, %c0_339], %444 {strides = array<i32>} : memref<70x256xbf16, #tpu.memory_space<vmem>>, vector<1x256xbf16>,
    %c6_340 = arith.constant 6 : index
    %c0_341 = arith.constant 0 : index
    %446 = vector.load %arg7[%c6_340, %c0_341] : memref<64x256xf32, #tpu.memory_space<vmem>>, vector<1x256xf32>
    %447 = arith.mulf %446, %400 : vector<1x256xf32>
    %448 = arith.addf %447, %403 : vector<1x256xf32>
    %cst_342 = arith.constant 0.000000e+00 : f32
    %449 = vector.broadcast %cst_342 : f32 to vector<1x256xf32>
    %450 = arith.maximumf %448, %449 : vector<1x256xf32>
    %451 = arith.truncf %450 : vector<1x256xf32> to vector<1x256xbf16>
    %c14_343 = arith.constant 14 : index
    %c0_344 = arith.constant 0 : index
    %452 = vector.load %arg10[%c14_343, %c0_344] : memref<70x256xbf16, #tpu.memory_space<vmem>>, vector<1x256xbf16>
    tpu.vector_store %arg10[%c14_343, %c0_344], %451 {strides = array<i32>} : memref<70x256xbf16, #tpu.memory_space<vmem>>, vector<1x256xbf16>,
    %c7_345 = arith.constant 7 : index
    %c0_346 = arith.constant 0 : index
    %453 = vector.load %arg7[%c7_345, %c0_346] : memref<64x256xf32, #tpu.memory_space<vmem>>, vector<1x256xf32>
    %454 = arith.mulf %453, %400 : vector<1x256xf32>
    %455 = arith.addf %454, %403 : vector<1x256xf32>
    %cst_347 = arith.constant 0.000000e+00 : f32
    %456 = vector.broadcast %cst_347 : f32 to vector<1x256xf32>
    %457 = arith.maximumf %455, %456 : vector<1x256xf32>
    %458 = arith.truncf %457 : vector<1x256xf32> to vector<1x256xbf16>
    %c16_348 = arith.constant 16 : index
    %c0_349 = arith.constant 0 : index
    %459 = vector.load %arg10[%c16_348, %c0_349] : memref<70x256xbf16, #tpu.memory_space<vmem>>, vector<1x256xbf16>
    tpu.vector_store %arg10[%c16_348, %c0_349], %458 {strides = array<i32>} : memref<70x256xbf16, #tpu.memory_space<vmem>>, vector<1x256xbf16>,
    %c8_350 = arith.constant 8 : index
    %c0_351 = arith.constant 0 : index
    %460 = vector.load %arg7[%c8_350, %c0_351] : memref<64x256xf32, #tpu.memory_space<vmem>>, vector<1x256xf32>
    %461 = arith.mulf %460, %400 : vector<1x256xf32>
    %462 = arith.addf %461, %403 : vector<1x256xf32>
    %cst_352 = arith.constant 0.000000e+00 : f32
    %463 = vector.broadcast %cst_352 : f32 to vector<1x256xf32>
    %464 = arith.maximumf %462, %463 : vector<1x256xf32>
    %465 = arith.truncf %464 : vector<1x256xf32> to vector<1x256xbf16>
    %c18 = arith.constant 18 : index
    %c0_353 = arith.constant 0 : index
    %466 = vector.load %arg10[%c18, %c0_353] : memref<70x256xbf16, #tpu.memory_space<vmem>>, vector<1x256xbf16>
    tpu.vector_store %arg10[%c18, %c0_353], %465 {strides = array<i32>} : memref<70x256xbf16, #tpu.memory_space<vmem>>, vector<1x256xbf16>,
    %c9_354 = arith.constant 9 : index
    %c0_355 = arith.constant 0 : index
    %467 = vector.load %arg7[%c9_354, %c0_355] : memref<64x256xf32, #tpu.memory_space<vmem>>, vector<1x256xf32>
    %468 = arith.mulf %467, %400 : vector<1x256xf32>
    %469 = arith.addf %468, %403 : vector<1x256xf32>
    %cst_356 = arith.constant 0.000000e+00 : f32
    %470 = vector.broadcast %cst_356 : f32 to vector<1x256xf32>
    %471 = arith.maximumf %469, %470 : vector<1x256xf32>
    %472 = arith.truncf %471 : vector<1x256xf32> to vector<1x256xbf16>
    %c20_357 = arith.constant 20 : index
    %c0_358 = arith.constant 0 : index
    %473 = vector.load %arg10[%c20_357, %c0_358] : memref<70x256xbf16, #tpu.memory_space<vmem>>, vector<1x256xbf16>
    tpu.vector_store %arg10[%c20_357, %c0_358], %472 {strides = array<i32>} : memref<70x256xbf16, #tpu.memory_space<vmem>>, vector<1x256xbf16>,
    %c10_359 = arith.constant 10 : index
    %c0_360 = arith.constant 0 : index
    %474 = vector.load %arg7[%c10_359, %c0_360] : memref<64x256xf32, #tpu.memory_space<vmem>>, vector<1x256xf32>
    %475 = arith.mulf %474, %400 : vector<1x256xf32>
    %476 = arith.addf %475, %403 : vector<1x256xf32>
    %cst_361 = arith.constant 0.000000e+00 : f32
    %477 = vector.broadcast %cst_361 : f32 to vector<1x256xf32>
    %478 = arith.maximumf %476, %477 : vector<1x256xf32>
    %479 = arith.truncf %478 : vector<1x256xf32> to vector<1x256xbf16>
    %c22_362 = arith.constant 22 : index
    %c0_363 = arith.constant 0 : index
    %480 = vector.load %arg10[%c22_362, %c0_363] : memref<70x256xbf16, #tpu.memory_space<vmem>>, vector<1x256xbf16>
    tpu.vector_store %arg10[%c22_362, %c0_363], %479 {strides = array<i32>} : memref<70x256xbf16, #tpu.memory_space<vmem>>, vector<1x256xbf16>,
    %c11_364 = arith.constant 11 : index
    %c0_365 = arith.constant 0 : index
    %481 = vector.load %arg7[%c11_364, %c0_365] : memref<64x256xf32, #tpu.memory_space<vmem>>, vector<1x256xf32>
    %482 = arith.mulf %481, %400 : vector<1x256xf32>
    %483 = arith.addf %482, %403 : vector<1x256xf32>
    %cst_366 = arith.constant 0.000000e+00 : f32
    %484 = vector.broadcast %cst_366 : f32 to vector<1x256xf32>
    %485 = arith.maximumf %483, %484 : vector<1x256xf32>
    %486 = arith.truncf %485 : vector<1x256xf32> to vector<1x256xbf16>
    %c24 = arith.constant 24 : index
    %c0_367 = arith.constant 0 : index
    %487 = vector.load %arg10[%c24, %c0_367] : memref<70x256xbf16, #tpu.memory_space<vmem>>, vector<1x256xbf16>
    tpu.vector_store %arg10[%c24, %c0_367], %486 {strides = array<i32>} : memref<70x256xbf16, #tpu.memory_space<vmem>>, vector<1x256xbf16>,
    %c12_368 = arith.constant 12 : index
    %c0_369 = arith.constant 0 : index
    %488 = vector.load %arg7[%c12_368, %c0_369] : memref<64x256xf32, #tpu.memory_space<vmem>>, vector<1x256xf32>
    %489 = arith.mulf %488, %400 : vector<1x256xf32>
    %490 = arith.addf %489, %403 : vector<1x256xf32>
    %cst_370 = arith.constant 0.000000e+00 : f32
    %491 = vector.broadcast %cst_370 : f32 to vector<1x256xf32>
    %492 = arith.maximumf %490, %491 : vector<1x256xf32>
    %493 = arith.truncf %492 : vector<1x256xf32> to vector<1x256xbf16>
    %c26 = arith.constant 26 : index
    %c0_371 = arith.constant 0 : index
    %494 = vector.load %arg10[%c26, %c0_371] : memref<70x256xbf16, #tpu.memory_space<vmem>>, vector<1x256xbf16>
    tpu.vector_store %arg10[%c26, %c0_371], %493 {strides = array<i32>} : memref<70x256xbf16, #tpu.memory_space<vmem>>, vector<1x256xbf16>,
    %c13_372 = arith.constant 13 : index
    %c0_373 = arith.constant 0 : index
    %495 = vector.load %arg7[%c13_372, %c0_373] : memref<64x256xf32, #tpu.memory_space<vmem>>, vector<1x256xf32>
    %496 = arith.mulf %495, %400 : vector<1x256xf32>
    %497 = arith.addf %496, %403 : vector<1x256xf32>
    %cst_374 = arith.constant 0.000000e+00 : f32
    %498 = vector.broadcast %cst_374 : f32 to vector<1x256xf32>
    %499 = arith.maximumf %497, %498 : vector<1x256xf32>
    %500 = arith.truncf %499 : vector<1x256xf32> to vector<1x256xbf16>
    %c28 = arith.constant 28 : index
    %c0_375 = arith.constant 0 : index
    %501 = vector.load %arg10[%c28, %c0_375] : memref<70x256xbf16, #tpu.memory_space<vmem>>, vector<1x256xbf16>
    tpu.vector_store %arg10[%c28, %c0_375], %500 {strides = array<i32>} : memref<70x256xbf16, #tpu.memory_space<vmem>>, vector<1x256xbf16>,
    %c14_376 = arith.constant 14 : index
    %c0_377 = arith.constant 0 : index
    %502 = vector.load %arg7[%c14_376, %c0_377] : memref<64x256xf32, #tpu.memory_space<vmem>>, vector<1x256xf32>
    %503 = arith.mulf %502, %400 : vector<1x256xf32>
    %504 = arith.addf %503, %403 : vector<1x256xf32>
    %cst_378 = arith.constant 0.000000e+00 : f32
    %505 = vector.broadcast %cst_378 : f32 to vector<1x256xf32>
    %506 = arith.maximumf %504, %505 : vector<1x256xf32>
    %507 = arith.truncf %506 : vector<1x256xf32> to vector<1x256xbf16>
    %c30 = arith.constant 30 : index
    %c0_379 = arith.constant 0 : index
    %508 = vector.load %arg10[%c30, %c0_379] : memref<70x256xbf16, #tpu.memory_space<vmem>>, vector<1x256xbf16>
    tpu.vector_store %arg10[%c30, %c0_379], %507 {strides = array<i32>} : memref<70x256xbf16, #tpu.memory_space<vmem>>, vector<1x256xbf16>,
    %c15_380 = arith.constant 15 : index
    %c0_381 = arith.constant 0 : index
    %509 = vector.load %arg7[%c15_380, %c0_381] : memref<64x256xf32, #tpu.memory_space<vmem>>, vector<1x256xf32>
    %510 = arith.mulf %509, %400 : vector<1x256xf32>
    %511 = arith.addf %510, %403 : vector<1x256xf32>
    %cst_382 = arith.constant 0.000000e+00 : f32
    %512 = vector.broadcast %cst_382 : f32 to vector<1x256xf32>
    %513 = arith.maximumf %511, %512 : vector<1x256xf32>
    %514 = arith.truncf %513 : vector<1x256xf32> to vector<1x256xbf16>
    %c32 = arith.constant 32 : index
    %c0_383 = arith.constant 0 : index
    %515 = vector.load %arg10[%c32, %c0_383] : memref<70x256xbf16, #tpu.memory_space<vmem>>, vector<1x256xbf16>
    tpu.vector_store %arg10[%c32, %c0_383], %514 {strides = array<i32>} : memref<70x256xbf16, #tpu.memory_space<vmem>>, vector<1x256xbf16>,
    %c16_384 = arith.constant 16 : index
    %c0_385 = arith.constant 0 : index
    %516 = vector.load %arg7[%c16_384, %c0_385] : memref<64x256xf32, #tpu.memory_space<vmem>>, vector<1x256xf32>
    %517 = arith.mulf %516, %400 : vector<1x256xf32>
    %518 = arith.addf %517, %403 : vector<1x256xf32>
    %cst_386 = arith.constant 0.000000e+00 : f32
    %519 = vector.broadcast %cst_386 : f32 to vector<1x256xf32>
    %520 = arith.maximumf %518, %519 : vector<1x256xf32>
    %521 = arith.truncf %520 : vector<1x256xf32> to vector<1x256xbf16>
    %c37 = arith.constant 37 : index
    %c0_387 = arith.constant 0 : index
    %522 = vector.load %arg10[%c37, %c0_387] : memref<70x256xbf16, #tpu.memory_space<vmem>>, vector<1x256xbf16>
    tpu.vector_store %arg10[%c37, %c0_387], %521 {strides = array<i32>} : memref<70x256xbf16, #tpu.memory_space<vmem>>, vector<1x256xbf16>,
    %c17_388 = arith.constant 17 : index
    %c0_389 = arith.constant 0 : index
    %523 = vector.load %arg7[%c17_388, %c0_389] : memref<64x256xf32, #tpu.memory_space<vmem>>, vector<1x256xf32>
    %524 = arith.mulf %523, %400 : vector<1x256xf32>
    %525 = arith.addf %524, %403 : vector<1x256xf32>
    %cst_390 = arith.constant 0.000000e+00 : f32
    %526 = vector.broadcast %cst_390 : f32 to vector<1x256xf32>
    %527 = arith.maximumf %525, %526 : vector<1x256xf32>
    %528 = arith.truncf %527 : vector<1x256xf32> to vector<1x256xbf16>
    %c39 = arith.constant 39 : index
    %c0_391 = arith.constant 0 : index
    %529 = vector.load %arg10[%c39, %c0_391] : memref<70x256xbf16, #tpu.memory_space<vmem>>, vector<1x256xbf16>
    tpu.vector_store %arg10[%c39, %c0_391], %528 {strides = array<i32>} : memref<70x256xbf16, #tpu.memory_space<vmem>>, vector<1x256xbf16>,
    %c18_392 = arith.constant 18 : index
    %c0_393 = arith.constant 0 : index
    %530 = vector.load %arg7[%c18_392, %c0_393] : memref<64x256xf32, #tpu.memory_space<vmem>>, vector<1x256xf32>
    %531 = arith.mulf %530, %400 : vector<1x256xf32>
    %532 = arith.addf %531, %403 : vector<1x256xf32>
    %cst_394 = arith.constant 0.000000e+00 : f32
    %533 = vector.broadcast %cst_394 : f32 to vector<1x256xf32>
    %534 = arith.maximumf %532, %533 : vector<1x256xf32>
    %535 = arith.truncf %534 : vector<1x256xf32> to vector<1x256xbf16>
    %c41 = arith.constant 41 : index
    %c0_395 = arith.constant 0 : index
    %536 = vector.load %arg10[%c41, %c0_395] : memref<70x256xbf16, #tpu.memory_space<vmem>>, vector<1x256xbf16>
    tpu.vector_store %arg10[%c41, %c0_395], %535 {strides = array<i32>} : memref<70x256xbf16, #tpu.memory_space<vmem>>, vector<1x256xbf16>,
    %c19_396 = arith.constant 19 : index
    %c0_397 = arith.constant 0 : index
    %537 = vector.load %arg7[%c19_396, %c0_397] : memref<64x256xf32, #tpu.memory_space<vmem>>, vector<1x256xf32>
    %538 = arith.mulf %537, %400 : vector<1x256xf32>
    %539 = arith.addf %538, %403 : vector<1x256xf32>
    %cst_398 = arith.constant 0.000000e+00 : f32
    %540 = vector.broadcast %cst_398 : f32 to vector<1x256xf32>
    %541 = arith.maximumf %539, %540 : vector<1x256xf32>
    %542 = arith.truncf %541 : vector<1x256xf32> to vector<1x256xbf16>
    %c43 = arith.constant 43 : index
    %c0_399 = arith.constant 0 : index
    %543 = vector.load %arg10[%c43, %c0_399] : memref<70x256xbf16, #tpu.memory_space<vmem>>, vector<1x256xbf16>
    tpu.vector_store %arg10[%c43, %c0_399], %542 {strides = array<i32>} : memref<70x256xbf16, #tpu.memory_space<vmem>>, vector<1x256xbf16>,
    %c20_400 = arith.constant 20 : index
    %c0_401 = arith.constant 0 : index
    %544 = vector.load %arg7[%c20_400, %c0_401] : memref<64x256xf32, #tpu.memory_space<vmem>>, vector<1x256xf32>
    %545 = arith.mulf %544, %400 : vector<1x256xf32>
    %546 = arith.addf %545, %403 : vector<1x256xf32>
    %cst_402 = arith.constant 0.000000e+00 : f32
    %547 = vector.broadcast %cst_402 : f32 to vector<1x256xf32>
    %548 = arith.maximumf %546, %547 : vector<1x256xf32>
    %549 = arith.truncf %548 : vector<1x256xf32> to vector<1x256xbf16>
    %c45 = arith.constant 45 : index
    %c0_403 = arith.constant 0 : index
    %550 = vector.load %arg10[%c45, %c0_403] : memref<70x256xbf16, #tpu.memory_space<vmem>>, vector<1x256xbf16>
    tpu.vector_store %arg10[%c45, %c0_403], %549 {strides = array<i32>} : memref<70x256xbf16, #tpu.memory_space<vmem>>, vector<1x256xbf16>,
    %c21_404 = arith.constant 21 : index
    %c0_405 = arith.constant 0 : index
    %551 = vector.load %arg7[%c21_404, %c0_405] : memref<64x256xf32, #tpu.memory_space<vmem>>, vector<1x256xf32>
    %552 = arith.mulf %551, %400 : vector<1x256xf32>
    %553 = arith.addf %552, %403 : vector<1x256xf32>
    %cst_406 = arith.constant 0.000000e+00 : f32
    %554 = vector.broadcast %cst_406 : f32 to vector<1x256xf32>
    %555 = arith.maximumf %553, %554 : vector<1x256xf32>
    %556 = arith.truncf %555 : vector<1x256xf32> to vector<1x256xbf16>
    %c47 = arith.constant 47 : index
    %c0_407 = arith.constant 0 : index
    %557 = vector.load %arg10[%c47, %c0_407] : memref<70x256xbf16, #tpu.memory_space<vmem>>, vector<1x256xbf16>
    tpu.vector_store %arg10[%c47, %c0_407], %556 {strides = array<i32>} : memref<70x256xbf16, #tpu.memory_space<vmem>>, vector<1x256xbf16>,
    %c22_408 = arith.constant 22 : index
    %c0_409 = arith.constant 0 : index
    %558 = vector.load %arg7[%c22_408, %c0_409] : memref<64x256xf32, #tpu.memory_space<vmem>>, vector<1x256xf32>
    %559 = arith.mulf %558, %400 : vector<1x256xf32>
    %560 = arith.addf %559, %403 : vector<1x256xf32>
    %cst_410 = arith.constant 0.000000e+00 : f32
    %561 = vector.broadcast %cst_410 : f32 to vector<1x256xf32>
    %562 = arith.maximumf %560, %561 : vector<1x256xf32>
    %563 = arith.truncf %562 : vector<1x256xf32> to vector<1x256xbf16>
    %c49 = arith.constant 49 : index
    %c0_411 = arith.constant 0 : index
    %564 = vector.load %arg10[%c49, %c0_411] : memref<70x256xbf16, #tpu.memory_space<vmem>>, vector<1x256xbf16>
    tpu.vector_store %arg10[%c49, %c0_411], %563 {strides = array<i32>} : memref<70x256xbf16, #tpu.memory_space<vmem>>, vector<1x256xbf16>,
    %c23_412 = arith.constant 23 : index
    %c0_413 = arith.constant 0 : index
    %565 = vector.load %arg7[%c23_412, %c0_413] : memref<64x256xf32, #tpu.memory_space<vmem>>, vector<1x256xf32>
    %566 = arith.mulf %565, %400 : vector<1x256xf32>
    %567 = arith.addf %566, %403 : vector<1x256xf32>
    %cst_414 = arith.constant 0.000000e+00 : f32
    %568 = vector.broadcast %cst_414 : f32 to vector<1x256xf32>
    %569 = arith.maximumf %567, %568 : vector<1x256xf32>
    %570 = arith.truncf %569 : vector<1x256xf32> to vector<1x256xbf16>
    %c51 = arith.constant 51 : index
    %c0_415 = arith.constant 0 : index
    %571 = vector.load %arg10[%c51, %c0_415] : memref<70x256xbf16, #tpu.memory_space<vmem>>, vector<1x256xbf16>
    tpu.vector_store %arg10[%c51, %c0_415], %570 {strides = array<i32>} : memref<70x256xbf16, #tpu.memory_space<vmem>>, vector<1x256xbf16>,
    %c24_416 = arith.constant 24 : index
    %c0_417 = arith.constant 0 : index
    %572 = vector.load %arg7[%c24_416, %c0_417] : memref<64x256xf32, #tpu.memory_space<vmem>>, vector<1x256xf32>
    %573 = arith.mulf %572, %400 : vector<1x256xf32>
    %574 = arith.addf %573, %403 : vector<1x256xf32>
    %cst_418 = arith.constant 0.000000e+00 : f32
    %575 = vector.broadcast %cst_418 : f32 to vector<1x256xf32>
    %576 = arith.maximumf %574, %575 : vector<1x256xf32>
    %577 = arith.truncf %576 : vector<1x256xf32> to vector<1x256xbf16>
    %c53 = arith.constant 53 : index
    %c0_419 = arith.constant 0 : index
    %578 = vector.load %arg10[%c53, %c0_419] : memref<70x256xbf16, #tpu.memory_space<vmem>>, vector<1x256xbf16>
    tpu.vector_store %arg10[%c53, %c0_419], %577 {strides = array<i32>} : memref<70x256xbf16, #tpu.memory_space<vmem>>, vector<1x256xbf16>,
    %c25_420 = arith.constant 25 : index
    %c0_421 = arith.constant 0 : index
    %579 = vector.load %arg7[%c25_420, %c0_421] : memref<64x256xf32, #tpu.memory_space<vmem>>, vector<1x256xf32>
    %580 = arith.mulf %579, %400 : vector<1x256xf32>
    %581 = arith.addf %580, %403 : vector<1x256xf32>
    %cst_422 = arith.constant 0.000000e+00 : f32
    %582 = vector.broadcast %cst_422 : f32 to vector<1x256xf32>
    %583 = arith.maximumf %581, %582 : vector<1x256xf32>
    %584 = arith.truncf %583 : vector<1x256xf32> to vector<1x256xbf16>
    %c55 = arith.constant 55 : index
    %c0_423 = arith.constant 0 : index
    %585 = vector.load %arg10[%c55, %c0_423] : memref<70x256xbf16, #tpu.memory_space<vmem>>, vector<1x256xbf16>
    tpu.vector_store %arg10[%c55, %c0_423], %584 {strides = array<i32>} : memref<70x256xbf16, #tpu.memory_space<vmem>>, vector<1x256xbf16>,
    %c26_424 = arith.constant 26 : index
    %c0_425 = arith.constant 0 : index
    %586 = vector.load %arg7[%c26_424, %c0_425] : memref<64x256xf32, #tpu.memory_space<vmem>>, vector<1x256xf32>
    %587 = arith.mulf %586, %400 : vector<1x256xf32>
    %588 = arith.addf %587, %403 : vector<1x256xf32>
    %cst_426 = arith.constant 0.000000e+00 : f32
    %589 = vector.broadcast %cst_426 : f32 to vector<1x256xf32>
    %590 = arith.maximumf %588, %589 : vector<1x256xf32>
    %591 = arith.truncf %590 : vector<1x256xf32> to vector<1x256xbf16>
    %c57 = arith.constant 57 : index
    %c0_427 = arith.constant 0 : index
    %592 = vector.load %arg10[%c57, %c0_427] : memref<70x256xbf16, #tpu.memory_space<vmem>>, vector<1x256xbf16>
    tpu.vector_store %arg10[%c57, %c0_427], %591 {strides = array<i32>} : memref<70x256xbf16, #tpu.memory_space<vmem>>, vector<1x256xbf16>,
    %c27_428 = arith.constant 27 : index
    %c0_429 = arith.constant 0 : index
    %593 = vector.load %arg7[%c27_428, %c0_429] : memref<64x256xf32, #tpu.memory_space<vmem>>, vector<1x256xf32>
    %594 = arith.mulf %593, %400 : vector<1x256xf32>
    %595 = arith.addf %594, %403 : vector<1x256xf32>
    %cst_430 = arith.constant 0.000000e+00 : f32
    %596 = vector.broadcast %cst_430 : f32 to vector<1x256xf32>
    %597 = arith.maximumf %595, %596 : vector<1x256xf32>
    %598 = arith.truncf %597 : vector<1x256xf32> to vector<1x256xbf16>
    %c59 = arith.constant 59 : index
    %c0_431 = arith.constant 0 : index
    %599 = vector.load %arg10[%c59, %c0_431] : memref<70x256xbf16, #tpu.memory_space<vmem>>, vector<1x256xbf16>
    tpu.vector_store %arg10[%c59, %c0_431], %598 {strides = array<i32>} : memref<70x256xbf16, #tpu.memory_space<vmem>>, vector<1x256xbf16>,
    %c28_432 = arith.constant 28 : index
    %c0_433 = arith.constant 0 : index
    %600 = vector.load %arg7[%c28_432, %c0_433] : memref<64x256xf32, #tpu.memory_space<vmem>>, vector<1x256xf32>
    %601 = arith.mulf %600, %400 : vector<1x256xf32>
    %602 = arith.addf %601, %403 : vector<1x256xf32>
    %cst_434 = arith.constant 0.000000e+00 : f32
    %603 = vector.broadcast %cst_434 : f32 to vector<1x256xf32>
    %604 = arith.maximumf %602, %603 : vector<1x256xf32>
    %605 = arith.truncf %604 : vector<1x256xf32> to vector<1x256xbf16>
    %c61 = arith.constant 61 : index
    %c0_435 = arith.constant 0 : index
    %606 = vector.load %arg10[%c61, %c0_435] : memref<70x256xbf16, #tpu.memory_space<vmem>>, vector<1x256xbf16>
    tpu.vector_store %arg10[%c61, %c0_435], %605 {strides = array<i32>} : memref<70x256xbf16, #tpu.memory_space<vmem>>, vector<1x256xbf16>,
    %c29_436 = arith.constant 29 : index
    %c0_437 = arith.constant 0 : index
    %607 = vector.load %arg7[%c29_436, %c0_437] : memref<64x256xf32, #tpu.memory_space<vmem>>, vector<1x256xf32>
    %608 = arith.mulf %607, %400 : vector<1x256xf32>
    %609 = arith.addf %608, %403 : vector<1x256xf32>
    %cst_438 = arith.constant 0.000000e+00 : f32
    %610 = vector.broadcast %cst_438 : f32 to vector<1x256xf32>
    %611 = arith.maximumf %609, %610 : vector<1x256xf32>
    %612 = arith.truncf %611 : vector<1x256xf32> to vector<1x256xbf16>
    %c63 = arith.constant 63 : index
    %c0_439 = arith.constant 0 : index
    %613 = vector.load %arg10[%c63, %c0_439] : memref<70x256xbf16, #tpu.memory_space<vmem>>, vector<1x256xbf16>
    tpu.vector_store %arg10[%c63, %c0_439], %612 {strides = array<i32>} : memref<70x256xbf16, #tpu.memory_space<vmem>>, vector<1x256xbf16>,
    %c30_440 = arith.constant 30 : index
    %c0_441 = arith.constant 0 : index
    %614 = vector.load %arg7[%c30_440, %c0_441] : memref<64x256xf32, #tpu.memory_space<vmem>>, vector<1x256xf32>
    %615 = arith.mulf %614, %400 : vector<1x256xf32>
    %616 = arith.addf %615, %403 : vector<1x256xf32>
    %cst_442 = arith.constant 0.000000e+00 : f32
    %617 = vector.broadcast %cst_442 : f32 to vector<1x256xf32>
    %618 = arith.maximumf %616, %617 : vector<1x256xf32>
    %619 = arith.truncf %618 : vector<1x256xf32> to vector<1x256xbf16>
    %c65 = arith.constant 65 : index
    %c0_443 = arith.constant 0 : index
    %620 = vector.load %arg10[%c65, %c0_443] : memref<70x256xbf16, #tpu.memory_space<vmem>>, vector<1x256xbf16>
    tpu.vector_store %arg10[%c65, %c0_443], %619 {strides = array<i32>} : memref<70x256xbf16, #tpu.memory_space<vmem>>, vector<1x256xbf16>,
    %c31_444 = arith.constant 31 : index
    %c0_445 = arith.constant 0 : index
    %621 = vector.load %arg7[%c31_444, %c0_445] : memref<64x256xf32, #tpu.memory_space<vmem>>, vector<1x256xf32>
    %622 = arith.mulf %621, %400 : vector<1x256xf32>
    %623 = arith.addf %622, %403 : vector<1x256xf32>
    %cst_446 = arith.constant 0.000000e+00 : f32
    %624 = vector.broadcast %cst_446 : f32 to vector<1x256xf32>
    %625 = arith.maximumf %623, %624 : vector<1x256xf32>
    %626 = arith.truncf %625 : vector<1x256xf32> to vector<1x256xbf16>
    %c67 = arith.constant 67 : index
    %c0_447 = arith.constant 0 : index
    %627 = vector.load %arg10[%c67, %c0_447] : memref<70x256xbf16, #tpu.memory_space<vmem>>, vector<1x256xbf16>
    tpu.vector_store %arg10[%c67, %c0_447], %626 {strides = array<i32>} : memref<70x256xbf16, #tpu.memory_space<vmem>>, vector<1x256xbf16>,
    %cst_448 = arith.constant 0.000000e+00 : f32
    %628 = vector.broadcast %cst_448 : f32 to vector<1x256xf32>
    %cst_449 = arith.constant 0.000000e+00 : f32
    %629 = vector.broadcast %cst_449 : f32 to vector<1x256xf32>
    %cst_450 = arith.constant 0.000000e+00 : f32
    %630 = vector.broadcast %cst_450 : f32 to vector<32x256xf32>
    %c3_451 = arith.constant 3 : index
    %c0_452 = arith.constant 0 : index
    %631 = vector.load %arg10[%c3_451, %c0_452] : memref<70x256xbf16, #tpu.memory_space<vmem>>, vector<32x256xbf16>
    %c2_453 = arith.constant 2 : index
    %c0_454 = arith.constant 0 : index
    %c0_455 = arith.constant 0 : index
    %c0_456 = arith.constant 0 : index
    %632 = vector.load %arg2[%c2_453, %c0_454, %c0_455, %c0_456] : memref<3x4x256x256xbf16, #tpu.memory_space<vmem>>, vector<1x1x256x256xbf16>
    %633 = vector.shape_cast %632 : vector<1x1x256x256xbf16> to vector<256x256xbf16>
    %cst_457 = arith.constant dense<0.000000e+00> : vector<32x256xf32>
    %634 = tpu.matmul %631, %633, %cst_457 {dimension_numbers = #tpu.dot_dimension_numbers<[1], [0], [0], [1], [0, 0, 1, 1], [], []>} : vector<32x256xbf16>, vector<256x256xbf16>, vector<32x256xf32> -> vector<32x256xf32>
    %635 = arith.addf %630, %634 : vector<32x256xf32>
    %c2_458 = arith.constant 2 : index
    %c0_459 = arith.constant 0 : index
    %636 = vector.load %arg10[%c2_458, %c0_459] : memref<70x256xbf16, #tpu.memory_space<vmem>>, vector<32x256xbf16>
    %c2_460 = arith.constant 2 : index
    %c1_461 = arith.constant 1 : index
    %c0_462 = arith.constant 0 : index
    %c0_463 = arith.constant 0 : index
    %637 = vector.load %arg2[%c2_460, %c1_461, %c0_462, %c0_463] : memref<3x4x256x256xbf16, #tpu.memory_space<vmem>>, vector<1x1x256x256xbf16>
    %638 = vector.shape_cast %637 : vector<1x1x256x256xbf16> to vector<256x256xbf16>
    %cst_464 = arith.constant dense<0.000000e+00> : vector<32x256xf32>
    %639 = tpu.matmul %636, %638, %cst_464 {dimension_numbers = #tpu.dot_dimension_numbers<[1], [0], [0], [1], [0, 0, 1, 1], [], []>} : vector<32x256xbf16>, vector<256x256xbf16>, vector<32x256xf32> -> vector<32x256xf32>
    %640 = arith.addf %635, %639 : vector<32x256xf32>
    %c1_465 = arith.constant 1 : index
    %c0_466 = arith.constant 0 : index
    %641 = vector.load %arg10[%c1_465, %c0_466] : memref<70x256xbf16, #tpu.memory_space<vmem>>, vector<32x256xbf16>
    %c2_467 = arith.constant 2 : index
    %c2_468 = arith.constant 2 : index
    %c0_469 = arith.constant 0 : index
    %c0_470 = arith.constant 0 : index
    %642 = vector.load %arg2[%c2_467, %c2_468, %c0_469, %c0_470] : memref<3x4x256x256xbf16, #tpu.memory_space<vmem>>, vector<1x1x256x256xbf16>
    %643 = vector.shape_cast %642 : vector<1x1x256x256xbf16> to vector<256x256xbf16>
    %cst_471 = arith.constant dense<0.000000e+00> : vector<32x256xf32>
    %644 = tpu.matmul %641, %643, %cst_471 {dimension_numbers = #tpu.dot_dimension_numbers<[1], [0], [0], [1], [0, 0, 1, 1], [], []>} : vector<32x256xbf16>, vector<256x256xbf16>, vector<32x256xf32> -> vector<32x256xf32>
    %645 = arith.addf %640, %644 : vector<32x256xf32>
    %c0_472 = arith.constant 0 : index
    %c0_473 = arith.constant 0 : index
    %646 = vector.load %arg10[%c0_472, %c0_473] : memref<70x256xbf16, #tpu.memory_space<vmem>>, vector<32x256xbf16>
    %c2_474 = arith.constant 2 : index
    %c3_475 = arith.constant 3 : index
    %c0_476 = arith.constant 0 : index
    %c0_477 = arith.constant 0 : index
    %647 = vector.load %arg2[%c2_474, %c3_475, %c0_476, %c0_477] : memref<3x4x256x256xbf16, #tpu.memory_space<vmem>>, vector<1x1x256x256xbf16>
    %648 = vector.shape_cast %647 : vector<1x1x256x256xbf16> to vector<256x256xbf16>
    %cst_478 = arith.constant dense<0.000000e+00> : vector<32x256xf32>
    %649 = tpu.matmul %646, %648, %cst_478 {dimension_numbers = #tpu.dot_dimension_numbers<[1], [0], [0], [1], [0, 0, 1, 1], [], []>} : vector<32x256xbf16>, vector<256x256xbf16>, vector<32x256xf32> -> vector<32x256xf32>
    %650 = arith.addf %645, %649 : vector<32x256xf32>
    %c0_479 = arith.constant 0 : index
    %c0_480 = arith.constant 0 : index
    %651 = vector.load %arg7[%c0_479, %c0_480] : memref<64x256xf32, #tpu.memory_space<vmem>>, vector<32x256xf32>
    tpu.vector_store %arg7[%c0_479, %c0_480], %650 {strides = array<i32>} : memref<64x256xf32, #tpu.memory_space<vmem>>, vector<32x256xf32>,
    %cst_481 = arith.constant dense<0.000000e+00> : vector<256xf32>
    %652 = vector.multi_reduction <add>, %650, %cst_481 [0] : vector<32x256xf32> to vector<256xf32>
    %653 = vector.shape_cast %652 : vector<256xf32> to vector<1x256xf32>
    %654 = arith.addf %628, %653 : vector<1x256xf32>
    %655 = arith.mulf %650, %650 : vector<32x256xf32>
    %cst_482 = arith.constant dense<0.000000e+00> : vector<256xf32>
    %656 = vector.multi_reduction <add>, %655, %cst_482 [0] : vector<32x256xf32> to vector<256xf32>
    %657 = vector.shape_cast %656 : vector<256xf32> to vector<1x256xf32>
    %658 = arith.addf %629, %657 : vector<1x256xf32>
    %cst_483 = arith.constant 0.000000e+00 : f32
    %659 = vector.broadcast %cst_483 : f32 to vector<32x256xf32>
    %c38 = arith.constant 38 : index
    %c0_484 = arith.constant 0 : index
    %660 = vector.load %arg10[%c38, %c0_484] : memref<70x256xbf16, #tpu.memory_space<vmem>>, vector<32x256xbf16>
    %c2_485 = arith.constant 2 : index
    %c0_486 = arith.constant 0 : index
    %c0_487 = arith.constant 0 : index
    %c0_488 = arith.constant 0 : index
    %661 = vector.load %arg2[%c2_485, %c0_486, %c0_487, %c0_488] : memref<3x4x256x256xbf16, #tpu.memory_space<vmem>>, vector<1x1x256x256xbf16>
    %662 = vector.shape_cast %661 : vector<1x1x256x256xbf16> to vector<256x256xbf16>
    %cst_489 = arith.constant dense<0.000000e+00> : vector<32x256xf32>
    %663 = tpu.matmul %660, %662, %cst_489 {dimension_numbers = #tpu.dot_dimension_numbers<[1], [0], [0], [1], [0, 0, 1, 1], [], []>} : vector<32x256xbf16>, vector<256x256xbf16>, vector<32x256xf32> -> vector<32x256xf32>
    %664 = arith.addf %659, %663 : vector<32x256xf32>
    %c37_490 = arith.constant 37 : index
    %c0_491 = arith.constant 0 : index
    %665 = vector.load %arg10[%c37_490, %c0_491] : memref<70x256xbf16, #tpu.memory_space<vmem>>, vector<32x256xbf16>
    %c2_492 = arith.constant 2 : index
    %c1_493 = arith.constant 1 : index
    %c0_494 = arith.constant 0 : index
    %c0_495 = arith.constant 0 : index
    %666 = vector.load %arg2[%c2_492, %c1_493, %c0_494, %c0_495] : memref<3x4x256x256xbf16, #tpu.memory_space<vmem>>, vector<1x1x256x256xbf16>
    %667 = vector.shape_cast %666 : vector<1x1x256x256xbf16> to vector<256x256xbf16>
    %cst_496 = arith.constant dense<0.000000e+00> : vector<32x256xf32>
    %668 = tpu.matmul %665, %667, %cst_496 {dimension_numbers = #tpu.dot_dimension_numbers<[1], [0], [0], [1], [0, 0, 1, 1], [], []>} : vector<32x256xbf16>, vector<256x256xbf16>, vector<32x256xf32> -> vector<32x256xf32>
    %669 = arith.addf %664, %668 : vector<32x256xf32>
    %c36 = arith.constant 36 : index
    %c0_497 = arith.constant 0 : index
    %670 = vector.load %arg10[%c36, %c0_497] : memref<70x256xbf16, #tpu.memory_space<vmem>>, vector<32x256xbf16>
    %c2_498 = arith.constant 2 : index
    %c2_499 = arith.constant 2 : index
    %c0_500 = arith.constant 0 : index
    %c0_501 = arith.constant 0 : index
    %671 = vector.load %arg2[%c2_498, %c2_499, %c0_500, %c0_501] : memref<3x4x256x256xbf16, #tpu.memory_space<vmem>>, vector<1x1x256x256xbf16>
    %672 = vector.shape_cast %671 : vector<1x1x256x256xbf16> to vector<256x256xbf16>
    %cst_502 = arith.constant dense<0.000000e+00> : vector<32x256xf32>
    %673 = tpu.matmul %670, %672, %cst_502 {dimension_numbers = #tpu.dot_dimension_numbers<[1], [0], [0], [1], [0, 0, 1, 1], [], []>} : vector<32x256xbf16>, vector<256x256xbf16>, vector<32x256xf32> -> vector<32x256xf32>
    %674 = arith.addf %669, %673 : vector<32x256xf32>
    %c35_503 = arith.constant 35 : index
    %c0_504 = arith.constant 0 : index
    %675 = vector.load %arg10[%c35_503, %c0_504] : memref<70x256xbf16, #tpu.memory_space<vmem>>, vector<32x256xbf16>
    %c2_505 = arith.constant 2 : index
    %c3_506 = arith.constant 3 : index
    %c0_507 = arith.constant 0 : index
    %c0_508 = arith.constant 0 : index
    %676 = vector.load %arg2[%c2_505, %c3_506, %c0_507, %c0_508] : memref<3x4x256x256xbf16, #tpu.memory_space<vmem>>, vector<1x1x256x256xbf16>
    %677 = vector.shape_cast %676 : vector<1x1x256x256xbf16> to vector<256x256xbf16>
    %cst_509 = arith.constant dense<0.000000e+00> : vector<32x256xf32>
    %678 = tpu.matmul %675, %677, %cst_509 {dimension_numbers = #tpu.dot_dimension_numbers<[1], [0], [0], [1], [0, 0, 1, 1], [], []>} : vector<32x256xbf16>, vector<256x256xbf16>, vector<32x256xf32> -> vector<32x256xf32>
    %679 = arith.addf %674, %678 : vector<32x256xf32>
    %c32_510 = arith.constant 32 : index
    %c0_511 = arith.constant 0 : index
    %680 = vector.load %arg7[%c32_510, %c0_511] : memref<64x256xf32, #tpu.memory_space<vmem>>, vector<32x256xf32>
    tpu.vector_store %arg7[%c32_510, %c0_511], %679 {strides = array<i32>} : memref<64x256xf32, #tpu.memory_space<vmem>>, vector<32x256xf32>,
    %cst_512 = arith.constant dense<0.000000e+00> : vector<256xf32>
    %681 = vector.multi_reduction <add>, %679, %cst_512 [0] : vector<32x256xf32> to vector<256xf32>
    %682 = vector.shape_cast %681 : vector<256xf32> to vector<1x256xf32>
    %683 = arith.addf %654, %682 : vector<1x256xf32>
    %684 = arith.mulf %679, %679 : vector<32x256xf32>
    %cst_513 = arith.constant dense<0.000000e+00> : vector<256xf32>
    %685 = vector.multi_reduction <add>, %684, %cst_513 [0] : vector<32x256xf32> to vector<256xf32>
    %686 = vector.shape_cast %685 : vector<256xf32> to vector<1x256xf32>
    %687 = arith.addf %658, %686 : vector<1x256xf32>
    %c3_514 = arith.constant 3 : index
    %c0_515 = arith.constant 0 : index
    %c0_516 = arith.constant 0 : index
    %688 = vector.load %arg3[%c3_514, %c0_515, %c0_516] : memref<4x256x256xf32, #tpu.memory_space<vmem>>, vector<1x256x256xf32>
    %689 = vector.shape_cast %688 : vector<1x256x256xf32> to vector<256x256xf32>
    %cst_517 = arith.constant dense<0.000000e+00> : vector<1x256xf32>
    %690 = tpu.matmul %683, %689, %cst_517 {dimension_numbers = #tpu.dot_dimension_numbers<[1], [0], [0], [1], [0, 0, 1, 1], [], []>} : vector<1x256xf32>, vector<256x256xf32>, vector<1x256xf32> -> vector<1x256xf32>
    %cst_518 = arith.constant 4.8828125E-4 : f32
    %691 = vector.broadcast %cst_518 : f32 to vector<1x256xf32>
    %692 = arith.mulf %690, %691 : vector<1x256xf32>
    %cst_519 = arith.constant dense<0.000000e+00> : vector<1x256xf32>
    %693 = tpu.matmul %687, %689, %cst_519 {dimension_numbers = #tpu.dot_dimension_numbers<[1], [0], [0], [1], [0, 0, 1, 1], [], []>} : vector<1x256xf32>, vector<256x256xf32>, vector<1x256xf32> -> vector<1x256xf32>
    %cst_520 = arith.constant 4.8828125E-4 : f32
    %694 = vector.broadcast %cst_520 : f32 to vector<1x256xf32>
    %695 = arith.mulf %693, %694 : vector<1x256xf32>
    %696 = arith.mulf %692, %692 : vector<1x256xf32>
    %697 = arith.subf %695, %696 : vector<1x256xf32>
    %c3_521 = arith.constant 3 : index
    %c0_522 = arith.constant 0 : index
    %c0_523 = arith.constant 0 : index
    %698 = vector.load %arg4[%c3_521, %c0_522, %c0_523] : memref<4x2x256xf32, #tpu.memory_space<vmem>>, vector<1x2x256xf32>
    %699 = vector.shape_cast %698 : vector<1x2x256xf32> to vector<2x256xf32>
    %700 = vector.extract_strided_slice %699 {offsets = [0, 0], sizes = [1, 256], strides = [1, 1]} : vector<2x256xf32> to vector<1x256xf32>
    %cst_524 = arith.constant 9.99999974E-6 : f32
    %701 = vector.broadcast %cst_524 : f32 to vector<1x256xf32>
    %702 = arith.addf %697, %701 : vector<1x256xf32>
    %703 = math.rsqrt %702 : vector<1x256xf32>
    %704 = arith.mulf %700, %703 : vector<1x256xf32>
    %705 = vector.extract_strided_slice %699 {offsets = [1, 0], sizes = [1, 256], strides = [1, 1]} : vector<2x256xf32> to vector<1x256xf32>
    %706 = arith.mulf %692, %704 : vector<1x256xf32>
    %707 = arith.subf %705, %706 : vector<1x256xf32>
    %c0_525 = arith.constant 0 : index
    %c0_526 = arith.constant 0 : index
    %708 = vector.load %arg7[%c0_525, %c0_526] : memref<64x256xf32, #tpu.memory_space<vmem>>, vector<32x256xf32>
    %709 = vector.broadcast %704 : vector<1x256xf32> to vector<32x256xf32>
    %710 = arith.mulf %708, %709 : vector<32x256xf32>
    %711 = vector.broadcast %707 : vector<1x256xf32> to vector<32x256xf32>
    %712 = arith.addf %710, %711 : vector<32x256xf32>
    %cst_527 = arith.constant 0.000000e+00 : f32
    %713 = vector.broadcast %cst_527 : f32 to vector<32x256xf32>
    %714 = arith.maximumf %712, %713 : vector<32x256xf32>
    %715 = arith.truncf %714 : vector<32x256xf32> to vector<32x256xbf16>
    %c0_528 = arith.constant 0 : index
    %c0_529 = arith.constant 0 : index
    %716 = vector.load %arg5[%c0_528, %c0_529] : memref<256x128xbf16, #tpu.memory_space<vmem>>, vector<256x128xbf16>
    %cst_530 = arith.constant dense<0.000000e+00> : vector<32x128xf32>
    %717 = tpu.matmul %715, %716, %cst_530 {dimension_numbers = #tpu.dot_dimension_numbers<[1], [0], [0], [1], [0, 0, 1, 1], [], []>} : vector<32x256xbf16>, vector<256x128xbf16>, vector<32x128xf32> -> vector<32x128xf32>
    %718 = math.tanh %717 : vector<32x128xf32>
    %c0_531 = arith.constant 0 : index
    %c0_532 = arith.constant 0 : index
    %719 = vector.load %arg6[%c0_531, %c0_532] : memref<64x128xf32, #tpu.memory_space<vmem>>, vector<32x128xf32>
    tpu.vector_store %arg6[%c0_531, %c0_532], %718 {strides = array<i32>} : memref<64x128xf32, #tpu.memory_space<vmem>>, vector<32x128xf32>,
    %c32_533 = arith.constant 32 : index
    %c0_534 = arith.constant 0 : index
    %720 = vector.load %arg7[%c32_533, %c0_534] : memref<64x256xf32, #tpu.memory_space<vmem>>, vector<32x256xf32>
    %721 = vector.broadcast %704 : vector<1x256xf32> to vector<32x256xf32>
    %722 = arith.mulf %720, %721 : vector<32x256xf32>
    %723 = vector.broadcast %707 : vector<1x256xf32> to vector<32x256xf32>
    %724 = arith.addf %722, %723 : vector<32x256xf32>
    %cst_535 = arith.constant 0.000000e+00 : f32
    %725 = vector.broadcast %cst_535 : f32 to vector<32x256xf32>
    %726 = arith.maximumf %724, %725 : vector<32x256xf32>
    %727 = arith.truncf %726 : vector<32x256xf32> to vector<32x256xbf16>
    %c0_536 = arith.constant 0 : index
    %c0_537 = arith.constant 0 : index
    %728 = vector.load %arg5[%c0_536, %c0_537] : memref<256x128xbf16, #tpu.memory_space<vmem>>, vector<256x128xbf16>
    %cst_538 = arith.constant dense<0.000000e+00> : vector<32x128xf32>
    %729 = tpu.matmul %727, %728, %cst_538 {dimension_numbers = #tpu.dot_dimension_numbers<[1], [0], [0], [1], [0, 0, 1, 1], [], []>} : vector<32x256xbf16>, vector<256x128xbf16>, vector<32x128xf32> -> vector<32x128xf32>
    %730 = math.tanh %729 : vector<32x128xf32>
    %c32_539 = arith.constant 32 : index
    %c0_540 = arith.constant 0 : index
    %731 = vector.load %arg6[%c32_539, %c0_540] : memref<64x128xf32, #tpu.memory_space<vmem>>, vector<32x128xf32>
    tpu.vector_store %arg6[%c32_539, %c0_540], %730 {strides = array<i32>} : memref<64x128xf32, #tpu.memory_space<vmem>>, vector<32x128xf32>,
    return
  }
}

</mosaic_0001>

<llo_original>
// kernel: generator_forward.1
$region0: #{generator_forward.1}
  #allocation0 [shape = 'u32[]', space=smem, size = 0x4, offset = 0x4, fixed_abs, tag = 'smem constant byte address 0x4 - core index']
  #allocation1 [shape = 'u32[144,128]{1,0:T(1,128)}', space=vmem, size = 0x12000, scoped, tag = 'internal scratch']
  #allocation2 [shape = 'f32[64,256]{1,0:T(8,128)}', space=vmem, size = 0x10000, scoped, tag = 'scratch operand']
  #allocation3 [shape = 'bf16[22,256]{1,0:T(8,128)(2,1)}', space=vmem, size = 0x3000, scoped, tag = 'scratch operand']
  #allocation4 [shape = 'bf16[38,256]{1,0:T(8,128)(2,1)}', space=vmem, size = 0x5000, scoped, tag = 'scratch operand']
  #allocation5 [shape = 'bf16[70,256]{1,0:T(8,128)(2,1)}', space=vmem, size = 0x9000, scoped, tag = 'scratch operand']
  %s0 = inlined_call_operand.vmem [shape: bf16[2,16], index: 0, kind: input, shape index: {}]
  %s1 = inlined_call_operand.hbm [shape: bf16[4,16,256], index: 1, kind: input, shape index: {}]
  %s2 = inlined_call_operand.hbm [shape: bf16[3,4,256,256], index: 2, kind: input, shape index: {}]
  %s3 = inlined_call_operand.hbm [shape: f32[4,256,256], index: 3, kind: input, shape index: {}]
  %s4 = inlined_call_operand.hbm [shape: f32[4,2,256], index: 4, kind: input, shape index: {}]
  %s5 = inlined_call_operand.hbm [shape: bf16[256,128], index: 5, kind: input, shape index: {}]
  %s6 = inlined_call_operand.vmem [shape: f32[64,128], index: 6, kind: output, shape index: {}]
  %s7 = sld [smem:[#allocation0]]
  $region54: #{generator_forward.1} parent=0
    _
  %s9 = ssub.s32 1, %s7
  %s10 = scalar_select 0, %s9, %s7
  $region1: #{generator_forward.1} parent=0
    #allocation6 [shape = 'u8[32768]{0}', space=vmem, size = 0x8000, scoped, tag = 'input window, operand 1, single buffered']
    #allocation7 [shape = 's32[1]{0}', space=sflag, size = 0x4, scoped, tag = 'scoped memory for generator_forward.1']
    #allocation8 [shape = 'u8[1572864]{0}', space=vmem, size = 0x180000, scoped, tag = 'input window, operand 2, single buffered']
    #allocation9 [shape = 's32[1]{0}', space=sflag, size = 0x4, scoped, tag = 'scoped memory for generator_forward.1']
    #allocation10 [shape = 'u8[1048576]{0}', space=vmem, size = 0x100000, scoped, tag = 'input window, operand 3, single buffered']
    #allocation11 [shape = 'u8[8192]{0}', space=vmem, size = 0x2000, scoped, tag = 'input window, operand 4, single buffered']
    #allocation12 [shape = 's32[1]{0}', space=sflag, size = 0x4, scoped, tag = 'scoped memory for generator_forward.1']
    #allocation13 [shape = 'u8[65536]{0}', space=vmem, size = 0x10000, scoped, tag = 'input window, operand 5, single buffered']
    %11 = vsyncpa [#allocation7], 0
    %12 = vsyncpa [#allocation9], 0
    %13 = vsyncpa [#allocation12], 0
    // Predicated region
    $region2: #{generator_forward.1} parent=1 // pred_check
      _
    $region3: #{generator_forward.1} parent=1 // pred_check_branch
      %15 = sbr.rel (0) target = $region5
    $region4: #{generator_forward.1} parent=1 // pred_region
      _
    $region5: #{generator_forward.1} parent=1 // pred_fallthru
      _
    // Predicated region
    $region6: #{generator_forward.1} parent=1 // pred_check
      _
    $region7: #{generator_forward.1} parent=1 // pred_check_branch
      %17 = sbr.rel (0) target = $region9
    $region8: #{generator_forward.1} parent=1 // pred_region
      %s19 = ssub.s32 1024, 1024
      %20 = vsyncadd [#allocation7], %s19
      %s21 = sshll.u32 [#allocation6], 4
      %s22 = int_to_ptr.vmem [resolvable:$true] %s21
      %27 = dma.hbm_to_vmem [thread:$0]  %s1, 1024, %s22, [#allocation7], 128, 128, 8
    $region9: #{generator_forward.1} parent=1 // pred_fallthru
      _
    // Predicated region
    $region10: #{generator_forward.1} parent=1 // pred_check
      _
    $region11: #{generator_forward.1} parent=1 // pred_check_branch
      %29 = sbr.rel (0) target = $region13
    $region12: #{generator_forward.1} parent=1 // pred_region
      %s31 = ssub.s32 49152, 49152
      %32 = vsyncadd [#allocation9], %s31
      %s33 = sshll.u32 [#allocation8], 4
      %s34 = int_to_ptr.vmem [resolvable:$true] %s33
      %39 = dma.hbm_to_vmem [thread:$0]  %s2, 49152, %s34, [#allocation9], 128, 128, 8
    $region13: #{generator_forward.1} parent=1 // pred_fallthru
      _
    // Predicated region
    $region14: #{generator_forward.1} parent=1 // pred_check
      _
    $region15: #{generator_forward.1} parent=1 // pred_check_branch
      %41 = sbr.rel (0) target = $region17
    $region16: #{generator_forward.1} parent=1 // pred_region
      %s43 = ssub.s32 32768, 32768
      %44 = vsyncadd [#allocation9], %s43
      %s45 = sshll.u32 [#allocation10], 4
      %s46 = int_to_ptr.vmem [resolvable:$true] %s45
      %51 = dma.hbm_to_vmem [thread:$0]  %s3, 32768, %s46, [#allocation9], 256, 256, 16
    $region17: #{generator_forward.1} parent=1 // pred_fallthru
      _
    // Predicated region
    $region18: #{generator_forward.1} parent=1 // pred_check
      _
    $region19: #{generator_forward.1} parent=1 // pred_check_branch
      %53 = sbr.rel (0) target = $region21
    $region20: #{generator_forward.1} parent=1 // pred_region
      %s55 = ssub.s32 256, 256
      %56 = vsyncadd [#allocation12], %s55
      %s57 = sshll.u32 [#allocation11], 4
      %s58 = int_to_ptr.vmem [resolvable:$true] %s57
      %63 = dma.hbm_to_vmem [thread:$0]  %s4, 256, %s58, [#allocation12], 64, 64, 4
    $region21: #{generator_forward.1} parent=1 // pred_fallthru
      _
    // Predicated region
    $region22: #{generator_forward.1} parent=1 // pred_check
      _
    $region23: #{generator_forward.1} parent=1 // pred_check_branch
      %65 = sbr.rel (0) target = $region25
    $region24: #{generator_forward.1} parent=1 // pred_region
      %s67 = ssub.s32 2048, 2048
      %68 = vsyncadd [#allocation12], %s67
      %s69 = sshll.u32 [#allocation13], 4
      %s70 = int_to_ptr.vmem [resolvable:$true] %s69
      %75 = dma.hbm_to_vmem [thread:$0]  %s5, 2048, %s70, [#allocation12], 64, 64, 4
    $region25: #{generator_forward.1} parent=1 // pred_fallthru
      _
    // Predicated region
    $region26: #{generator_forward.1} parent=1 // pred_check
      _
    $region27: #{generator_forward.1} parent=1 // pred_check_branch
      %77 = sbr.rel (0) target = $region29
    $region28: #{generator_forward.1} parent=1 // pred_region
      %78 = dma.done [#allocation7], 1024
    $region29: #{generator_forward.1} parent=1 // pred_fallthru
      _
    // Predicated region
    $region30: #{generator_forward.1} parent=1 // pred_check
      _
    $region31: #{generator_forward.1} parent=1 // pred_check_branch
      %80 = sbr.rel (0) target = $region33
    $region32: #{generator_forward.1} parent=1 // pred_region
      %81 = dma.done [#allocation9], 49152
    $region33: #{generator_forward.1} parent=1 // pred_fallthru
      _
    // Predicated region
    $region34: #{generator_forward.1} parent=1 // pred_check
      _
    $region35: #{generator_forward.1} parent=1 // pred_check_branch
      %83 = sbr.rel (0) target = $region37
    $region36: #{generator_forward.1} parent=1 // pred_region
      %84 = dma.done [#allocation9], 32768
    $region37: #{generator_forward.1} parent=1 // pred_fallthru
      _
    // Predicated region
    $region38: #{generator_forward.1} parent=1 // pred_check
      _
    $region39: #{generator_forward.1} parent=1 // pred_check_branch
      %86 = sbr.rel (0) target = $region41
    $region40: #{generator_forward.1} parent=1 // pred_region
      %87 = dma.done [#allocation12], 256
    $region41: #{generator_forward.1} parent=1 // pred_fallthru
      _
    // Predicated region
    $region42: #{generator_forward.1} parent=1 // pred_check
      _
    $region43: #{generator_forward.1} parent=1 // pred_check_branch
      %89 = sbr.rel (0) target = $region45
    $region44: #{generator_forward.1} parent=1 // pred_region
      %90 = dma.done [#allocation12], 2048
    $region45: #{generator_forward.1} parent=1 // pred_fallthru
      _
    %92 = vst [vmem:[#allocation3] sm:$0xff] 0
    %93 = vst [vmem:[#allocation3 + $0x8] sm:$0xff] 0
    %94 = vst [vmem:[#allocation3 + $0x10] sm:$0x77] 0
    %95 = vst [vmem:[#allocation4] sm:$0xff] 0
    %96 = vst [vmem:[#allocation4 + $0x8] sm:$0xff] 0
    %97 = vst [vmem:[#allocation4 + $0x10] sm:$0xff] 0
    %98 = vst [vmem:[#allocation4 + $0x18] sm:$0xff] 0
    %99 = vst [vmem:[#allocation4 + $0x20] sm:$0x77] 0
    %100 = vst [vmem:[#allocation5] sm:$0xff] 0
    %101 = vst [vmem:[#allocation5 + $0x8] sm:$0xff] 0
    %102 = vst [vmem:[#allocation5 + $0x10] sm:$0xff] 0
    %103 = vst [vmem:[#allocation5 + $0x18] sm:$0xff] 0
    %104 = vst [vmem:[#allocation5 + $0x20] sm:$0xff] 0
    %105 = vst [vmem:[#allocation5 + $0x28] sm:$0xff] 0
    %106 = vst [vmem:[#allocation5 + $0x30] sm:$0xff] 0
    %107 = vst [vmem:[#allocation5 + $0x38] sm:$0xff] 0
    %108 = vst [vmem:[#allocation5 + $0x40] sm:$0x77] 0
    %v109 = vld [vmem:[%s0] sm:$0x1]
    %v110 = vld [vmem:[#allocation6] sm:$0xff]
    %v111 = vld [vmem:[#allocation6 + $0x8] sm:$0xff]
    %v114 = vunpack.c.l.b16 %v110
    %v115 = vunpack.c.h.b16 %v110
    %v116 = vunpack.c.l.b16 %v111
    %v117 = vunpack.c.h.b16 %v111
    %v118 = vpack.c.b16 %v116, %v114
    %v119 = vpack.c.b16 %v117, %v115
    %vm122 = vcmask 130048
    %v124 = vsel %vm122, %v109, 0
    %126 = vmatprep.subr.bf16.mxu0 0
    %127 = vmatpush1.bf16.msra.mxu0 0
    %128 = vmatprep.subr.bf16.mxu0 0
    %129 = vmatpush1.bf16.msra.mxu0 0
    %130 = vmatprep.subr.bf16.mxu0 0
    %131 = vmatpush1.bf16.msra.mxu0 0
    %132 = vmatprep.subr.bf16.mxu0 0
    %133 = vmatpush1.bf16.msra.mxu0 0
    %134 = vmatprep.subr.bf16.mxu0 0
    %135 = vmatpush1.bf16.msra.mxu0 0
    %136 = vmatprep.subr.bf16.mxu0 0
    %137 = vmatpush1.bf16.msra.mxu0 0
    %138 = vmatprep.subr.bf16.mxu0 0
    %139 = vmatpush1.bf16.msra.mxu0 0
    %140 = vmatprep.subr.bf16.mxu0 %v119
    %141 = vmatpush1.bf16.msra.mxu0 %v118
    %142 = vmatprep.subr.bf16.mxu0 0
    %143 = vmatpush2.bf16.msra.mxu0 0
    %144 = vmatprep.subr.bf16.mxu0 0
    %145 = vmatpush2.bf16.msra.mxu0 0
    %146 = vmatprep.subr.bf16.mxu0 0
    %147 = vmatpush2.bf16.msra.mxu0 0
    %148 = vmatprep.subr.bf16.mxu0 0
    %149 = vmatpush2.bf16.msra.mxu0 0
    %150 = vmatprep.subr.bf16.mxu0 0
    %151 = vmatpush2.bf16.msra.mxu0 0
    %152 = vmatprep.subr.bf16.mxu0 0
    %153 = vmatpush2.bf16.msra.mxu0 0
    %154 = vmatprep.subr.bf16.mxu0 0
    %155 = vmatpush2.bf16.msra.mxu0 0
    %156 = vmatprep.subr.bf16.mxu0 0
    %157 = vmatpush2.bf16.msra.mxu0 0
    %158 = vmatprep.mubr.bf16.mxu0 0
    %159 = vmatmul.mubr.bf16.gmra.mxu0 %v124
    %v160 = vpop.f32.mrf.mxu0
    %v161 = vadd.f32 0.0, %v160
    %v162 = vpop.f32.mrf.mxu0
    %v163 = vadd.f32 0.0, %v162
    %v164 = vpop.f32.mrf.mxu0
    %v165 = vpop.f32.mrf.mxu0
    %166 = vdwg.mxu0
    %167 = vst [vmem:[#allocation2] sm:$0x3] %v161
    %168 = vst [vmem:[#allocation2 + $0x8] sm:$0x3] %v163
    %vm169 = vcmask 1041408
    %v170 = vsel %vm169, %v161, 0.0
    %v171 = vrot.slane %v170, 4
    %v172 = vadd.f32 %v170, %v171
    %v173 = vrot.slane %v172, 2
    %v174 = vadd.f32 %v172, %v173
    %v175 = vrot.slane %v174, 1
    %v176 = vadd.f32 %v174, %v175
    %v177 = vsel %vm169, %v163, 0.0
    %v178 = vrot.slane %v177, 4
    %v179 = vadd.f32 %v177, %v178
    %v180 = vrot.slane %v179, 2
    %v181 = vadd.f32 %v179, %v180
    %v182 = vrot.slane %v181, 1
    %v183 = vadd.f32 %v181, %v182
    %v184 = vadd.f32 %v176, 0.0
    %v185 = vadd.f32 %v183, 0.0
    %v186 = vmul.f32 %v161, %v161
    %v187 = vmul.f32 %v163, %v163
    %v188 = vsel %vm169, %v186, 0.0
    %v189 = vrot.slane %v188, 4
    %v190 = vadd.f32 %v188, %v189
    %v191 = vrot.slane %v190, 2
    %v192 = vadd.f32 %v190, %v191
    %v193 = vrot.slane %v192, 1
    %v194 = vadd.f32 %v192, %v193
    %v195 = vsel %vm169, %v187, 0.0
    %v196 = vrot.slane %v195, 4
    %v197 = vadd.f32 %v195, %v196
    %v198 = vrot.slane %v197, 2
    %v199 = vadd.f32 %v197, %v198
    %v200 = vrot.slane %v199, 1
    %v201 = vadd.f32 %v199, %v200
    %v202 = vadd.f32 %v194, 0.0
    %v203 = vadd.f32 %v201, 0.0
    %v204 = vld [vmem:[%s0] sm:$0x1]
    %s205 = scalar_lea.vmem [#allocation6], 16
    %v206 = vld [vmem:[%s205] sm:$0xff]
    %v207 = vld [vmem:[%s205 + $0x8] sm:$0xff]
    %v210 = vunpack.c.l.b16 %v206
    %v211 = vunpack.c.h.b16 %v206
    %v212 = vunpack.c.l.b16 %v207
    %v213 = vunpack.c.h.b16 %v207
    %v214 = vpack.c.b16 %v212, %v210
    %v215 = vpack.c.b16 %v213, %v211
    %v219 = vsel %vm122, %v204, 0
    %221 = vmatprep.subr.bf16.mxu0 0
    %222 = vmatpush1.bf16.msra.mxu0 0
    %223 = vmatprep.subr.bf16.mxu0 0
    %224 = vmatpush1.bf16.msra.mxu0 0
    %225 = vmatprep.subr.bf16.mxu0 0
    %226 = vmatpush1.bf16.msra.mxu0 0
    %227 = vmatprep.subr.bf16.mxu0 0
    %228 = vmatpush1.bf16.msra.mxu0 0
    %229 = vmatprep.subr.bf16.mxu0 0
    %230 = vmatpush1.bf16.msra.mxu0 0
    %231 = vmatprep.subr.bf16.mxu0 0
    %232 = vmatpush1.bf16.msra.mxu0 0
    %233 = vmatprep.subr.bf16.mxu0 0
    %234 = vmatpush1.bf16.msra.mxu0 0
    %235 = vmatprep.subr.bf16.mxu0 %v215
    %236 = vmatpush1.bf16.msra.mxu0 %v214
    %237 = vmatprep.subr.bf16.mxu0 0
    %238 = vmatpush2.bf16.msra.mxu0 0
    %239 = vmatprep.subr.bf16.mxu0 0
    %240 = vmatpush2.bf16.msra.mxu0 0
    %241 = vmatprep.subr.bf16.mxu0 0
    %242 = vmatpush2.bf16.msra.mxu0 0
    %243 = vmatprep.subr.bf16.mxu0 0
    %244 = vmatpush2.bf16.msra.mxu0 0
    %245 = vmatprep.subr.bf16.mxu0 0
    %246 = vmatpush2.bf16.msra.mxu0 0
    %247 = vmatprep.subr.bf16.mxu0 0
    %248 = vmatpush2.bf16.msra.mxu0 0
    %249 = vmatprep.subr.bf16.mxu0 0
    %250 = vmatpush2.bf16.msra.mxu0 0
    %251 = vmatprep.subr.bf16.mxu0 0
    %252 = vmatpush2.bf16.msra.mxu0 0
    %253 = vmatprep.mubr.bf16.mxu0 0
    %254 = vmatmul.mubr.bf16.gmra.mxu0 %v219
    %v255 = vpop.f32.mrf.mxu0
    %v256 = vadd.f32 0.0, %v255
    %v257 = vpop.f32.mrf.mxu0
    %v258 = vadd.f32 0.0, %v257
    %v259 = vpop.f32.mrf.mxu0
    %v260 = vpop.f32.mrf.mxu0
    %261 = vdwg.mxu0
    %v264 = vrot.slane %v256, 6
    %v265 = vrot.slane %v258, 6
    %268 = vst [vmem:[#allocation2] sm:$0xc] %v264
    %269 = vst [vmem:[#allocation2 + $0x8] sm:$0xc] %v265
    %v270 = vsel %vm169, %v256, 0.0
    %v271 = vrot.slane %v270, 4
    %v272 = vadd.f32 %v270, %v271
    %v273 = vrot.slane %v272, 2
    %v274 = vadd.f32 %v272, %v273
    %v275 = vrot.slane %v274, 1
    %v276 = vadd.f32 %v274, %v275
    %v277 = vsel %vm169, %v258, 0.0
    %v278 = vrot.slane %v277, 4
    %v279 = vadd.f32 %v277, %v278
    %v280 = vrot.slane %v279, 2
    %v281 = vadd.f32 %v279, %v280
    %v282 = vrot.slane %v281, 1
    %v283 = vadd.f32 %v281, %v282
    %v284 = vadd.f32 %v184, %v276
    %v285 = vadd.f32 %v185, %v283
    %v286 = vmul.f32 %v256, %v256
    %v287 = vmul.f32 %v258, %v258
    %v288 = vsel %vm169, %v286, 0.0
    %v289 = vrot.slane %v288, 4
    %v290 = vadd.f32 %v288, %v289
    %v291 = vrot.slane %v290, 2
    %v292 = vadd.f32 %v290, %v291
    %v293 = vrot.slane %v292, 1
    %v294 = vadd.f32 %v292, %v293
    %v295 = vsel %vm169, %v287, 0.0
    %v296 = vrot.slane %v295, 4
    %v297 = vadd.f32 %v295, %v296
    %v298 = vrot.slane %v297, 2
    %v299 = vadd.f32 %v297, %v298
    %v300 = vrot.slane %v299, 1
    %v301 = vadd.f32 %v299, %v300
    %v302 = vadd.f32 %v202, %v294
    %v303 = vadd.f32 %v203, %v301
    %v304 = vld [vmem:[%s0] sm:$0x1]
    %s305 = scalar_lea.vmem [#allocation6], 32
    %v306 = vld [vmem:[%s305] sm:$0xff]
    %v307 = vld [vmem:[%s305 + $0x8] sm:$0xff]
    %v310 = vunpack.c.l.b16 %v306
    %v311 = vunpack.c.h.b16 %v306
    %v312 = vunpack.c.l.b16 %v307
    %v313 = vunpack.c.h.b16 %v307
    %v314 = vpack.c.b16 %v312, %v310
    %v315 = vpack.c.b16 %v313, %v311
    %v319 = vsel %vm122, %v304, 0
    %321 = vmatprep.subr.bf16.mxu0 0
    %322 = vmatpush1.bf16.msra.mxu0 0
    %323 = vmatprep.subr.bf16.mxu0 0
    %324 = vmatpush1.bf16.msra.mxu0 0
    %325 = vmatprep.subr.bf16.mxu0 0
    %326 = vmatpush1.bf16.msra.mxu0 0
    %327 = vmatprep.subr.bf16.mxu0 0
    %328 = vmatpush1.bf16.msra.mxu0 0
    %329 = vmatprep.subr.bf16.mxu0 0
    %330 = vmatpush1.bf16.msra.mxu0 0
    %331 = vmatprep.subr.bf16.mxu0 0
    %332 = vmatpush1.bf16.msra.mxu0 0
    %333 = vmatprep.subr.bf16.mxu0 0
    %334 = vmatpush1.bf16.msra.mxu0 0
    %335 = vmatprep.subr.bf16.mxu0 %v315
    %336 = vmatpush1.bf16.msra.mxu0 %v314
    %337 = vmatprep.subr.bf16.mxu0 0
    %338 = vmatpush2.bf16.msra.mxu0 0
    %339 = vmatprep.subr.bf16.mxu0 0
    %340 = vmatpush2.bf16.msra.mxu0 0
    %341 = vmatprep.subr.bf16.mxu0 0
    %342 = vmatpush2.bf16.msra.mxu0 0
    %343 = vmatprep.subr.bf16.mxu0 0
    %344 = vmatpush2.bf16.msra.mxu0 0
    %345 = vmatprep.subr.bf16.mxu0 0
    %346 = vmatpush2.bf16.msra.mxu0 0
    %347 = vmatprep.subr.bf16.mxu0 0
    %348 = vmatpush2.bf16.msra.mxu0 0
    %349 = vmatprep.subr.bf16.mxu0 0
    %350 = vmatpush2.bf16.msra.mxu0 0
    %351 = vmatprep.subr.bf16.mxu0 0
    %352 = vmatpush2.bf16.msra.mxu0 0
    %353 = vmatprep.mubr.bf16.mxu0 0
    %354 = vmatmul.mubr.bf16.gmra.mxu0 %v319
    %v355 = vpop.f32.mrf.mxu0
    %v356 = vadd.f32 0.0, %v355
    %v357 = vpop.f32.mrf.mxu0
    %v358 = vadd.f32 0.0, %v357
    %v359 = vpop.f32.mrf.mxu0
    %v360 = vpop.f32.mrf.mxu0
    %361 = vdwg.mxu0
    %v364 = vrot.slane %v356, 4
    %v365 = vrot.slane %v358, 4
    %368 = vst [vmem:[#allocation2] sm:$0x30] %v364
    %369 = vst [vmem:[#allocation2 + $0x8] sm:$0x30] %v365
    %v370 = vsel %vm169, %v356, 0.0
    %v371 = vrot.slane %v370, 4
    %v372 = vadd.f32 %v370, %v371
    %v373 = vrot.slane %v372, 2
    %v374 = vadd.f32 %v372, %v373
    %v375 = vrot.slane %v374, 1
    %v376 = vadd.f32 %v374, %v375
    %v377 = vsel %vm169, %v358, 0.0
    %v378 = vrot.slane %v377, 4
    %v379 = vadd.f32 %v377, %v378
    %v380 = vrot.slane %v379, 2
    %v381 = vadd.f32 %v379, %v380
    %v382 = vrot.slane %v381, 1
    %v383 = vadd.f32 %v381, %v382
    %v384 = vadd.f32 %v284, %v376
    %v385 = vadd.f32 %v285, %v383
    %v386 = vmul.f32 %v356, %v356
    %v387 = vmul.f32 %v358, %v358
    %v388 = vsel %vm169, %v386, 0.0
    %v389 = vrot.slane %v388, 4
    %v390 = vadd.f32 %v388, %v389
    %v391 = vrot.slane %v390, 2
    %v392 = vadd.f32 %v390, %v391
    %v393 = vrot.slane %v392, 1
    %v394 = vadd.f32 %v392, %v393
    %v395 = vsel %vm169, %v387, 0.0
    %v396 = vrot.slane %v395, 4
    %v397 = vadd.f32 %v395, %v396
    %v398 = vrot.slane %v397, 2
    %v399 = vadd.f32 %v397, %v398
    %v400 = vrot.slane %v399, 1
    %v401 = vadd.f32 %v399, %v400
    %v402 = vadd.f32 %v302, %v394
    %v403 = vadd.f32 %v303, %v401
    %v404 = vld [vmem:[%s0] sm:$0x1]
    %s405 = scalar_lea.vmem [#allocation6], 48
    %v406 = vld [vmem:[%s405] sm:$0xff]
    %v407 = vld [vmem:[%s405 + $0x8] sm:$0xff]
    %v410 = vunpack.c.l.b16 %v406
    %v411 = vunpack.c.h.b16 %v406
    %v412 = vunpack.c.l.b16 %v407
    %v413 = vunpack.c.h.b16 %v407
    %v414 = vpack.c.b16 %v412, %v410
    %v415 = vpack.c.b16 %v413, %v411
    %v419 = vsel %vm122, %v404, 0
    %421 = vmatprep.subr.bf16.mxu0 0
    %422 = vmatpush1.bf16.msra.mxu0 0
    %423 = vmatprep.subr.bf16.mxu0 0
    %424 = vmatpush1.bf16.msra.mxu0 0
    %425 = vmatprep.subr.bf16.mxu0 0
    %426 = vmatpush1.bf16.msra.mxu0 0
    %427 = vmatprep.subr.bf16.mxu0 0
    %428 = vmatpush1.bf16.msra.mxu0 0
    %429 = vmatprep.subr.bf16.mxu0 0
    %430 = vmatpush1.bf16.msra.mxu0 0
    %431 = vmatprep.subr.bf16.mxu0 0
    %432 = vmatpush1.bf16.msra.mxu0 0
    %433 = vmatprep.subr.bf16.mxu0 0
    %434 = vmatpush1.bf16.msra.mxu0 0
    %435 = vmatprep.subr.bf16.mxu0 %v415
    %436 = vmatpush1.bf16.msra.mxu0 %v414
    %437 = vmatprep.subr.bf16.mxu0 0
    %438 = vmatpush2.bf16.msra.mxu0 0
    %439 = vmatprep.subr.bf16.mxu0 0
    %440 = vmatpush2.bf16.msra.mxu0 0
    %441 = vmatprep.subr.bf16.mxu0 0
    %442 = vmatpush2.bf16.msra.mxu0 0
    %443 = vmatprep.subr.bf16.mxu0 0
    %444 = vmatpush2.bf16.msra.mxu0 0
    %445 = vmatprep.subr.bf16.mxu0 0
    %446 = vmatpush2.bf16.msra.mxu0 0
    %447 = vmatprep.subr.bf16.mxu0 0
    %448 = vmatpush2.bf16.msra.mxu0 0
    %449 = vmatprep.subr.bf16.mxu0 0
    %450 = vmatpush2.bf16.msra.mxu0 0
    %451 = vmatprep.subr.bf16.mxu0 0
    %452 = vmatpush2.bf16.msra.mxu0 0
    %453 = vmatprep.mubr.bf16.mxu0 0
    %454 = vmatmul.mubr.bf16.gmra.mxu0 %v419
    %v455 = vpop.f32.mrf.mxu0
    %v456 = vadd.f32 0.0, %v455
    %v457 = vpop.f32.mrf.mxu0
    %v458 = vadd.f32 0.0, %v457
    %v459 = vpop.f32.mrf.mxu0
    %v460 = vpop.f32.mrf.mxu0
    %461 = vdwg.mxu0
    %v464 = vrot.slane %v456, 2
    %v465 = vrot.slane %v458, 2
    %468 = vst [vmem:[#allocation2] sm:$0xc0] %v464
    %469 = vst [vmem:[#allocation2 + $0x8] sm:$0xc0] %v465
    %v470 = vsel %vm169, %v456, 0.0
    %v471 = vrot.slane %v470, 4
    %v472 = vadd.f32 %v470, %v471
    %v473 = vrot.slane %v472, 2
    %v474 = vadd.f32 %v472, %v473
    %v475 = vrot.slane %v474, 1
    %v476 = vadd.f32 %v474, %v475
    %v477 = vsel %vm169, %v458, 0.0
    %v478 = vrot.slane %v477, 4
    %v479 = vadd.f32 %v477, %v478
    %v480 = vrot.slane %v479, 2
    %v481 = vadd.f32 %v479, %v480
    %v482 = vrot.slane %v481, 1
    %v483 = vadd.f32 %v481, %v482
    %v484 = vadd.f32 %v384, %v476
    %v485 = vadd.f32 %v385, %v483
    %v486 = vmul.f32 %v456, %v456
    %v487 = vmul.f32 %v458, %v458
    %v488 = vsel %vm169, %v486, 0.0
    %v489 = vrot.slane %v488, 4
    %v490 = vadd.f32 %v488, %v489
    %v491 = vrot.slane %v490, 2
    %v492 = vadd.f32 %v490, %v491
    %v493 = vrot.slane %v492, 1
    %v494 = vadd.f32 %v492, %v493
    %v495 = vsel %vm169, %v487, 0.0
    %v496 = vrot.slane %v495, 4
    %v497 = vadd.f32 %v495, %v496
    %v498 = vrot.slane %v497, 2
    %v499 = vadd.f32 %v497, %v498
    %v500 = vrot.slane %v499, 1
    %v501 = vadd.f32 %v499, %v500
    %v502 = vadd.f32 %v402, %v494
    %v503 = vadd.f32 %v403, %v501
    %v504 = vld [vmem:[#allocation10] sm:$0xff]
    %v505 = vld [vmem:[#allocation10 + $0x8] sm:$0xff]
    %v506 = vld [vmem:[#allocation10 + $0x10] sm:$0xff]
    %v507 = vld [vmem:[#allocation10 + $0x18] sm:$0xff]
    %v508 = vld [vmem:[#allocation10 + $0x20] sm:$0xff]
    %v509 = vld [vmem:[#allocation10 + $0x28] sm:$0xff]
    %v510 = vld [vmem:[#allocation10 + $0x30] sm:$0xff]
    %v511 = vld [vmem:[#allocation10 + $0x38] sm:$0xff]
    %v512 = vld [vmem:[#allocation10 + $0x40] sm:$0xff]
    %v513 = vld [vmem:[#allocation10 + $0x48] sm:$0xff]
    %v514 = vld [vmem:[#allocation10 + $0x50] sm:$0xff]
    %v515 = vld [vmem:[#allocation10 + $0x58] sm:$0xff]
    %v516 = vld [vmem:[#allocation10 + $0x60] sm:$0xff]
    %v517 = vld [vmem:[#allocation10 + $0x68] sm:$0xff]
    %v518 = vld [vmem:[#allocation10 + $0x70] sm:$0xff]
    %v519 = vld [vmem:[#allocation10 + $0x78] sm:$0xff]
    %v520 = vld [vmem:[#allocation10 + $0x80] sm:$0xff]
    %v521 = vld [vmem:[#allocation10 + $0x88] sm:$0xff]
    %v522 = vld [vmem:[#allocation10 + $0x90] sm:$0xff]
    %v523 = vld [vmem:[#allocation10 + $0x98] sm:$0xff]
    %v524 = vld [vmem:[#allocation10 + $0xa0] sm:$0xff]
    %v525 = vld [vmem:[#allocation10 + $0xa8] sm:$0xff]
    %v526 = vld [vmem:[#allocation10 + $0xb0] sm:$0xff]
    %v527 = vld [vmem:[#allocation10 + $0xb8] sm:$0xff]
    %v528 = vld [vmem:[#allocation10 + $0xc0] sm:$0xff]
    %v529 = vld [vmem:[#allocation10 + $0xc8] sm:$0xff]
    %v530 = vld [vmem:[#allocation10 + $0xd0] sm:$0xff]
    %v531 = vld [vmem:[#allocation10 + $0xd8] sm:$0xff]
    %v532 = vld [vmem:[#allocation10 + $0xe0] sm:$0xff]
    %v533 = vld [vmem:[#allocation10 + $0xe8] sm:$0xff]
    %v534 = vld [vmem:[#allocation10 + $0xf0] sm:$0xff]
    %v535 = vld [vmem:[#allocation10 + $0xf8] sm:$0xff]
    %v536 = vld [vmem:[#allocation10 + $0x100] sm:$0xff]
    %v537 = vld [vmem:[#allocation10 + $0x108] sm:$0xff]
    %v538 = vld [vmem:[#allocation10 + $0x110] sm:$0xff]
    %v539 = vld [vmem:[#allocation10 + $0x118] sm:$0xff]
    %v540 = vld [vmem:[#allocation10 + $0x120] sm:$0xff]
    %v541 = vld [vmem:[#allocation10 + $0x128] sm:$0xff]
    %v542 = vld [vmem:[#allocation10 + $0x130] sm:$0xff]
    %v543 = vld [vmem:[#allocation10 + $0x138] sm:$0xff]
    %v544 = vld [vmem:[#allocation10 + $0x140] sm:$0xff]
    %v545 = vld [vmem:[#allocation10 + $0x148] sm:$0xff]
    %v546 = vld [vmem:[#allocation10 + $0x150] sm:$0xff]
    %v547 = vld [vmem:[#allocation10 + $0x158] sm:$0xff]
    %v548 = vld [vmem:[#allocation10 + $0x160] sm:$0xff]
    %v549 = vld [vmem:[#allocation10 + $0x168] sm:$0xff]
    %v550 = vld [vmem:[#allocation10 + $0x170] sm:$0xff]
    %v551 = vld [vmem:[#allocation10 + $0x178] sm:$0xff]
    %v552 = vld [vmem:[#allocation10 + $0x180] sm:$0xff]
    %v553 = vld [vmem:[#allocation10 + $0x188] sm:$0xff]
    %v554 = vld [vmem:[#allocation10 + $0x190] sm:$0xff]
    %v555 = vld [vmem:[#allocation10 + $0x198] sm:$0xff]
    %v556 = vld [vmem:[#allocation10 + $0x1a0] sm:$0xff]
    %v557 = vld [vmem:[#allocation10 + $0x1a8] sm:$0xff]
    %v558 = vld [vmem:[#allocation10 + $0x1b0] sm:$0xff]
    %v559 = vld [vmem:[#allocation10 + $0x1b8] sm:$0xff]
    %v560 = vld [vmem:[#allocation10 + $0x1c0] sm:$0xff]
    %v561 = vld [vmem:[#allocation10 + $0x1c8] sm:$0xff]
    %v562 = vld [vmem:[#allocation10 + $0x1d0] sm:$0xff]
    %v563 = vld [vmem:[#allocation10 + $0x1d8] sm:$0xff]
    %v564 = vld [vmem:[#allocation10 + $0x1e0] sm:$0xff]
    %v565 = vld [vmem:[#allocation10 + $0x1e8] sm:$0xff]
    %v566 = vld [vmem:[#allocation10 + $0x1f0] sm:$0xff]
    %v567 = vld [vmem:[#allocation10 + $0x1f8] sm:$0xff]
    %568 = vmatprep.subr.mxu0 %v535
    %569 = vmatpush1.msra.mxu0 %v534
    %570 = vmatprep.subr.mxu0 %v533
    %571 = vmatpush1.msra.mxu0 %v532
    %572 = vmatprep.subr.mxu0 %v531
    %573 = vmatpush1.msra.mxu0 %v530
    %574 = vmatprep.subr.mxu0 %v529
    %575 = vmatpush1.msra.mxu0 %v528
    %576 = vmatprep.subr.mxu0 %v527
    %577 = vmatpush1.msra.mxu0 %v526
    %578 = vmatprep.subr.mxu0 %v525
    %579 = vmatpush1.msra.mxu0 %v524
    %580 = vmatprep.subr.mxu0 %v523
    %581 = vmatpush1.msra.mxu0 %v522
    %582 = vmatprep.subr.mxu0 %v521
    %583 = vmatpush1.msra.mxu0 %v520
    %584 = vmatprep.subr.mxu0 %v519
    %585 = vmatpush1.msra.mxu0 %v518
    %586 = vmatprep.subr.mxu0 %v517
    %587 = vmatpush1.msra.mxu0 %v516
    %588 = vmatprep.subr.mxu0 %v515
    %589 = vmatpush1.msra.mxu0 %v514
    %590 = vmatprep.subr.mxu0 %v513
    %591 = vmatpush1.msra.mxu0 %v512
    %592 = vmatprep.subr.mxu0 %v511
    %593 = vmatpush1.msra.mxu0 %v510
    %594 = vmatprep.subr.mxu0 %v509
    %595 = vmatpush1.msra.mxu0 %v508
    %596 = vmatprep.subr.mxu0 %v507
    %597 = vmatpush1.msra.mxu0 %v506
    %598 = vmatprep.subr.mxu0 %v505
    %599 = vmatpush1.msra.mxu0 %v504
    %600 = vmatprep.subr.mxu0 %v567
    %601 = vmatpush2.msra.mxu0 %v566
    %602 = vmatprep.subr.mxu0 %v565
    %603 = vmatpush2.msra.mxu0 %v564
    %604 = vmatprep.subr.mxu0 %v563
    %605 = vmatpush2.msra.mxu0 %v562
    %606 = vmatprep.subr.mxu0 %v561
    %607 = vmatpush2.msra.mxu0 %v560
    %608 = vmatprep.subr.mxu0 %v559
    %609 = vmatpush2.msra.mxu0 %v558
    %610 = vmatprep.subr.mxu0 %v557
    %611 = vmatpush2.msra.mxu0 %v556
    %612 = vmatprep.subr.mxu0 %v555
    %613 = vmatpush2.msra.mxu0 %v554
    %614 = vmatprep.subr.mxu0 %v553
    %615 = vmatpush2.msra.mxu0 %v552
    %616 = vmatprep.subr.mxu0 %v551
    %617 = vmatpush2.msra.mxu0 %v550
    %618 = vmatprep.subr.mxu0 %v549
    %619 = vmatpush2.msra.mxu0 %v548
    %620 = vmatprep.subr.mxu0 %v547
    %621 = vmatpush2.msra.mxu0 %v546
    %622 = vmatprep.subr.mxu0 %v545
    %623 = vmatpush2.msra.mxu0 %v544
    %624 = vmatprep.subr.mxu0 %v543
    %625 = vmatpush2.msra.mxu0 %v542
    %626 = vmatprep.subr.mxu0 %v541
    %627 = vmatpush2.msra.mxu0 %v540
    %628 = vmatprep.subr.mxu0 %v539
    %629 = vmatpush2.msra.mxu0 %v538
    %630 = vmatprep.subr.mxu0 %v537
    %631 = vmatpush2.msra.mxu0 %v536
    %632 = vmatprep.mubr.f32.mxu0 %v485
    %633 = vmatmul.mubr.f32.gmra.mxu0 %v484
    %v634 = vpop.f32.mrf.mxu0
    %v635 = vadd.f32 0.0, %v634
    %v636 = vpop.f32.mrf.mxu0
    %v637 = vadd.f32 0.0, %v636
    %638 = vdwg.mxu0
    %v639 = vmul.f32 %v635, 0.03125
    %v640 = vmul.f32 %v637, 0.03125
    %641 = vmatprep.subr.mxu0 %v535
    %642 = vmatpush1.msra.mxu0 %v534
    %643 = vmatprep.subr.mxu0 %v533
    %644 = vmatpush1.msra.mxu0 %v532
    %645 = vmatprep.subr.mxu0 %v531
    %646 = vmatpush1.msra.mxu0 %v530
    %647 = vmatprep.subr.mxu0 %v529
    %648 = vmatpush1.msra.mxu0 %v528
    %649 = vmatprep.subr.mxu0 %v527
    %650 = vmatpush1.msra.mxu0 %v526
    %651 = vmatprep.subr.mxu0 %v525
    %652 = vmatpush1.msra.mxu0 %v524
    %653 = vmatprep.subr.mxu0 %v523
    %654 = vmatpush1.msra.mxu0 %v522
    %655 = vmatprep.subr.mxu0 %v521
    %656 = vmatpush1.msra.mxu0 %v520
    %657 = vmatprep.subr.mxu0 %v519
    %658 = vmatpush1.msra.mxu0 %v518
    %659 = vmatprep.subr.mxu0 %v517
    %660 = vmatpush1.msra.mxu0 %v516
    %661 = vmatprep.subr.mxu0 %v515
    %662 = vmatpush1.msra.mxu0 %v514
    %663 = vmatprep.subr.mxu0 %v513
    %664 = vmatpush1.msra.mxu0 %v512
    %665 = vmatprep.subr.mxu0 %v511
    %666 = vmatpush1.msra.mxu0 %v510
    %667 = vmatprep.subr.mxu0 %v509
    %668 = vmatpush1.msra.mxu0 %v508
    %669 = vmatprep.subr.mxu0 %v507
    %670 = vmatpush1.msra.mxu0 %v506
    %671 = vmatprep.subr.mxu0 %v505
    %672 = vmatpush1.msra.mxu0 %v504
    %673 = vmatprep.subr.mxu0 %v567
    %674 = vmatpush2.msra.mxu0 %v566
    %675 = vmatprep.subr.mxu0 %v565
    %676 = vmatpush2.msra.mxu0 %v564
    %677 = vmatprep.subr.mxu0 %v563
    %678 = vmatpush2.msra.mxu0 %v562
    %679 = vmatprep.subr.mxu0 %v561
    %680 = vmatpush2.msra.mxu0 %v560
    %681 = vmatprep.subr.mxu0 %v559
    %682 = vmatpush2.msra.mxu0 %v558
    %683 = vmatprep.subr.mxu0 %v557
    %684 = vmatpush2.msra.mxu0 %v556
    %685 = vmatprep.subr.mxu0 %v555
    %686 = vmatpush2.msra.mxu0 %v554
    %687 = vmatprep.subr.mxu0 %v553
    %688 = vmatpush2.msra.mxu0 %v552
    %689 = vmatprep.subr.mxu0 %v551
    %690 = vmatpush2.msra.mxu0 %v550
    %691 = vmatprep.subr.mxu0 %v549
    %692 = vmatpush2.msra.mxu0 %v548
    %693 = vmatprep.subr.mxu0 %v547
    %694 = vmatpush2.msra.mxu0 %v546
    %695 = vmatprep.subr.mxu0 %v545
    %696 = vmatpush2.msra.mxu0 %v544
    %697 = vmatprep.subr.mxu0 %v543
    %698 = vmatpush2.msra.mxu0 %v542
    %699 = vmatprep.subr.mxu0 %v541
    %700 = vmatpush2.msra.mxu0 %v540
    %701 = vmatprep.subr.mxu0 %v539
    %702 = vmatpush2.msra.mxu0 %v538
    %703 = vmatprep.subr.mxu0 %v537
    %704 = vmatpush2.msra.mxu0 %v536
    %705 = vmatprep.mubr.f32.mxu0 %v503
    %706 = vmatmul.mubr.f32.gmra.mxu0 %v502
    %v707 = vpop.f32.mrf.mxu0
    %v708 = vadd.f32 0.0, %v707
    %v709 = vpop.f32.mrf.mxu0
    %v710 = vadd.f32 0.0, %v709
    %711 = vdwg.mxu0
    %v712 = vmul.f32 %v708, 0.03125
    %v713 = vmul.f32 %v710, 0.03125
    %v714 = vmul.f32 %v639, %v639
    %v715 = vmul.f32 %v640, %v640
    %v716 = vsub.f32 %v712, %v714
    %v717 = vsub.f32 %v713, %v715
    %v718 = vld [vmem:[#allocation11] sm:$0xf]
    %v719 = vadd.f32 %v716, 1e-05
    %v720 = vadd.f32 %v717, 1e-05
    %v721 = vrsqrt.pop %v719
    %v722 = vrsqrt.pop %v720
    %v725 = vcombine.low %v721, %v722
    %v727 = vunpack.c.l.s4 1983009808
    %v728 = vunpack.c.0.s8 %v727
    %v729 = vlaneseq
    %v730 = vshrl.u32 %v729, 7
    %v731 = vsub.s32 %v728, %v730
    %v732 = vrot.slane %v725, %v731
    %v734 = vmul.f32 %v718, %v732
    %v736 = vlaneseq
    %v737 = vshrl.u32 %v736, 7
    %v738 = vsub.s32 0, %v737
    %v739 = vrot.slane %v734, %v738
    %v740 = vlaneseq
    %v741 = vshrl.u32 %v740, 7
    %v742 = vsub.s32 2, %v741
    %v743 = vrot.slane %v734, %v742
    %v746 = vmul.f32 %v639, %v739
    %v747 = vmul.f32 %v640, %v743
    %v750 = vcombine.low %v746, %v747
    %v752 = vunpack.c.l.s4 1983009808
    %v753 = vunpack.c.0.s8 %v752
    %v754 = vlaneseq
    %v755 = vshrl.u32 %v754, 7
    %v756 = vsub.s32 %v753, %v755
    %v757 = vrot.slane %v750, %v756
    %v758 = vrot.slane %v757, 7
    %v760 = vsub.f32 %v718, %v758
    %v761 = vld [vmem:[#allocation2] ss:$8 sm:$0x3]
    %v763 = vunpack.c.l.s4 1966171168
    %v764 = vunpack.c.0.s8 %v763
    %v765 = vlaneseq
    %v766 = vshrl.u32 %v765, 7
    %v767 = vsub.s32 %v764, %v766
    %v768 = vrot.slane %v734, %v767
    %v770 = vmul.f32 %v761, %v768
    %v773 = vunpack.c.l.s4 1966171168
    %v774 = vunpack.c.0.s8 %v773
    %v775 = vlaneseq
    %v776 = vshrl.u32 %v775, 7
    %v777 = vsub.s32 %v774, %v776
    %v778 = vrot.slane %v760, %v777
    %v779 = vcombine.high %v778, %v778
    %v781 = vadd.f32 %v770, %v779
    %v782 = vmax.f32 %v781, 0.0
    %v784 = vlaneseq
    %v785 = vshrl.u32 %v784, 7
    %v786 = vsub.s32 0, %v785
    %v787 = vrot.slane %v782, %v786
    %v788 = vlaneseq
    %v789 = vshrl.u32 %v788, 7
    %v790 = vsub.s32 1, %v789
    %v791 = vrot.slane %v782, %v790
    %v794 = vpack.c.bf16 %v787, %v787
    %v795 = vpack.c.bf16 %v791, %v791
    %v798 = vunpack.c.l.b16 %v794
    %v799 = vunpack.c.l.b16 %v795
    %v800 = vpack.c.b16 %v799, %v798
    %v801 = vrot.slane %v800, 7
    %vm803 = vcmask 1041409
    %vm804 = vsmask.f32 1280
    %vm805 = vmand %vm803, %vm804
    %vm806 = vcmask 1045509
    %vm807 = vsmask.f32 5376
    %vm808 = vmand %vm806, %vm807
    %vm809 = vmor %vm808, %vm805
    %v810 = vld [vmem:[#allocation3] sm:$0x22]
    %v811 = vsel %vm809, %v801, %v810
    %812 = vst [vmem:[#allocation3] sm:$0x22] %v811
    %s813 = scalar_lea.vmem [#allocation2], 2
    %v814 = vld [vmem:[%s813] ss:$8 sm:$0x3]
    %v815 = vmul.f32 %v814, %v768
    %v816 = vadd.f32 %v815, %v779
    %v817 = vmax.f32 %v816, 0.0
    %v819 = vlaneseq
    %v820 = vshrl.u32 %v819, 7
    %v821 = vsub.s32 0, %v820
    %v822 = vrot.slane %v817, %v821
    %v823 = vlaneseq
    %v824 = vshrl.u32 %v823, 7
    %v825 = vsub.s32 1, %v824
    %v826 = vrot.slane %v817, %v825
    %v829 = vpack.c.bf16 %v822, %v822
    %v830 = vpack.c.bf16 %v826, %v826
    %v833 = vunpack.c.l.b16 %v829
    %v834 = vunpack.c.l.b16 %v830
    %v835 = vpack.c.b16 %v834, %v833
    %v836 = vrot.slane %v835, 6
    %vm838 = vcmask 1042434
    %vm839 = vsmask.f32 2304
    %vm840 = vmand %vm838, %vm839
    %vm841 = vcmask 1046534
    %vm842 = vsmask.f32 6400
    %vm843 = vmand %vm841, %vm842
    %vm844 = vmor %vm843, %vm840
    %v845 = vld [vmem:[#allocation3] sm:$0x44]
    %v846 = vsel %vm844, %v836, %v845
    %847 = vst [vmem:[#allocation3] sm:$0x44] %v846
    %s848 = scalar_lea.vmem [#allocation2], 4
    %v849 = vld [vmem:[%s848] ss:$8 sm:$0x3]
    %v850 = vmul.f32 %v849, %v768
    %v851 = vadd.f32 %v850, %v779
    %v852 = vmax.f32 %v851, 0.0
    %v854 = vlaneseq
    %v855 = vshrl.u32 %v854, 7
    %v856 = vsub.s32 0, %v855
    %v857 = vrot.slane %v852, %v856
    %v858 = vlaneseq
    %v859 = vshrl.u32 %v858, 7
    %v860 = vsub.s32 1, %v859
    %v861 = vrot.slane %v852, %v860
    %v864 = vpack.c.bf16 %v857, %v857
    %v865 = vpack.c.bf16 %v861, %v861
    %v868 = vunpack.c.l.b16 %v864
    %v869 = vunpack.c.l.b16 %v865
    %v870 = vpack.c.b16 %v869, %v868
    %v871 = vrot.slane %v870, 5
    %vm873 = vcmask 1043459
    %vm874 = vsmask.f32 3328
    %vm875 = vmand %vm873, %vm874
    %vm876 = vcmask 1047559
    %vm877 = vsmask.f32 7424
    %vm878 = vmand %vm876, %vm877
    %vm879 = vmor %vm878, %vm875
    %v880 = vld [vmem:[#allocation3] sm:$0x88]
    %v881 = vsel %vm879, %v871, %v880
    %882 = vst [vmem:[#allocation3] sm:$0x88] %v881
    %s883 = scalar_lea.vmem [#allocation2], 6
    %v884 = vld [vmem:[%s883] ss:$8 sm:$0x3]
    %v885 = vmul.f32 %v884, %v768
    %v886 = vadd.f32 %v885, %v779
    %v887 = vmax.f32 %v886, 0.0
    %v889 = vlaneseq
    %v890 = vshrl.u32 %v889, 7
    %v891 = vsub.s32 0, %v890
    %v892 = vrot.slane %v887, %v891
    %v893 = vlaneseq
    %v894 = vshrl.u32 %v893, 7
    %v895 = vsub.s32 1, %v894
    %v896 = vrot.slane %v887, %v895
    %v899 = vpack.c.bf16 %v892, %v892
    %v900 = vpack.c.bf16 %v896, %v896
    %v903 = vunpack.c.l.b16 %v899
    %v904 = vunpack.c.l.b16 %v900
    %v905 = vpack.c.b16 %v904, %v903
    %vm907 = vcmask 1040384
    %vm908 = vsmask.f32 256
    %vm909 = vmand %vm907, %vm908
    %vm910 = vcmask 1044484
    %vm911 = vsmask.f32 4352
    %vm912 = vmand %vm910, %vm911
    %vm913 = vmor %vm912, %vm909
    %v914 = vld [vmem:[#allocation3 + $0x8] sm:$0x11]
    %v915 = vsel %vm913, %v905, %v914
    %916 = vst [vmem:[#allocation3 + $0x8] sm:$0x11] %v915
    %s917 = scalar_lea.vmem [#allocation2], 1
    %v918 = vld [vmem:[%s917] ss:$8 sm:$0x3]
    %v919 = vmul.f32 %v918, %v768
    %v920 = vadd.f32 %v919, %v779
    %v921 = vmax.f32 %v920, 0.0
    %v923 = vlaneseq
    %v924 = vshrl.u32 %v923, 7
    %v925 = vsub.s32 0, %v924
    %v926 = vrot.slane %v921, %v925
    %v927 = vlaneseq
    %v928 = vshrl.u32 %v927, 7
    %v929 = vsub.s32 1, %v928
    %v930 = vrot.slane %v921, %v929
    %v933 = vpack.c.bf16 %v926, %v926
    %v934 = vpack.c.bf16 %v930, %v930
    %v937 = vunpack.c.l.b16 %v933
    %v938 = vunpack.c.l.b16 %v934
    %v939 = vpack.c.b16 %v938, %v937
    %v941 = vshll.u32 %v939, 16
    %v943 = vrot.slane %v941, 6
    %vm945 = vsmask.f32 7946
    %vm946 = vmand %vm838, %vm945
    %vm947 = vsmask.f32 7962
    %vm948 = vmand %vm841, %vm947
    %vm949 = vmor %vm948, %vm946
    %v950 = vld [vmem:[#allocation3 + $0x8] sm:$0x44]
    %v951 = vsel %vm949, %v943, %v950
    %952 = vst [vmem:[#allocation3 + $0x8] sm:$0x44] %v951
    %s953 = scalar_lea.vmem [#allocation2], 3
    %v954 = vld [vmem:[%s953] ss:$8 sm:$0x3]
    %v955 = vmul.f32 %v954, %v768
    %v956 = vadd.f32 %v955, %v779
    %v957 = vmax.f32 %v956, 0.0
    %v959 = vlaneseq
    %v960 = vshrl.u32 %v959, 7
    %v961 = vsub.s32 0, %v960
    %v962 = vrot.slane %v957, %v961
    %v963 = vlaneseq
    %v964 = vshrl.u32 %v963, 7
    %v965 = vsub.s32 1, %v964
    %v966 = vrot.slane %v957, %v965
    %v969 = vpack.c.bf16 %v962, %v962
    %v970 = vpack.c.bf16 %v966, %v966
    %v973 = vunpack.c.l.b16 %v969
    %v974 = vunpack.c.l.b16 %v970
    %v975 = vpack.c.b16 %v974, %v973
    %v977 = vshll.u32 %v975, 16
    %v979 = vrot.slane %v977, 5
    %vm981 = vsmask.f32 7950
    %vm982 = vmand %vm873, %vm981
    %vm983 = vsmask.f32 7966
    %vm984 = vmand %vm876, %vm983
    %vm985 = vmor %vm984, %vm982
    %v986 = vld [vmem:[#allocation3 + $0x8] sm:$0x88]
    %v987 = vsel %vm985, %v979, %v986
    %988 = vst [vmem:[#allocation3 + $0x8] sm:$0x88] %v987
    %s989 = scalar_lea.vmem [#allocation2], 5
    %v990 = vld [vmem:[%s989] ss:$8 sm:$0x3]
    %v991 = vmul.f32 %v990, %v768
    %v992 = vadd.f32 %v991, %v779
    %v993 = vmax.f32 %v992, 0.0
    %v995 = vlaneseq
    %v996 = vshrl.u32 %v995, 7
    %v997 = vsub.s32 0, %v996
    %v998 = vrot.slane %v993, %v997
    %v999 = vlaneseq
    %v1000 = vshrl.u32 %v999, 7
    %v1001 = vsub.s32 1, %v1000
    %v1002 = vrot.slane %v993, %v1001
    %v1005 = vpack.c.bf16 %v998, %v998
    %v1006 = vpack.c.bf16 %v1002, %v1002
    %v1009 = vunpack.c.l.b16 %v1005
    %v1010 = vunpack.c.l.b16 %v1006
    %v1011 = vpack.c.b16 %v1010, %v1009
    %v1013 = vshll.u32 %v1011, 16
    %vm1016 = vsmask.f32 7938
    %vm1017 = vmand %vm907, %vm1016
    %vm1018 = vsmask.f32 7954
    %vm1019 = vmand %vm910, %vm1018
    %vm1020 = vmor %vm1019, %vm1017
    %v1021 = vld [vmem:[#allocation3 + $0x10] sm:$0x11]
    %v1022 = vsel %vm1020, %v1013, %v1021
    %1023 = vst [vmem:[#allocation3 + $0x10] sm:$0x11] %v1022
    %s1024 = scalar_lea.vmem [#allocation2], 7
    %v1025 = vld [vmem:[%s1024] ss:$8 sm:$0x3]
    %v1026 = vmul.f32 %v1025, %v768
    %v1027 = vadd.f32 %v1026, %v779
    %v1028 = vmax.f32 %v1027, 0.0
    %v1030 = vlaneseq
    %v1031 = vshrl.u32 %v1030, 7
    %v1032 = vsub.s32 0, %v1031
    %v1033 = vrot.slane %v1028, %v1032
    %v1034 = vlaneseq
    %v1035 = vshrl.u32 %v1034, 7
    %v1036 = vsub.s32 1, %v1035
    %v1037 = vrot.slane %v1028, %v1036
    %v1040 = vpack.c.bf16 %v1033, %v1033
    %v1041 = vpack.c.bf16 %v1037, %v1037
    %v1044 = vunpack.c.l.b16 %v1040
    %v1045 = vunpack.c.l.b16 %v1041
    %v1046 = vpack.c.b16 %v1045, %v1044
    %v1048 = vshll.u32 %v1046, 16
    %v1050 = vrot.slane %v1048, 7
    %vm1052 = vsmask.f32 7942
    %vm1053 = vmand %vm803, %vm1052
    %vm1054 = vsmask.f32 7958
    %vm1055 = vmand %vm806, %vm1054
    %vm1056 = vmor %vm1055, %vm1053
    %v1057 = vld [vmem:[#allocation3 + $0x10] sm:$0x22]
    %v1058 = vsel %vm1056, %v1050, %v1057
    %1059 = vst [vmem:[#allocation3 + $0x10] sm:$0x22] %v1058
    %v1060 = vld [vmem:[#allocation3] sm:$0xee]
    %v1061 = vld [vmem:[#allocation3 + $0x8] sm:$0x33]
    %v1062 = vld [vmem:[#allocation8] sm:$0xff]
    %v1063 = vld [vmem:[#allocation8 + $0x8] sm:$0xff]
    %v1064 = vld [vmem:[#allocation8 + $0x10] sm:$0xff]
    %v1065 = vld [vmem:[#allocation8 + $0x18] sm:$0xff]
    %v1066 = vld [vmem:[#allocation8 + $0x20] sm:$0xff]
    %v1067 = vld [vmem:[#allocation8 + $0x28] sm:$0xff]
    %v1068 = vld [vmem:[#allocation8 + $0x30] sm:$0xff]
    %v1069 = vld [vmem:[#allocation8 + $0x38] sm:$0xff]
    %v1070 = vld [vmem:[#allocation8 + $0x40] sm:$0xff]
    %v1071 = vld [vmem:[#allocation8 + $0x48] sm:$0xff]
    %v1072 = vld [vmem:[#allocation8 + $0x50] sm:$0xff]
    %v1073 = vld [vmem:[#allocation8 + $0x58] sm:$0xff]
    %v1074 = vld [vmem:[#allocation8 + $0x60] sm:$0xff]
    %v1075 = vld [vmem:[#allocation8 + $0x68] sm:$0xff]
    %v1076 = vld [vmem:[#allocation8 + $0x70] sm:$0xff]
    %v1077 = vld [vmem:[#allocation8 + $0x78] sm:$0xff]
    %v1078 = vld [vmem:[#allocation8 + $0x80] sm:$0xff]
    %v1079 = vld [vmem:[#allocation8 + $0x88] sm:$0xff]
    %v1080 = vld [vmem:[#allocation8 + $0x90] sm:$0xff]
    %v1081 = vld [vmem:[#allocation8 + $0x98] sm:$0xff]
    %v1082 = vld [vmem:[#allocation8 + $0xa0] sm:$0xff]
    %v1083 = vld [vmem:[#allocation8 + $0xa8] sm:$0xff]
    %v1084 = vld [vmem:[#allocation8 + $0xb0] sm:$0xff]
    %v1085 = vld [vmem:[#allocation8 + $0xb8] sm:$0xff]
    %v1086 = vld [vmem:[#allocation8 + $0xc0] sm:$0xff]
    %v1087 = vld [vmem:[#allocation8 + $0xc8] sm:$0xff]
    %v1088 = vld [vmem:[#allocation8 + $0xd0] sm:$0xff]
    %v1089 = vld [vmem:[#allocation8 + $0xd8] sm:$0xff]
    %v1090 = vld [vmem:[#allocation8 + $0xe0] sm:$0xff]
    %v1091 = vld [vmem:[#allocation8 + $0xe8] sm:$0xff]
    %v1092 = vld [vmem:[#allocation8 + $0xf0] sm:$0xff]
    %v1093 = vld [vmem:[#allocation8 + $0xf8] sm:$0xff]
    %v1094 = vld [vmem:[#allocation3 + $0x8] sm:$0x11]
    %s1095 = scalar_lea.vmem [#allocation8], 256
    %v1096 = vld [vmem:[%s1095] sm:$0xff]
    %v1097 = vld [vmem:[%s1095 + $0x8] sm:$0xff]
    %v1098 = vld [vmem:[%s1095 + $0x10] sm:$0xff]
    %v1099 = vld [vmem:[%s1095 + $0x18] sm:$0xff]
    %v1100 = vld [vmem:[%s1095 + $0x20] sm:$0xff]
    %v1101 = vld [vmem:[%s1095 + $0x28] sm:$0xff]
    %v1102 = vld [vmem:[%s1095 + $0x30] sm:$0xff]
    %v1103 = vld [vmem:[%s1095 + $0x38] sm:$0xff]
    %v1104 = vld [vmem:[%s1095 + $0x40] sm:$0xff]
    %v1105 = vld [vmem:[%s1095 + $0x48] sm:$0xff]
    %v1106 = vld [vmem:[%s1095 + $0x50] sm:$0xff]
    %v1107 = vld [vmem:[%s1095 + $0x58] sm:$0xff]
    %v1108 = vld [vmem:[%s1095 + $0x60] sm:$0xff]
    %v1109 = vld [vmem:[%s1095 + $0x68] sm:$0xff]
    %v1110 = vld [vmem:[%s1095 + $0x70] sm:$0xff]
    %v1111 = vld [vmem:[%s1095 + $0x78] sm:$0xff]
    %v1112 = vld [vmem:[%s1095 + $0x80] sm:$0xff]
    %v1113 = vld [vmem:[%s1095 + $0x88] sm:$0xff]
    %v1114 = vld [vmem:[%s1095 + $0x90] sm:$0xff]
    %v1115 = vld [vmem:[%s1095 + $0x98] sm:$0xff]
    %v1116 = vld [vmem:[%s1095 + $0xa0] sm:$0xff]
    %v1117 = vld [vmem:[%s1095 + $0xa8] sm:$0xff]
    %v1118 = vld [vmem:[%s1095 + $0xb0] sm:$0xff]
    %v1119 = vld [vmem:[%s1095 + $0xb8] sm:$0xff]
    %v1120 = vld [vmem:[%s1095 + $0xc0] sm:$0xff]
    %v1121 = vld [vmem:[%s1095 + $0xc8] sm:$0xff]
    %v1122 = vld [vmem:[%s1095 + $0xd0] sm:$0xff]
    %v1123 = vld [vmem:[%s1095 + $0xd8] sm:$0xff]
    %v1124 = vld [vmem:[%s1095 + $0xe0] sm:$0xff]
    %v1125 = vld [vmem:[%s1095 + $0xe8] sm:$0xff]
    %v1126 = vld [vmem:[%s1095 + $0xf0] sm:$0xff]
    %v1127 = vld [vmem:[%s1095 + $0xf8] sm:$0xff]
    %v1130 = vunpack.c.l.b16 %v1060
    %v1131 = vunpack.c.h.b16 %v1060
    %v1132 = vunpack.c.l.b16 %v1094
    %v1133 = vunpack.c.h.b16 %v1094
    %v1134 = vpack.c.b16 %v1132, %v1130
    %v1135 = vpack.c.b16 %v1133, %v1131
    %v1136 = vrot.slane %v1134, 1
    %v1137 = vrot.slane %v1135, 1
    %v1172 = vunpack.c.l.b16 %v1096
    %v1173 = vunpack.c.h.b16 %v1096
    %v1174 = vunpack.c.l.b16 %v1097
    %v1175 = vunpack.c.h.b16 %v1097
    %v1176 = vunpack.c.l.b16 %v1098
    %v1177 = vunpack.c.h.b16 %v1098
    %v1178 = vunpack.c.l.b16 %v1099
    %v1179 = vunpack.c.h.b16 %v1099
    %v1180 = vunpack.c.l.b16 %v1100
    %v1181 = vunpack.c.h.b16 %v1100
    %v1182 = vunpack.c.l.b16 %v1101
    %v1183 = vunpack.c.h.b16 %v1101
    %v1184 = vunpack.c.l.b16 %v1102
    %v1185 = vunpack.c.h.b16 %v1102
    %v1186 = vunpack.c.l.b16 %v1103
    %v1187 = vunpack.c.h.b16 %v1103
    %v1188 = vunpack.c.l.b16 %v1104
    %v1189 = vunpack.c.h.b16 %v1104
    %v1190 = vunpack.c.l.b16 %v1105
    %v1191 = vunpack.c.h.b16 %v1105
    %v1192 = vunpack.c.l.b16 %v1106
    %v1193 = vunpack.c.h.b16 %v1106
    %v1194 = vunpack.c.l.b16 %v1107
    %v1195 = vunpack.c.h.b16 %v1107
    %v1196 = vunpack.c.l.b16 %v1108
    %v1197 = vunpack.c.h.b16 %v1108
    %v1198 = vunpack.c.l.b16 %v1109
    %v1199 = vunpack.c.h.b16 %v1109
    %v1200 = vunpack.c.l.b16 %v1110
    %v1201 = vunpack.c.h.b16 %v1110
    %v1202 = vunpack.c.l.b16 %v1111
    %v1203 = vunpack.c.h.b16 %v1111
    %v1204 = vunpack.c.l.b16 %v1112
    %v1205 = vunpack.c.h.b16 %v1112
    %v1206 = vunpack.c.l.b16 %v1113
    %v1207 = vunpack.c.h.b16 %v1113
    %v1208 = vunpack.c.l.b16 %v1114
    %v1209 = vunpack.c.h.b16 %v1114
    %v1210 = vunpack.c.l.b16 %v1115
    %v1211 = vunpack.c.h.b16 %v1115
    %v1212 = vunpack.c.l.b16 %v1116
    %v1213 = vunpack.c.h.b16 %v1116
    %v1214 = vunpack.c.l.b16 %v1117
    %v1215 = vunpack.c.h.b16 %v1117
    %v1216 = vunpack.c.l.b16 %v1118
    %v1217 = vunpack.c.h.b16 %v1118
    %v1218 = vunpack.c.l.b16 %v1119
    %v1219 = vunpack.c.h.b16 %v1119
    %v1220 = vunpack.c.l.b16 %v1120
    %v1221 = vunpack.c.h.b16 %v1120
    %v1222 = vunpack.c.l.b16 %v1121
    %v1223 = vunpack.c.h.b16 %v1121
    %v1224 = vunpack.c.l.b16 %v1122
    %v1225 = vunpack.c.h.b16 %v1122
    %v1226 = vunpack.c.l.b16 %v1123
    %v1227 = vunpack.c.h.b16 %v1123
    %v1228 = vunpack.c.l.b16 %v1124
    %v1229 = vunpack.c.h.b16 %v1124
    %v1230 = vunpack.c.l.b16 %v1125
    %v1231 = vunpack.c.h.b16 %v1125
    %v1232 = vunpack.c.l.b16 %v1126
    %v1233 = vunpack.c.h.b16 %v1126
    %v1234 = vunpack.c.l.b16 %v1127
    %v1235 = vunpack.c.h.b16 %v1127
    %v1236 = vpack.c.b16 %v1174, %v1172
    %v1237 = vpack.c.b16 %v1175, %v1173
    %v1238 = vpack.c.b16 %v1178, %v1176
    %v1239 = vpack.c.b16 %v1179, %v1177
    %v1240 = vpack.c.b16 %v1182, %v1180
    %v1241 = vpack.c.b16 %v1183, %v1181
    %v1242 = vpack.c.b16 %v1186, %v1184
    %v1243 = vpack.c.b16 %v1187, %v1185
    %v1244 = vpack.c.b16 %v1190, %v1188
    %v1245 = vpack.c.b16 %v1191, %v1189
    %v1246 = vpack.c.b16 %v1194, %v1192
    %v1247 = vpack.c.b16 %v1195, %v1193
    %v1248 = vpack.c.b16 %v1198, %v1196
    %v1249 = vpack.c.b16 %v1199, %v1197
    %v1250 = vpack.c.b16 %v1202, %v1200
    %v1251 = vpack.c.b16 %v1203, %v1201
    %v1252 = vpack.c.b16 %v1206, %v1204
    %v1253 = vpack.c.b16 %v1207, %v1205
    %v1254 = vpack.c.b16 %v1210, %v1208
    %v1255 = vpack.c.b16 %v1211, %v1209
    %v1256 = vpack.c.b16 %v1214, %v1212
    %v1257 = vpack.c.b16 %v1215, %v1213
    %v1258 = vpack.c.b16 %v1218, %v1216
    %v1259 = vpack.c.b16 %v1219, %v1217
    %v1260 = vpack.c.b16 %v1222, %v1220
    %v1261 = vpack.c.b16 %v1223, %v1221
    %v1262 = vpack.c.b16 %v1226, %v1224
    %v1263 = vpack.c.b16 %v1227, %v1225
    %v1264 = vpack.c.b16 %v1230, %v1228
    %v1265 = vpack.c.b16 %v1231, %v1229
    %v1266 = vpack.c.b16 %v1234, %v1232
    %v1267 = vpack.c.b16 %v1235, %v1233
    %1300 = vmatprep.subr.bf16.mxu0 %v1251
    %1301 = vmatpush1.bf16.msra.mxu0 %v1250
    %1302 = vmatprep.subr.bf16.mxu0 %v1249
    %1303 = vmatpush1.bf16.msra.mxu0 %v1248
    %1304 = vmatprep.subr.bf16.mxu0 %v1247
    %1305 = vmatpush1.bf16.msra.mxu0 %v1246
    %1306 = vmatprep.subr.bf16.mxu0 %v1245
    %1307 = vmatpush1.bf16.msra.mxu0 %v1244
    %1308 = vmatprep.subr.bf16.mxu0 %v1243
    %1309 = vmatpush1.bf16.msra.mxu0 %v1242
    %1310 = vmatprep.subr.bf16.mxu0 %v1241
    %1311 = vmatpush1.bf16.msra.mxu0 %v1240
    %1312 = vmatprep.subr.bf16.mxu0 %v1239
    %1313 = vmatpush1.bf16.msra.mxu0 %v1238
    %1314 = vmatprep.subr.bf16.mxu0 %v1237
    %1315 = vmatpush1.bf16.msra.mxu0 %v1236
    %1316 = vmatprep.subr.bf16.mxu0 %v1267
    %1317 = vmatpush2.bf16.msra.mxu0 %v1266
    %1318 = vmatprep.subr.bf16.mxu0 %v1265
    %1319 = vmatpush2.bf16.msra.mxu0 %v1264
    %1320 = vmatprep.subr.bf16.mxu0 %v1263
    %1321 = vmatpush2.bf16.msra.mxu0 %v1262
    %1322 = vmatprep.subr.bf16.mxu0 %v1261
    %1323 = vmatpush2.bf16.msra.mxu0 %v1260
    %1324 = vmatprep.subr.bf16.mxu0 %v1259
    %1325 = vmatpush2.bf16.msra.mxu0 %v1258
    %1326 = vmatprep.subr.bf16.mxu0 %v1257
    %1327 = vmatpush2.bf16.msra.mxu0 %v1256
    %1328 = vmatprep.subr.bf16.mxu0 %v1255
    %1329 = vmatpush2.bf16.msra.mxu0 %v1254
    %1330 = vmatprep.subr.bf16.mxu0 %v1253
    %1331 = vmatpush2.bf16.msra.mxu0 %v1252
    %1332 = vmatprep.mubr.bf16.mxu0 %v1137
    %1333 = vmatmul.mubr.bf16.gmra.mxu0 %v1136
    %v1334 = vpop.f32.mrf.mxu0
    %v1335 = vadd.f32 0.0, %v1334
    %v1336 = vpop.f32.mrf.mxu0
    %v1337 = vadd.f32 0.0, %v1336
    %v1338 = vpop.f32.mrf.mxu0
    %v1339 = vpop.f32.mrf.mxu0
    %1340 = vdwg.mxu0
    %v1342 = vunpack.c.l.b16 %v1061
    %v1343 = vunpack.c.h.b16 %v1061
    %v1344 = vpack.c.b16 %v1342, %v1130
    %v1345 = vpack.c.b16 %v1343, %v1131
    %v1347 = vshrl.u32 %v1344, 16
    %v1349 = vrot.slane %v1347, 1
    %v1350 = vshll.u32 %v1344, 16
    %v1352 = vrot.slane %v1350, 2
    %v1353 = vor.u32 %v1349, %v1352
    %v1355 = vshrl.u32 %v1345, 16
    %v1357 = vrot.slane %v1355, 1
    %v1358 = vshll.u32 %v1345, 16
    %v1360 = vrot.slane %v1358, 2
    %v1361 = vor.u32 %v1357, %v1360
    %v1396 = vunpack.c.l.b16 %v1062
    %v1397 = vunpack.c.h.b16 %v1062
    %v1398 = vunpack.c.l.b16 %v1063
    %v1399 = vunpack.c.h.b16 %v1063
    %v1400 = vunpack.c.l.b16 %v1064
    %v1401 = vunpack.c.h.b16 %v1064
    %v1402 = vunpack.c.l.b16 %v1065
    %v1403 = vunpack.c.h.b16 %v1065
    %v1404 = vunpack.c.l.b16 %v1066
    %v1405 = vunpack.c.h.b16 %v1066
    %v1406 = vunpack.c.l.b16 %v1067
    %v1407 = vunpack.c.h.b16 %v1067
    %v1408 = vunpack.c.l.b16 %v1068
    %v1409 = vunpack.c.h.b16 %v1068
    %v1410 = vunpack.c.l.b16 %v1069
    %v1411 = vunpack.c.h.b16 %v1069
    %v1412 = vunpack.c.l.b16 %v1070
    %v1413 = vunpack.c.h.b16 %v1070
    %v1414 = vunpack.c.l.b16 %v1071
    %v1415 = vunpack.c.h.b16 %v1071
    %v1416 = vunpack.c.l.b16 %v1072
    %v1417 = vunpack.c.h.b16 %v1072
    %v1418 = vunpack.c.l.b16 %v1073
    %v1419 = vunpack.c.h.b16 %v1073
    %v1420 = vunpack.c.l.b16 %v1074
    %v1421 = vunpack.c.h.b16 %v1074
    %v1422 = vunpack.c.l.b16 %v1075
    %v1423 = vunpack.c.h.b16 %v1075
    %v1424 = vunpack.c.l.b16 %v1076
    %v1425 = vunpack.c.h.b16 %v1076
    %v1426 = vunpack.c.l.b16 %v1077
    %v1427 = vunpack.c.h.b16 %v1077
    %v1428 = vunpack.c.l.b16 %v1078
    %v1429 = vunpack.c.h.b16 %v1078
    %v1430 = vunpack.c.l.b16 %v1079
    %v1431 = vunpack.c.h.b16 %v1079
    %v1432 = vunpack.c.l.b16 %v1080
    %v1433 = vunpack.c.h.b16 %v1080
    %v1434 = vunpack.c.l.b16 %v1081
    %v1435 = vunpack.c.h.b16 %v1081
    %v1436 = vunpack.c.l.b16 %v1082
    %v1437 = vunpack.c.h.b16 %v1082
    %v1438 = vunpack.c.l.b16 %v1083
    %v1439 = vunpack.c.h.b16 %v1083
    %v1440 = vunpack.c.l.b16 %v1084
    %v1441 = vunpack.c.h.b16 %v1084
    %v1442 = vunpack.c.l.b16 %v1085
    %v1443 = vunpack.c.h.b16 %v1085
    %v1444 = vunpack.c.l.b16 %v1086
    %v1445 = vunpack.c.h.b16 %v1086
    %v1446 = vunpack.c.l.b16 %v1087
    %v1447 = vunpack.c.h.b16 %v1087
    %v1448 = vunpack.c.l.b16 %v1088
    %v1449 = vunpack.c.h.b16 %v1088
    %v1450 = vunpack.c.l.b16 %v1089
    %v1451 = vunpack.c.h.b16 %v1089
    %v1452 = vunpack.c.l.b16 %v1090
    %v1453 = vunpack.c.h.b16 %v1090
    %v1454 = vunpack.c.l.b16 %v1091
    %v1455 = vunpack.c.h.b16 %v1091
    %v1456 = vunpack.c.l.b16 %v1092
    %v1457 = vunpack.c.h.b16 %v1092
    %v1458 = vunpack.c.l.b16 %v1093
    %v1459 = vunpack.c.h.b16 %v1093
    %v1460 = vpack.c.b16 %v1398, %v1396
    %v1461 = vpack.c.b16 %v1399, %v1397
    %v1462 = vpack.c.b16 %v1402, %v1400
    %v1463 = vpack.c.b16 %v1403, %v1401
    %v1464 = vpack.c.b16 %v1406, %v1404
    %v1465 = vpack.c.b16 %v1407, %v1405
    %v1466 = vpack.c.b16 %v1410, %v1408
    %v1467 = vpack.c.b16 %v1411, %v1409
    %v1468 = vpack.c.b16 %v1414, %v1412
    %v1469 = vpack.c.b16 %v1415, %v1413
    %v1470 = vpack.c.b16 %v1418, %v1416
    %v1471 = vpack.c.b16 %v1419, %v1417
    %v1472 = vpack.c.b16 %v1422, %v1420
    %v1473 = vpack.c.b16 %v1423, %v1421
    %v1474 = vpack.c.b16 %v1426, %v1424
    %v1475 = vpack.c.b16 %v1427, %v1425
    %v1476 = vpack.c.b16 %v1430, %v1428
    %v1477 = vpack.c.b16 %v1431, %v1429
    %v1478 = vpack.c.b16 %v1434, %v1432
    %v1479 = vpack.c.b16 %v1435, %v1433
    %v1480 = vpack.c.b16 %v1438, %v1436
    %v1481 = vpack.c.b16 %v1439, %v1437
    %v1482 = vpack.c.b16 %v1442, %v1440
    %v1483 = vpack.c.b16 %v1443, %v1441
    %v1484 = vpack.c.b16 %v1446, %v1444
    %v1485 = vpack.c.b16 %v1447, %v1445
    %v1486 = vpack.c.b16 %v1450, %v1448
    %v1487 = vpack.c.b16 %v1451, %v1449
    %v1488 = vpack.c.b16 %v1454, %v1452
    %v1489 = vpack.c.b16 %v1455, %v1453
    %v1490 = vpack.c.b16 %v1458, %v1456
    %v1491 = vpack.c.b16 %v1459, %v1457
    %1524 = vmatprep.subr.bf16.mxu0 %v1475
    %1525 = vmatpush1.bf16.msra.mxu0 %v1474
    %1526 = vmatprep.subr.bf16.mxu0 %v1473
    %1527 = vmatpush1.bf16.msra.mxu0 %v1472
    %1528 = vmatprep.subr.bf16.mxu0 %v1471
    %1529 = vmatpush1.bf16.msra.mxu0 %v1470
    %1530 = vmatprep.subr.bf16.mxu0 %v1469
    %1531 = vmatpush1.bf16.msra.mxu0 %v1468
    %1532 = vmatprep.subr.bf16.mxu0 %v1467
    %1533 = vmatpush1.bf16.msra.mxu0 %v1466
    %1534 = vmatprep.subr.bf16.mxu0 %v1465
    %1535 = vmatpush1.bf16.msra.mxu0 %v1464
    %1536 = vmatprep.subr.bf16.mxu0 %v1463
    %1537 = vmatpush1.bf16.msra.mxu0 %v1462
    %1538 = vmatprep.subr.bf16.mxu0 %v1461
    %1539 = vmatpush1.bf16.msra.mxu0 %v1460
    %1540 = vmatprep.subr.bf16.mxu0 %v1491
    %1541 = vmatpush2.bf16.msra.mxu0 %v1490
    %1542 = vmatprep.subr.bf16.mxu0 %v1489
    %1543 = vmatpush2.bf16.msra.mxu0 %v1488
    %1544 = vmatprep.subr.bf16.mxu0 %v1487
    %1545 = vmatpush2.bf16.msra.mxu0 %v1486
    %1546 = vmatprep.subr.bf16.mxu0 %v1485
    %1547 = vmatpush2.bf16.msra.mxu0 %v1484
    %1548 = vmatprep.subr.bf16.mxu0 %v1483
    %1549 = vmatpush2.bf16.msra.mxu0 %v1482
    %1550 = vmatprep.subr.bf16.mxu0 %v1481
    %1551 = vmatpush2.bf16.msra.mxu0 %v1480
    %1552 = vmatprep.subr.bf16.mxu0 %v1479
    %1553 = vmatpush2.bf16.msra.mxu0 %v1478
    %1554 = vmatprep.subr.bf16.mxu0 %v1477
    %1555 = vmatpush2.bf16.msra.mxu0 %v1476
    %1556 = vmatprep.mubr.bf16.mxu0 %v1361
    %1557 = vmatmul.mubr.bf16.gmra.mxu0 %v1353
    %v1558 = vpop.f32.mrf.mxu0
    %v1559 = vadd.f32 %v1335, %v1558
    %v1560 = vpop.f32.mrf.mxu0
    %v1561 = vadd.f32 %v1337, %v1560
    %v1562 = vpop.f32.mrf.mxu0
    %v1563 = vpop.f32.mrf.mxu0
    %1564 = vdwg.mxu0
    %v1565 = vld [vmem:[#allocation3] sm:$0xff]
    %s1566 = scalar_lea.vmem [#allocation8], 512
    %v1567 = vld [vmem:[%s1566] sm:$0xff]
    %v1568 = vld [vmem:[%s1566 + $0x8] sm:$0xff]
    %v1569 = vld [vmem:[%s1566 + $0x10] sm:$0xff]
    %v1570 = vld [vmem:[%s1566 + $0x18] sm:$0xff]
    %v1571 = vld [vmem:[%s1566 + $0x20] sm:$0xff]
    %v1572 = vld [vmem:[%s1566 + $0x28] sm:$0xff]
    %v1573 = vld [vmem:[%s1566 + $0x30] sm:$0xff]
    %v1574 = vld [vmem:[%s1566 + $0x38] sm:$0xff]
    %v1575 = vld [vmem:[%s1566 + $0x40] sm:$0xff]
    %v1576 = vld [vmem:[%s1566 + $0x48] sm:$0xff]
    %v1577 = vld [vmem:[%s1566 + $0x50] sm:$0xff]
    %v1578 = vld [vmem:[%s1566 + $0x58] sm:$0xff]
    %v1579 = vld [vmem:[%s1566 + $0x60] sm:$0xff]
    %v1580 = vld [vmem:[%s1566 + $0x68] sm:$0xff]
    %v1581 = vld [vmem:[%s1566 + $0x70] sm:$0xff]
    %v1582 = vld [vmem:[%s1566 + $0x78] sm:$0xff]
    %v1583 = vld [vmem:[%s1566 + $0x80] sm:$0xff]
    %v1584 = vld [vmem:[%s1566 + $0x88] sm:$0xff]
    %v1585 = vld [vmem:[%s1566 + $0x90] sm:$0xff]
    %v1586 = vld [vmem:[%s1566 + $0x98] sm:$0xff]
    %v1587 = vld [vmem:[%s1566 + $0xa0] sm:$0xff]
    %v1588 = vld [vmem:[%s1566 + $0xa8] sm:$0xff]
    %v1589 = vld [vmem:[%s1566 + $0xb0] sm:$0xff]
    %v1590 = vld [vmem:[%s1566 + $0xb8] sm:$0xff]
    %v1591 = vld [vmem:[%s1566 + $0xc0] sm:$0xff]
    %v1592 = vld [vmem:[%s1566 + $0xc8] sm:$0xff]
    %v1593 = vld [vmem:[%s1566 + $0xd0] sm:$0xff]
    %v1594 = vld [vmem:[%s1566 + $0xd8] sm:$0xff]
    %v1595 = vld [vmem:[%s1566 + $0xe0] sm:$0xff]
    %v1596 = vld [vmem:[%s1566 + $0xe8] sm:$0xff]
    %v1597 = vld [vmem:[%s1566 + $0xf0] sm:$0xff]
    %v1598 = vld [vmem:[%s1566 + $0xf8] sm:$0xff]
    %v1600 = vunpack.c.l.b16 %v1565
    %v1601 = vunpack.c.h.b16 %v1565
    %v1602 = vpack.c.b16 %v1132, %v1600
    %v1603 = vpack.c.b16 %v1133, %v1601
    %v1605 = vshrl.u32 %v1602, 16
    %v1607 = vshll.u32 %v1602, 16
    %v1609 = vrot.slane %v1607, 1
    %v1610 = vor.u32 %v1605, %v1609
    %v1612 = vshrl.u32 %v1603, 16
    %v1614 = vshll.u32 %v1603, 16
    %v1616 = vrot.slane %v1614, 1
    %v1617 = vor.u32 %v1612, %v1616
    %v1652 = vunpack.c.l.b16 %v1567
    %v1653 = vunpack.c.h.b16 %v1567
    %v1654 = vunpack.c.l.b16 %v1568
    %v1655 = vunpack.c.h.b16 %v1568
    %v1656 = vunpack.c.l.b16 %v1569
    %v1657 = vunpack.c.h.b16 %v1569
    %v1658 = vunpack.c.l.b16 %v1570
    %v1659 = vunpack.c.h.b16 %v1570
    %v1660 = vunpack.c.l.b16 %v1571
    %v1661 = vunpack.c.h.b16 %v1571
    %v1662 = vunpack.c.l.b16 %v1572
    %v1663 = vunpack.c.h.b16 %v1572
    %v1664 = vunpack.c.l.b16 %v1573
    %v1665 = vunpack.c.h.b16 %v1573
    %v1666 = vunpack.c.l.b16 %v1574
    %v1667 = vunpack.c.h.b16 %v1574
    %v1668 = vunpack.c.l.b16 %v1575
    %v1669 = vunpack.c.h.b16 %v1575
    %v1670 = vunpack.c.l.b16 %v1576
    %v1671 = vunpack.c.h.b16 %v1576
    %v1672 = vunpack.c.l.b16 %v1577
    %v1673 = vunpack.c.h.b16 %v1577
    %v1674 = vunpack.c.l.b16 %v1578
    %v1675 = vunpack.c.h.b16 %v1578
    %v1676 = vunpack.c.l.b16 %v1579
    %v1677 = vunpack.c.h.b16 %v1579
    %v1678 = vunpack.c.l.b16 %v1580
    %v1679 = vunpack.c.h.b16 %v1580
    %v1680 = vunpack.c.l.b16 %v1581
    %v1681 = vunpack.c.h.b16 %v1581
    %v1682 = vunpack.c.l.b16 %v1582
    %v1683 = vunpack.c.h.b16 %v1582
    %v1684 = vunpack.c.l.b16 %v1583
    %v1685 = vunpack.c.h.b16 %v1583
    %v1686 = vunpack.c.l.b16 %v1584
    %v1687 = vunpack.c.h.b16 %v1584
    %v1688 = vunpack.c.l.b16 %v1585
    %v1689 = vunpack.c.h.b16 %v1585
    %v1690 = vunpack.c.l.b16 %v1586
    %v1691 = vunpack.c.h.b16 %v1586
    %v1692 = vunpack.c.l.b16 %v1587
    %v1693 = vunpack.c.h.b16 %v1587
    %v1694 = vunpack.c.l.b16 %v1588
    %v1695 = vunpack.c.h.b16 %v1588
    %v1696 = vunpack.c.l.b16 %v1589
    %v1697 = vunpack.c.h.b16 %v1589
    %v1698 = vunpack.c.l.b16 %v1590
    %v1699 = vunpack.c.h.b16 %v1590
    %v1700 = vunpack.c.l.b16 %v1591
    %v1701 = vunpack.c.h.b16 %v1591
    %v1702 = vunpack.c.l.b16 %v1592
    %v1703 = vunpack.c.h.b16 %v1592
    %v1704 = vunpack.c.l.b16 %v1593
    %v1705 = vunpack.c.h.b16 %v1593
    %v1706 = vunpack.c.l.b16 %v1594
    %v1707 = vunpack.c.h.b16 %v1594
    %v1708 = vunpack.c.l.b16 %v1595
    %v1709 = vunpack.c.h.b16 %v1595
    %v1710 = vunpack.c.l.b16 %v1596
    %v1711 = vunpack.c.h.b16 %v1596
    %v1712 = vunpack.c.l.b16 %v1597
    %v1713 = vunpack.c.h.b16 %v1597
    %v1714 = vunpack.c.l.b16 %v1598
    %v1715 = vunpack.c.h.b16 %v1598
    %v1716 = vpack.c.b16 %v1654, %v1652
    %v1717 = vpack.c.b16 %v1655, %v1653
    %v1718 = vpack.c.b16 %v1658, %v1656
    %v1719 = vpack.c.b16 %v1659, %v1657
    %v1720 = vpack.c.b16 %v1662, %v1660
    %v1721 = vpack.c.b16 %v1663, %v1661
    %v1722 = vpack.c.b16 %v1666, %v1664
    %v1723 = vpack.c.b16 %v1667, %v1665
    %v1724 = vpack.c.b16 %v1670, %v1668
    %v1725 = vpack.c.b16 %v1671, %v1669
    %v1726 = vpack.c.b16 %v1674, %v1672
    %v1727 = vpack.c.b16 %v1675, %v1673
    %v1728 = vpack.c.b16 %v1678, %v1676
    %v1729 = vpack.c.b16 %v1679, %v1677
    %v1730 = vpack.c.b16 %v1682, %v1680
    %v1731 = vpack.c.b16 %v1683, %v1681
    %v1732 = vpack.c.b16 %v1686, %v1684
    %v1733 = vpack.c.b16 %v1687, %v1685
    %v1734 = vpack.c.b16 %v1690, %v1688
    %v1735 = vpack.c.b16 %v1691, %v1689
    %v1736 = vpack.c.b16 %v1694, %v1692
    %v1737 = vpack.c.b16 %v1695, %v1693
    %v1738 = vpack.c.b16 %v1698, %v1696
    %v1739 = vpack.c.b16 %v1699, %v1697
    %v1740 = vpack.c.b16 %v1702, %v1700
    %v1741 = vpack.c.b16 %v1703, %v1701
    %v1742 = vpack.c.b16 %v1706, %v1704
    %v1743 = vpack.c.b16 %v1707, %v1705
    %v1744 = vpack.c.b16 %v1710, %v1708
    %v1745 = vpack.c.b16 %v1711, %v1709
    %v1746 = vpack.c.b16 %v1714, %v1712
    %v1747 = vpack.c.b16 %v1715, %v1713
    %1780 = vmatprep.subr.bf16.mxu0 %v1731
    %1781 = vmatpush1.bf16.msra.mxu0 %v1730
    %1782 = vmatprep.subr.bf16.mxu0 %v1729
    %1783 = vmatpush1.bf16.msra.mxu0 %v1728
    %1784 = vmatprep.subr.bf16.mxu0 %v1727
    %1785 = vmatpush1.bf16.msra.mxu0 %v1726
    %1786 = vmatprep.subr.bf16.mxu0 %v1725
    %1787 = vmatpush1.bf16.msra.mxu0 %v1724
    %1788 = vmatprep.subr.bf16.mxu0 %v1723
    %1789 = vmatpush1.bf16.msra.mxu0 %v1722
    %1790 = vmatprep.subr.bf16.mxu0 %v1721
    %1791 = vmatpush1.bf16.msra.mxu0 %v1720
    %1792 = vmatprep.subr.bf16.mxu0 %v1719
    %1793 = vmatpush1.bf16.msra.mxu0 %v1718
    %1794 = vmatprep.subr.bf16.mxu0 %v1717
    %1795 = vmatpush1.bf16.msra.mxu0 %v1716
    %1796 = vmatprep.subr.bf16.mxu0 %v1747
    %1797 = vmatpush2.bf16.msra.mxu0 %v1746
    %1798 = vmatprep.subr.bf16.mxu0 %v1745
    %1799 = vmatpush2.bf16.msra.mxu0 %v1744
    %1800 = vmatprep.subr.bf16.mxu0 %v1743
    %1801 = vmatpush2.bf16.msra.mxu0 %v1742
    %1802 = vmatprep.subr.bf16.mxu0 %v1741
    %1803 = vmatpush2.bf16.msra.mxu0 %v1740
    %1804 = vmatprep.subr.bf16.mxu0 %v1739
    %1805 = vmatpush2.bf16.msra.mxu0 %v1738
    %1806 = vmatprep.subr.bf16.mxu0 %v1737
    %1807 = vmatpush2.bf16.msra.mxu0 %v1736
    %1808 = vmatprep.subr.bf16.mxu0 %v1735
    %1809 = vmatpush2.bf16.msra.mxu0 %v1734
    %1810 = vmatprep.subr.bf16.mxu0 %v1733
    %1811 = vmatpush2.bf16.msra.mxu0 %v1732
    %1812 = vmatprep.mubr.bf16.mxu0 %v1617
    %1813 = vmatmul.mubr.bf16.gmra.mxu0 %v1610
    %v1814 = vpop.f32.mrf.mxu0
    %v1815 = vadd.f32 0.0, %v1814
    %v1816 = vpop.f32.mrf.mxu0
    %v1817 = vadd.f32 0.0, %v1816
    %v1818 = vpop.f32.mrf.mxu0
    %v1819 = vpop.f32.mrf.mxu0
    %1820 = vdwg.mxu0
    %v1821 = vadd.f32 %v1559, %v1815
    %v1822 = vadd.f32 %v1561, %v1817
    %v1823 = vld [vmem:[#allocation3] sm:$0xff]
    %s1824 = scalar_lea.vmem [#allocation8], 768
    %v1825 = vld [vmem:[%s1824] sm:$0xff]
    %v1826 = vld [vmem:[%s1824 + $0x8] sm:$0xff]
    %v1827 = vld [vmem:[%s1824 + $0x10] sm:$0xff]
    %v1828 = vld [vmem:[%s1824 + $0x18] sm:$0xff]
    %v1829 = vld [vmem:[%s1824 + $0x20] sm:$0xff]
    %v1830 = vld [vmem:[%s1824 + $0x28] sm:$0xff]
    %v1831 = vld [vmem:[%s1824 + $0x30] sm:$0xff]
    %v1832 = vld [vmem:[%s1824 + $0x38] sm:$0xff]
    %v1833 = vld [vmem:[%s1824 + $0x40] sm:$0xff]
    %v1834 = vld [vmem:[%s1824 + $0x48] sm:$0xff]
    %v1835 = vld [vmem:[%s1824 + $0x50] sm:$0xff]
    %v1836 = vld [vmem:[%s1824 + $0x58] sm:$0xff]
    %v1837 = vld [vmem:[%s1824 + $0x60] sm:$0xff]
    %v1838 = vld [vmem:[%s1824 + $0x68] sm:$0xff]
    %v1839 = vld [vmem:[%s1824 + $0x70] sm:$0xff]
    %v1840 = vld [vmem:[%s1824 + $0x78] sm:$0xff]
    %v1841 = vld [vmem:[%s1824 + $0x80] sm:$0xff]
    %v1842 = vld [vmem:[%s1824 + $0x88] sm:$0xff]
    %v1843 = vld [vmem:[%s1824 + $0x90] sm:$0xff]
    %v1844 = vld [vmem:[%s1824 + $0x98] sm:$0xff]
    %v1845 = vld [vmem:[%s1824 + $0xa0] sm:$0xff]
    %v1846 = vld [vmem:[%s1824 + $0xa8] sm:$0xff]
    %v1847 = vld [vmem:[%s1824 + $0xb0] sm:$0xff]
    %v1848 = vld [vmem:[%s1824 + $0xb8] sm:$0xff]
    %v1849 = vld [vmem:[%s1824 + $0xc0] sm:$0xff]
    %v1850 = vld [vmem:[%s1824 + $0xc8] sm:$0xff]
    %v1851 = vld [vmem:[%s1824 + $0xd0] sm:$0xff]
    %v1852 = vld [vmem:[%s1824 + $0xd8] sm:$0xff]
    %v1853 = vld [vmem:[%s1824 + $0xe0] sm:$0xff]
    %v1854 = vld [vmem:[%s1824 + $0xe8] sm:$0xff]
    %v1855 = vld [vmem:[%s1824 + $0xf0] sm:$0xff]
    %v1856 = vld [vmem:[%s1824 + $0xf8] sm:$0xff]
    %v1858 = vunpack.c.l.b16 %v1823
    %v1859 = vunpack.c.h.b16 %v1823
    %v1860 = vpack.c.b16 %v1858, %v1858
    %v1861 = vpack.c.b16 %v1859, %v1859
    %v1896 = vunpack.c.l.b16 %v1825
    %v1897 = vunpack.c.h.b16 %v1825
    %v1898 = vunpack.c.l.b16 %v1826
    %v1899 = vunpack.c.h.b16 %v1826
    %v1900 = vunpack.c.l.b16 %v1827
    %v1901 = vunpack.c.h.b16 %v1827
    %v1902 = vunpack.c.l.b16 %v1828
    %v1903 = vunpack.c.h.b16 %v1828
    %v1904 = vunpack.c.l.b16 %v1829
    %v1905 = vunpack.c.h.b16 %v1829
    %v1906 = vunpack.c.l.b16 %v1830
    %v1907 = vunpack.c.h.b16 %v1830
    %v1908 = vunpack.c.l.b16 %v1831
    %v1909 = vunpack.c.h.b16 %v1831
    %v1910 = vunpack.c.l.b16 %v1832
    %v1911 = vunpack.c.h.b16 %v1832
    %v1912 = vunpack.c.l.b16 %v1833
    %v1913 = vunpack.c.h.b16 %v1833
    %v1914 = vunpack.c.l.b16 %v1834
    %v1915 = vunpack.c.h.b16 %v1834
    %v1916 = vunpack.c.l.b16 %v1835
    %v1917 = vunpack.c.h.b16 %v1835
    %v1918 = vunpack.c.l.b16 %v1836
    %v1919 = vunpack.c.h.b16 %v1836
    %v1920 = vunpack.c.l.b16 %v1837
    %v1921 = vunpack.c.h.b16 %v1837
    %v1922 = vunpack.c.l.b16 %v1838
    %v1923 = vunpack.c.h.b16 %v1838
    %v1924 = vunpack.c.l.b16 %v1839
    %v1925 = vunpack.c.h.b16 %v1839
    %v1926 = vunpack.c.l.b16 %v1840
    %v1927 = vunpack.c.h.b16 %v1840
    %v1928 = vunpack.c.l.b16 %v1841
    %v1929 = vunpack.c.h.b16 %v1841
    %v1930 = vunpack.c.l.b16 %v1842
    %v1931 = vunpack.c.h.b16 %v1842
    %v1932 = vunpack.c.l.b16 %v1843
    %v1933 = vunpack.c.h.b16 %v1843
    %v1934 = vunpack.c.l.b16 %v1844
    %v1935 = vunpack.c.h.b16 %v1844
    %v1936 = vunpack.c.l.b16 %v1845
    %v1937 = vunpack.c.h.b16 %v1845
    %v1938 = vunpack.c.l.b16 %v1846
    %v1939 = vunpack.c.h.b16 %v1846
    %v1940 = vunpack.c.l.b16 %v1847
    %v1941 = vunpack.c.h.b16 %v1847
    %v1942 = vunpack.c.l.b16 %v1848
    %v1943 = vunpack.c.h.b16 %v1848
    %v1944 = vunpack.c.l.b16 %v1849
    %v1945 = vunpack.c.h.b16 %v1849
    %v1946 = vunpack.c.l.b16 %v1850
    %v1947 = vunpack.c.h.b16 %v1850
    %v1948 = vunpack.c.l.b16 %v1851
    %v1949 = vunpack.c.h.b16 %v1851
    %v1950 = vunpack.c.l.b16 %v1852
    %v1951 = vunpack.c.h.b16 %v1852
    %v1952 = vunpack.c.l.b16 %v1853
    %v1953 = vunpack.c.h.b16 %v1853
    %v1954 = vunpack.c.l.b16 %v1854
    %v1955 = vunpack.c.h.b16 %v1854
    %v1956 = vunpack.c.l.b16 %v1855
    %v1957 = vunpack.c.h.b16 %v1855
    %v1958 = vunpack.c.l.b16 %v1856
    %v1959 = vunpack.c.h.b16 %v1856
    %v1960 = vpack.c.b16 %v1898, %v1896
    %v1961 = vpack.c.b16 %v1899, %v1897
    %v1962 = vpack.c.b16 %v1902, %v1900
    %v1963 = vpack.c.b16 %v1903, %v1901
    %v1964 = vpack.c.b16 %v1906, %v1904
    %v1965 = vpack.c.b16 %v1907, %v1905
    %v1966 = vpack.c.b16 %v1910, %v1908
    %v1967 = vpack.c.b16 %v1911, %v1909
    %v1968 = vpack.c.b16 %v1914, %v1912
    %v1969 = vpack.c.b16 %v1915, %v1913
    %v1970 = vpack.c.b16 %v1918, %v1916
    %v1971 = vpack.c.b16 %v1919, %v1917
    %v1972 = vpack.c.b16 %v1922, %v1920
    %v1973 = vpack.c.b16 %v1923, %v1921
    %v1974 = vpack.c.b16 %v1926, %v1924
    %v1975 = vpack.c.b16 %v1927, %v1925
    %v1976 = vpack.c.b16 %v1930, %v1928
    %v1977 = vpack.c.b16 %v1931, %v1929
    %v1978 = vpack.c.b16 %v1934, %v1932
    %v1979 = vpack.c.b16 %v1935, %v1933
    %v1980 = vpack.c.b16 %v1938, %v1936
    %v1981 = vpack.c.b16 %v1939, %v1937
    %v1982 = vpack.c.b16 %v1942, %v1940
    %v1983 = vpack.c.b16 %v1943, %v1941
    %v1984 = vpack.c.b16 %v1946, %v1944
    %v1985 = vpack.c.b16 %v1947, %v1945
    %v1986 = vpack.c.b16 %v1950, %v1948
    %v1987 = vpack.c.b16 %v1951, %v1949
    %v1988 = vpack.c.b16 %v1954, %v1952
    %v1989 = vpack.c.b16 %v1955, %v1953
    %v1990 = vpack.c.b16 %v1958, %v1956
    %v1991 = vpack.c.b16 %v1959, %v1957
    %2024 = vmatprep.subr.bf16.mxu0 %v1975
    %2025 = vmatpush1.bf16.msra.mxu0 %v1974
    %2026 = vmatprep.subr.bf16.mxu0 %v1973
    %2027 = vmatpush1.bf16.msra.mxu0 %v1972
    %2028 = vmatprep.subr.bf16.mxu0 %v1971
    %2029 = vmatpush1.bf16.msra.mxu0 %v1970
    %2030 = vmatprep.subr.bf16.mxu0 %v1969
    %2031 = vmatpush1.bf16.msra.mxu0 %v1968
    %2032 = vmatprep.subr.bf16.mxu0 %v1967
    %2033 = vmatpush1.bf16.msra.mxu0 %v1966
    %2034 = vmatprep.subr.bf16.mxu0 %v1965
    %2035 = vmatpush1.bf16.msra.mxu0 %v1964
    %2036 = vmatprep.subr.bf16.mxu0 %v1963
    %2037 = vmatpush1.bf16.msra.mxu0 %v1962
    %2038 = vmatprep.subr.bf16.mxu0 %v1961
    %2039 = vmatpush1.bf16.msra.mxu0 %v1960
    %2040 = vmatprep.subr.bf16.mxu0 %v1991
    %2041 = vmatpush2.bf16.msra.mxu0 %v1990
    %2042 = vmatprep.subr.bf16.mxu0 %v1989
    %2043 = vmatpush2.bf16.msra.mxu0 %v1988
    %2044 = vmatprep.subr.bf16.mxu0 %v1987
    %2045 = vmatpush2.bf16.msra.mxu0 %v1986
    %2046 = vmatprep.subr.bf16.mxu0 %v1985
    %2047 = vmatpush2.bf16.msra.mxu0 %v1984
    %2048 = vmatprep.subr.bf16.mxu0 %v1983
    %2049 = vmatpush2.bf16.msra.mxu0 %v1982
    %2050 = vmatprep.subr.bf16.mxu0 %v1981
    %2051 = vmatpush2.bf16.msra.mxu0 %v1980
    %2052 = vmatprep.subr.bf16.mxu0 %v1979
    %2053 = vmatpush2.bf16.msra.mxu0 %v1978
    %2054 = vmatprep.subr.bf16.mxu0 %v1977
    %2055 = vmatpush2.bf16.msra.mxu0 %v1976
    %2056 = vmatprep.mubr.bf16.mxu0 %v1861
    %2057 = vmatmul.mubr.bf16.gmra.mxu0 %v1860
    %v2058 = vpop.f32.mrf.mxu0
    %v2059 = vadd.f32 0.0, %v2058
    %v2060 = vpop.f32.mrf.mxu0
    %v2061 = vadd.f32 0.0, %v2060
    %v2062 = vpop.f32.mrf.mxu0
    %v2063 = vpop.f32.mrf.mxu0
    %2064 = vdwg.mxu0
    %v2065 = vadd.f32 %v1821, %v2059
    %v2066 = vadd.f32 %v1822, %v2061
    %2067 = vst [vmem:[#allocation2] sm:$0xff] %v2065
    %2068 = vst [vmem:[#allocation2 + $0x8] sm:$0xff] %v2066
    %v2069 = vrot.slane %v2065, 4
    %v2070 = vadd.f32 %v2065, %v2069
    %v2071 = vrot.slane %v2070, 2
    %v2072 = vadd.f32 %v2070, %v2071
    %v2073 = vrot.slane %v2072, 1
    %v2074 = vadd.f32 %v2072, %v2073
    %v2075 = vrot.slane %v2066, 4
    %v2076 = vadd.f32 %v2066, %v2075
    %v2077 = vrot.slane %v2076, 2
    %v2078 = vadd.f32 %v2076, %v2077
    %v2079 = vrot.slane %v2078, 1
    %v2080 = vadd.f32 %v2078, %v2079
    %v2081 = vadd.f32 %v2074, 0.0
    %v2082 = vadd.f32 %v2080, 0.0
    %v2083 = vmul.f32 %v2065, %v2065
    %v2084 = vmul.f32 %v2066, %v2066
    %v2085 = vrot.slane %v2083, 4
    %v2086 = vadd.f32 %v2083, %v2085
    %v2087 = vrot.slane %v2086, 2
    %v2088 = vadd.f32 %v2086, %v2087
    %v2089 = vrot.slane %v2088, 1
    %v2090 = vadd.f32 %v2088, %v2089
    %v2091 = vrot.slane %v2084, 4
    %v2092 = vadd.f32 %v2084, %v2091
    %v2093 = vrot.slane %v2092, 2
    %v2094 = vadd.f32 %v2092, %v2093
    %v2095 = vrot.slane %v2094, 1
    %v2096 = vadd.f32 %v2094, %v2095
    %v2097 = vadd.f32 %v2090, 0.0
    %v2098 = vadd.f32 %v2096, 0.0
    %v2099 = vld [vmem:[#allocation3 + $0x8] sm:$0x88]
    %v2100 = vld [vmem:[#allocation3 + $0x10] sm:$0x77]
    %v2101 = vld [vmem:[#allocation8] sm:$0xff]
    %v2102 = vld [vmem:[#allocation8 + $0x8] sm:$0xff]
    %v2103 = vld [vmem:[#allocation8 + $0x10] sm:$0xff]
    %v2104 = vld [vmem:[#allocation8 + $0x18] sm:$0xff]
    %v2105 = vld [vmem:[#allocation8 + $0x20] sm:$0xff]
    %v2106 = vld [vmem:[#allocation8 + $0x28] sm:$0xff]
    %v2107 = vld [vmem:[#allocation8 + $0x30] sm:$0xff]
    %v2108 = vld [vmem:[#allocation8 + $0x38] sm:$0xff]
    %v2109 = vld [vmem:[#allocation8 + $0x40] sm:$0xff]
    %v2110 = vld [vmem:[#allocation8 + $0x48] sm:$0xff]
    %v2111 = vld [vmem:[#allocation8 + $0x50] sm:$0xff]
    %v2112 = vld [vmem:[#allocation8 + $0x58] sm:$0xff]
    %v2113 = vld [vmem:[#allocation8 + $0x60] sm:$0xff]
    %v2114 = vld [vmem:[#allocation8 + $0x68] sm:$0xff]
    %v2115 = vld [vmem:[#allocation8 + $0x70] sm:$0xff]
    %v2116 = vld [vmem:[#allocation8 + $0x78] sm:$0xff]
    %v2117 = vld [vmem:[#allocation8 + $0x80] sm:$0xff]
    %v2118 = vld [vmem:[#allocation8 + $0x88] sm:$0xff]
    %v2119 = vld [vmem:[#allocation8 + $0x90] sm:$0xff]
    %v2120 = vld [vmem:[#allocation8 + $0x98] sm:$0xff]
    %v2121 = vld [vmem:[#allocation8 + $0xa0] sm:$0xff]
    %v2122 = vld [vmem:[#allocation8 + $0xa8] sm:$0xff]
    %v2123 = vld [vmem:[#allocation8 + $0xb0] sm:$0xff]
    %v2124 = vld [vmem:[#allocation8 + $0xb8] sm:$0xff]
    %v2125 = vld [vmem:[#allocation8 + $0xc0] sm:$0xff]
    %v2126 = vld [vmem:[#allocation8 + $0xc8] sm:$0xff]
    %v2127 = vld [vmem:[#allocation8 + $0xd0] sm:$0xff]
    %v2128 = vld [vmem:[#allocation8 + $0xd8] sm:$0xff]
    %v2129 = vld [vmem:[#allocation8 + $0xe0] sm:$0xff]
    %v2130 = vld [vmem:[#allocation8 + $0xe8] sm:$0xff]
    %v2131 = vld [vmem:[#allocation8 + $0xf0] sm:$0xff]
    %v2132 = vld [vmem:[#allocation8 + $0xf8] sm:$0xff]
    %v2133 = vld [vmem:[#allocation3 + $0x8] sm:$0xcc]
    %v2134 = vld [vmem:[%s1095] sm:$0xff]
    %v2135 = vld [vmem:[%s1095 + $0x8] sm:$0xff]
    %v2136 = vld [vmem:[%s1095 + $0x10] sm:$0xff]
    %v2137 = vld [vmem:[%s1095 + $0x18] sm:$0xff]
    %v2138 = vld [vmem:[%s1095 + $0x20] sm:$0xff]
    %v2139 = vld [vmem:[%s1095 + $0x28] sm:$0xff]
    %v2140 = vld [vmem:[%s1095 + $0x30] sm:$0xff]
    %v2141 = vld [vmem:[%s1095 + $0x38] sm:$0xff]
    %v2142 = vld [vmem:[%s1095 + $0x40] sm:$0xff]
    %v2143 = vld [vmem:[%s1095 + $0x48] sm:$0xff]
    %v2144 = vld [vmem:[%s1095 + $0x50] sm:$0xff]
    %v2145 = vld [vmem:[%s1095 + $0x58] sm:$0xff]
    %v2146 = vld [vmem:[%s1095 + $0x60] sm:$0xff]
    %v2147 = vld [vmem:[%s1095 + $0x68] sm:$0xff]
    %v2148 = vld [vmem:[%s1095 + $0x70] sm:$0xff]
    %v2149 = vld [vmem:[%s1095 + $0x78] sm:$0xff]
    %v2150 = vld [vmem:[%s1095 + $0x80] sm:$0xff]
    %v2151 = vld [vmem:[%s1095 + $0x88] sm:$0xff]
    %v2152 = vld [vmem:[%s1095 + $0x90] sm:$0xff]
    %v2153 = vld [vmem:[%s1095 + $0x98] sm:$0xff]
    %v2154 = vld [vmem:[%s1095 + $0xa0] sm:$0xff]
    %v2155 = vld [vmem:[%s1095 + $0xa8] sm:$0xff]
    %v2156 = vld [vmem:[%s1095 + $0xb0] sm:$0xff]
    %v2157 = vld [vmem:[%s1095 + $0xb8] sm:$0xff]
    %v2158 = vld [vmem:[%s1095 + $0xc0] sm:$0xff]
    %v2159 = vld [vmem:[%s1095 + $0xc8] sm:$0xff]
    %v2160 = vld [vmem:[%s1095 + $0xd0] sm:$0xff]
    %v2161 = vld [vmem:[%s1095 + $0xd8] sm:$0xff]
    %v2162 = vld [vmem:[%s1095 + $0xe0] sm:$0xff]
    %v2163 = vld [vmem:[%s1095 + $0xe8] sm:$0xff]
    %v2164 = vld [vmem:[%s1095 + $0xf0] sm:$0xff]
    %v2165 = vld [vmem:[%s1095 + $0xf8] sm:$0xff]
    %v2168 = vunpack.c.l.b16 %v2133
    %v2169 = vunpack.c.h.b16 %v2133
    %v2170 = vunpack.c.l.b16 %v2100
    %v2171 = vunpack.c.h.b16 %v2100
    %v2172 = vpack.c.b16 %v2170, %v2168
    %v2173 = vpack.c.b16 %v2171, %v2169
    %v2175 = vshrl.u32 %v2172, 16
    %v2177 = vrot.slane %v2175, 2
    %v2178 = vshll.u32 %v2172, 16
    %v2180 = vrot.slane %v2178, 3
    %v2181 = vor.u32 %v2177, %v2180
    %v2183 = vshrl.u32 %v2173, 16
    %v2185 = vrot.slane %v2183, 2
    %v2186 = vshll.u32 %v2173, 16
    %v2188 = vrot.slane %v2186, 3
    %v2189 = vor.u32 %v2185, %v2188
    %v2224 = vunpack.c.l.b16 %v2134
    %v2225 = vunpack.c.h.b16 %v2134
    %v2226 = vunpack.c.l.b16 %v2135
    %v2227 = vunpack.c.h.b16 %v2135
    %v2228 = vunpack.c.l.b16 %v2136
    %v2229 = vunpack.c.h.b16 %v2136
    %v2230 = vunpack.c.l.b16 %v2137
    %v2231 = vunpack.c.h.b16 %v2137
    %v2232 = vunpack.c.l.b16 %v2138
    %v2233 = vunpack.c.h.b16 %v2138
    %v2234 = vunpack.c.l.b16 %v2139
    %v2235 = vunpack.c.h.b16 %v2139
    %v2236 = vunpack.c.l.b16 %v2140
    %v2237 = vunpack.c.h.b16 %v2140
    %v2238 = vunpack.c.l.b16 %v2141
    %v2239 = vunpack.c.h.b16 %v2141
    %v2240 = vunpack.c.l.b16 %v2142
    %v2241 = vunpack.c.h.b16 %v2142
    %v2242 = vunpack.c.l.b16 %v2143
    %v2243 = vunpack.c.h.b16 %v2143
    %v2244 = vunpack.c.l.b16 %v2144
    %v2245 = vunpack.c.h.b16 %v2144
    %v2246 = vunpack.c.l.b16 %v2145
    %v2247 = vunpack.c.h.b16 %v2145
    %v2248 = vunpack.c.l.b16 %v2146
    %v2249 = vunpack.c.h.b16 %v2146
    %v2250 = vunpack.c.l.b16 %v2147
    %v2251 = vunpack.c.h.b16 %v2147
    %v2252 = vunpack.c.l.b16 %v2148
    %v2253 = vunpack.c.h.b16 %v2148
    %v2254 = vunpack.c.l.b16 %v2149
    %v2255 = vunpack.c.h.b16 %v2149
    %v2256 = vunpack.c.l.b16 %v2150
    %v2257 = vunpack.c.h.b16 %v2150
    %v2258 = vunpack.c.l.b16 %v2151
    %v2259 = vunpack.c.h.b16 %v2151
    %v2260 = vunpack.c.l.b16 %v2152
    %v2261 = vunpack.c.h.b16 %v2152
    %v2262 = vunpack.c.l.b16 %v2153
    %v2263 = vunpack.c.h.b16 %v2153
    %v2264 = vunpack.c.l.b16 %v2154
    %v2265 = vunpack.c.h.b16 %v2154
    %v2266 = vunpack.c.l.b16 %v2155
    %v2267 = vunpack.c.h.b16 %v2155
    %v2268 = vunpack.c.l.b16 %v2156
    %v2269 = vunpack.c.h.b16 %v2156
    %v2270 = vunpack.c.l.b16 %v2157
    %v2271 = vunpack.c.h.b16 %v2157
    %v2272 = vunpack.c.l.b16 %v2158
    %v2273 = vunpack.c.h.b16 %v2158
    %v2274 = vunpack.c.l.b16 %v2159
    %v2275 = vunpack.c.h.b16 %v2159
    %v2276 = vunpack.c.l.b16 %v2160
    %v2277 = vunpack.c.h.b16 %v2160
    %v2278 = vunpack.c.l.b16 %v2161
    %v2279 = vunpack.c.h.b16 %v2161
    %v2280 = vunpack.c.l.b16 %v2162
    %v2281 = vunpack.c.h.b16 %v2162
    %v2282 = vunpack.c.l.b16 %v2163
    %v2283 = vunpack.c.h.b16 %v2163
    %v2284 = vunpack.c.l.b16 %v2164
    %v2285 = vunpack.c.h.b16 %v2164
    %v2286 = vunpack.c.l.b16 %v2165
    %v2287 = vunpack.c.h.b16 %v2165
    %v2288 = vpack.c.b16 %v2226, %v2224
    %v2289 = vpack.c.b16 %v2227, %v2225
    %v2290 = vpack.c.b16 %v2230, %v2228
    %v2291 = vpack.c.b16 %v2231, %v2229
    %v2292 = vpack.c.b16 %v2234, %v2232
    %v2293 = vpack.c.b16 %v2235, %v2233
    %v2294 = vpack.c.b16 %v2238, %v2236
    %v2295 = vpack.c.b16 %v2239, %v2237
    %v2296 = vpack.c.b16 %v2242, %v2240
    %v2297 = vpack.c.b16 %v2243, %v2241
    %v2298 = vpack.c.b16 %v2246, %v2244
    %v2299 = vpack.c.b16 %v2247, %v2245
    %v2300 = vpack.c.b16 %v2250, %v2248
    %v2301 = vpack.c.b16 %v2251, %v2249
    %v2302 = vpack.c.b16 %v2254, %v2252
    %v2303 = vpack.c.b16 %v2255, %v2253
    %v2304 = vpack.c.b16 %v2258, %v2256
    %v2305 = vpack.c.b16 %v2259, %v2257
    %v2306 = vpack.c.b16 %v2262, %v2260
    %v2307 = vpack.c.b16 %v2263, %v2261
    %v2308 = vpack.c.b16 %v2266, %v2264
    %v2309 = vpack.c.b16 %v2267, %v2265
    %v2310 = vpack.c.b16 %v2270, %v2268
    %v2311 = vpack.c.b16 %v2271, %v2269
    %v2312 = vpack.c.b16 %v2274, %v2272
    %v2313 = vpack.c.b16 %v2275, %v2273
    %v2314 = vpack.c.b16 %v2278, %v2276
    %v2315 = vpack.c.b16 %v2279, %v2277
    %v2316 = vpack.c.b16 %v2282, %v2280
    %v2317 = vpack.c.b16 %v2283, %v2281
    %v2318 = vpack.c.b16 %v2286, %v2284
    %v2319 = vpack.c.b16 %v2287, %v2285
    %2352 = vmatprep.subr.bf16.mxu0 %v2303
    %2353 = vmatpush1.bf16.msra.mxu0 %v2302
    %2354 = vmatprep.subr.bf16.mxu0 %v2301
    %2355 = vmatpush1.bf16.msra.mxu0 %v2300
    %2356 = vmatprep.subr.bf16.mxu0 %v2299
    %2357 = vmatpush1.bf16.msra.mxu0 %v2298
    %2358 = vmatprep.subr.bf16.mxu0 %v2297
    %2359 = vmatpush1.bf16.msra.mxu0 %v2296
    %2360 = vmatprep.subr.bf16.mxu0 %v2295
    %2361 = vmatpush1.bf16.msra.mxu0 %v2294
    %2362 = vmatprep.subr.bf16.mxu0 %v2293
    %2363 = vmatpush1.bf16.msra.mxu0 %v2292
    %2364 = vmatprep.subr.bf16.mxu0 %v2291
    %2365 = vmatpush1.bf16.msra.mxu0 %v2290
    %2366 = vmatprep.subr.bf16.mxu0 %v2289
    %2367 = vmatpush1.bf16.msra.mxu0 %v2288
    %2368 = vmatprep.subr.bf16.mxu0 %v2319
    %2369 = vmatpush2.bf16.msra.mxu0 %v2318
    %2370 = vmatprep.subr.bf16.mxu0 %v2317
    %2371 = vmatpush2.bf16.msra.mxu0 %v2316
    %2372 = vmatprep.subr.bf16.mxu0 %v2315
    %2373 = vmatpush2.bf16.msra.mxu0 %v2314
    %2374 = vmatprep.subr.bf16.mxu0 %v2313
    %2375 = vmatpush2.bf16.msra.mxu0 %v2312
    %2376 = vmatprep.subr.bf16.mxu0 %v2311
    %2377 = vmatpush2.bf16.msra.mxu0 %v2310
    %2378 = vmatprep.subr.bf16.mxu0 %v2309
    %2379 = vmatpush2.bf16.msra.mxu0 %v2308
    %2380 = vmatprep.subr.bf16.mxu0 %v2307
    %2381 = vmatpush2.bf16.msra.mxu0 %v2306
    %2382 = vmatprep.subr.bf16.mxu0 %v2305
    %2383 = vmatpush2.bf16.msra.mxu0 %v2304
    %2384 = vmatprep.mubr.bf16.mxu0 %v2189
    %2385 = vmatmul.mubr.bf16.gmra.mxu0 %v2181
    %v2386 = vpop.f32.mrf.mxu0
    %v2387 = vadd.f32 0.0, %v2386
    %v2388 = vpop.f32.mrf.mxu0
    %v2389 = vadd.f32 0.0, %v2388
    %v2390 = vpop.f32.mrf.mxu0
    %v2391 = vpop.f32.mrf.mxu0
    %2392 = vdwg.mxu0
    %v2394 = vunpack.c.l.b16 %v2099
    %v2395 = vunpack.c.h.b16 %v2099
    %v2396 = vpack.c.b16 %v2170, %v2394
    %v2397 = vpack.c.b16 %v2171, %v2395
    %v2398 = vrot.slane %v2396, 3
    %v2399 = vrot.slane %v2397, 3
    %v2434 = vunpack.c.l.b16 %v2101
    %v2435 = vunpack.c.h.b16 %v2101
    %v2436 = vunpack.c.l.b16 %v2102
    %v2437 = vunpack.c.h.b16 %v2102
    %v2438 = vunpack.c.l.b16 %v2103
    %v2439 = vunpack.c.h.b16 %v2103
    %v2440 = vunpack.c.l.b16 %v2104
    %v2441 = vunpack.c.h.b16 %v2104
    %v2442 = vunpack.c.l.b16 %v2105
    %v2443 = vunpack.c.h.b16 %v2105
    %v2444 = vunpack.c.l.b16 %v2106
    %v2445 = vunpack.c.h.b16 %v2106
    %v2446 = vunpack.c.l.b16 %v2107
    %v2447 = vunpack.c.h.b16 %v2107
    %v2448 = vunpack.c.l.b16 %v2108
    %v2449 = vunpack.c.h.b16 %v2108
    %v2450 = vunpack.c.l.b16 %v2109
    %v2451 = vunpack.c.h.b16 %v2109
    %v2452 = vunpack.c.l.b16 %v2110
    %v2453 = vunpack.c.h.b16 %v2110
    %v2454 = vunpack.c.l.b16 %v2111
    %v2455 = vunpack.c.h.b16 %v2111
    %v2456 = vunpack.c.l.b16 %v2112
    %v2457 = vunpack.c.h.b16 %v2112
    %v2458 = vunpack.c.l.b16 %v2113
    %v2459 = vunpack.c.h.b16 %v2113
    %v2460 = vunpack.c.l.b16 %v2114
    %v2461 = vunpack.c.h.b16 %v2114
    %v2462 = vunpack.c.l.b16 %v2115
    %v2463 = vunpack.c.h.b16 %v2115
    %v2464 = vunpack.c.l.b16 %v2116
    %v2465 = vunpack.c.h.b16 %v2116
    %v2466 = vunpack.c.l.b16 %v2117
    %v2467 = vunpack.c.h.b16 %v2117
    %v2468 = vunpack.c.l.b16 %v2118
    %v2469 = vunpack.c.h.b16 %v2118
    %v2470 = vunpack.c.l.b16 %v2119
    %v2471 = vunpack.c.h.b16 %v2119
    %v2472 = vunpack.c.l.b16 %v2120
    %v2473 = vunpack.c.h.b16 %v2120
    %v2474 = vunpack.c.l.b16 %v2121
    %v2475 = vunpack.c.h.b16 %v2121
    %v2476 = vunpack.c.l.b16 %v2122
    %v2477 = vunpack.c.h.b16 %v2122
    %v2478 = vunpack.c.l.b16 %v2123
    %v2479 = vunpack.c.h.b16 %v2123
    %v2480 = vunpack.c.l.b16 %v2124
    %v2481 = vunpack.c.h.b16 %v2124
    %v2482 = vunpack.c.l.b16 %v2125
    %v2483 = vunpack.c.h.b16 %v2125
    %v2484 = vunpack.c.l.b16 %v2126
    %v2485 = vunpack.c.h.b16 %v2126
    %v2486 = vunpack.c.l.b16 %v2127
    %v2487 = vunpack.c.h.b16 %v2127
    %v2488 = vunpack.c.l.b16 %v2128
    %v2489 = vunpack.c.h.b16 %v2128
    %v2490 = vunpack.c.l.b16 %v2129
    %v2491 = vunpack.c.h.b16 %v2129
    %v2492 = vunpack.c.l.b16 %v2130
    %v2493 = vunpack.c.h.b16 %v2130
    %v2494 = vunpack.c.l.b16 %v2131
    %v2495 = vunpack.c.h.b16 %v2131
    %v2496 = vunpack.c.l.b16 %v2132
    %v2497 = vunpack.c.h.b16 %v2132
    %v2498 = vpack.c.b16 %v2436, %v2434
    %v2499 = vpack.c.b16 %v2437, %v2435
    %v2500 = vpack.c.b16 %v2440, %v2438
    %v2501 = vpack.c.b16 %v2441, %v2439
    %v2502 = vpack.c.b16 %v2444, %v2442
    %v2503 = vpack.c.b16 %v2445, %v2443
    %v2504 = vpack.c.b16 %v2448, %v2446
    %v2505 = vpack.c.b16 %v2449, %v2447
    %v2506 = vpack.c.b16 %v2452, %v2450
    %v2507 = vpack.c.b16 %v2453, %v2451
    %v2508 = vpack.c.b16 %v2456, %v2454
    %v2509 = vpack.c.b16 %v2457, %v2455
    %v2510 = vpack.c.b16 %v2460, %v2458
    %v2511 = vpack.c.b16 %v2461, %v2459
    %v2512 = vpack.c.b16 %v2464, %v2462
    %v2513 = vpack.c.b16 %v2465, %v2463
    %v2514 = vpack.c.b16 %v2468, %v2466
    %v2515 = vpack.c.b16 %v2469, %v2467
    %v2516 = vpack.c.b16 %v2472, %v2470
    %v2517 = vpack.c.b16 %v2473, %v2471
    %v2518 = vpack.c.b16 %v2476, %v2474
    %v2519 = vpack.c.b16 %v2477, %v2475
    %v2520 = vpack.c.b16 %v2480, %v2478
    %v2521 = vpack.c.b16 %v2481, %v2479
    %v2522 = vpack.c.b16 %v2484, %v2482
    %v2523 = vpack.c.b16 %v2485, %v2483
    %v2524 = vpack.c.b16 %v2488, %v2486
    %v2525 = vpack.c.b16 %v2489, %v2487
    %v2526 = vpack.c.b16 %v2492, %v2490
    %v2527 = vpack.c.b16 %v2493, %v2491
    %v2528 = vpack.c.b16 %v2496, %v2494
    %v2529 = vpack.c.b16 %v2497, %v2495
    %2562 = vmatprep.subr.bf16.mxu0 %v2513
    %2563 = vmatpush1.bf16.msra.mxu0 %v2512
    %2564 = vmatprep.subr.bf16.mxu0 %v2511
    %2565 = vmatpush1.bf16.msra.mxu0 %v2510
    %2566 = vmatprep.subr.bf16.mxu0 %v2509
    %2567 = vmatpush1.bf16.msra.mxu0 %v2508
    %2568 = vmatprep.subr.bf16.mxu0 %v2507
    %2569 = vmatpush1.bf16.msra.mxu0 %v2506
    %2570 = vmatprep.subr.bf16.mxu0 %v2505
    %2571 = vmatpush1.bf16.msra.mxu0 %v2504
    %2572 = vmatprep.subr.bf16.mxu0 %v2503
    %2573 = vmatpush1.bf16.msra.mxu0 %v2502
    %2574 = vmatprep.subr.bf16.mxu0 %v2501
    %2575 = vmatpush1.bf16.msra.mxu0 %v2500
    %2576 = vmatprep.subr.bf16.mxu0 %v2499
    %2577 = vmatpush1.bf16.msra.mxu0 %v2498
    %2578 = vmatprep.subr.bf16.mxu0 %v2529
    %2579 = vmatpush2.bf16.msra.mxu0 %v2528
    %2580 = vmatprep.subr.bf16.mxu0 %v2527
    %2581 = vmatpush2.bf16.msra.mxu0 %v2526
    %2582 = vmatprep.subr.bf16.mxu0 %v2525
    %2583 = vmatpush2.bf16.msra.mxu0 %v2524
    %2584 = vmatprep.subr.bf16.mxu0 %v2523
    %2585 = vmatpush2.bf16.msra.mxu0 %v2522
    %2586 = vmatprep.subr.bf16.mxu0 %v2521
    %2587 = vmatpush2.bf16.msra.mxu0 %v2520
    %2588 = vmatprep.subr.bf16.mxu0 %v2519
    %2589 = vmatpush2.bf16.msra.mxu0 %v2518
    %2590 = vmatprep.subr.bf16.mxu0 %v2517
    %2591 = vmatpush2.bf16.msra.mxu0 %v2516
    %2592 = vmatprep.subr.bf16.mxu0 %v2515
    %2593 = vmatpush2.bf16.msra.mxu0 %v2514
    %2594 = vmatprep.mubr.bf16.mxu0 %v2399
    %2595 = vmatmul.mubr.bf16.gmra.mxu0 %v2398
    %v2596 = vpop.f32.mrf.mxu0
    %v2597 = vadd.f32 %v2387, %v2596
    %v2598 = vpop.f32.mrf.mxu0
    %v2599 = vadd.f32 %v2389, %v2598
    %v2600 = vpop.f32.mrf.mxu0
    %v2601 = vpop.f32.mrf.mxu0
    %2602 = vdwg.mxu0
    %v2603 = vld [vmem:[#allocation3 + $0x10] sm:$0x33]
    %v2604 = vld [vmem:[%s1566] sm:$0xff]
    %v2605 = vld [vmem:[%s1566 + $0x8] sm:$0xff]
    %v2606 = vld [vmem:[%s1566 + $0x10] sm:$0xff]
    %v2607 = vld [vmem:[%s1566 + $0x18] sm:$0xff]
    %v2608 = vld [vmem:[%s1566 + $0x20] sm:$0xff]
    %v2609 = vld [vmem:[%s1566 + $0x28] sm:$0xff]
    %v2610 = vld [vmem:[%s1566 + $0x30] sm:$0xff]
    %v2611 = vld [vmem:[%s1566 + $0x38] sm:$0xff]
    %v2612 = vld [vmem:[%s1566 + $0x40] sm:$0xff]
    %v2613 = vld [vmem:[%s1566 + $0x48] sm:$0xff]
    %v2614 = vld [vmem:[%s1566 + $0x50] sm:$0xff]
    %v2615 = vld [vmem:[%s1566 + $0x58] sm:$0xff]
    %v2616 = vld [vmem:[%s1566 + $0x60] sm:$0xff]
    %v2617 = vld [vmem:[%s1566 + $0x68] sm:$0xff]
    %v2618 = vld [vmem:[%s1566 + $0x70] sm:$0xff]
    %v2619 = vld [vmem:[%s1566 + $0x78] sm:$0xff]
    %v2620 = vld [vmem:[%s1566 + $0x80] sm:$0xff]
    %v2621 = vld [vmem:[%s1566 + $0x88] sm:$0xff]
    %v2622 = vld [vmem:[%s1566 + $0x90] sm:$0xff]
    %v2623 = vld [vmem:[%s1566 + $0x98] sm:$0xff]
    %v2624 = vld [vmem:[%s1566 + $0xa0] sm:$0xff]
    %v2625 = vld [vmem:[%s1566 + $0xa8] sm:$0xff]
    %v2626 = vld [vmem:[%s1566 + $0xb0] sm:$0xff]
    %v2627 = vld [vmem:[%s1566 + $0xb8] sm:$0xff]
    %v2628 = vld [vmem:[%s1566 + $0xc0] sm:$0xff]
    %v2629 = vld [vmem:[%s1566 + $0xc8] sm:$0xff]
    %v2630 = vld [vmem:[%s1566 + $0xd0] sm:$0xff]
    %v2631 = vld [vmem:[%s1566 + $0xd8] sm:$0xff]
    %v2632 = vld [vmem:[%s1566 + $0xe0] sm:$0xff]
    %v2633 = vld [vmem:[%s1566 + $0xe8] sm:$0xff]
    %v2634 = vld [vmem:[%s1566 + $0xf0] sm:$0xff]
    %v2635 = vld [vmem:[%s1566 + $0xf8] sm:$0xff]
    %v2637 = vunpack.c.l.b16 %v2603
    %v2638 = vunpack.c.h.b16 %v2603
    %v2639 = vpack.c.b16 %v2637, %v2168
    %v2640 = vpack.c.b16 %v2638, %v2169
    %v2641 = vrot.slane %v2639, 2
    %v2642 = vrot.slane %v2640, 2
    %v2677 = vunpack.c.l.b16 %v2604
    %v2678 = vunpack.c.h.b16 %v2604
    %v2679 = vunpack.c.l.b16 %v2605
    %v2680 = vunpack.c.h.b16 %v2605
    %v2681 = vunpack.c.l.b16 %v2606
    %v2682 = vunpack.c.h.b16 %v2606
    %v2683 = vunpack.c.l.b16 %v2607
    %v2684 = vunpack.c.h.b16 %v2607
    %v2685 = vunpack.c.l.b16 %v2608
    %v2686 = vunpack.c.h.b16 %v2608
    %v2687 = vunpack.c.l.b16 %v2609
    %v2688 = vunpack.c.h.b16 %v2609
    %v2689 = vunpack.c.l.b16 %v2610
    %v2690 = vunpack.c.h.b16 %v2610
    %v2691 = vunpack.c.l.b16 %v2611
    %v2692 = vunpack.c.h.b16 %v2611
    %v2693 = vunpack.c.l.b16 %v2612
    %v2694 = vunpack.c.h.b16 %v2612
    %v2695 = vunpack.c.l.b16 %v2613
    %v2696 = vunpack.c.h.b16 %v2613
    %v2697 = vunpack.c.l.b16 %v2614
    %v2698 = vunpack.c.h.b16 %v2614
    %v2699 = vunpack.c.l.b16 %v2615
    %v2700 = vunpack.c.h.b16 %v2615
    %v2701 = vunpack.c.l.b16 %v2616
    %v2702 = vunpack.c.h.b16 %v2616
    %v2703 = vunpack.c.l.b16 %v2617
    %v2704 = vunpack.c.h.b16 %v2617
    %v2705 = vunpack.c.l.b16 %v2618
    %v2706 = vunpack.c.h.b16 %v2618
    %v2707 = vunpack.c.l.b16 %v2619
    %v2708 = vunpack.c.h.b16 %v2619
    %v2709 = vunpack.c.l.b16 %v2620
    %v2710 = vunpack.c.h.b16 %v2620
    %v2711 = vunpack.c.l.b16 %v2621
    %v2712 = vunpack.c.h.b16 %v2621
    %v2713 = vunpack.c.l.b16 %v2622
    %v2714 = vunpack.c.h.b16 %v2622
    %v2715 = vunpack.c.l.b16 %v2623
    %v2716 = vunpack.c.h.b16 %v2623
    %v2717 = vunpack.c.l.b16 %v2624
    %v2718 = vunpack.c.h.b16 %v2624
    %v2719 = vunpack.c.l.b16 %v2625
    %v2720 = vunpack.c.h.b16 %v2625
    %v2721 = vunpack.c.l.b16 %v2626
    %v2722 = vunpack.c.h.b16 %v2626
    %v2723 = vunpack.c.l.b16 %v2627
    %v2724 = vunpack.c.h.b16 %v2627
    %v2725 = vunpack.c.l.b16 %v2628
    %v2726 = vunpack.c.h.b16 %v2628
    %v2727 = vunpack.c.l.b16 %v2629
    %v2728 = vunpack.c.h.b16 %v2629
    %v2729 = vunpack.c.l.b16 %v2630
    %v2730 = vunpack.c.h.b16 %v2630
    %v2731 = vunpack.c.l.b16 %v2631
    %v2732 = vunpack.c.h.b16 %v2631
    %v2733 = vunpack.c.l.b16 %v2632
    %v2734 = vunpack.c.h.b16 %v2632
    %v2735 = vunpack.c.l.b16 %v2633
    %v2736 = vunpack.c.h.b16 %v2633
    %v2737 = vunpack.c.l.b16 %v2634
    %v2738 = vunpack.c.h.b16 %v2634
    %v2739 = vunpack.c.l.b16 %v2635
    %v2740 = vunpack.c.h.b16 %v2635
    %v2741 = vpack.c.b16 %v2679, %v2677
    %v2742 = vpack.c.b16 %v2680, %v2678
    %v2743 = vpack.c.b16 %v2683, %v2681
    %v2744 = vpack.c.b16 %v2684, %v2682
    %v2745 = vpack.c.b16 %v2687, %v2685
    %v2746 = vpack.c.b16 %v2688, %v2686
    %v2747 = vpack.c.b16 %v2691, %v2689
    %v2748 = vpack.c.b16 %v2692, %v2690
    %v2749 = vpack.c.b16 %v2695, %v2693
    %v2750 = vpack.c.b16 %v2696, %v2694
    %v2751 = vpack.c.b16 %v2699, %v2697
    %v2752 = vpack.c.b16 %v2700, %v2698
    %v2753 = vpack.c.b16 %v2703, %v2701
    %v2754 = vpack.c.b16 %v2704, %v2702
    %v2755 = vpack.c.b16 %v2707, %v2705
    %v2756 = vpack.c.b16 %v2708, %v2706
    %v2757 = vpack.c.b16 %v2711, %v2709
    %v2758 = vpack.c.b16 %v2712, %v2710
    %v2759 = vpack.c.b16 %v2715, %v2713
    %v2760 = vpack.c.b16 %v2716, %v2714
    %v2761 = vpack.c.b16 %v2719, %v2717
    %v2762 = vpack.c.b16 %v2720, %v2718
    %v2763 = vpack.c.b16 %v2723, %v2721
    %v2764 = vpack.c.b16 %v2724, %v2722
    %v2765 = vpack.c.b16 %v2727, %v2725
    %v2766 = vpack.c.b16 %v2728, %v2726
    %v2767 = vpack.c.b16 %v2731, %v2729
    %v2768 = vpack.c.b16 %v2732, %v2730
    %v2769 = vpack.c.b16 %v2735, %v2733
    %v2770 = vpack.c.b16 %v2736, %v2734
    %v2771 = vpack.c.b16 %v2739, %v2737
    %v2772 = vpack.c.b16 %v2740, %v2738
    %2805 = vmatprep.subr.bf16.mxu0 %v2756
    %2806 = vmatpush1.bf16.msra.mxu0 %v2755
    %2807 = vmatprep.subr.bf16.mxu0 %v2754
    %2808 = vmatpush1.bf16.msra.mxu0 %v2753
    %2809 = vmatprep.subr.bf16.mxu0 %v2752
    %2810 = vmatpush1.bf16.msra.mxu0 %v2751
    %2811 = vmatprep.subr.bf16.mxu0 %v2750
    %2812 = vmatpush1.bf16.msra.mxu0 %v2749
    %2813 = vmatprep.subr.bf16.mxu0 %v2748
    %2814 = vmatpush1.bf16.msra.mxu0 %v2747
    %2815 = vmatprep.subr.bf16.mxu0 %v2746
    %2816 = vmatpush1.bf16.msra.mxu0 %v2745
    %2817 = vmatprep.subr.bf16.mxu0 %v2744
    %2818 = vmatpush1.bf16.msra.mxu0 %v2743
    %2819 = vmatprep.subr.bf16.mxu0 %v2742
    %2820 = vmatpush1.bf16.msra.mxu0 %v2741
    %2821 = vmatprep.subr.bf16.mxu0 %v2772
    %2822 = vmatpush2.bf16.msra.mxu0 %v2771
    %2823 = vmatprep.subr.bf16.mxu0 %v2770
    %2824 = vmatpush2.bf16.msra.mxu0 %v2769
    %2825 = vmatprep.subr.bf16.mxu0 %v2768
    %2826 = vmatpush2.bf16.msra.mxu0 %v2767
    %2827 = vmatprep.subr.bf16.mxu0 %v2766
    %2828 = vmatpush2.bf16.msra.mxu0 %v2765
    %2829 = vmatprep.subr.bf16.mxu0 %v2764
    %2830 = vmatpush2.bf16.msra.mxu0 %v2763
    %2831 = vmatprep.subr.bf16.mxu0 %v2762
    %2832 = vmatpush2.bf16.msra.mxu0 %v2761
    %2833 = vmatprep.subr.bf16.mxu0 %v2760
    %2834 = vmatpush2.bf16.msra.mxu0 %v2759
    %2835 = vmatprep.subr.bf16.mxu0 %v2758
    %2836 = vmatpush2.bf16.msra.mxu0 %v2757
    %2837 = vmatprep.mubr.bf16.mxu0 %v2642
    %2838 = vmatmul.mubr.bf16.gmra.mxu0 %v2641
    %v2839 = vpop.f32.mrf.mxu0
    %v2840 = vadd.f32 0.0, %v2839
    %v2841 = vpop.f32.mrf.mxu0
    %v2842 = vadd.f32 0.0, %v2841
    %v2843 = vpop.f32.mrf.mxu0
    %v2844 = vpop.f32.mrf.mxu0
    %2845 = vdwg.mxu0
    %v2846 = vadd.f32 %v2597, %v2840
    %v2847 = vadd.f32 %v2599, %v2842
    %v2848 = vld [vmem:[#allocation3 + $0x8] sm:$0xee]
    %v2849 = vld [vmem:[%s1824] sm:$0xff]
    %v2850 = vld [vmem:[%s1824 + $0x8] sm:$0xff]
    %v2851 = vld [vmem:[%s1824 + $0x10] sm:$0xff]
    %v2852 = vld [vmem:[%s1824 + $0x18] sm:$0xff]
    %v2853 = vld [vmem:[%s1824 + $0x20] sm:$0xff]
    %v2854 = vld [vmem:[%s1824 + $0x28] sm:$0xff]
    %v2855 = vld [vmem:[%s1824 + $0x30] sm:$0xff]
    %v2856 = vld [vmem:[%s1824 + $0x38] sm:$0xff]
    %v2857 = vld [vmem:[%s1824 + $0x40] sm:$0xff]
    %v2858 = vld [vmem:[%s1824 + $0x48] sm:$0xff]
    %v2859 = vld [vmem:[%s1824 + $0x50] sm:$0xff]
    %v2860 = vld [vmem:[%s1824 + $0x58] sm:$0xff]
    %v2861 = vld [vmem:[%s1824 + $0x60] sm:$0xff]
    %v2862 = vld [vmem:[%s1824 + $0x68] sm:$0xff]
    %v2863 = vld [vmem:[%s1824 + $0x70] sm:$0xff]
    %v2864 = vld [vmem:[%s1824 + $0x78] sm:$0xff]
    %v2865 = vld [vmem:[%s1824 + $0x80] sm:$0xff]
    %v2866 = vld [vmem:[%s1824 + $0x88] sm:$0xff]
    %v2867 = vld [vmem:[%s1824 + $0x90] sm:$0xff]
    %v2868 = vld [vmem:[%s1824 + $0x98] sm:$0xff]
    %v2869 = vld [vmem:[%s1824 + $0xa0] sm:$0xff]
    %v2870 = vld [vmem:[%s1824 + $0xa8] sm:$0xff]
    %v2871 = vld [vmem:[%s1824 + $0xb0] sm:$0xff]
    %v2872 = vld [vmem:[%s1824 + $0xb8] sm:$0xff]
    %v2873 = vld [vmem:[%s1824 + $0xc0] sm:$0xff]
    %v2874 = vld [vmem:[%s1824 + $0xc8] sm:$0xff]
    %v2875 = vld [vmem:[%s1824 + $0xd0] sm:$0xff]
    %v2876 = vld [vmem:[%s1824 + $0xd8] sm:$0xff]
    %v2877 = vld [vmem:[%s1824 + $0xe0] sm:$0xff]
    %v2878 = vld [vmem:[%s1824 + $0xe8] sm:$0xff]
    %v2879 = vld [vmem:[%s1824 + $0xf0] sm:$0xff]
    %v2880 = vld [vmem:[%s1824 + $0xf8] sm:$0xff]
    %v2882 = vunpack.c.l.b16 %v2848
    %v2883 = vunpack.c.h.b16 %v2848
    %v2884 = vpack.c.b16 %v2637, %v2882
    %v2885 = vpack.c.b16 %v2638, %v2883
    %v2887 = vshrl.u32 %v2884, 16
    %v2889 = vrot.slane %v2887, 1
    %v2890 = vshll.u32 %v2884, 16
    %v2892 = vrot.slane %v2890, 2
    %v2893 = vor.u32 %v2889, %v2892
    %v2895 = vshrl.u32 %v2885, 16
    %v2897 = vrot.slane %v2895, 1
    %v2898 = vshll.u32 %v2885, 16
    %v2900 = vrot.slane %v2898, 2
    %v2901 = vor.u32 %v2897, %v2900
    %v2936 = vunpack.c.l.b16 %v2849
    %v2937 = vunpack.c.h.b16 %v2849
    %v2938 = vunpack.c.l.b16 %v2850
    %v2939 = vunpack.c.h.b16 %v2850
    %v2940 = vunpack.c.l.b16 %v2851
    %v2941 = vunpack.c.h.b16 %v2851
    %v2942 = vunpack.c.l.b16 %v2852
    %v2943 = vunpack.c.h.b16 %v2852
    %v2944 = vunpack.c.l.b16 %v2853
    %v2945 = vunpack.c.h.b16 %v2853
    %v2946 = vunpack.c.l.b16 %v2854
    %v2947 = vunpack.c.h.b16 %v2854
    %v2948 = vunpack.c.l.b16 %v2855
    %v2949 = vunpack.c.h.b16 %v2855
    %v2950 = vunpack.c.l.b16 %v2856
    %v2951 = vunpack.c.h.b16 %v2856
    %v2952 = vunpack.c.l.b16 %v2857
    %v2953 = vunpack.c.h.b16 %v2857
    %v2954 = vunpack.c.l.b16 %v2858
    %v2955 = vunpack.c.h.b16 %v2858
    %v2956 = vunpack.c.l.b16 %v2859
    %v2957 = vunpack.c.h.b16 %v2859
    %v2958 = vunpack.c.l.b16 %v2860
    %v2959 = vunpack.c.h.b16 %v2860
    %v2960 = vunpack.c.l.b16 %v2861
    %v2961 = vunpack.c.h.b16 %v2861
    %v2962 = vunpack.c.l.b16 %v2862
    %v2963 = vunpack.c.h.b16 %v2862
    %v2964 = vunpack.c.l.b16 %v2863
    %v2965 = vunpack.c.h.b16 %v2863
    %v2966 = vunpack.c.l.b16 %v2864
    %v2967 = vunpack.c.h.b16 %v2864
    %v2968 = vunpack.c.l.b16 %v2865
    %v2969 = vunpack.c.h.b16 %v2865
    %v2970 = vunpack.c.l.b16 %v2866
    %v2971 = vunpack.c.h.b16 %v2866
    %v2972 = vunpack.c.l.b16 %v2867
    %v2973 = vunpack.c.h.b16 %v2867
    %v2974 = vunpack.c.l.b16 %v2868
    %v2975 = vunpack.c.h.b16 %v2868
    %v2976 = vunpack.c.l.b16 %v2869
    %v2977 = vunpack.c.h.b16 %v2869
    %v2978 = vunpack.c.l.b16 %v2870
    %v2979 = vunpack.c.h.b16 %v2870
    %v2980 = vunpack.c.l.b16 %v2871
    %v2981 = vunpack.c.h.b16 %v2871
    %v2982 = vunpack.c.l.b16 %v2872
    %v2983 = vunpack.c.h.b16 %v2872
    %v2984 = vunpack.c.l.b16 %v2873
    %v2985 = vunpack.c.h.b16 %v2873
    %v2986 = vunpack.c.l.b16 %v2874
    %v2987 = vunpack.c.h.b16 %v2874
    %v2988 = vunpack.c.l.b16 %v2875
    %v2989 = vunpack.c.h.b16 %v2875
    %v2990 = vunpack.c.l.b16 %v2876
    %v2991 = vunpack.c.h.b16 %v2876
    %v2992 = vunpack.c.l.b16 %v2877
    %v2993 = vunpack.c.h.b16 %v2877
    %v2994 = vunpack.c.l.b16 %v2878
    %v2995 = vunpack.c.h.b16 %v2878
    %v2996 = vunpack.c.l.b16 %v2879
    %v2997 = vunpack.c.h.b16 %v2879
    %v2998 = vunpack.c.l.b16 %v2880
    %v2999 = vunpack.c.h.b16 %v2880
    %v3000 = vpack.c.b16 %v2938, %v2936
    %v3001 = vpack.c.b16 %v2939, %v2937
    %v3002 = vpack.c.b16 %v2942, %v2940
    %v3003 = vpack.c.b16 %v2943, %v2941
    %v3004 = vpack.c.b16 %v2946, %v2944
    %v3005 = vpack.c.b16 %v2947, %v2945
    %v3006 = vpack.c.b16 %v2950, %v2948
    %v3007 = vpack.c.b16 %v2951, %v2949
    %v3008 = vpack.c.b16 %v2954, %v2952
    %v3009 = vpack.c.b16 %v2955, %v2953
    %v3010 = vpack.c.b16 %v2958, %v2956
    %v3011 = vpack.c.b16 %v2959, %v2957
    %v3012 = vpack.c.b16 %v2962, %v2960
    %v3013 = vpack.c.b16 %v2963, %v2961
    %v3014 = vpack.c.b16 %v2966, %v2964
    %v3015 = vpack.c.b16 %v2967, %v2965
    %v3016 = vpack.c.b16 %v2970, %v2968
    %v3017 = vpack.c.b16 %v2971, %v2969
    %v3018 = vpack.c.b16 %v2974, %v2972
    %v3019 = vpack.c.b16 %v2975, %v2973
    %v3020 = vpack.c.b16 %v2978, %v2976
    %v3021 = vpack.c.b16 %v2979, %v2977
    %v3022 = vpack.c.b16 %v2982, %v2980
    %v3023 = vpack.c.b16 %v2983, %v2981
    %v3024 = vpack.c.b16 %v2986, %v2984
    %v3025 = vpack.c.b16 %v2987, %v2985
    %v3026 = vpack.c.b16 %v2990, %v2988
    %v3027 = vpack.c.b16 %v2991, %v2989
    %v3028 = vpack.c.b16 %v2994, %v2992
    %v3029 = vpack.c.b16 %v2995, %v2993
    %v3030 = vpack.c.b16 %v2998, %v2996
    %v3031 = vpack.c.b16 %v2999, %v2997
    %3064 = vmatprep.subr.bf16.mxu0 %v3015
    %3065 = vmatpush1.bf16.msra.mxu0 %v3014
    %3066 = vmatprep.subr.bf16.mxu0 %v3013
    %3067 = vmatpush1.bf16.msra.mxu0 %v3012
    %3068 = vmatprep.subr.bf16.mxu0 %v3011
    %3069 = vmatpush1.bf16.msra.mxu0 %v3010
    %3070 = vmatprep.subr.bf16.mxu0 %v3009
    %3071 = vmatpush1.bf16.msra.mxu0 %v3008
    %3072 = vmatprep.subr.bf16.mxu0 %v3007
    %3073 = vmatpush1.bf16.msra.mxu0 %v3006
    %3074 = vmatprep.subr.bf16.mxu0 %v3005
    %3075 = vmatpush1.bf16.msra.mxu0 %v3004
    %3076 = vmatprep.subr.bf16.mxu0 %v3003
    %3077 = vmatpush1.bf16.msra.mxu0 %v3002
    %3078 = vmatprep.subr.bf16.mxu0 %v3001
    %3079 = vmatpush1.bf16.msra.mxu0 %v3000
    %3080 = vmatprep.subr.bf16.mxu0 %v3031
    %3081 = vmatpush2.bf16.msra.mxu0 %v3030
    %3082 = vmatprep.subr.bf16.mxu0 %v3029
    %3083 = vmatpush2.bf16.msra.mxu0 %v3028
    %3084 = vmatprep.subr.bf16.mxu0 %v3027
    %3085 = vmatpush2.bf16.msra.mxu0 %v3026
    %3086 = vmatprep.subr.bf16.mxu0 %v3025
    %3087 = vmatpush2.bf16.msra.mxu0 %v3024
    %3088 = vmatprep.subr.bf16.mxu0 %v3023
    %3089 = vmatpush2.bf16.msra.mxu0 %v3022
    %3090 = vmatprep.subr.bf16.mxu0 %v3021
    %3091 = vmatpush2.bf16.msra.mxu0 %v3020
    %3092 = vmatprep.subr.bf16.mxu0 %v3019
    %3093 = vmatpush2.bf16.msra.mxu0 %v3018
    %3094 = vmatprep.subr.bf16.mxu0 %v3017
    %3095 = vmatpush2.bf16.msra.mxu0 %v3016
    %3096 = vmatprep.mubr.bf16.mxu0 %v2901
    %3097 = vmatmul.mubr.bf16.gmra.mxu0 %v2893
    %v3098 = vpop.f32.mrf.mxu0
    %v3099 = vadd.f32 0.0, %v3098
    %v3100 = vpop.f32.mrf.mxu0
    %v3101 = vadd.f32 0.0, %v3100
    %v3102 = vpop.f32.mrf.mxu0
    %v3103 = vpop.f32.mrf.mxu0
    %3104 = vdwg.mxu0
    %v3105 = vadd.f32 %v2846, %v3099
    %v3106 = vadd.f32 %v2847, %v3101
    %3107 = vst [vmem:[#allocation2 + $0x10] sm:$0xff] %v3105
    %3108 = vst [vmem:[#allocation2 + $0x18] sm:$0xff] %v3106
    %v3109 = vrot.slane %v3105, 4
    %v3110 = vadd.f32 %v3105, %v3109
    %v3111 = vrot.slane %v3110, 2
    %v3112 = vadd.f32 %v3110, %v3111
    %v3113 = vrot.slane %v3112, 1
    %v3114 = vadd.f32 %v3112, %v3113
    %v3115 = vrot.slane %v3106, 4
    %v3116 = vadd.f32 %v3106, %v3115
    %v3117 = vrot.slane %v3116, 2
    %v3118 = vadd.f32 %v3116, %v3117
    %v3119 = vrot.slane %v3118, 1
    %v3120 = vadd.f32 %v3118, %v3119
    %v3121 = vadd.f32 %v2081, %v3114
    %v3122 = vadd.f32 %v2082, %v3120
    %v3123 = vmul.f32 %v3105, %v3105
    %v3124 = vmul.f32 %v3106, %v3106
    %v3125 = vrot.slane %v3123, 4
    %v3126 = vadd.f32 %v3123, %v3125
    %v3127 = vrot.slane %v3126, 2
    %v3128 = vadd.f32 %v3126, %v3127
    %v3129 = vrot.slane %v3128, 1
    %v3130 = vadd.f32 %v3128, %v3129
    %v3131 = vrot.slane %v3124, 4
    %v3132 = vadd.f32 %v3124, %v3131
    %v3133 = vrot.slane %v3132, 2
    %v3134 = vadd.f32 %v3132, %v3133
    %v3135 = vrot.slane %v3134, 1
    %v3136 = vadd.f32 %v3134, %v3135
    %v3137 = vadd.f32 %v2097, %v3130
    %v3138 = vadd.f32 %v2098, %v3136
    %s3139 = scalar_lea.vmem [#allocation10], 512
    %v3140 = vld [vmem:[%s3139] sm:$0xff]
    %v3141 = vld [vmem:[%s3139 + $0x8] sm:$0xff]
    %v3142 = vld [vmem:[%s3139 + $0x10] sm:$0xff]
    %v3143 = vld [vmem:[%s3139 + $0x18] sm:$0xff]
    %v3144 = vld [vmem:[%s3139 + $0x20] sm:$0xff]
    %v3145 = vld [vmem:[%s3139 + $0x28] sm:$0xff]
    %v3146 = vld [vmem:[%s3139 + $0x30] sm:$0xff]
    %v3147 = vld [vmem:[%s3139 + $0x38] sm:$0xff]
    %v3148 = vld [vmem:[%s3139 + $0x40] sm:$0xff]
    %v3149 = vld [vmem:[%s3139 + $0x48] sm:$0xff]
    %v3150 = vld [vmem:[%s3139 + $0x50] sm:$0xff]
    %v3151 = vld [vmem:[%s3139 + $0x58] sm:$0xff]
    %v3152 = vld [vmem:[%s3139 + $0x60] sm:$0xff]
    %v3153 = vld [vmem:[%s3139 + $0x68] sm:$0xff]
    %v3154 = vld [vmem:[%s3139 + $0x70] sm:$0xff]
    %v3155 = vld [vmem:[%s3139 + $0x78] sm:$0xff]
    %v3156 = vld [vmem:[%s3139 + $0x80] sm:$0xff]
    %v3157 = vld [vmem:[%s3139 + $0x88] sm:$0xff]
    %v3158 = vld [vmem:[%s3139 + $0x90] sm:$0xff]
    %v3159 = vld [vmem:[%s3139 + $0x98] sm:$0xff]
    %v3160 = vld [vmem:[%s3139 + $0xa0] sm:$0xff]
    %v3161 = vld [vmem:[%s3139 + $0xa8] sm:$0xff]
    %v3162 = vld [vmem:[%s3139 + $0xb0] sm:$0xff]
    %v3163 = vld [vmem:[%s3139 + $0xb8] sm:$0xff]
    %v3164 = vld [vmem:[%s3139 + $0xc0] sm:$0xff]
    %v3165 = vld [vmem:[%s3139 + $0xc8] sm:$0xff]
    %v3166 = vld [vmem:[%s3139 + $0xd0] sm:$0xff]
    %v3167 = vld [vmem:[%s3139 + $0xd8] sm:$0xff]
    %v3168 = vld [vmem:[%s3139 + $0xe0] sm:$0xff]
    %v3169 = vld [vmem:[%s3139 + $0xe8] sm:$0xff]
    %v3170 = vld [vmem:[%s3139 + $0xf0] sm:$0xff]
    %v3171 = vld [vmem:[%s3139 + $0xf8] sm:$0xff]
    %v3172 = vld [vmem:[%s3139 + $0x100] sm:$0xff]
    %v3173 = vld [vmem:[%s3139 + $0x108] sm:$0xff]
    %v3174 = vld [vmem:[%s3139 + $0x110] sm:$0xff]
    %v3175 = vld [vmem:[%s3139 + $0x118] sm:$0xff]
    %v3176 = vld [vmem:[%s3139 + $0x120] sm:$0xff]
    %v3177 = vld [vmem:[%s3139 + $0x128] sm:$0xff]
    %v3178 = vld [vmem:[%s3139 + $0x130] sm:$0xff]
    %v3179 = vld [vmem:[%s3139 + $0x138] sm:$0xff]
    %v3180 = vld [vmem:[%s3139 + $0x140] sm:$0xff]
    %v3181 = vld [vmem:[%s3139 + $0x148] sm:$0xff]
    %v3182 = vld [vmem:[%s3139 + $0x150] sm:$0xff]
    %v3183 = vld [vmem:[%s3139 + $0x158] sm:$0xff]
    %v3184 = vld [vmem:[%s3139 + $0x160] sm:$0xff]
    %v3185 = vld [vmem:[%s3139 + $0x168] sm:$0xff]
    %v3186 = vld [vmem:[%s3139 + $0x170] sm:$0xff]
    %v3187 = vld [vmem:[%s3139 + $0x178] sm:$0xff]
    %v3188 = vld [vmem:[%s3139 + $0x180] sm:$0xff]
    %v3189 = vld [vmem:[%s3139 + $0x188] sm:$0xff]
    %v3190 = vld [vmem:[%s3139 + $0x190] sm:$0xff]
    %v3191 = vld [vmem:[%s3139 + $0x198] sm:$0xff]
    %v3192 = vld [vmem:[%s3139 + $0x1a0] sm:$0xff]
    %v3193 = vld [vmem:[%s3139 + $0x1a8] sm:$0xff]
    %v3194 = vld [vmem:[%s3139 + $0x1b0] sm:$0xff]
    %v3195 = vld [vmem:[%s3139 + $0x1b8] sm:$0xff]
    %v3196 = vld [vmem:[%s3139 + $0x1c0] sm:$0xff]
    %v3197 = vld [vmem:[%s3139 + $0x1c8] sm:$0xff]
    %v3198 = vld [vmem:[%s3139 + $0x1d0] sm:$0xff]
    %v3199 = vld [vmem:[%s3139 + $0x1d8] sm:$0xff]
    %v3200 = vld [vmem:[%s3139 + $0x1e0] sm:$0xff]
    %v3201 = vld [vmem:[%s3139 + $0x1e8] sm:$0xff]
    %v3202 = vld [vmem:[%s3139 + $0x1f0] sm:$0xff]
    %v3203 = vld [vmem:[%s3139 + $0x1f8] sm:$0xff]
    %3204 = vmatprep.subr.mxu0 %v3171
    %3205 = vmatpush1.msra.mxu0 %v3170
    %3206 = vmatprep.subr.mxu0 %v3169
    %3207 = vmatpush1.msra.mxu0 %v3168
    %3208 = vmatprep.subr.mxu0 %v3167
    %3209 = vmatpush1.msra.mxu0 %v3166
    %3210 = vmatprep.subr.mxu0 %v3165
    %3211 = vmatpush1.msra.mxu0 %v3164
    %3212 = vmatprep.subr.mxu0 %v3163
    %3213 = vmatpush1.msra.mxu0 %v3162
    %3214 = vmatprep.subr.mxu0 %v3161
    %3215 = vmatpush1.msra.mxu0 %v3160
    %3216 = vmatprep.subr.mxu0 %v3159
    %3217 = vmatpush1.msra.mxu0 %v3158
    %3218 = vmatprep.subr.mxu0 %v3157
    %3219 = vmatpush1.msra.mxu0 %v3156
    %3220 = vmatprep.subr.mxu0 %v3155
    %3221 = vmatpush1.msra.mxu0 %v3154
    %3222 = vmatprep.subr.mxu0 %v3153
    %3223 = vmatpush1.msra.mxu0 %v3152
    %3224 = vmatprep.subr.mxu0 %v3151
    %3225 = vmatpush1.msra.mxu0 %v3150
    %3226 = vmatprep.subr.mxu0 %v3149
    %3227 = vmatpush1.msra.mxu0 %v3148
    %3228 = vmatprep.subr.mxu0 %v3147
    %3229 = vmatpush1.msra.mxu0 %v3146
    %3230 = vmatprep.subr.mxu0 %v3145
    %3231 = vmatpush1.msra.mxu0 %v3144
    %3232 = vmatprep.subr.mxu0 %v3143
    %3233 = vmatpush1.msra.mxu0 %v3142
    %3234 = vmatprep.subr.mxu0 %v3141
    %3235 = vmatpush1.msra.mxu0 %v3140
    %3236 = vmatprep.subr.mxu0 %v3203
    %3237 = vmatpush2.msra.mxu0 %v3202
    %3238 = vmatprep.subr.mxu0 %v3201
    %3239 = vmatpush2.msra.mxu0 %v3200
    %3240 = vmatprep.subr.mxu0 %v3199
    %3241 = vmatpush2.msra.mxu0 %v3198
    %3242 = vmatprep.subr.mxu0 %v3197
    %3243 = vmatpush2.msra.mxu0 %v3196
    %3244 = vmatprep.subr.mxu0 %v3195
    %3245 = vmatpush2.msra.mxu0 %v3194
    %3246 = vmatprep.subr.mxu0 %v3193
    %3247 = vmatpush2.msra.mxu0 %v3192
    %3248 = vmatprep.subr.mxu0 %v3191
    %3249 = vmatpush2.msra.mxu0 %v3190
    %3250 = vmatprep.subr.mxu0 %v3189
    %3251 = vmatpush2.msra.mxu0 %v3188
    %3252 = vmatprep.subr.mxu0 %v3187
    %3253 = vmatpush2.msra.mxu0 %v3186
    %3254 = vmatprep.subr.mxu0 %v3185
    %3255 = vmatpush2.msra.mxu0 %v3184
    %3256 = vmatprep.subr.mxu0 %v3183
    %3257 = vmatpush2.msra.mxu0 %v3182
    %3258 = vmatprep.subr.mxu0 %v3181
    %3259 = vmatpush2.msra.mxu0 %v3180
    %3260 = vmatprep.subr.mxu0 %v3179
    %3261 = vmatpush2.msra.mxu0 %v3178
    %3262 = vmatprep.subr.mxu0 %v3177
    %3263 = vmatpush2.msra.mxu0 %v3176
    %3264 = vmatprep.subr.mxu0 %v3175
    %3265 = vmatpush2.msra.mxu0 %v3174
    %3266 = vmatprep.subr.mxu0 %v3173
    %3267 = vmatpush2.msra.mxu0 %v3172
    %3268 = vmatprep.mubr.f32.mxu0 %v3122
    %3269 = vmatmul.mubr.f32.gmra.mxu0 %v3121
    %v3270 = vpop.f32.mrf.mxu0
    %v3271 = vadd.f32 0.0, %v3270
    %v3272 = vpop.f32.mrf.mxu0
    %v3273 = vadd.f32 0.0, %v3272
    %3274 = vdwg.mxu0
    %v3275 = vmul.f32 %v3271, 0.0078125
    %v3276 = vmul.f32 %v3273, 0.0078125
    %3277 = vmatprep.subr.mxu0 %v3171
    %3278 = vmatpush1.msra.mxu0 %v3170
    %3279 = vmatprep.subr.mxu0 %v3169
    %3280 = vmatpush1.msra.mxu0 %v3168
    %3281 = vmatprep.subr.mxu0 %v3167
    %3282 = vmatpush1.msra.mxu0 %v3166
    %3283 = vmatprep.subr.mxu0 %v3165
    %3284 = vmatpush1.msra.mxu0 %v3164
    %3285 = vmatprep.subr.mxu0 %v3163
    %3286 = vmatpush1.msra.mxu0 %v3162
    %3287 = vmatprep.subr.mxu0 %v3161
    %3288 = vmatpush1.msra.mxu0 %v3160
    %3289 = vmatprep.subr.mxu0 %v3159
    %3290 = vmatpush1.msra.mxu0 %v3158
    %3291 = vmatprep.subr.mxu0 %v3157
    %3292 = vmatpush1.msra.mxu0 %v3156
    %3293 = vmatprep.subr.mxu0 %v3155
    %3294 = vmatpush1.msra.mxu0 %v3154
    %3295 = vmatprep.subr.mxu0 %v3153
    %3296 = vmatpush1.msra.mxu0 %v3152
    %3297 = vmatprep.subr.mxu0 %v3151
    %3298 = vmatpush1.msra.mxu0 %v3150
    %3299 = vmatprep.subr.mxu0 %v3149
    %3300 = vmatpush1.msra.mxu0 %v3148
    %3301 = vmatprep.subr.mxu0 %v3147
    %3302 = vmatpush1.msra.mxu0 %v3146
    %3303 = vmatprep.subr.mxu0 %v3145
    %3304 = vmatpush1.msra.mxu0 %v3144
    %3305 = vmatprep.subr.mxu0 %v3143
    %3306 = vmatpush1.msra.mxu0 %v3142
    %3307 = vmatprep.subr.mxu0 %v3141
    %3308 = vmatpush1.msra.mxu0 %v3140
    %3309 = vmatprep.subr.mxu0 %v3203
    %3310 = vmatpush2.msra.mxu0 %v3202
    %3311 = vmatprep.subr.mxu0 %v3201
    %3312 = vmatpush2.msra.mxu0 %v3200
    %3313 = vmatprep.subr.mxu0 %v3199
    %3314 = vmatpush2.msra.mxu0 %v3198
    %3315 = vmatprep.subr.mxu0 %v3197
    %3316 = vmatpush2.msra.mxu0 %v3196
    %3317 = vmatprep.subr.mxu0 %v3195
    %3318 = vmatpush2.msra.mxu0 %v3194
    %3319 = vmatprep.subr.mxu0 %v3193
    %3320 = vmatpush2.msra.mxu0 %v3192
    %3321 = vmatprep.subr.mxu0 %v3191
    %3322 = vmatpush2.msra.mxu0 %v3190
    %3323 = vmatprep.subr.mxu0 %v3189
    %3324 = vmatpush2.msra.mxu0 %v3188
    %3325 = vmatprep.subr.mxu0 %v3187
    %3326 = vmatpush2.msra.mxu0 %v3186
    %3327 = vmatprep.subr.mxu0 %v3185
    %3328 = vmatpush2.msra.mxu0 %v3184
    %3329 = vmatprep.subr.mxu0 %v3183
    %3330 = vmatpush2.msra.mxu0 %v3182
    %3331 = vmatprep.subr.mxu0 %v3181
    %3332 = vmatpush2.msra.mxu0 %v3180
    %3333 = vmatprep.subr.mxu0 %v3179
    %3334 = vmatpush2.msra.mxu0 %v3178
    %3335 = vmatprep.subr.mxu0 %v3177
    %3336 = vmatpush2.msra.mxu0 %v3176
    %3337 = vmatprep.subr.mxu0 %v3175
    %3338 = vmatpush2.msra.mxu0 %v3174
    %3339 = vmatprep.subr.mxu0 %v3173
    %3340 = vmatpush2.msra.mxu0 %v3172
    %3341 = vmatprep.mubr.f32.mxu0 %v3138
    %3342 = vmatmul.mubr.f32.gmra.mxu0 %v3137
    %v3343 = vpop.f32.mrf.mxu0
    %v3344 = vadd.f32 0.0, %v3343
    %v3345 = vpop.f32.mrf.mxu0
    %v3346 = vadd.f32 0.0, %v3345
    %3347 = vdwg.mxu0
    %v3348 = vmul.f32 %v3344, 0.0078125
    %v3349 = vmul.f32 %v3346, 0.0078125
    %v3350 = vmul.f32 %v3275, %v3275
    %v3351 = vmul.f32 %v3276, %v3276
    %v3352 = vsub.f32 %v3348, %v3350
    %v3353 = vsub.f32 %v3349, %v3351
    %s3354 = scalar_lea.vmem [#allocation11], 4
    %v3355 = vld [vmem:[%s3354] sm:$0xf]
    %v3356 = vadd.f32 %v3352, 1e-05
    %v3357 = vadd.f32 %v3353, 1e-05
    %v3358 = vrsqrt.pop %v3356
    %v3359 = vrsqrt.pop %v3357
    %v3362 = vcombine.low %v3358, %v3359
    %v3364 = vunpack.c.l.s4 1983009808
    %v3365 = vunpack.c.0.s8 %v3364
    %v3366 = vlaneseq
    %v3367 = vshrl.u32 %v3366, 7
    %v3368 = vsub.s32 %v3365, %v3367
    %v3369 = vrot.slane %v3362, %v3368
    %v3371 = vmul.f32 %v3355, %v3369
    %v3373 = vlaneseq
    %v3374 = vshrl.u32 %v3373, 7
    %v3375 = vsub.s32 0, %v3374
    %v3376 = vrot.slane %v3371, %v3375
    %v3377 = vlaneseq
    %v3378 = vshrl.u32 %v3377, 7
    %v3379 = vsub.s32 2, %v3378
    %v3380 = vrot.slane %v3371, %v3379
    %v3383 = vmul.f32 %v3275, %v3376
    %v3384 = vmul.f32 %v3276, %v3380
    %v3387 = vcombine.low %v3383, %v3384
    %v3389 = vunpack.c.l.s4 1983009808
    %v3390 = vunpack.c.0.s8 %v3389
    %v3391 = vlaneseq
    %v3392 = vshrl.u32 %v3391, 7
    %v3393 = vsub.s32 %v3390, %v3392
    %v3394 = vrot.slane %v3387, %v3393
    %v3395 = vrot.slane %v3394, 7
    %v3397 = vsub.f32 %v3355, %v3395
    %v3398 = vld [vmem:[#allocation2] ss:$8 sm:$0x3]
    %v3400 = vunpack.c.l.s4 1966171168
    %v3401 = vunpack.c.0.s8 %v3400
    %v3402 = vlaneseq
    %v3403 = vshrl.u32 %v3402, 7
    %v3404 = vsub.s32 %v3401, %v3403
    %v3405 = vrot.slane %v3371, %v3404
    %v3407 = vmul.f32 %v3398, %v3405
    %v3410 = vunpack.c.l.s4 1966171168
    %v3411 = vunpack.c.0.s8 %v3410
    %v3412 = vlaneseq
    %v3413 = vshrl.u32 %v3412, 7
    %v3414 = vsub.s32 %v3411, %v3413
    %v3415 = vrot.slane %v3397, %v3414
    %v3416 = vcombine.high %v3415, %v3415
    %v3418 = vadd.f32 %v3407, %v3416
    %v3419 = vmax.f32 %v3418, 0.0
    %v3421 = vlaneseq
    %v3422 = vshrl.u32 %v3421, 7
    %v3423 = vsub.s32 0, %v3422
    %v3424 = vrot.slane %v3419, %v3423
    %v3425 = vlaneseq
    %v3426 = vshrl.u32 %v3425, 7
    %v3427 = vsub.s32 1, %v3426
    %v3428 = vrot.slane %v3419, %v3427
    %v3431 = vpack.c.bf16 %v3424, %v3424
    %v3432 = vpack.c.bf16 %v3428, %v3428
    %v3435 = vunpack.c.l.b16 %v3431
    %v3436 = vunpack.c.l.b16 %v3432
    %v3437 = vpack.c.b16 %v3436, %v3435
    %v3438 = vrot.slane %v3437, 7
    %v3440 = vld [vmem:[#allocation4] sm:$0x22]
    %v3441 = vsel %vm809, %v3438, %v3440
    %3442 = vst [vmem:[#allocation4] sm:$0x22] %v3441
    %v3443 = vld [vmem:[%s917] ss:$8 sm:$0x3]
    %v3444 = vmul.f32 %v3443, %v3405
    %v3445 = vadd.f32 %v3444, %v3416
    %v3446 = vmax.f32 %v3445, 0.0
    %v3448 = vlaneseq
    %v3449 = vshrl.u32 %v3448, 7
    %v3450 = vsub.s32 0, %v3449
    %v3451 = vrot.slane %v3446, %v3450
    %v3452 = vlaneseq
    %v3453 = vshrl.u32 %v3452, 7
    %v3454 = vsub.s32 1, %v3453
    %v3455 = vrot.slane %v3446, %v3454
    %v3458 = vpack.c.bf16 %v3451, %v3451
    %v3459 = vpack.c.bf16 %v3455, %v3455
    %v3462 = vunpack.c.l.b16 %v3458
    %v3463 = vunpack.c.l.b16 %v3459
    %v3464 = vpack.c.b16 %v3463, %v3462
    %v3465 = vrot.slane %v3464, 6
    %v3467 = vld [vmem:[#allocation4] sm:$0x44]
    %v3468 = vsel %vm844, %v3465, %v3467
    %3469 = vst [vmem:[#allocation4] sm:$0x44] %v3468
    %v3470 = vld [vmem:[%s813] ss:$8 sm:$0x3]
    %v3471 = vmul.f32 %v3470, %v3405
    %v3472 = vadd.f32 %v3471, %v3416
    %v3473 = vmax.f32 %v3472, 0.0
    %v3475 = vlaneseq
    %v3476 = vshrl.u32 %v3475, 7
    %v3477 = vsub.s32 0, %v3476
    %v3478 = vrot.slane %v3473, %v3477
    %v3479 = vlaneseq
    %v3480 = vshrl.u32 %v3479, 7
    %v3481 = vsub.s32 1, %v3480
    %v3482 = vrot.slane %v3473, %v3481
    %v3485 = vpack.c.bf16 %v3478, %v3478
    %v3486 = vpack.c.bf16 %v3482, %v3482
    %v3489 = vunpack.c.l.b16 %v3485
    %v3490 = vunpack.c.l.b16 %v3486
    %v3491 = vpack.c.b16 %v3490, %v3489
    %v3492 = vrot.slane %v3491, 5
    %v3494 = vld [vmem:[#allocation4] sm:$0x88]
    %v3495 = vsel %vm879, %v3492, %v3494
    %3496 = vst [vmem:[#allocation4] sm:$0x88] %v3495
    %v3497 = vld [vmem:[%s953] ss:$8 sm:$0x3]
    %v3498 = vmul.f32 %v3497, %v3405
    %v3499 = vadd.f32 %v3498, %v3416
    %v3500 = vmax.f32 %v3499, 0.0
    %v3502 = vlaneseq
    %v3503 = vshrl.u32 %v3502, 7
    %v3504 = vsub.s32 0, %v3503
    %v3505 = vrot.slane %v3500, %v3504
    %v3506 = vlaneseq
    %v3507 = vshrl.u32 %v3506, 7
    %v3508 = vsub.s32 1, %v3507
    %v3509 = vrot.slane %v3500, %v3508
    %v3512 = vpack.c.bf16 %v3505, %v3505
    %v3513 = vpack.c.bf16 %v3509, %v3509
    %v3516 = vunpack.c.l.b16 %v3512
    %v3517 = vunpack.c.l.b16 %v3513
    %v3518 = vpack.c.b16 %v3517, %v3516
    %v3520 = vld [vmem:[#allocation4 + $0x8] sm:$0x11]
    %v3521 = vsel %vm913, %v3518, %v3520
    %3522 = vst [vmem:[#allocation4 + $0x8] sm:$0x11] %v3521
    %v3523 = vld [vmem:[%s848] ss:$8 sm:$0x3]
    %v3524 = vmul.f32 %v3523, %v3405
    %v3525 = vadd.f32 %v3524, %v3416
    %v3526 = vmax.f32 %v3525, 0.0
    %v3528 = vlaneseq
    %v3529 = vshrl.u32 %v3528, 7
    %v3530 = vsub.s32 0, %v3529
    %v3531 = vrot.slane %v3526, %v3530
    %v3532 = vlaneseq
    %v3533 = vshrl.u32 %v3532, 7
    %v3534 = vsub.s32 1, %v3533
    %v3535 = vrot.slane %v3526, %v3534
    %v3538 = vpack.c.bf16 %v3531, %v3531
    %v3539 = vpack.c.bf16 %v3535, %v3535
    %v3542 = vunpack.c.l.b16 %v3538
    %v3543 = vunpack.c.l.b16 %v3539
    %v3544 = vpack.c.b16 %v3543, %v3542
    %v3545 = vrot.slane %v3544, 7
    %v3547 = vld [vmem:[#allocation4 + $0x8] sm:$0x22]
    %v3548 = vsel %vm809, %v3545, %v3547
    %3549 = vst [vmem:[#allocation4 + $0x8] sm:$0x22] %v3548
    %v3550 = vld [vmem:[%s989] ss:$8 sm:$0x3]
    %v3551 = vmul.f32 %v3550, %v3405
    %v3552 = vadd.f32 %v3551, %v3416
    %v3553 = vmax.f32 %v3552, 0.0
    %v3555 = vlaneseq
    %v3556 = vshrl.u32 %v3555, 7
    %v3557 = vsub.s32 0, %v3556
    %v3558 = vrot.slane %v3553, %v3557
    %v3559 = vlaneseq
    %v3560 = vshrl.u32 %v3559, 7
    %v3561 = vsub.s32 1, %v3560
    %v3562 = vrot.slane %v3553, %v3561
    %v3565 = vpack.c.bf16 %v3558, %v3558
    %v3566 = vpack.c.bf16 %v3562, %v3562
    %v3569 = vunpack.c.l.b16 %v3565
    %v3570 = vunpack.c.l.b16 %v3566
    %v3571 = vpack.c.b16 %v3570, %v3569
    %v3572 = vrot.slane %v3571, 6
    %v3574 = vld [vmem:[#allocation4 + $0x8] sm:$0x44]
    %v3575 = vsel %vm844, %v3572, %v3574
    %3576 = vst [vmem:[#allocation4 + $0x8] sm:$0x44] %v3575
    %v3577 = vld [vmem:[%s883] ss:$8 sm:$0x3]
    %v3578 = vmul.f32 %v3577, %v3405
    %v3579 = vadd.f32 %v3578, %v3416
    %v3580 = vmax.f32 %v3579, 0.0
    %v3582 = vlaneseq
    %v3583 = vshrl.u32 %v3582, 7
    %v3584 = vsub.s32 0, %v3583
    %v3585 = vrot.slane %v3580, %v3584
    %v3586 = vlaneseq
    %v3587 = vshrl.u32 %v3586, 7
    %v3588 = vsub.s32 1, %v3587
    %v3589 = vrot.slane %v3580, %v3588
    %v3592 = vpack.c.bf16 %v3585, %v3585
    %v3593 = vpack.c.bf16 %v3589, %v3589
    %v3596 = vunpack.c.l.b16 %v3592
    %v3597 = vunpack.c.l.b16 %v3593
    %v3598 = vpack.c.b16 %v3597, %v3596
    %v3599 = vrot.slane %v3598, 5
    %v3601 = vld [vmem:[#allocation4 + $0x8] sm:$0x88]
    %v3602 = vsel %vm879, %v3599, %v3601
    %3603 = vst [vmem:[#allocation4 + $0x8] sm:$0x88] %v3602
    %v3604 = vld [vmem:[%s1024] ss:$8 sm:$0x3]
    %v3605 = vmul.f32 %v3604, %v3405
    %v3606 = vadd.f32 %v3605, %v3416
    %v3607 = vmax.f32 %v3606, 0.0
    %v3609 = vlaneseq
    %v3610 = vshrl.u32 %v3609, 7
    %v3611 = vsub.s32 0, %v3610
    %v3612 = vrot.slane %v3607, %v3611
    %v3613 = vlaneseq
    %v3614 = vshrl.u32 %v3613, 7
    %v3615 = vsub.s32 1, %v3614
    %v3616 = vrot.slane %v3607, %v3615
    %v3619 = vpack.c.bf16 %v3612, %v3612
    %v3620 = vpack.c.bf16 %v3616, %v3616
    %v3623 = vunpack.c.l.b16 %v3619
    %v3624 = vunpack.c.l.b16 %v3620
    %v3625 = vpack.c.b16 %v3624, %v3623
    %v3627 = vld [vmem:[#allocation4 + $0x10] sm:$0x11]
    %v3628 = vsel %vm913, %v3625, %v3627
    %3629 = vst [vmem:[#allocation4 + $0x10] sm:$0x11] %v3628
    %s3630 = scalar_lea.vmem [#allocation2], 16
    %v3631 = vld [vmem:[%s3630] ss:$8 sm:$0x3]
    %v3632 = vmul.f32 %v3631, %v3405
    %v3633 = vadd.f32 %v3632, %v3416
    %v3634 = vmax.f32 %v3633, 0.0
    %v3636 = vlaneseq
    %v3637 = vshrl.u32 %v3636, 7
    %v3638 = vsub.s32 0, %v3637
    %v3639 = vrot.slane %v3634, %v3638
    %v3640 = vlaneseq
    %v3641 = vshrl.u32 %v3640, 7
    %v3642 = vsub.s32 1, %v3641
    %v3643 = vrot.slane %v3634, %v3642
    %v3646 = vpack.c.bf16 %v3639, %v3639
    %v3647 = vpack.c.bf16 %v3643, %v3643
    %v3650 = vunpack.c.l.b16 %v3646
    %v3651 = vunpack.c.l.b16 %v3647
    %v3652 = vpack.c.b16 %v3651, %v3650
    %v3654 = vshll.u32 %v3652, 16
    %v3656 = vrot.slane %v3654, 6
    %v3658 = vld [vmem:[#allocation4 + $0x10] sm:$0x44]
    %v3659 = vsel %vm949, %v3656, %v3658
    %3660 = vst [vmem:[#allocation4 + $0x10] sm:$0x44] %v3659
    %s3661 = scalar_lea.vmem [#allocation2], 17
    %v3662 = vld [vmem:[%s3661] ss:$8 sm:$0x3]
    %v3663 = vmul.f32 %v3662, %v3405
    %v3664 = vadd.f32 %v3663, %v3416
    %v3665 = vmax.f32 %v3664, 0.0
    %v3667 = vlaneseq
    %v3668 = vshrl.u32 %v3667, 7
    %v3669 = vsub.s32 0, %v3668
    %v3670 = vrot.slane %v3665, %v3669
    %v3671 = vlaneseq
    %v3672 = vshrl.u32 %v3671, 7
    %v3673 = vsub.s32 1, %v3672
    %v3674 = vrot.slane %v3665, %v3673
    %v3677 = vpack.c.bf16 %v3670, %v3670
    %v3678 = vpack.c.bf16 %v3674, %v3674
    %v3681 = vunpack.c.l.b16 %v3677
    %v3682 = vunpack.c.l.b16 %v3678
    %v3683 = vpack.c.b16 %v3682, %v3681
    %v3685 = vshll.u32 %v3683, 16
    %v3687 = vrot.slane %v3685, 5
    %v3689 = vld [vmem:[#allocation4 + $0x10] sm:$0x88]
    %v3690 = vsel %vm985, %v3687, %v3689
    %3691 = vst [vmem:[#allocation4 + $0x10] sm:$0x88] %v3690
    %s3692 = scalar_lea.vmem [#allocation2], 18
    %v3693 = vld [vmem:[%s3692] ss:$8 sm:$0x3]
    %v3694 = vmul.f32 %v3693, %v3405
    %v3695 = vadd.f32 %v3694, %v3416
    %v3696 = vmax.f32 %v3695, 0.0
    %v3698 = vlaneseq
    %v3699 = vshrl.u32 %v3698, 7
    %v3700 = vsub.s32 0, %v3699
    %v3701 = vrot.slane %v3696, %v3700
    %v3702 = vlaneseq
    %v3703 = vshrl.u32 %v3702, 7
    %v3704 = vsub.s32 1, %v3703
    %v3705 = vrot.slane %v3696, %v3704
    %v3708 = vpack.c.bf16 %v3701, %v3701
    %v3709 = vpack.c.bf16 %v3705, %v3705
    %v3712 = vunpack.c.l.b16 %v3708
    %v3713 = vunpack.c.l.b16 %v3709
    %v3714 = vpack.c.b16 %v3713, %v3712
    %v3716 = vshll.u32 %v3714, 16
    %v3719 = vld [vmem:[#allocation4 + $0x18] sm:$0x11]
    %v3720 = vsel %vm1020, %v3716, %v3719
    %3721 = vst [vmem:[#allocation4 + $0x18] sm:$0x11] %v3720
    %s3722 = scalar_lea.vmem [#allocation2], 19
    %v3723 = vld [vmem:[%s3722] ss:$8 sm:$0x3]
    %v3724 = vmul.f32 %v3723, %v3405
    %v3725 = vadd.f32 %v3724, %v3416
    %v3726 = vmax.f32 %v3725, 0.0
    %v3728 = vlaneseq
    %v3729 = vshrl.u32 %v3728, 7
    %v3730 = vsub.s32 0, %v3729
    %v3731 = vrot.slane %v3726, %v3730
    %v3732 = vlaneseq
    %v3733 = vshrl.u32 %v3732, 7
    %v3734 = vsub.s32 1, %v3733
    %v3735 = vrot.slane %v3726, %v3734
    %v3738 = vpack.c.bf16 %v3731, %v3731
    %v3739 = vpack.c.bf16 %v3735, %v3735
    %v3742 = vunpack.c.l.b16 %v3738
    %v3743 = vunpack.c.l.b16 %v3739
    %v3744 = vpack.c.b16 %v3743, %v3742
    %v3746 = vshll.u32 %v3744, 16
    %v3748 = vrot.slane %v3746, 7
    %v3750 = vld [vmem:[#allocation4 + $0x18] sm:$0x22]
    %v3751 = vsel %vm1056, %v3748, %v3750
    %3752 = vst [vmem:[#allocation4 + $0x18] sm:$0x22] %v3751
    %s3753 = scalar_lea.vmem [#allocation2], 20
    %v3754 = vld [vmem:[%s3753] ss:$8 sm:$0x3]
    %v3755 = vmul.f32 %v3754, %v3405
    %v3756 = vadd.f32 %v3755, %v3416
    %v3757 = vmax.f32 %v3756, 0.0
    %v3759 = vlaneseq
    %v3760 = vshrl.u32 %v3759, 7
    %v3761 = vsub.s32 0, %v3760
    %v3762 = vrot.slane %v3757, %v3761
    %v3763 = vlaneseq
    %v3764 = vshrl.u32 %v3763, 7
    %v3765 = vsub.s32 1, %v3764
    %v3766 = vrot.slane %v3757, %v3765
    %v3769 = vpack.c.bf16 %v3762, %v3762
    %v3770 = vpack.c.bf16 %v3766, %v3766
    %v3773 = vunpack.c.l.b16 %v3769
    %v3774 = vunpack.c.l.b16 %v3770
    %v3775 = vpack.c.b16 %v3774, %v3773
    %v3777 = vshll.u32 %v3775, 16
    %v3779 = vrot.slane %v3777, 6
    %v3781 = vld [vmem:[#allocation4 + $0x18] sm:$0x44]
    %v3782 = vsel %vm949, %v3779, %v3781
    %3783 = vst [vmem:[#allocation4 + $0x18] sm:$0x44] %v3782
    %s3784 = scalar_lea.vmem [#allocation2], 21
    %v3785 = vld [vmem:[%s3784] ss:$8 sm:$0x3]
    %v3786 = vmul.f32 %v3785, %v3405
    %v3787 = vadd.f32 %v3786, %v3416
    %v3788 = vmax.f32 %v3787, 0.0
    %v3790 = vlaneseq
    %v3791 = vshrl.u32 %v3790, 7
    %v3792 = vsub.s32 0, %v3791
    %v3793 = vrot.slane %v3788, %v3792
    %v3794 = vlaneseq
    %v3795 = vshrl.u32 %v3794, 7
    %v3796 = vsub.s32 1, %v3795
    %v3797 = vrot.slane %v3788, %v3796
    %v3800 = vpack.c.bf16 %v3793, %v3793
    %v3801 = vpack.c.bf16 %v3797, %v3797
    %v3804 = vunpack.c.l.b16 %v3800
    %v3805 = vunpack.c.l.b16 %v3801
    %v3806 = vpack.c.b16 %v3805, %v3804
    %v3808 = vshll.u32 %v3806, 16
    %v3810 = vrot.slane %v3808, 5
    %v3812 = vld [vmem:[#allocation4 + $0x18] sm:$0x88]
    %v3813 = vsel %vm985, %v3810, %v3812
    %3814 = vst [vmem:[#allocation4 + $0x18] sm:$0x88] %v3813
    %s3815 = scalar_lea.vmem [#allocation2], 22
    %v3816 = vld [vmem:[%s3815] ss:$8 sm:$0x3]
    %v3817 = vmul.f32 %v3816, %v3405
    %v3818 = vadd.f32 %v3817, %v3416
    %v3819 = vmax.f32 %v3818, 0.0
    %v3821 = vlaneseq
    %v3822 = vshrl.u32 %v3821, 7
    %v3823 = vsub.s32 0, %v3822
    %v3824 = vrot.slane %v3819, %v3823
    %v3825 = vlaneseq
    %v3826 = vshrl.u32 %v3825, 7
    %v3827 = vsub.s32 1, %v3826
    %v3828 = vrot.slane %v3819, %v3827
    %v3831 = vpack.c.bf16 %v3824, %v3824
    %v3832 = vpack.c.bf16 %v3828, %v3828
    %v3835 = vunpack.c.l.b16 %v3831
    %v3836 = vunpack.c.l.b16 %v3832
    %v3837 = vpack.c.b16 %v3836, %v3835
    %v3839 = vshll.u32 %v3837, 16
    %v3842 = vld [vmem:[#allocation4 + $0x20] sm:$0x11]
    %v3843 = vsel %vm1020, %v3839, %v3842
    %3844 = vst [vmem:[#allocation4 + $0x20] sm:$0x11] %v3843
    %s3845 = scalar_lea.vmem [#allocation2], 23
    %v3846 = vld [vmem:[%s3845] ss:$8 sm:$0x3]
    %v3847 = vmul.f32 %v3846, %v3405
    %v3848 = vadd.f32 %v3847, %v3416
    %v3849 = vmax.f32 %v3848, 0.0
    %v3851 = vlaneseq
    %v3852 = vshrl.u32 %v3851, 7
    %v3853 = vsub.s32 0, %v3852
    %v3854 = vrot.slane %v3849, %v3853
    %v3855 = vlaneseq
    %v3856 = vshrl.u32 %v3855, 7
    %v3857 = vsub.s32 1, %v3856
    %v3858 = vrot.slane %v3849, %v3857
    %v3861 = vpack.c.bf16 %v3854, %v3854
    %v3862 = vpack.c.bf16 %v3858, %v3858
    %v3865 = vunpack.c.l.b16 %v3861
    %v3866 = vunpack.c.l.b16 %v3862
    %v3867 = vpack.c.b16 %v3866, %v3865
    %v3869 = vshll.u32 %v3867, 16
    %v3871 = vrot.slane %v3869, 7
    %v3873 = vld [vmem:[#allocation4 + $0x20] sm:$0x22]
    %v3874 = vsel %vm1056, %v3871, %v3873
    %3875 = vst [vmem:[#allocation4 + $0x20] sm:$0x22] %v3874
    %v3876 = vld [vmem:[#allocation4] sm:$0xee]
    %v3877 = vld [vmem:[#allocation4 + $0x8] sm:$0xff]
    %v3878 = vld [vmem:[#allocation4 + $0x10] sm:$0x33]
    %s3879 = scalar_lea.vmem [#allocation8], 1024
    %v3880 = vld [vmem:[%s3879] sm:$0xff]
    %v3881 = vld [vmem:[%s3879 + $0x8] sm:$0xff]
    %v3882 = vld [vmem:[%s3879 + $0x10] sm:$0xff]
    %v3883 = vld [vmem:[%s3879 + $0x18] sm:$0xff]
    %v3884 = vld [vmem:[%s3879 + $0x20] sm:$0xff]
    %v3885 = vld [vmem:[%s3879 + $0x28] sm:$0xff]
    %v3886 = vld [vmem:[%s3879 + $0x30] sm:$0xff]
    %v3887 = vld [vmem:[%s3879 + $0x38] sm:$0xff]
    %v3888 = vld [vmem:[%s3879 + $0x40] sm:$0xff]
    %v3889 = vld [vmem:[%s3879 + $0x48] sm:$0xff]
    %v3890 = vld [vmem:[%s3879 + $0x50] sm:$0xff]
    %v3891 = vld [vmem:[%s3879 + $0x58] sm:$0xff]
    %v3892 = vld [vmem:[%s3879 + $0x60] sm:$0xff]
    %v3893 = vld [vmem:[%s3879 + $0x68] sm:$0xff]
    %v3894 = vld [vmem:[%s3879 + $0x70] sm:$0xff]
    %v3895 = vld [vmem:[%s3879 + $0x78] sm:$0xff]
    %v3896 = vld [vmem:[%s3879 + $0x80] sm:$0xff]
    %v3897 = vld [vmem:[%s3879 + $0x88] sm:$0xff]
    %v3898 = vld [vmem:[%s3879 + $0x90] sm:$0xff]
    %v3899 = vld [vmem:[%s3879 + $0x98] sm:$0xff]
    %v3900 = vld [vmem:[%s3879 + $0xa0] sm:$0xff]
    %v3901 = vld [vmem:[%s3879 + $0xa8] sm:$0xff]
    %v3902 = vld [vmem:[%s3879 + $0xb0] sm:$0xff]
    %v3903 = vld [vmem:[%s3879 + $0xb8] sm:$0xff]
    %v3904 = vld [vmem:[%s3879 + $0xc0] sm:$0xff]
    %v3905 = vld [vmem:[%s3879 + $0xc8] sm:$0xff]
    %v3906 = vld [vmem:[%s3879 + $0xd0] sm:$0xff]
    %v3907 = vld [vmem:[%s3879 + $0xd8] sm:$0xff]
    %v3908 = vld [vmem:[%s3879 + $0xe0] sm:$0xff]
    %v3909 = vld [vmem:[%s3879 + $0xe8] sm:$0xff]
    %v3910 = vld [vmem:[%s3879 + $0xf0] sm:$0xff]
    %v3911 = vld [vmem:[%s3879 + $0xf8] sm:$0xff]
    %v3912 = vld [vmem:[#allocation4 + $0x10] sm:$0x11]
    %s3913 = scalar_lea.vmem [#allocation8], 1280
    %v3914 = vld [vmem:[%s3913] sm:$0xff]
    %v3915 = vld [vmem:[%s3913 + $0x8] sm:$0xff]
    %v3916 = vld [vmem:[%s3913 + $0x10] sm:$0xff]
    %v3917 = vld [vmem:[%s3913 + $0x18] sm:$0xff]
    %v3918 = vld [vmem:[%s3913 + $0x20] sm:$0xff]
    %v3919 = vld [vmem:[%s3913 + $0x28] sm:$0xff]
    %v3920 = vld [vmem:[%s3913 + $0x30] sm:$0xff]
    %v3921 = vld [vmem:[%s3913 + $0x38] sm:$0xff]
    %v3922 = vld [vmem:[%s3913 + $0x40] sm:$0xff]
    %v3923 = vld [vmem:[%s3913 + $0x48] sm:$0xff]
    %v3924 = vld [vmem:[%s3913 + $0x50] sm:$0xff]
    %v3925 = vld [vmem:[%s3913 + $0x58] sm:$0xff]
    %v3926 = vld [vmem:[%s3913 + $0x60] sm:$0xff]
    %v3927 = vld [vmem:[%s3913 + $0x68] sm:$0xff]
    %v3928 = vld [vmem:[%s3913 + $0x70] sm:$0xff]
    %v3929 = vld [vmem:[%s3913 + $0x78] sm:$0xff]
    %v3930 = vld [vmem:[%s3913 + $0x80] sm:$0xff]
    %v3931 = vld [vmem:[%s3913 + $0x88] sm:$0xff]
    %v3932 = vld [vmem:[%s3913 + $0x90] sm:$0xff]
    %v3933 = vld [vmem:[%s3913 + $0x98] sm:$0xff]
    %v3934 = vld [vmem:[%s3913 + $0xa0] sm:$0xff]
    %v3935 = vld [vmem:[%s3913 + $0xa8] sm:$0xff]
    %v3936 = vld [vmem:[%s3913 + $0xb0] sm:$0xff]
    %v3937 = vld [vmem:[%s3913 + $0xb8] sm:$0xff]
    %v3938 = vld [vmem:[%s3913 + $0xc0] sm:$0xff]
    %v3939 = vld [vmem:[%s3913 + $0xc8] sm:$0xff]
    %v3940 = vld [vmem:[%s3913 + $0xd0] sm:$0xff]
    %v3941 = vld [vmem:[%s3913 + $0xd8] sm:$0xff]
    %v3942 = vld [vmem:[%s3913 + $0xe0] sm:$0xff]
    %v3943 = vld [vmem:[%s3913 + $0xe8] sm:$0xff]
    %v3944 = vld [vmem:[%s3913 + $0xf0] sm:$0xff]
    %v3945 = vld [vmem:[%s3913 + $0xf8] sm:$0xff]
    %v3949 = vunpack.c.l.b16 %v3876
    %v3950 = vunpack.c.h.b16 %v3876
    %v3951 = vunpack.c.l.b16 %v3877
    %v3952 = vunpack.c.h.b16 %v3877
    %v3953 = vunpack.c.l.b16 %v3912
    %v3954 = vunpack.c.h.b16 %v3912
    %v3955 = vpack.c.b16 %v3951, %v3949
    %v3956 = vpack.c.b16 %v3952, %v3950
    %v3957 = vpack.c.b16 %v3953, %v3953
    %v3958 = vpack.c.b16 %v3954, %v3954
    %vm3959 = vcmask 1046528
    %v3960 = vrot.slane %v3955, 1
    %v3961 = vrot.slane %v3957, 1
    %v3962 = vsel %vm3959, %v3960, %v3961
    %v3963 = vrot.slane %v3956, 1
    %v3964 = vrot.slane %v3958, 1
    %v3965 = vsel %vm3959, %v3963, %v3964
    %v4000 = vunpack.c.l.b16 %v3914
    %v4001 = vunpack.c.h.b16 %v3914
    %v4002 = vunpack.c.l.b16 %v3915
    %v4003 = vunpack.c.h.b16 %v3915
    %v4004 = vunpack.c.l.b16 %v3916
    %v4005 = vunpack.c.h.b16 %v3916
    %v4006 = vunpack.c.l.b16 %v3917
    %v4007 = vunpack.c.h.b16 %v3917
    %v4008 = vunpack.c.l.b16 %v3918
    %v4009 = vunpack.c.h.b16 %v3918
    %v4010 = vunpack.c.l.b16 %v3919
    %v4011 = vunpack.c.h.b16 %v3919
    %v4012 = vunpack.c.l.b16 %v3920
    %v4013 = vunpack.c.h.b16 %v3920
    %v4014 = vunpack.c.l.b16 %v3921
    %v4015 = vunpack.c.h.b16 %v3921
    %v4016 = vunpack.c.l.b16 %v3922
    %v4017 = vunpack.c.h.b16 %v3922
    %v4018 = vunpack.c.l.b16 %v3923
    %v4019 = vunpack.c.h.b16 %v3923
    %v4020 = vunpack.c.l.b16 %v3924
    %v4021 = vunpack.c.h.b16 %v3924
    %v4022 = vunpack.c.l.b16 %v3925
    %v4023 = vunpack.c.h.b16 %v3925
    %v4024 = vunpack.c.l.b16 %v3926
    %v4025 = vunpack.c.h.b16 %v3926
    %v4026 = vunpack.c.l.b16 %v3927
    %v4027 = vunpack.c.h.b16 %v3927
    %v4028 = vunpack.c.l.b16 %v3928
    %v4029 = vunpack.c.h.b16 %v3928
    %v4030 = vunpack.c.l.b16 %v3929
    %v4031 = vunpack.c.h.b16 %v3929
    %v4032 = vunpack.c.l.b16 %v3930
    %v4033 = vunpack.c.h.b16 %v3930
    %v4034 = vunpack.c.l.b16 %v3931
    %v4035 = vunpack.c.h.b16 %v3931
    %v4036 = vunpack.c.l.b16 %v3932
    %v4037 = vunpack.c.h.b16 %v3932
    %v4038 = vunpack.c.l.b16 %v3933
    %v4039 = vunpack.c.h.b16 %v3933
    %v4040 = vunpack.c.l.b16 %v3934
    %v4041 = vunpack.c.h.b16 %v3934
    %v4042 = vunpack.c.l.b16 %v3935
    %v4043 = vunpack.c.h.b16 %v3935
    %v4044 = vunpack.c.l.b16 %v3936
    %v4045 = vunpack.c.h.b16 %v3936
    %v4046 = vunpack.c.l.b16 %v3937
    %v4047 = vunpack.c.h.b16 %v3937
    %v4048 = vunpack.c.l.b16 %v3938
    %v4049 = vunpack.c.h.b16 %v3938
    %v4050 = vunpack.c.l.b16 %v3939
    %v4051 = vunpack.c.h.b16 %v3939
    %v4052 = vunpack.c.l.b16 %v3940
    %v4053 = vunpack.c.h.b16 %v3940
    %v4054 = vunpack.c.l.b16 %v3941
    %v4055 = vunpack.c.h.b16 %v3941
    %v4056 = vunpack.c.l.b16 %v3942
    %v4057 = vunpack.c.h.b16 %v3942
    %v4058 = vunpack.c.l.b16 %v3943
    %v4059 = vunpack.c.h.b16 %v3943
    %v4060 = vunpack.c.l.b16 %v3944
    %v4061 = vunpack.c.h.b16 %v3944
    %v4062 = vunpack.c.l.b16 %v3945
    %v4063 = vunpack.c.h.b16 %v3945
    %v4064 = vpack.c.b16 %v4002, %v4000
    %v4065 = vpack.c.b16 %v4003, %v4001
    %v4066 = vpack.c.b16 %v4006, %v4004
    %v4067 = vpack.c.b16 %v4007, %v4005
    %v4068 = vpack.c.b16 %v4010, %v4008
    %v4069 = vpack.c.b16 %v4011, %v4009
    %v4070 = vpack.c.b16 %v4014, %v4012
    %v4071 = vpack.c.b16 %v4015, %v4013
    %v4072 = vpack.c.b16 %v4018, %v4016
    %v4073 = vpack.c.b16 %v4019, %v4017
    %v4074 = vpack.c.b16 %v4022, %v4020
    %v4075 = vpack.c.b16 %v4023, %v4021
    %v4076 = vpack.c.b16 %v4026, %v4024
    %v4077 = vpack.c.b16 %v4027, %v4025
    %v4078 = vpack.c.b16 %v4030, %v4028
    %v4079 = vpack.c.b16 %v4031, %v4029
    %v4080 = vpack.c.b16 %v4034, %v4032
    %v4081 = vpack.c.b16 %v4035, %v4033
    %v4082 = vpack.c.b16 %v4038, %v4036
    %v4083 = vpack.c.b16 %v4039, %v4037
    %v4084 = vpack.c.b16 %v4042, %v4040
    %v4085 = vpack.c.b16 %v4043, %v4041
    %v4086 = vpack.c.b16 %v4046, %v4044
    %v4087 = vpack.c.b16 %v4047, %v4045
    %v4088 = vpack.c.b16 %v4050, %v4048
    %v4089 = vpack.c.b16 %v4051, %v4049
    %v4090 = vpack.c.b16 %v4054, %v4052
    %v4091 = vpack.c.b16 %v4055, %v4053
    %v4092 = vpack.c.b16 %v4058, %v4056
    %v4093 = vpack.c.b16 %v4059, %v4057
    %v4094 = vpack.c.b16 %v4062, %v4060
    %v4095 = vpack.c.b16 %v4063, %v4061
    %4128 = vmatprep.subr.bf16.mxu0 %v4079
    %4129 = vmatpush1.bf16.msra.mxu0 %v4078
    %4130 = vmatprep.subr.bf16.mxu0 %v4077
    %4131 = vmatpush1.bf16.msra.mxu0 %v4076
    %4132 = vmatprep.subr.bf16.mxu0 %v4075
    %4133 = vmatpush1.bf16.msra.mxu0 %v4074
    %4134 = vmatprep.subr.bf16.mxu0 %v4073
    %4135 = vmatpush1.bf16.msra.mxu0 %v4072
    %4136 = vmatprep.subr.bf16.mxu0 %v4071
    %4137 = vmatpush1.bf16.msra.mxu0 %v4070
    %4138 = vmatprep.subr.bf16.mxu0 %v4069
    %4139 = vmatpush1.bf16.msra.mxu0 %v4068
    %4140 = vmatprep.subr.bf16.mxu0 %v4067
    %4141 = vmatpush1.bf16.msra.mxu0 %v4066
    %4142 = vmatprep.subr.bf16.mxu0 %v4065
    %4143 = vmatpush1.bf16.msra.mxu0 %v4064
    %4144 = vmatprep.subr.bf16.mxu0 %v4095
    %4145 = vmatpush2.bf16.msra.mxu0 %v4094
    %4146 = vmatprep.subr.bf16.mxu0 %v4093
    %4147 = vmatpush2.bf16.msra.mxu0 %v4092
    %4148 = vmatprep.subr.bf16.mxu0 %v4091
    %4149 = vmatpush2.bf16.msra.mxu0 %v4090
    %4150 = vmatprep.subr.bf16.mxu0 %v4089
    %4151 = vmatpush2.bf16.msra.mxu0 %v4088
    %4152 = vmatprep.subr.bf16.mxu0 %v4087
    %4153 = vmatpush2.bf16.msra.mxu0 %v4086
    %4154 = vmatprep.subr.bf16.mxu0 %v4085
    %4155 = vmatpush2.bf16.msra.mxu0 %v4084
    %4156 = vmatprep.subr.bf16.mxu0 %v4083
    %4157 = vmatpush2.bf16.msra.mxu0 %v4082
    %4158 = vmatprep.subr.bf16.mxu0 %v4081
    %4159 = vmatpush2.bf16.msra.mxu0 %v4080
    %4160 = vmatprep.mubr.bf16.mxu0 %v3965
    %4161 = vmatmul.mubr.bf16.gmra.mxu0 %v3962
    %v4162 = vpop.f32.mrf.mxu0
    %v4163 = vadd.f32 0.0, %v4162
    %v4164 = vpop.f32.mrf.mxu0
    %v4165 = vadd.f32 0.0, %v4164
    %v4166 = vpop.f32.mrf.mxu0
    %v4167 = vadd.f32 0.0, %v4166
    %v4168 = vpop.f32.mrf.mxu0
    %v4169 = vadd.f32 0.0, %v4168
    %4170 = vdwg.mxu0
    %v4172 = vunpack.c.l.b16 %v3878
    %v4173 = vunpack.c.h.b16 %v3878
    %v4174 = vpack.c.b16 %v4172, %v4172
    %v4175 = vpack.c.b16 %v4173, %v4173
    %v4177 = vshrl.u32 %v3955, 16
    %v4179 = vrot.slane %v4177, 1
    %v4180 = vshll.u32 %v3955, 16
    %v4182 = vrot.slane %v4180, 2
    %v4183 = vor.u32 %v4179, %v4182
    %v4185 = vshrl.u32 %v4174, 16
    %v4187 = vrot.slane %v4185, 1
    %v4188 = vshll.u32 %v4174, 16
    %v4190 = vrot.slane %v4188, 2
    %v4191 = vor.u32 %v4187, %v4190
    %v4192 = vsel %vm842, %v4183, %v4191
    %v4194 = vshrl.u32 %v3956, 16
    %v4196 = vrot.slane %v4194, 1
    %v4197 = vshll.u32 %v3956, 16
    %v4199 = vrot.slane %v4197, 2
    %v4200 = vor.u32 %v4196, %v4199
    %v4202 = vshrl.u32 %v4175, 16
    %v4204 = vrot.slane %v4202, 1
    %v4205 = vshll.u32 %v4175, 16
    %v4207 = vrot.slane %v4205, 2
    %v4208 = vor.u32 %v4204, %v4207
    %v4209 = vsel %vm842, %v4200, %v4208
    %v4244 = vunpack.c.l.b16 %v3880
    %v4245 = vunpack.c.h.b16 %v3880
    %v4246 = vunpack.c.l.b16 %v3881
    %v4247 = vunpack.c.h.b16 %v3881
    %v4248 = vunpack.c.l.b16 %v3882
    %v4249 = vunpack.c.h.b16 %v3882
    %v4250 = vunpack.c.l.b16 %v3883
    %v4251 = vunpack.c.h.b16 %v3883
    %v4252 = vunpack.c.l.b16 %v3884
    %v4253 = vunpack.c.h.b16 %v3884
    %v4254 = vunpack.c.l.b16 %v3885
    %v4255 = vunpack.c.h.b16 %v3885
    %v4256 = vunpack.c.l.b16 %v3886
    %v4257 = vunpack.c.h.b16 %v3886
    %v4258 = vunpack.c.l.b16 %v3887
    %v4259 = vunpack.c.h.b16 %v3887
    %v4260 = vunpack.c.l.b16 %v3888
    %v4261 = vunpack.c.h.b16 %v3888
    %v4262 = vunpack.c.l.b16 %v3889
    %v4263 = vunpack.c.h.b16 %v3889
    %v4264 = vunpack.c.l.b16 %v3890
    %v4265 = vunpack.c.h.b16 %v3890
    %v4266 = vunpack.c.l.b16 %v3891
    %v4267 = vunpack.c.h.b16 %v3891
    %v4268 = vunpack.c.l.b16 %v3892
    %v4269 = vunpack.c.h.b16 %v3892
    %v4270 = vunpack.c.l.b16 %v3893
    %v4271 = vunpack.c.h.b16 %v3893
    %v4272 = vunpack.c.l.b16 %v3894
    %v4273 = vunpack.c.h.b16 %v3894
    %v4274 = vunpack.c.l.b16 %v3895
    %v4275 = vunpack.c.h.b16 %v3895
    %v4276 = vunpack.c.l.b16 %v3896
    %v4277 = vunpack.c.h.b16 %v3896
    %v4278 = vunpack.c.l.b16 %v3897
    %v4279 = vunpack.c.h.b16 %v3897
    %v4280 = vunpack.c.l.b16 %v3898
    %v4281 = vunpack.c.h.b16 %v3898
    %v4282 = vunpack.c.l.b16 %v3899
    %v4283 = vunpack.c.h.b16 %v3899
    %v4284 = vunpack.c.l.b16 %v3900
    %v4285 = vunpack.c.h.b16 %v3900
    %v4286 = vunpack.c.l.b16 %v3901
    %v4287 = vunpack.c.h.b16 %v3901
    %v4288 = vunpack.c.l.b16 %v3902
    %v4289 = vunpack.c.h.b16 %v3902
    %v4290 = vunpack.c.l.b16 %v3903
    %v4291 = vunpack.c.h.b16 %v3903
    %v4292 = vunpack.c.l.b16 %v3904
    %v4293 = vunpack.c.h.b16 %v3904
    %v4294 = vunpack.c.l.b16 %v3905
    %v4295 = vunpack.c.h.b16 %v3905
    %v4296 = vunpack.c.l.b16 %v3906
    %v4297 = vunpack.c.h.b16 %v3906
    %v4298 = vunpack.c.l.b16 %v3907
    %v4299 = vunpack.c.h.b16 %v3907
    %v4300 = vunpack.c.l.b16 %v3908
    %v4301 = vunpack.c.h.b16 %v3908
    %v4302 = vunpack.c.l.b16 %v3909
    %v4303 = vunpack.c.h.b16 %v3909
    %v4304 = vunpack.c.l.b16 %v3910
    %v4305 = vunpack.c.h.b16 %v3910
    %v4306 = vunpack.c.l.b16 %v3911
    %v4307 = vunpack.c.h.b16 %v3911
    %v4308 = vpack.c.b16 %v4246, %v4244
    %v4309 = vpack.c.b16 %v4247, %v4245
    %v4310 = vpack.c.b16 %v4250, %v4248
    %v4311 = vpack.c.b16 %v4251, %v4249
    %v4312 = vpack.c.b16 %v4254, %v4252
    %v4313 = vpack.c.b16 %v4255, %v4253
    %v4314 = vpack.c.b16 %v4258, %v4256
    %v4315 = vpack.c.b16 %v4259, %v4257
    %v4316 = vpack.c.b16 %v4262, %v4260
    %v4317 = vpack.c.b16 %v4263, %v4261
    %v4318 = vpack.c.b16 %v4266, %v4264
    %v4319 = vpack.c.b16 %v4267, %v4265
    %v4320 = vpack.c.b16 %v4270, %v4268
    %v4321 = vpack.c.b16 %v4271, %v4269
    %v4322 = vpack.c.b16 %v4274, %v4272
    %v4323 = vpack.c.b16 %v4275, %v4273
    %v4324 = vpack.c.b16 %v4278, %v4276
    %v4325 = vpack.c.b16 %v4279, %v4277
    %v4326 = vpack.c.b16 %v4282, %v4280
    %v4327 = vpack.c.b16 %v4283, %v4281
    %v4328 = vpack.c.b16 %v4286, %v4284
    %v4329 = vpack.c.b16 %v4287, %v4285
    %v4330 = vpack.c.b16 %v4290, %v4288
    %v4331 = vpack.c.b16 %v4291, %v4289
    %v4332 = vpack.c.b16 %v4294, %v4292
    %v4333 = vpack.c.b16 %v4295, %v4293
    %v4334 = vpack.c.b16 %v4298, %v4296
    %v4335 = vpack.c.b16 %v4299, %v4297
    %v4336 = vpack.c.b16 %v4302, %v4300
    %v4337 = vpack.c.b16 %v4303, %v4301
    %v4338 = vpack.c.b16 %v4306, %v4304
    %v4339 = vpack.c.b16 %v4307, %v4305
    %4372 = vmatprep.subr.bf16.mxu0 %v4323
    %4373 = vmatpush1.bf16.msra.mxu0 %v4322
    %4374 = vmatprep.subr.bf16.mxu0 %v4321
    %4375 = vmatpush1.bf16.msra.mxu0 %v4320
    %4376 = vmatprep.subr.bf16.mxu0 %v4319
    %4377 = vmatpush1.bf16.msra.mxu0 %v4318
    %4378 = vmatprep.subr.bf16.mxu0 %v4317
    %4379 = vmatpush1.bf16.msra.mxu0 %v4316
    %4380 = vmatprep.subr.bf16.mxu0 %v4315
    %4381 = vmatpush1.bf16.msra.mxu0 %v4314
    %4382 = vmatprep.subr.bf16.mxu0 %v4313
    %4383 = vmatpush1.bf16.msra.mxu0 %v4312
    %4384 = vmatprep.subr.bf16.mxu0 %v4311
    %4385 = vmatpush1.bf16.msra.mxu0 %v4310
    %4386 = vmatprep.subr.bf16.mxu0 %v4309
    %4387 = vmatpush1.bf16.msra.mxu0 %v4308
    %4388 = vmatprep.subr.bf16.mxu0 %v4339
    %4389 = vmatpush2.bf16.msra.mxu0 %v4338
    %4390 = vmatprep.subr.bf16.mxu0 %v4337
    %4391 = vmatpush2.bf16.msra.mxu0 %v4336
    %4392 = vmatprep.subr.bf16.mxu0 %v4335
    %4393 = vmatpush2.bf16.msra.mxu0 %v4334
    %4394 = vmatprep.subr.bf16.mxu0 %v4333
    %4395 = vmatpush2.bf16.msra.mxu0 %v4332
    %4396 = vmatprep.subr.bf16.mxu0 %v4331
    %4397 = vmatpush2.bf16.msra.mxu0 %v4330
    %4398 = vmatprep.subr.bf16.mxu0 %v4329
    %4399 = vmatpush2.bf16.msra.mxu0 %v4328
    %4400 = vmatprep.subr.bf16.mxu0 %v4327
    %4401 = vmatpush2.bf16.msra.mxu0 %v4326
    %4402 = vmatprep.subr.bf16.mxu0 %v4325
    %4403 = vmatpush2.bf16.msra.mxu0 %v4324
    %4404 = vmatprep.mubr.bf16.mxu0 %v4209
    %4405 = vmatmul.mubr.bf16.gmra.mxu0 %v4192
    %v4406 = vpop.f32.mrf.mxu0
    %v4407 = vadd.f32 %v4163, %v4406
    %v4408 = vpop.f32.mrf.mxu0
    %v4409 = vadd.f32 %v4165, %v4408
    %v4410 = vpop.f32.mrf.mxu0
    %v4411 = vadd.f32 %v4167, %v4410
    %v4412 = vpop.f32.mrf.mxu0
    %v4413 = vadd.f32 %v4169, %v4412
    %4414 = vdwg.mxu0
    %v4415 = vld [vmem:[#allocation4] sm:$0xff]
    %s4416 = scalar_lea.vmem [#allocation8], 1536
    %v4417 = vld [vmem:[%s4416] sm:$0xff]
    %v4418 = vld [vmem:[%s4416 + $0x8] sm:$0xff]
    %v4419 = vld [vmem:[%s4416 + $0x10] sm:$0xff]
    %v4420 = vld [vmem:[%s4416 + $0x18] sm:$0xff]
    %v4421 = vld [vmem:[%s4416 + $0x20] sm:$0xff]
    %v4422 = vld [vmem:[%s4416 + $0x28] sm:$0xff]
    %v4423 = vld [vmem:[%s4416 + $0x30] sm:$0xff]
    %v4424 = vld [vmem:[%s4416 + $0x38] sm:$0xff]
    %v4425 = vld [vmem:[%s4416 + $0x40] sm:$0xff]
    %v4426 = vld [vmem:[%s4416 + $0x48] sm:$0xff]
    %v4427 = vld [vmem:[%s4416 + $0x50] sm:$0xff]
    %v4428 = vld [vmem:[%s4416 + $0x58] sm:$0xff]
    %v4429 = vld [vmem:[%s4416 + $0x60] sm:$0xff]
    %v4430 = vld [vmem:[%s4416 + $0x68] sm:$0xff]
    %v4431 = vld [vmem:[%s4416 + $0x70] sm:$0xff]
    %v4432 = vld [vmem:[%s4416 + $0x78] sm:$0xff]
    %v4433 = vld [vmem:[%s4416 + $0x80] sm:$0xff]
    %v4434 = vld [vmem:[%s4416 + $0x88] sm:$0xff]
    %v4435 = vld [vmem:[%s4416 + $0x90] sm:$0xff]
    %v4436 = vld [vmem:[%s4416 + $0x98] sm:$0xff]
    %v4437 = vld [vmem:[%s4416 + $0xa0] sm:$0xff]
    %v4438 = vld [vmem:[%s4416 + $0xa8] sm:$0xff]
    %v4439 = vld [vmem:[%s4416 + $0xb0] sm:$0xff]
    %v4440 = vld [vmem:[%s4416 + $0xb8] sm:$0xff]
    %v4441 = vld [vmem:[%s4416 + $0xc0] sm:$0xff]
    %v4442 = vld [vmem:[%s4416 + $0xc8] sm:$0xff]
    %v4443 = vld [vmem:[%s4416 + $0xd0] sm:$0xff]
    %v4444 = vld [vmem:[%s4416 + $0xd8] sm:$0xff]
    %v4445 = vld [vmem:[%s4416 + $0xe0] sm:$0xff]
    %v4446 = vld [vmem:[%s4416 + $0xe8] sm:$0xff]
    %v4447 = vld [vmem:[%s4416 + $0xf0] sm:$0xff]
    %v4448 = vld [vmem:[%s4416 + $0xf8] sm:$0xff]
    %v4450 = vunpack.c.l.b16 %v4415
    %v4451 = vunpack.c.h.b16 %v4415
    %v4452 = vpack.c.b16 %v3951, %v4450
    %v4453 = vpack.c.b16 %v3952, %v4451
    %v4455 = vshrl.u32 %v4452, 16
    %v4457 = vshll.u32 %v4452, 16
    %v4459 = vrot.slane %v4457, 1
    %v4460 = vor.u32 %v4455, %v4459
    %v4462 = vshll.u32 %v3957, 16
    %v4464 = vrot.slane %v4462, 1
    %v4465 = vsel %vm877, %v4460, %v4464
    %v4467 = vshrl.u32 %v4453, 16
    %v4469 = vshll.u32 %v4453, 16
    %v4471 = vrot.slane %v4469, 1
    %v4472 = vor.u32 %v4467, %v4471
    %v4474 = vshll.u32 %v3958, 16
    %v4476 = vrot.slane %v4474, 1
    %v4477 = vsel %vm877, %v4472, %v4476
    %v4512 = vunpack.c.l.b16 %v4417
    %v4513 = vunpack.c.h.b16 %v4417
    %v4514 = vunpack.c.l.b16 %v4418
    %v4515 = vunpack.c.h.b16 %v4418
    %v4516 = vunpack.c.l.b16 %v4419
    %v4517 = vunpack.c.h.b16 %v4419
    %v4518 = vunpack.c.l.b16 %v4420
    %v4519 = vunpack.c.h.b16 %v4420
    %v4520 = vunpack.c.l.b16 %v4421
    %v4521 = vunpack.c.h.b16 %v4421
    %v4522 = vunpack.c.l.b16 %v4422
    %v4523 = vunpack.c.h.b16 %v4422
    %v4524 = vunpack.c.l.b16 %v4423
    %v4525 = vunpack.c.h.b16 %v4423
    %v4526 = vunpack.c.l.b16 %v4424
    %v4527 = vunpack.c.h.b16 %v4424
    %v4528 = vunpack.c.l.b16 %v4425
    %v4529 = vunpack.c.h.b16 %v4425
    %v4530 = vunpack.c.l.b16 %v4426
    %v4531 = vunpack.c.h.b16 %v4426
    %v4532 = vunpack.c.l.b16 %v4427
    %v4533 = vunpack.c.h.b16 %v4427
    %v4534 = vunpack.c.l.b16 %v4428
    %v4535 = vunpack.c.h.b16 %v4428
    %v4536 = vunpack.c.l.b16 %v4429
    %v4537 = vunpack.c.h.b16 %v4429
    %v4538 = vunpack.c.l.b16 %v4430
    %v4539 = vunpack.c.h.b16 %v4430
    %v4540 = vunpack.c.l.b16 %v4431
    %v4541 = vunpack.c.h.b16 %v4431
    %v4542 = vunpack.c.l.b16 %v4432
    %v4543 = vunpack.c.h.b16 %v4432
    %v4544 = vunpack.c.l.b16 %v4433
    %v4545 = vunpack.c.h.b16 %v4433
    %v4546 = vunpack.c.l.b16 %v4434
    %v4547 = vunpack.c.h.b16 %v4434
    %v4548 = vunpack.c.l.b16 %v4435
    %v4549 = vunpack.c.h.b16 %v4435
    %v4550 = vunpack.c.l.b16 %v4436
    %v4551 = vunpack.c.h.b16 %v4436
    %v4552 = vunpack.c.l.b16 %v4437
    %v4553 = vunpack.c.h.b16 %v4437
    %v4554 = vunpack.c.l.b16 %v4438
    %v4555 = vunpack.c.h.b16 %v4438
    %v4556 = vunpack.c.l.b16 %v4439
    %v4557 = vunpack.c.h.b16 %v4439
    %v4558 = vunpack.c.l.b16 %v4440
    %v4559 = vunpack.c.h.b16 %v4440
    %v4560 = vunpack.c.l.b16 %v4441
    %v4561 = vunpack.c.h.b16 %v4441
    %v4562 = vunpack.c.l.b16 %v4442
    %v4563 = vunpack.c.h.b16 %v4442
    %v4564 = vunpack.c.l.b16 %v4443
    %v4565 = vunpack.c.h.b16 %v4443
    %v4566 = vunpack.c.l.b16 %v4444
    %v4567 = vunpack.c.h.b16 %v4444
    %v4568 = vunpack.c.l.b16 %v4445
    %v4569 = vunpack.c.h.b16 %v4445
    %v4570 = vunpack.c.l.b16 %v4446
    %v4571 = vunpack.c.h.b16 %v4446
    %v4572 = vunpack.c.l.b16 %v4447
    %v4573 = vunpack.c.h.b16 %v4447
    %v4574 = vunpack.c.l.b16 %v4448
    %v4575 = vunpack.c.h.b16 %v4448
    %v4576 = vpack.c.b16 %v4514, %v4512
    %v4577 = vpack.c.b16 %v4515, %v4513
    %v4578 = vpack.c.b16 %v4518, %v4516
    %v4579 = vpack.c.b16 %v4519, %v4517
    %v4580 = vpack.c.b16 %v4522, %v4520
    %v4581 = vpack.c.b16 %v4523, %v4521
    %v4582 = vpack.c.b16 %v4526, %v4524
    %v4583 = vpack.c.b16 %v4527, %v4525
    %v4584 = vpack.c.b16 %v4530, %v4528
    %v4585 = vpack.c.b16 %v4531, %v4529
    %v4586 = vpack.c.b16 %v4534, %v4532
    %v4587 = vpack.c.b16 %v4535, %v4533
    %v4588 = vpack.c.b16 %v4538, %v4536
    %v4589 = vpack.c.b16 %v4539, %v4537
    %v4590 = vpack.c.b16 %v4542, %v4540
    %v4591 = vpack.c.b16 %v4543, %v4541
    %v4592 = vpack.c.b16 %v4546, %v4544
    %v4593 = vpack.c.b16 %v4547, %v4545
    %v4594 = vpack.c.b16 %v4550, %v4548
    %v4595 = vpack.c.b16 %v4551, %v4549
    %v4596 = vpack.c.b16 %v4554, %v4552
    %v4597 = vpack.c.b16 %v4555, %v4553
    %v4598 = vpack.c.b16 %v4558, %v4556
    %v4599 = vpack.c.b16 %v4559, %v4557
    %v4600 = vpack.c.b16 %v4562, %v4560
    %v4601 = vpack.c.b16 %v4563, %v4561
    %v4602 = vpack.c.b16 %v4566, %v4564
    %v4603 = vpack.c.b16 %v4567, %v4565
    %v4604 = vpack.c.b16 %v4570, %v4568
    %v4605 = vpack.c.b16 %v4571, %v4569
    %v4606 = vpack.c.b16 %v4574, %v4572
    %v4607 = vpack.c.b16 %v4575, %v4573
    %4640 = vmatprep.subr.bf16.mxu0 %v4591
    %4641 = vmatpush1.bf16.msra.mxu0 %v4590
    %4642 = vmatprep.subr.bf16.mxu0 %v4589
    %4643 = vmatpush1.bf16.msra.mxu0 %v4588
    %4644 = vmatprep.subr.bf16.mxu0 %v4587
    %4645 = vmatpush1.bf16.msra.mxu0 %v4586
    %4646 = vmatprep.subr.bf16.mxu0 %v4585
    %4647 = vmatpush1.bf16.msra.mxu0 %v4584
    %4648 = vmatprep.subr.bf16.mxu0 %v4583
    %4649 = vmatpush1.bf16.msra.mxu0 %v4582
    %4650 = vmatprep.subr.bf16.mxu0 %v4581
    %4651 = vmatpush1.bf16.msra.mxu0 %v4580
    %4652 = vmatprep.subr.bf16.mxu0 %v4579
    %4653 = vmatpush1.bf16.msra.mxu0 %v4578
    %4654 = vmatprep.subr.bf16.mxu0 %v4577
    %4655 = vmatpush1.bf16.msra.mxu0 %v4576
    %4656 = vmatprep.subr.bf16.mxu0 %v4607
    %4657 = vmatpush2.bf16.msra.mxu0 %v4606
    %4658 = vmatprep.subr.bf16.mxu0 %v4605
    %4659 = vmatpush2.bf16.msra.mxu0 %v4604
    %4660 = vmatprep.subr.bf16.mxu0 %v4603
    %4661 = vmatpush2.bf16.msra.mxu0 %v4602
    %4662 = vmatprep.subr.bf16.mxu0 %v4601
    %4663 = vmatpush2.bf16.msra.mxu0 %v4600
    %4664 = vmatprep.subr.bf16.mxu0 %v4599
    %4665 = vmatpush2.bf16.msra.mxu0 %v4598
    %4666 = vmatprep.subr.bf16.mxu0 %v4597
    %4667 = vmatpush2.bf16.msra.mxu0 %v4596
    %4668 = vmatprep.subr.bf16.mxu0 %v4595
    %4669 = vmatpush2.bf16.msra.mxu0 %v4594
    %4670 = vmatprep.subr.bf16.mxu0 %v4593
    %4671 = vmatpush2.bf16.msra.mxu0 %v4592
    %4672 = vmatprep.mubr.bf16.mxu0 %v4477
    %4673 = vmatmul.mubr.bf16.gmra.mxu0 %v4465
    %v4674 = vpop.f32.mrf.mxu0
    %v4675 = vadd.f32 0.0, %v4674
    %v4676 = vpop.f32.mrf.mxu0
    %v4677 = vadd.f32 0.0, %v4676
    %v4678 = vpop.f32.mrf.mxu0
    %v4679 = vadd.f32 0.0, %v4678
    %v4680 = vpop.f32.mrf.mxu0
    %v4681 = vadd.f32 0.0, %v4680
    %4682 = vdwg.mxu0
    %v4683 = vadd.f32 %v4407, %v4675
    %v4684 = vadd.f32 %v4409, %v4677
    %v4685 = vadd.f32 %v4411, %v4679
    %v4686 = vadd.f32 %v4413, %v4681
    %v4687 = vld [vmem:[#allocation4] sm:$0xff]
    %v4688 = vld [vmem:[#allocation4 + $0x8] sm:$0xff]
    %s4689 = scalar_lea.vmem [#allocation8], 1792
    %v4690 = vld [vmem:[%s4689] sm:$0xff]
    %v4691 = vld [vmem:[%s4689 + $0x8] sm:$0xff]
    %v4692 = vld [vmem:[%s4689 + $0x10] sm:$0xff]
    %v4693 = vld [vmem:[%s4689 + $0x18] sm:$0xff]
    %v4694 = vld [vmem:[%s4689 + $0x20] sm:$0xff]
    %v4695 = vld [vmem:[%s4689 + $0x28] sm:$0xff]
    %v4696 = vld [vmem:[%s4689 + $0x30] sm:$0xff]
    %v4697 = vld [vmem:[%s4689 + $0x38] sm:$0xff]
    %v4698 = vld [vmem:[%s4689 + $0x40] sm:$0xff]
    %v4699 = vld [vmem:[%s4689 + $0x48] sm:$0xff]
    %v4700 = vld [vmem:[%s4689 + $0x50] sm:$0xff]
    %v4701 = vld [vmem:[%s4689 + $0x58] sm:$0xff]
    %v4702 = vld [vmem:[%s4689 + $0x60] sm:$0xff]
    %v4703 = vld [vmem:[%s4689 + $0x68] sm:$0xff]
    %v4704 = vld [vmem:[%s4689 + $0x70] sm:$0xff]
    %v4705 = vld [vmem:[%s4689 + $0x78] sm:$0xff]
    %v4706 = vld [vmem:[%s4689 + $0x80] sm:$0xff]
    %v4707 = vld [vmem:[%s4689 + $0x88] sm:$0xff]
    %v4708 = vld [vmem:[%s4689 + $0x90] sm:$0xff]
    %v4709 = vld [vmem:[%s4689 + $0x98] sm:$0xff]
    %v4710 = vld [vmem:[%s4689 + $0xa0] sm:$0xff]
    %v4711 = vld [vmem:[%s4689 + $0xa8] sm:$0xff]
    %v4712 = vld [vmem:[%s4689 + $0xb0] sm:$0xff]
    %v4713 = vld [vmem:[%s4689 + $0xb8] sm:$0xff]
    %v4714 = vld [vmem:[%s4689 + $0xc0] sm:$0xff]
    %v4715 = vld [vmem:[%s4689 + $0xc8] sm:$0xff]
    %v4716 = vld [vmem:[%s4689 + $0xd0] sm:$0xff]
    %v4717 = vld [vmem:[%s4689 + $0xd8] sm:$0xff]
    %v4718 = vld [vmem:[%s4689 + $0xe0] sm:$0xff]
    %v4719 = vld [vmem:[%s4689 + $0xe8] sm:$0xff]
    %v4720 = vld [vmem:[%s4689 + $0xf0] sm:$0xff]
    %v4721 = vld [vmem:[%s4689 + $0xf8] sm:$0xff]
    %v4724 = vunpack.c.l.b16 %v4687
    %v4725 = vunpack.c.h.b16 %v4687
    %v4726 = vunpack.c.l.b16 %v4688
    %v4727 = vunpack.c.h.b16 %v4688
    %v4728 = vpack.c.b16 %v4726, %v4724
    %v4729 = vpack.c.b16 %v4727, %v4725
    %v4764 = vunpack.c.l.b16 %v4690
    %v4765 = vunpack.c.h.b16 %v4690
    %v4766 = vunpack.c.l.b16 %v4691
    %v4767 = vunpack.c.h.b16 %v4691
    %v4768 = vunpack.c.l.b16 %v4692
    %v4769 = vunpack.c.h.b16 %v4692
    %v4770 = vunpack.c.l.b16 %v4693
    %v4771 = vunpack.c.h.b16 %v4693
    %v4772 = vunpack.c.l.b16 %v4694
    %v4773 = vunpack.c.h.b16 %v4694
    %v4774 = vunpack.c.l.b16 %v4695
    %v4775 = vunpack.c.h.b16 %v4695
    %v4776 = vunpack.c.l.b16 %v4696
    %v4777 = vunpack.c.h.b16 %v4696
    %v4778 = vunpack.c.l.b16 %v4697
    %v4779 = vunpack.c.h.b16 %v4697
    %v4780 = vunpack.c.l.b16 %v4698
    %v4781 = vunpack.c.h.b16 %v4698
    %v4782 = vunpack.c.l.b16 %v4699
    %v4783 = vunpack.c.h.b16 %v4699
    %v4784 = vunpack.c.l.b16 %v4700
    %v4785 = vunpack.c.h.b16 %v4700
    %v4786 = vunpack.c.l.b16 %v4701
    %v4787 = vunpack.c.h.b16 %v4701
    %v4788 = vunpack.c.l.b16 %v4702
    %v4789 = vunpack.c.h.b16 %v4702
    %v4790 = vunpack.c.l.b16 %v4703
    %v4791 = vunpack.c.h.b16 %v4703
    %v4792 = vunpack.c.l.b16 %v4704
    %v4793 = vunpack.c.h.b16 %v4704
    %v4794 = vunpack.c.l.b16 %v4705
    %v4795 = vunpack.c.h.b16 %v4705
    %v4796 = vunpack.c.l.b16 %v4706
    %v4797 = vunpack.c.h.b16 %v4706
    %v4798 = vunpack.c.l.b16 %v4707
    %v4799 = vunpack.c.h.b16 %v4707
    %v4800 = vunpack.c.l.b16 %v4708
    %v4801 = vunpack.c.h.b16 %v4708
    %v4802 = vunpack.c.l.b16 %v4709
    %v4803 = vunpack.c.h.b16 %v4709
    %v4804 = vunpack.c.l.b16 %v4710
    %v4805 = vunpack.c.h.b16 %v4710
    %v4806 = vunpack.c.l.b16 %v4711
    %v4807 = vunpack.c.h.b16 %v4711
    %v4808 = vunpack.c.l.b16 %v4712
    %v4809 = vunpack.c.h.b16 %v4712
    %v4810 = vunpack.c.l.b16 %v4713
    %v4811 = vunpack.c.h.b16 %v4713
    %v4812 = vunpack.c.l.b16 %v4714
    %v4813 = vunpack.c.h.b16 %v4714
    %v4814 = vunpack.c.l.b16 %v4715
    %v4815 = vunpack.c.h.b16 %v4715
    %v4816 = vunpack.c.l.b16 %v4716
    %v4817 = vunpack.c.h.b16 %v4716
    %v4818 = vunpack.c.l.b16 %v4717
    %v4819 = vunpack.c.h.b16 %v4717
    %v4820 = vunpack.c.l.b16 %v4718
    %v4821 = vunpack.c.h.b16 %v4718
    %v4822 = vunpack.c.l.b16 %v4719
    %v4823 = vunpack.c.h.b16 %v4719
    %v4824 = vunpack.c.l.b16 %v4720
    %v4825 = vunpack.c.h.b16 %v4720
    %v4826 = vunpack.c.l.b16 %v4721
    %v4827 = vunpack.c.h.b16 %v4721
    %v4828 = vpack.c.b16 %v4766, %v4764
    %v4829 = vpack.c.b16 %v4767, %v4765
    %v4830 = vpack.c.b16 %v4770, %v4768
    %v4831 = vpack.c.b16 %v4771, %v4769
    %v4832 = vpack.c.b16 %v4774, %v4772
    %v4833 = vpack.c.b16 %v4775, %v4773
    %v4834 = vpack.c.b16 %v4778, %v4776
    %v4835 = vpack.c.b16 %v4779, %v4777
    %v4836 = vpack.c.b16 %v4782, %v4780
    %v4837 = vpack.c.b16 %v4783, %v4781
    %v4838 = vpack.c.b16 %v4786, %v4784
    %v4839 = vpack.c.b16 %v4787, %v4785
    %v4840 = vpack.c.b16 %v4790, %v4788
    %v4841 = vpack.c.b16 %v4791, %v4789
    %v4842 = vpack.c.b16 %v4794, %v4792
    %v4843 = vpack.c.b16 %v4795, %v4793
    %v4844 = vpack.c.b16 %v4798, %v4796
    %v4845 = vpack.c.b16 %v4799, %v4797
    %v4846 = vpack.c.b16 %v4802, %v4800
    %v4847 = vpack.c.b16 %v4803, %v4801
    %v4848 = vpack.c.b16 %v4806, %v4804
    %v4849 = vpack.c.b16 %v4807, %v4805
    %v4850 = vpack.c.b16 %v4810, %v4808
    %v4851 = vpack.c.b16 %v4811, %v4809
    %v4852 = vpack.c.b16 %v4814, %v4812
    %v4853 = vpack.c.b16 %v4815, %v4813
    %v4854 = vpack.c.b16 %v4818, %v4816
    %v4855 = vpack.c.b16 %v4819, %v4817
    %v4856 = vpack.c.b16 %v4822, %v4820
    %v4857 = vpack.c.b16 %v4823, %v4821
    %v4858 = vpack.c.b16 %v4826, %v4824
    %v4859 = vpack.c.b16 %v4827, %v4825
    %4892 = vmatprep.subr.bf16.mxu0 %v4843
    %4893 = vmatpush1.bf16.msra.mxu0 %v4842
    %4894 = vmatprep.subr.bf16.mxu0 %v4841
    %4895 = vmatpush1.bf16.msra.mxu0 %v4840
    %4896 = vmatprep.subr.bf16.mxu0 %v4839
    %4897 = vmatpush1.bf16.msra.mxu0 %v4838
    %4898 = vmatprep.subr.bf16.mxu0 %v4837
    %4899 = vmatpush1.bf16.msra.mxu0 %v4836
    %4900 = vmatprep.subr.bf16.mxu0 %v4835
    %4901 = vmatpush1.bf16.msra.mxu0 %v4834
    %4902 = vmatprep.subr.bf16.mxu0 %v4833
    %4903 = vmatpush1.bf16.msra.mxu0 %v4832
    %4904 = vmatprep.subr.bf16.mxu0 %v4831
    %4905 = vmatpush1.bf16.msra.mxu0 %v4830
    %4906 = vmatprep.subr.bf16.mxu0 %v4829
    %4907 = vmatpush1.bf16.msra.mxu0 %v4828
    %4908 = vmatprep.subr.bf16.mxu0 %v4859
    %4909 = vmatpush2.bf16.msra.mxu0 %v4858
    %4910 = vmatprep.subr.bf16.mxu0 %v4857
    %4911 = vmatpush2.bf16.msra.mxu0 %v4856
    %4912 = vmatprep.subr.bf16.mxu0 %v4855
    %4913 = vmatpush2.bf16.msra.mxu0 %v4854
    %4914 = vmatprep.subr.bf16.mxu0 %v4853
    %4915 = vmatpush2.bf16.msra.mxu0 %v4852
    %4916 = vmatprep.subr.bf16.mxu0 %v4851
    %4917 = vmatpush2.bf16.msra.mxu0 %v4850
    %4918 = vmatprep.subr.bf16.mxu0 %v4849
    %4919 = vmatpush2.bf16.msra.mxu0 %v4848
    %4920 = vmatprep.subr.bf16.mxu0 %v4847
    %4921 = vmatpush2.bf16.msra.mxu0 %v4846
    %4922 = vmatprep.subr.bf16.mxu0 %v4845
    %4923 = vmatpush2.bf16.msra.mxu0 %v4844
    %4924 = vmatprep.mubr.bf16.mxu0 %v4729
    %4925 = vmatmul.mubr.bf16.gmra.mxu0 %v4728
    %v4926 = vpop.f32.mrf.mxu0
    %v4927 = vadd.f32 0.0, %v4926
    %v4928 = vpop.f32.mrf.mxu0
    %v4929 = vadd.f32 0.0, %v4928
    %v4930 = vpop.f32.mrf.mxu0
    %v4931 = vadd.f32 0.0, %v4930
    %v4932 = vpop.f32.mrf.mxu0
    %v4933 = vadd.f32 0.0, %v4932
    %4934 = vdwg.mxu0
    %v4935 = vadd.f32 %v4683, %v4927
    %v4936 = vadd.f32 %v4684, %v4929
    %v4937 = vadd.f32 %v4685, %v4931
    %v4938 = vadd.f32 %v4686, %v4933
    %4939 = vst [vmem:[#allocation2] sm:$0xff] %v4935
    %4940 = vst [vmem:[#allocation2 + $0x8] sm:$0xff] %v4936
    %4941 = vst [vmem:[#allocation2 + $0x10] sm:$0xff] %v4937
    %4942 = vst [vmem:[#allocation2 + $0x18] sm:$0xff] %v4938
    %v4943 = vadd.f32 %v4935, %v4937
    %v4944 = vrot.slane %v4943, 4
    %v4945 = vadd.f32 %v4943, %v4944
    %v4946 = vrot.slane %v4945, 2
    %v4947 = vadd.f32 %v4945, %v4946
    %v4948 = vrot.slane %v4947, 1
    %v4949 = vadd.f32 %v4947, %v4948
    %v4950 = vadd.f32 %v4936, %v4938
    %v4951 = vrot.slane %v4950, 4
    %v4952 = vadd.f32 %v4950, %v4951
    %v4953 = vrot.slane %v4952, 2
    %v4954 = vadd.f32 %v4952, %v4953
    %v4955 = vrot.slane %v4954, 1
    %v4956 = vadd.f32 %v4954, %v4955
    %v4957 = vadd.f32 %v4949, 0.0
    %v4958 = vadd.f32 %v4956, 0.0
    %v4959 = vmul.f32 %v4935, %v4935
    %v4960 = vmul.f32 %v4936, %v4936
    %v4961 = vmul.f32 %v4937, %v4937
    %v4962 = vmul.f32 %v4938, %v4938
    %v4963 = vadd.f32 %v4959, %v4961
    %v4964 = vrot.slane %v4963, 4
    %v4965 = vadd.f32 %v4963, %v4964
    %v4966 = vrot.slane %v4965, 2
    %v4967 = vadd.f32 %v4965, %v4966
    %v4968 = vrot.slane %v4967, 1
    %v4969 = vadd.f32 %v4967, %v4968
    %v4970 = vadd.f32 %v4960, %v4962
    %v4971 = vrot.slane %v4970, 4
    %v4972 = vadd.f32 %v4970, %v4971
    %v4973 = vrot.slane %v4972, 2
    %v4974 = vadd.f32 %v4972, %v4973
    %v4975 = vrot.slane %v4974, 1
    %v4976 = vadd.f32 %v4974, %v4975
    %v4977 = vadd.f32 %v4969, 0.0
    %v4978 = vadd.f32 %v4976, 0.0
    %v4979 = vld [vmem:[#allocation4 + $0x10] sm:$0x88]
    %v4980 = vld [vmem:[#allocation4 + $0x18] sm:$0xff]
    %v4981 = vld [vmem:[#allocation4 + $0x20] sm:$0x77]
    %v4982 = vld [vmem:[%s3879] sm:$0xff]
    %v4983 = vld [vmem:[%s3879 + $0x8] sm:$0xff]
    %v4984 = vld [vmem:[%s3879 + $0x10] sm:$0xff]
    %v4985 = vld [vmem:[%s3879 + $0x18] sm:$0xff]
    %v4986 = vld [vmem:[%s3879 + $0x20] sm:$0xff]
    %v4987 = vld [vmem:[%s3879 + $0x28] sm:$0xff]
    %v4988 = vld [vmem:[%s3879 + $0x30] sm:$0xff]
    %v4989 = vld [vmem:[%s3879 + $0x38] sm:$0xff]
    %v4990 = vld [vmem:[%s3879 + $0x40] sm:$0xff]
    %v4991 = vld [vmem:[%s3879 + $0x48] sm:$0xff]
    %v4992 = vld [vmem:[%s3879 + $0x50] sm:$0xff]
    %v4993 = vld [vmem:[%s3879 + $0x58] sm:$0xff]
    %v4994 = vld [vmem:[%s3879 + $0x60] sm:$0xff]
    %v4995 = vld [vmem:[%s3879 + $0x68] sm:$0xff]
    %v4996 = vld [vmem:[%s3879 + $0x70] sm:$0xff]
    %v4997 = vld [vmem:[%s3879 + $0x78] sm:$0xff]
    %v4998 = vld [vmem:[%s3879 + $0x80] sm:$0xff]
    %v4999 = vld [vmem:[%s3879 + $0x88] sm:$0xff]
    %v5000 = vld [vmem:[%s3879 + $0x90] sm:$0xff]
    %v5001 = vld [vmem:[%s3879 + $0x98] sm:$0xff]
    %v5002 = vld [vmem:[%s3879 + $0xa0] sm:$0xff]
    %v5003 = vld [vmem:[%s3879 + $0xa8] sm:$0xff]
    %v5004 = vld [vmem:[%s3879 + $0xb0] sm:$0xff]
    %v5005 = vld [vmem:[%s3879 + $0xb8] sm:$0xff]
    %v5006 = vld [vmem:[%s3879 + $0xc0] sm:$0xff]
    %v5007 = vld [vmem:[%s3879 + $0xc8] sm:$0xff]
    %v5008 = vld [vmem:[%s3879 + $0xd0] sm:$0xff]
    %v5009 = vld [vmem:[%s3879 + $0xd8] sm:$0xff]
    %v5010 = vld [vmem:[%s3879 + $0xe0] sm:$0xff]
    %v5011 = vld [vmem:[%s3879 + $0xe8] sm:$0xff]
    %v5012 = vld [vmem:[%s3879 + $0xf0] sm:$0xff]
    %v5013 = vld [vmem:[%s3879 + $0xf8] sm:$0xff]
    %v5014 = vld [vmem:[#allocation4 + $0x10] sm:$0xcc]
    %v5015 = vld [vmem:[%s3913] sm:$0xff]
    %v5016 = vld [vmem:[%s3913 + $0x8] sm:$0xff]
    %v5017 = vld [vmem:[%s3913 + $0x10] sm:$0xff]
    %v5018 = vld [vmem:[%s3913 + $0x18] sm:$0xff]
    %v5019 = vld [vmem:[%s3913 + $0x20] sm:$0xff]
    %v5020 = vld [vmem:[%s3913 + $0x28] sm:$0xff]
    %v5021 = vld [vmem:[%s3913 + $0x30] sm:$0xff]
    %v5022 = vld [vmem:[%s3913 + $0x38] sm:$0xff]
    %v5023 = vld [vmem:[%s3913 + $0x40] sm:$0xff]
    %v5024 = vld [vmem:[%s3913 + $0x48] sm:$0xff]
    %v5025 = vld [vmem:[%s3913 + $0x50] sm:$0xff]
    %v5026 = vld [vmem:[%s3913 + $0x58] sm:$0xff]
    %v5027 = vld [vmem:[%s3913 + $0x60] sm:$0xff]
    %v5028 = vld [vmem:[%s3913 + $0x68] sm:$0xff]
    %v5029 = vld [vmem:[%s3913 + $0x70] sm:$0xff]
    %v5030 = vld [vmem:[%s3913 + $0x78] sm:$0xff]
    %v5031 = vld [vmem:[%s3913 + $0x80] sm:$0xff]
    %v5032 = vld [vmem:[%s3913 + $0x88] sm:$0xff]
    %v5033 = vld [vmem:[%s3913 + $0x90] sm:$0xff]
    %v5034 = vld [vmem:[%s3913 + $0x98] sm:$0xff]
    %v5035 = vld [vmem:[%s3913 + $0xa0] sm:$0xff]
    %v5036 = vld [vmem:[%s3913 + $0xa8] sm:$0xff]
    %v5037 = vld [vmem:[%s3913 + $0xb0] sm:$0xff]
    %v5038 = vld [vmem:[%s3913 + $0xb8] sm:$0xff]
    %v5039 = vld [vmem:[%s3913 + $0xc0] sm:$0xff]
    %v5040 = vld [vmem:[%s3913 + $0xc8] sm:$0xff]
    %v5041 = vld [vmem:[%s3913 + $0xd0] sm:$0xff]
    %v5042 = vld [vmem:[%s3913 + $0xd8] sm:$0xff]
    %v5043 = vld [vmem:[%s3913 + $0xe0] sm:$0xff]
    %v5044 = vld [vmem:[%s3913 + $0xe8] sm:$0xff]
    %v5045 = vld [vmem:[%s3913 + $0xf0] sm:$0xff]
    %v5046 = vld [vmem:[%s3913 + $0xf8] sm:$0xff]
    %v5050 = vunpack.c.l.b16 %v5014
    %v5051 = vunpack.c.h.b16 %v5014
    %v5052 = vunpack.c.l.b16 %v4980
    %v5053 = vunpack.c.h.b16 %v4980
    %v5054 = vunpack.c.l.b16 %v4981
    %v5055 = vunpack.c.h.b16 %v4981
    %v5056 = vpack.c.b16 %v5052, %v5050
    %v5057 = vpack.c.b16 %v5053, %v5051
    %v5058 = vpack.c.b16 %v5054, %v5054
    %v5059 = vpack.c.b16 %v5055, %v5055
    %v5061 = vshrl.u32 %v5056, 16
    %v5063 = vrot.slane %v5061, 2
    %v5064 = vshll.u32 %v5056, 16
    %v5066 = vrot.slane %v5064, 3
    %v5067 = vor.u32 %v5063, %v5066
    %v5069 = vshrl.u32 %v5058, 16
    %v5071 = vrot.slane %v5069, 2
    %v5072 = vshll.u32 %v5058, 16
    %v5074 = vrot.slane %v5072, 3
    %v5075 = vor.u32 %v5071, %v5074
    %v5076 = vsel %vm807, %v5067, %v5075
    %v5078 = vshrl.u32 %v5057, 16
    %v5080 = vrot.slane %v5078, 2
    %v5081 = vshll.u32 %v5057, 16
    %v5083 = vrot.slane %v5081, 3
    %v5084 = vor.u32 %v5080, %v5083
    %v5086 = vshrl.u32 %v5059, 16
    %v5088 = vrot.slane %v5086, 2
    %v5089 = vshll.u32 %v5059, 16
    %v5091 = vrot.slane %v5089, 3
    %v5092 = vor.u32 %v5088, %v5091
    %v5093 = vsel %vm807, %v5084, %v5092
    %v5128 = vunpack.c.l.b16 %v5015
    %v5129 = vunpack.c.h.b16 %v5015
    %v5130 = vunpack.c.l.b16 %v5016
    %v5131 = vunpack.c.h.b16 %v5016
    %v5132 = vunpack.c.l.b16 %v5017
    %v5133 = vunpack.c.h.b16 %v5017
    %v5134 = vunpack.c.l.b16 %v5018
    %v5135 = vunpack.c.h.b16 %v5018
    %v5136 = vunpack.c.l.b16 %v5019
    %v5137 = vunpack.c.h.b16 %v5019
    %v5138 = vunpack.c.l.b16 %v5020
    %v5139 = vunpack.c.h.b16 %v5020
    %v5140 = vunpack.c.l.b16 %v5021
    %v5141 = vunpack.c.h.b16 %v5021
    %v5142 = vunpack.c.l.b16 %v5022
    %v5143 = vunpack.c.h.b16 %v5022
    %v5144 = vunpack.c.l.b16 %v5023
    %v5145 = vunpack.c.h.b16 %v5023
    %v5146 = vunpack.c.l.b16 %v5024
    %v5147 = vunpack.c.h.b16 %v5024
    %v5148 = vunpack.c.l.b16 %v5025
    %v5149 = vunpack.c.h.b16 %v5025
    %v5150 = vunpack.c.l.b16 %v5026
    %v5151 = vunpack.c.h.b16 %v5026
    %v5152 = vunpack.c.l.b16 %v5027
    %v5153 = vunpack.c.h.b16 %v5027
    %v5154 = vunpack.c.l.b16 %v5028
    %v5155 = vunpack.c.h.b16 %v5028
    %v5156 = vunpack.c.l.b16 %v5029
    %v5157 = vunpack.c.h.b16 %v5029
    %v5158 = vunpack.c.l.b16 %v5030
    %v5159 = vunpack.c.h.b16 %v5030
    %v5160 = vunpack.c.l.b16 %v5031
    %v5161 = vunpack.c.h.b16 %v5031
    %v5162 = vunpack.c.l.b16 %v5032
    %v5163 = vunpack.c.h.b16 %v5032
    %v5164 = vunpack.c.l.b16 %v5033
    %v5165 = vunpack.c.h.b16 %v5033
    %v5166 = vunpack.c.l.b16 %v5034
    %v5167 = vunpack.c.h.b16 %v5034
    %v5168 = vunpack.c.l.b16 %v5035
    %v5169 = vunpack.c.h.b16 %v5035
    %v5170 = vunpack.c.l.b16 %v5036
    %v5171 = vunpack.c.h.b16 %v5036
    %v5172 = vunpack.c.l.b16 %v5037
    %v5173 = vunpack.c.h.b16 %v5037
    %v5174 = vunpack.c.l.b16 %v5038
    %v5175 = vunpack.c.h.b16 %v5038
    %v5176 = vunpack.c.l.b16 %v5039
    %v5177 = vunpack.c.h.b16 %v5039
    %v5178 = vunpack.c.l.b16 %v5040
    %v5179 = vunpack.c.h.b16 %v5040
    %v5180 = vunpack.c.l.b16 %v5041
    %v5181 = vunpack.c.h.b16 %v5041
    %v5182 = vunpack.c.l.b16 %v5042
    %v5183 = vunpack.c.h.b16 %v5042
    %v5184 = vunpack.c.l.b16 %v5043
    %v5185 = vunpack.c.h.b16 %v5043
    %v5186 = vunpack.c.l.b16 %v5044
    %v5187 = vunpack.c.h.b16 %v5044
    %v5188 = vunpack.c.l.b16 %v5045
    %v5189 = vunpack.c.h.b16 %v5045
    %v5190 = vunpack.c.l.b16 %v5046
    %v5191 = vunpack.c.h.b16 %v5046
    %v5192 = vpack.c.b16 %v5130, %v5128
    %v5193 = vpack.c.b16 %v5131, %v5129
    %v5194 = vpack.c.b16 %v5134, %v5132
    %v5195 = vpack.c.b16 %v5135, %v5133
    %v5196 = vpack.c.b16 %v5138, %v5136
    %v5197 = vpack.c.b16 %v5139, %v5137
    %v5198 = vpack.c.b16 %v5142, %v5140
    %v5199 = vpack.c.b16 %v5143, %v5141
    %v5200 = vpack.c.b16 %v5146, %v5144
    %v5201 = vpack.c.b16 %v5147, %v5145
    %v5202 = vpack.c.b16 %v5150, %v5148
    %v5203 = vpack.c.b16 %v5151, %v5149
    %v5204 = vpack.c.b16 %v5154, %v5152
    %v5205 = vpack.c.b16 %v5155, %v5153
    %v5206 = vpack.c.b16 %v5158, %v5156
    %v5207 = vpack.c.b16 %v5159, %v5157
    %v5208 = vpack.c.b16 %v5162, %v5160
    %v5209 = vpack.c.b16 %v5163, %v5161
    %v5210 = vpack.c.b16 %v5166, %v5164
    %v5211 = vpack.c.b16 %v5167, %v5165
    %v5212 = vpack.c.b16 %v5170, %v5168
    %v5213 = vpack.c.b16 %v5171, %v5169
    %v5214 = vpack.c.b16 %v5174, %v5172
    %v5215 = vpack.c.b16 %v5175, %v5173
    %v5216 = vpack.c.b16 %v5178, %v5176
    %v5217 = vpack.c.b16 %v5179, %v5177
    %v5218 = vpack.c.b16 %v5182, %v5180
    %v5219 = vpack.c.b16 %v5183, %v5181
    %v5220 = vpack.c.b16 %v5186, %v5184
    %v5221 = vpack.c.b16 %v5187, %v5185
    %v5222 = vpack.c.b16 %v5190, %v5188
    %v5223 = vpack.c.b16 %v5191, %v5189
    %5256 = vmatprep.subr.bf16.mxu0 %v5207
    %5257 = vmatpush1.bf16.msra.mxu0 %v5206
    %5258 = vmatprep.subr.bf16.mxu0 %v5205
    %5259 = vmatpush1.bf16.msra.mxu0 %v5204
    %5260 = vmatprep.subr.bf16.mxu0 %v5203
    %5261 = vmatpush1.bf16.msra.mxu0 %v5202
    %5262 = vmatprep.subr.bf16.mxu0 %v5201
    %5263 = vmatpush1.bf16.msra.mxu0 %v5200
    %5264 = vmatprep.subr.bf16.mxu0 %v5199
    %5265 = vmatpush1.bf16.msra.mxu0 %v5198
    %5266 = vmatprep.subr.bf16.mxu0 %v5197
    %5267 = vmatpush1.bf16.msra.mxu0 %v5196
    %5268 = vmatprep.subr.bf16.mxu0 %v5195
    %5269 = vmatpush1.bf16.msra.mxu0 %v5194
    %5270 = vmatprep.subr.bf16.mxu0 %v5193
    %5271 = vmatpush1.bf16.msra.mxu0 %v5192
    %5272 = vmatprep.subr.bf16.mxu0 %v5223
    %5273 = vmatpush2.bf16.msra.mxu0 %v5222
    %5274 = vmatprep.subr.bf16.mxu0 %v5221
    %5275 = vmatpush2.bf16.msra.mxu0 %v5220
    %5276 = vmatprep.subr.bf16.mxu0 %v5219
    %5277 = vmatpush2.bf16.msra.mxu0 %v5218
    %5278 = vmatprep.subr.bf16.mxu0 %v5217
    %5279 = vmatpush2.bf16.msra.mxu0 %v5216
    %5280 = vmatprep.subr.bf16.mxu0 %v5215
    %5281 = vmatpush2.bf16.msra.mxu0 %v5214
    %5282 = vmatprep.subr.bf16.mxu0 %v5213
    %5283 = vmatpush2.bf16.msra.mxu0 %v5212
    %5284 = vmatprep.subr.bf16.mxu0 %v5211
    %5285 = vmatpush2.bf16.msra.mxu0 %v5210
    %5286 = vmatprep.subr.bf16.mxu0 %v5209
    %5287 = vmatpush2.bf16.msra.mxu0 %v5208
    %5288 = vmatprep.mubr.bf16.mxu0 %v5093
    %5289 = vmatmul.mubr.bf16.gmra.mxu0 %v5076
    %v5290 = vpop.f32.mrf.mxu0
    %v5291 = vadd.f32 0.0, %v5290
    %v5292 = vpop.f32.mrf.mxu0
    %v5293 = vadd.f32 0.0, %v5292
    %v5294 = vpop.f32.mrf.mxu0
    %v5295 = vadd.f32 0.0, %v5294
    %v5296 = vpop.f32.mrf.mxu0
    %v5297 = vadd.f32 0.0, %v5296
    %5298 = vdwg.mxu0
    %v5300 = vunpack.c.l.b16 %v4979
    %v5301 = vunpack.c.h.b16 %v4979
    %v5302 = vpack.c.b16 %v5052, %v5300
    %v5303 = vpack.c.b16 %v5053, %v5301
    %vm5304 = vcmask 1044480
    %v5305 = vrot.slane %v5302, 3
    %v5306 = vrot.slane %v5058, 3
    %v5307 = vsel %vm5304, %v5305, %v5306
    %v5308 = vrot.slane %v5303, 3
    %v5309 = vrot.slane %v5059, 3
    %v5310 = vsel %vm5304, %v5308, %v5309
    %v5345 = vunpack.c.l.b16 %v4982
    %v5346 = vunpack.c.h.b16 %v4982
    %v5347 = vunpack.c.l.b16 %v4983
    %v5348 = vunpack.c.h.b16 %v4983
    %v5349 = vunpack.c.l.b16 %v4984
    %v5350 = vunpack.c.h.b16 %v4984
    %v5351 = vunpack.c.l.b16 %v4985
    %v5352 = vunpack.c.h.b16 %v4985
    %v5353 = vunpack.c.l.b16 %v4986
    %v5354 = vunpack.c.h.b16 %v4986
    %v5355 = vunpack.c.l.b16 %v4987
    %v5356 = vunpack.c.h.b16 %v4987
    %v5357 = vunpack.c.l.b16 %v4988
    %v5358 = vunpack.c.h.b16 %v4988
    %v5359 = vunpack.c.l.b16 %v4989
    %v5360 = vunpack.c.h.b16 %v4989
    %v5361 = vunpack.c.l.b16 %v4990
    %v5362 = vunpack.c.h.b16 %v4990
    %v5363 = vunpack.c.l.b16 %v4991
    %v5364 = vunpack.c.h.b16 %v4991
    %v5365 = vunpack.c.l.b16 %v4992
    %v5366 = vunpack.c.h.b16 %v4992
    %v5367 = vunpack.c.l.b16 %v4993
    %v5368 = vunpack.c.h.b16 %v4993
    %v5369 = vunpack.c.l.b16 %v4994
    %v5370 = vunpack.c.h.b16 %v4994
    %v5371 = vunpack.c.l.b16 %v4995
    %v5372 = vunpack.c.h.b16 %v4995
    %v5373 = vunpack.c.l.b16 %v4996
    %v5374 = vunpack.c.h.b16 %v4996
    %v5375 = vunpack.c.l.b16 %v4997
    %v5376 = vunpack.c.h.b16 %v4997
    %v5377 = vunpack.c.l.b16 %v4998
    %v5378 = vunpack.c.h.b16 %v4998
    %v5379 = vunpack.c.l.b16 %v4999
    %v5380 = vunpack.c.h.b16 %v4999
    %v5381 = vunpack.c.l.b16 %v5000
    %v5382 = vunpack.c.h.b16 %v5000
    %v5383 = vunpack.c.l.b16 %v5001
    %v5384 = vunpack.c.h.b16 %v5001
    %v5385 = vunpack.c.l.b16 %v5002
    %v5386 = vunpack.c.h.b16 %v5002
    %v5387 = vunpack.c.l.b16 %v5003
    %v5388 = vunpack.c.h.b16 %v5003
    %v5389 = vunpack.c.l.b16 %v5004
    %v5390 = vunpack.c.h.b16 %v5004
    %v5391 = vunpack.c.l.b16 %v5005
    %v5392 = vunpack.c.h.b16 %v5005
    %v5393 = vunpack.c.l.b16 %v5006
    %v5394 = vunpack.c.h.b16 %v5006
    %v5395 = vunpack.c.l.b16 %v5007
    %v5396 = vunpack.c.h.b16 %v5007
    %v5397 = vunpack.c.l.b16 %v5008
    %v5398 = vunpack.c.h.b16 %v5008
    %v5399 = vunpack.c.l.b16 %v5009
    %v5400 = vunpack.c.h.b16 %v5009
    %v5401 = vunpack.c.l.b16 %v5010
    %v5402 = vunpack.c.h.b16 %v5010
    %v5403 = vunpack.c.l.b16 %v5011
    %v5404 = vunpack.c.h.b16 %v5011
    %v5405 = vunpack.c.l.b16 %v5012
    %v5406 = vunpack.c.h.b16 %v5012
    %v5407 = vunpack.c.l.b16 %v5013
    %v5408 = vunpack.c.h.b16 %v5013
    %v5409 = vpack.c.b16 %v5347, %v5345
    %v5410 = vpack.c.b16 %v5348, %v5346
    %v5411 = vpack.c.b16 %v5351, %v5349
    %v5412 = vpack.c.b16 %v5352, %v5350
    %v5413 = vpack.c.b16 %v5355, %v5353
    %v5414 = vpack.c.b16 %v5356, %v5354
    %v5415 = vpack.c.b16 %v5359, %v5357
    %v5416 = vpack.c.b16 %v5360, %v5358
    %v5417 = vpack.c.b16 %v5363, %v5361
    %v5418 = vpack.c.b16 %v5364, %v5362
    %v5419 = vpack.c.b16 %v5367, %v5365
    %v5420 = vpack.c.b16 %v5368, %v5366
    %v5421 = vpack.c.b16 %v5371, %v5369
    %v5422 = vpack.c.b16 %v5372, %v5370
    %v5423 = vpack.c.b16 %v5375, %v5373
    %v5424 = vpack.c.b16 %v5376, %v5374
    %v5425 = vpack.c.b16 %v5379, %v5377
    %v5426 = vpack.c.b16 %v5380, %v5378
    %v5427 = vpack.c.b16 %v5383, %v5381
    %v5428 = vpack.c.b16 %v5384, %v5382
    %v5429 = vpack.c.b16 %v5387, %v5385
    %v5430 = vpack.c.b16 %v5388, %v5386
    %v5431 = vpack.c.b16 %v5391, %v5389
    %v5432 = vpack.c.b16 %v5392, %v5390
    %v5433 = vpack.c.b16 %v5395, %v5393
    %v5434 = vpack.c.b16 %v5396, %v5394
    %v5435 = vpack.c.b16 %v5399, %v5397
    %v5436 = vpack.c.b16 %v5400, %v5398
    %v5437 = vpack.c.b16 %v5403, %v5401
    %v5438 = vpack.c.b16 %v5404, %v5402
    %v5439 = vpack.c.b16 %v5407, %v5405
    %v5440 = vpack.c.b16 %v5408, %v5406
    %5473 = vmatprep.subr.bf16.mxu0 %v5424
    %5474 = vmatpush1.bf16.msra.mxu0 %v5423
    %5475 = vmatprep.subr.bf16.mxu0 %v5422
    %5476 = vmatpush1.bf16.msra.mxu0 %v5421
    %5477 = vmatprep.subr.bf16.mxu0 %v5420
    %5478 = vmatpush1.bf16.msra.mxu0 %v5419
    %5479 = vmatprep.subr.bf16.mxu0 %v5418
    %5480 = vmatpush1.bf16.msra.mxu0 %v5417
    %5481 = vmatprep.subr.bf16.mxu0 %v5416
    %5482 = vmatpush1.bf16.msra.mxu0 %v5415
    %5483 = vmatprep.subr.bf16.mxu0 %v5414
    %5484 = vmatpush1.bf16.msra.mxu0 %v5413
    %5485 = vmatprep.subr.bf16.mxu0 %v5412
    %5486 = vmatpush1.bf16.msra.mxu0 %v5411
    %5487 = vmatprep.subr.bf16.mxu0 %v5410
    %5488 = vmatpush1.bf16.msra.mxu0 %v5409
    %5489 = vmatprep.subr.bf16.mxu0 %v5440
    %5490 = vmatpush2.bf16.msra.mxu0 %v5439
    %5491 = vmatprep.subr.bf16.mxu0 %v5438
    %5492 = vmatpush2.bf16.msra.mxu0 %v5437
    %5493 = vmatprep.subr.bf16.mxu0 %v5436
    %5494 = vmatpush2.bf16.msra.mxu0 %v5435
    %5495 = vmatprep.subr.bf16.mxu0 %v5434
    %5496 = vmatpush2.bf16.msra.mxu0 %v5433
    %5497 = vmatprep.subr.bf16.mxu0 %v5432
    %5498 = vmatpush2.bf16.msra.mxu0 %v5431
    %5499 = vmatprep.subr.bf16.mxu0 %v5430
    %5500 = vmatpush2.bf16.msra.mxu0 %v5429
    %5501 = vmatprep.subr.bf16.mxu0 %v5428
    %5502 = vmatpush2.bf16.msra.mxu0 %v5427
    %5503 = vmatprep.subr.bf16.mxu0 %v5426
    %5504 = vmatpush2.bf16.msra.mxu0 %v5425
    %5505 = vmatprep.mubr.bf16.mxu0 %v5310
    %5506 = vmatmul.mubr.bf16.gmra.mxu0 %v5307
    %v5507 = vpop.f32.mrf.mxu0
    %v5508 = vadd.f32 %v5291, %v5507
    %v5509 = vpop.f32.mrf.mxu0
    %v5510 = vadd.f32 %v5293, %v5509
    %v5511 = vpop.f32.mrf.mxu0
    %v5512 = vadd.f32 %v5295, %v5511
    %v5513 = vpop.f32.mrf.mxu0
    %v5514 = vadd.f32 %v5297, %v5513
    %5515 = vdwg.mxu0
    %v5516 = vld [vmem:[#allocation4 + $0x20] sm:$0x33]
    %v5517 = vld [vmem:[%s4416] sm:$0xff]
    %v5518 = vld [vmem:[%s4416 + $0x8] sm:$0xff]
    %v5519 = vld [vmem:[%s4416 + $0x10] sm:$0xff]
    %v5520 = vld [vmem:[%s4416 + $0x18] sm:$0xff]
    %v5521 = vld [vmem:[%s4416 + $0x20] sm:$0xff]
    %v5522 = vld [vmem:[%s4416 + $0x28] sm:$0xff]
    %v5523 = vld [vmem:[%s4416 + $0x30] sm:$0xff]
    %v5524 = vld [vmem:[%s4416 + $0x38] sm:$0xff]
    %v5525 = vld [vmem:[%s4416 + $0x40] sm:$0xff]
    %v5526 = vld [vmem:[%s4416 + $0x48] sm:$0xff]
    %v5527 = vld [vmem:[%s4416 + $0x50] sm:$0xff]
    %v5528 = vld [vmem:[%s4416 + $0x58] sm:$0xff]
    %v5529 = vld [vmem:[%s4416 + $0x60] sm:$0xff]
    %v5530 = vld [vmem:[%s4416 + $0x68] sm:$0xff]
    %v5531 = vld [vmem:[%s4416 + $0x70] sm:$0xff]
    %v5532 = vld [vmem:[%s4416 + $0x78] sm:$0xff]
    %v5533 = vld [vmem:[%s4416 + $0x80] sm:$0xff]
    %v5534 = vld [vmem:[%s4416 + $0x88] sm:$0xff]
    %v5535 = vld [vmem:[%s4416 + $0x90] sm:$0xff]
    %v5536 = vld [vmem:[%s4416 + $0x98] sm:$0xff]
    %v5537 = vld [vmem:[%s4416 + $0xa0] sm:$0xff]
    %v5538 = vld [vmem:[%s4416 + $0xa8] sm:$0xff]
    %v5539 = vld [vmem:[%s4416 + $0xb0] sm:$0xff]
    %v5540 = vld [vmem:[%s4416 + $0xb8] sm:$0xff]
    %v5541 = vld [vmem:[%s4416 + $0xc0] sm:$0xff]
    %v5542 = vld [vmem:[%s4416 + $0xc8] sm:$0xff]
    %v5543 = vld [vmem:[%s4416 + $0xd0] sm:$0xff]
    %v5544 = vld [vmem:[%s4416 + $0xd8] sm:$0xff]
    %v5545 = vld [vmem:[%s4416 + $0xe0] sm:$0xff]
    %v5546 = vld [vmem:[%s4416 + $0xe8] sm:$0xff]
    %v5547 = vld [vmem:[%s4416 + $0xf0] sm:$0xff]
    %v5548 = vld [vmem:[%s4416 + $0xf8] sm:$0xff]
    %v5550 = vunpack.c.l.b16 %v5516
    %v5551 = vunpack.c.h.b16 %v5516
    %v5552 = vpack.c.b16 %v5550, %v5550
    %v5553 = vpack.c.b16 %v5551, %v5551
    %vm5554 = vcmask 1045504
    %v5555 = vrot.slane %v5056, 2
    %v5556 = vrot.slane %v5552, 2
    %v5557 = vsel %vm5554, %v5555, %v5556
    %v5558 = vrot.slane %v5057, 2
    %v5559 = vrot.slane %v5553, 2
    %v5560 = vsel %vm5554, %v5558, %v5559
    %v5595 = vunpack.c.l.b16 %v5517
    %v5596 = vunpack.c.h.b16 %v5517
    %v5597 = vunpack.c.l.b16 %v5518
    %v5598 = vunpack.c.h.b16 %v5518
    %v5599 = vunpack.c.l.b16 %v5519
    %v5600 = vunpack.c.h.b16 %v5519
    %v5601 = vunpack.c.l.b16 %v5520
    %v5602 = vunpack.c.h.b16 %v5520
    %v5603 = vunpack.c.l.b16 %v5521
    %v5604 = vunpack.c.h.b16 %v5521
    %v5605 = vunpack.c.l.b16 %v5522
    %v5606 = vunpack.c.h.b16 %v5522
    %v5607 = vunpack.c.l.b16 %v5523
    %v5608 = vunpack.c.h.b16 %v5523
    %v5609 = vunpack.c.l.b16 %v5524
    %v5610 = vunpack.c.h.b16 %v5524
    %v5611 = vunpack.c.l.b16 %v5525
    %v5612 = vunpack.c.h.b16 %v5525
    %v5613 = vunpack.c.l.b16 %v5526
    %v5614 = vunpack.c.h.b16 %v5526
    %v5615 = vunpack.c.l.b16 %v5527
    %v5616 = vunpack.c.h.b16 %v5527
    %v5617 = vunpack.c.l.b16 %v5528
    %v5618 = vunpack.c.h.b16 %v5528
    %v5619 = vunpack.c.l.b16 %v5529
    %v5620 = vunpack.c.h.b16 %v5529
    %v5621 = vunpack.c.l.b16 %v5530
    %v5622 = vunpack.c.h.b16 %v5530
    %v5623 = vunpack.c.l.b16 %v5531
    %v5624 = vunpack.c.h.b16 %v5531
    %v5625 = vunpack.c.l.b16 %v5532
    %v5626 = vunpack.c.h.b16 %v5532
    %v5627 = vunpack.c.l.b16 %v5533
    %v5628 = vunpack.c.h.b16 %v5533
    %v5629 = vunpack.c.l.b16 %v5534
    %v5630 = vunpack.c.h.b16 %v5534
    %v5631 = vunpack.c.l.b16 %v5535
    %v5632 = vunpack.c.h.b16 %v5535
    %v5633 = vunpack.c.l.b16 %v5536
    %v5634 = vunpack.c.h.b16 %v5536
    %v5635 = vunpack.c.l.b16 %v5537
    %v5636 = vunpack.c.h.b16 %v5537
    %v5637 = vunpack.c.l.b16 %v5538
    %v5638 = vunpack.c.h.b16 %v5538
    %v5639 = vunpack.c.l.b16 %v5539
    %v5640 = vunpack.c.h.b16 %v5539
    %v5641 = vunpack.c.l.b16 %v5540
    %v5642 = vunpack.c.h.b16 %v5540
    %v5643 = vunpack.c.l.b16 %v5541
    %v5644 = vunpack.c.h.b16 %v5541
    %v5645 = vunpack.c.l.b16 %v5542
    %v5646 = vunpack.c.h.b16 %v5542
    %v5647 = vunpack.c.l.b16 %v5543
    %v5648 = vunpack.c.h.b16 %v5543
    %v5649 = vunpack.c.l.b16 %v5544
    %v5650 = vunpack.c.h.b16 %v5544
    %v5651 = vunpack.c.l.b16 %v5545
    %v5652 = vunpack.c.h.b16 %v5545
    %v5653 = vunpack.c.l.b16 %v5546
    %v5654 = vunpack.c.h.b16 %v5546
    %v5655 = vunpack.c.l.b16 %v5547
    %v5656 = vunpack.c.h.b16 %v5547
    %v5657 = vunpack.c.l.b16 %v5548
    %v5658 = vunpack.c.h.b16 %v5548
    %v5659 = vpack.c.b16 %v5597, %v5595
    %v5660 = vpack.c.b16 %v5598, %v5596
    %v5661 = vpack.c.b16 %v5601, %v5599
    %v5662 = vpack.c.b16 %v5602, %v5600
    %v5663 = vpack.c.b16 %v5605, %v5603
    %v5664 = vpack.c.b16 %v5606, %v5604
    %v5665 = vpack.c.b16 %v5609, %v5607
    %v5666 = vpack.c.b16 %v5610, %v5608
    %v5667 = vpack.c.b16 %v5613, %v5611
    %v5668 = vpack.c.b16 %v5614, %v5612
    %v5669 = vpack.c.b16 %v5617, %v5615
    %v5670 = vpack.c.b16 %v5618, %v5616
    %v5671 = vpack.c.b16 %v5621, %v5619
    %v5672 = vpack.c.b16 %v5622, %v5620
    %v5673 = vpack.c.b16 %v5625, %v5623
    %v5674 = vpack.c.b16 %v5626, %v5624
    %v5675 = vpack.c.b16 %v5629, %v5627
    %v5676 = vpack.c.b16 %v5630, %v5628
    %v5677 = vpack.c.b16 %v5633, %v5631
    %v5678 = vpack.c.b16 %v5634, %v5632
    %v5679 = vpack.c.b16 %v5637, %v5635
    %v5680 = vpack.c.b16 %v5638, %v5636
    %v5681 = vpack.c.b16 %v5641, %v5639
    %v5682 = vpack.c.b16 %v5642, %v5640
    %v5683 = vpack.c.b16 %v5645, %v5643
    %v5684 = vpack.c.b16 %v5646, %v5644
    %v5685 = vpack.c.b16 %v5649, %v5647
    %v5686 = vpack.c.b16 %v5650, %v5648
    %v5687 = vpack.c.b16 %v5653, %v5651
    %v5688 = vpack.c.b16 %v5654, %v5652
    %v5689 = vpack.c.b16 %v5657, %v5655
    %v5690 = vpack.c.b16 %v5658, %v5656
    %5723 = vmatprep.subr.bf16.mxu0 %v5674
    %5724 = vmatpush1.bf16.msra.mxu0 %v5673
    %5725 = vmatprep.subr.bf16.mxu0 %v5672
    %5726 = vmatpush1.bf16.msra.mxu0 %v5671
    %5727 = vmatprep.subr.bf16.mxu0 %v5670
    %5728 = vmatpush1.bf16.msra.mxu0 %v5669
    %5729 = vmatprep.subr.bf16.mxu0 %v5668
    %5730 = vmatpush1.bf16.msra.mxu0 %v5667
    %5731 = vmatprep.subr.bf16.mxu0 %v5666
    %5732 = vmatpush1.bf16.msra.mxu0 %v5665
    %5733 = vmatprep.subr.bf16.mxu0 %v5664
    %5734 = vmatpush1.bf16.msra.mxu0 %v5663
    %5735 = vmatprep.subr.bf16.mxu0 %v5662
    %5736 = vmatpush1.bf16.msra.mxu0 %v5661
    %5737 = vmatprep.subr.bf16.mxu0 %v5660
    %5738 = vmatpush1.bf16.msra.mxu0 %v5659
    %5739 = vmatprep.subr.bf16.mxu0 %v5690
    %5740 = vmatpush2.bf16.msra.mxu0 %v5689
    %5741 = vmatprep.subr.bf16.mxu0 %v5688
    %5742 = vmatpush2.bf16.msra.mxu0 %v5687
    %5743 = vmatprep.subr.bf16.mxu0 %v5686
    %5744 = vmatpush2.bf16.msra.mxu0 %v5685
    %5745 = vmatprep.subr.bf16.mxu0 %v5684
    %5746 = vmatpush2.bf16.msra.mxu0 %v5683
    %5747 = vmatprep.subr.bf16.mxu0 %v5682
    %5748 = vmatpush2.bf16.msra.mxu0 %v5681
    %5749 = vmatprep.subr.bf16.mxu0 %v5680
    %5750 = vmatpush2.bf16.msra.mxu0 %v5679
    %5751 = vmatprep.subr.bf16.mxu0 %v5678
    %5752 = vmatpush2.bf16.msra.mxu0 %v5677
    %5753 = vmatprep.subr.bf16.mxu0 %v5676
    %5754 = vmatpush2.bf16.msra.mxu0 %v5675
    %5755 = vmatprep.mubr.bf16.mxu0 %v5560
    %5756 = vmatmul.mubr.bf16.gmra.mxu0 %v5557
    %v5757 = vpop.f32.mrf.mxu0
    %v5758 = vadd.f32 0.0, %v5757
    %v5759 = vpop.f32.mrf.mxu0
    %v5760 = vadd.f32 0.0, %v5759
    %v5761 = vpop.f32.mrf.mxu0
    %v5762 = vadd.f32 0.0, %v5761
    %v5763 = vpop.f32.mrf.mxu0
    %v5764 = vadd.f32 0.0, %v5763
    %5765 = vdwg.mxu0
    %v5766 = vadd.f32 %v5508, %v5758
    %v5767 = vadd.f32 %v5510, %v5760
    %v5768 = vadd.f32 %v5512, %v5762
    %v5769 = vadd.f32 %v5514, %v5764
    %v5770 = vld [vmem:[#allocation4 + $0x10] sm:$0xee]
    %v5771 = vld [vmem:[%s4689] sm:$0xff]
    %v5772 = vld [vmem:[%s4689 + $0x8] sm:$0xff]
    %v5773 = vld [vmem:[%s4689 + $0x10] sm:$0xff]
    %v5774 = vld [vmem:[%s4689 + $0x18] sm:$0xff]
    %v5775 = vld [vmem:[%s4689 + $0x20] sm:$0xff]
    %v5776 = vld [vmem:[%s4689 + $0x28] sm:$0xff]
    %v5777 = vld [vmem:[%s4689 + $0x30] sm:$0xff]
    %v5778 = vld [vmem:[%s4689 + $0x38] sm:$0xff]
    %v5779 = vld [vmem:[%s4689 + $0x40] sm:$0xff]
    %v5780 = vld [vmem:[%s4689 + $0x48] sm:$0xff]
    %v5781 = vld [vmem:[%s4689 + $0x50] sm:$0xff]
    %v5782 = vld [vmem:[%s4689 + $0x58] sm:$0xff]
    %v5783 = vld [vmem:[%s4689 + $0x60] sm:$0xff]
    %v5784 = vld [vmem:[%s4689 + $0x68] sm:$0xff]
    %v5785 = vld [vmem:[%s4689 + $0x70] sm:$0xff]
    %v5786 = vld [vmem:[%s4689 + $0x78] sm:$0xff]
    %v5787 = vld [vmem:[%s4689 + $0x80] sm:$0xff]
    %v5788 = vld [vmem:[%s4689 + $0x88] sm:$0xff]
    %v5789 = vld [vmem:[%s4689 + $0x90] sm:$0xff]
    %v5790 = vld [vmem:[%s4689 + $0x98] sm:$0xff]
    %v5791 = vld [vmem:[%s4689 + $0xa0] sm:$0xff]
    %v5792 = vld [vmem:[%s4689 + $0xa8] sm:$0xff]
    %v5793 = vld [vmem:[%s4689 + $0xb0] sm:$0xff]
    %v5794 = vld [vmem:[%s4689 + $0xb8] sm:$0xff]
    %v5795 = vld [vmem:[%s4689 + $0xc0] sm:$0xff]
    %v5796 = vld [vmem:[%s4689 + $0xc8] sm:$0xff]
    %v5797 = vld [vmem:[%s4689 + $0xd0] sm:$0xff]
    %v5798 = vld [vmem:[%s4689 + $0xd8] sm:$0xff]
    %v5799 = vld [vmem:[%s4689 + $0xe0] sm:$0xff]
    %v5800 = vld [vmem:[%s4689 + $0xe8] sm:$0xff]
    %v5801 = vld [vmem:[%s4689 + $0xf0] sm:$0xff]
    %v5802 = vld [vmem:[%s4689 + $0xf8] sm:$0xff]
    %v5804 = vunpack.c.l.b16 %v5770
    %v5805 = vunpack.c.h.b16 %v5770
    %v5806 = vpack.c.b16 %v5052, %v5804
    %v5807 = vpack.c.b16 %v5053, %v5805
    %v5809 = vshrl.u32 %v5806, 16
    %v5811 = vrot.slane %v5809, 1
    %v5812 = vshll.u32 %v5806, 16
    %v5814 = vrot.slane %v5812, 2
    %v5815 = vor.u32 %v5811, %v5814
    %v5817 = vshrl.u32 %v5552, 16
    %v5819 = vrot.slane %v5817, 1
    %v5820 = vshll.u32 %v5552, 16
    %v5822 = vrot.slane %v5820, 2
    %v5823 = vor.u32 %v5819, %v5822
    %v5824 = vsel %vm842, %v5815, %v5823
    %v5826 = vshrl.u32 %v5807, 16
    %v5828 = vrot.slane %v5826, 1
    %v5829 = vshll.u32 %v5807, 16
    %v5831 = vrot.slane %v5829, 2
    %v5832 = vor.u32 %v5828, %v5831
    %v5834 = vshrl.u32 %v5553, 16
    %v5836 = vrot.slane %v5834, 1
    %v5837 = vshll.u32 %v5553, 16
    %v5839 = vrot.slane %v5837, 2
    %v5840 = vor.u32 %v5836, %v5839
    %v5841 = vsel %vm842, %v5832, %v5840
    %v5876 = vunpack.c.l.b16 %v5771
    %v5877 = vunpack.c.h.b16 %v5771
    %v5878 = vunpack.c.l.b16 %v5772
    %v5879 = vunpack.c.h.b16 %v5772
    %v5880 = vunpack.c.l.b16 %v5773
    %v5881 = vunpack.c.h.b16 %v5773
    %v5882 = vunpack.c.l.b16 %v5774
    %v5883 = vunpack.c.h.b16 %v5774
    %v5884 = vunpack.c.l.b16 %v5775
    %v5885 = vunpack.c.h.b16 %v5775
    %v5886 = vunpack.c.l.b16 %v5776
    %v5887 = vunpack.c.h.b16 %v5776
    %v5888 = vunpack.c.l.b16 %v5777
    %v5889 = vunpack.c.h.b16 %v5777
    %v5890 = vunpack.c.l.b16 %v5778
    %v5891 = vunpack.c.h.b16 %v5778
    %v5892 = vunpack.c.l.b16 %v5779
    %v5893 = vunpack.c.h.b16 %v5779
    %v5894 = vunpack.c.l.b16 %v5780
    %v5895 = vunpack.c.h.b16 %v5780
    %v5896 = vunpack.c.l.b16 %v5781
    %v5897 = vunpack.c.h.b16 %v5781
    %v5898 = vunpack.c.l.b16 %v5782
    %v5899 = vunpack.c.h.b16 %v5782
    %v5900 = vunpack.c.l.b16 %v5783
    %v5901 = vunpack.c.h.b16 %v5783
    %v5902 = vunpack.c.l.b16 %v5784
    %v5903 = vunpack.c.h.b16 %v5784
    %v5904 = vunpack.c.l.b16 %v5785
    %v5905 = vunpack.c.h.b16 %v5785
    %v5906 = vunpack.c.l.b16 %v5786
    %v5907 = vunpack.c.h.b16 %v5786
    %v5908 = vunpack.c.l.b16 %v5787
    %v5909 = vunpack.c.h.b16 %v5787
    %v5910 = vunpack.c.l.b16 %v5788
    %v5911 = vunpack.c.h.b16 %v5788
    %v5912 = vunpack.c.l.b16 %v5789
    %v5913 = vunpack.c.h.b16 %v5789
    %v5914 = vunpack.c.l.b16 %v5790
    %v5915 = vunpack.c.h.b16 %v5790
    %v5916 = vunpack.c.l.b16 %v5791
    %v5917 = vunpack.c.h.b16 %v5791
    %v5918 = vunpack.c.l.b16 %v5792
    %v5919 = vunpack.c.h.b16 %v5792
    %v5920 = vunpack.c.l.b16 %v5793
    %v5921 = vunpack.c.h.b16 %v5793
    %v5922 = vunpack.c.l.b16 %v5794
    %v5923 = vunpack.c.h.b16 %v5794
    %v5924 = vunpack.c.l.b16 %v5795
    %v5925 = vunpack.c.h.b16 %v5795
    %v5926 = vunpack.c.l.b16 %v5796
    %v5927 = vunpack.c.h.b16 %v5796
    %v5928 = vunpack.c.l.b16 %v5797
    %v5929 = vunpack.c.h.b16 %v5797
    %v5930 = vunpack.c.l.b16 %v5798
    %v5931 = vunpack.c.h.b16 %v5798
    %v5932 = vunpack.c.l.b16 %v5799
    %v5933 = vunpack.c.h.b16 %v5799
    %v5934 = vunpack.c.l.b16 %v5800
    %v5935 = vunpack.c.h.b16 %v5800
    %v5936 = vunpack.c.l.b16 %v5801
    %v5937 = vunpack.c.h.b16 %v5801
    %v5938 = vunpack.c.l.b16 %v5802
    %v5939 = vunpack.c.h.b16 %v5802
    %v5940 = vpack.c.b16 %v5878, %v5876
    %v5941 = vpack.c.b16 %v5879, %v5877
    %v5942 = vpack.c.b16 %v5882, %v5880
    %v5943 = vpack.c.b16 %v5883, %v5881
    %v5944 = vpack.c.b16 %v5886, %v5884
    %v5945 = vpack.c.b16 %v5887, %v5885
    %v5946 = vpack.c.b16 %v5890, %v5888
    %v5947 = vpack.c.b16 %v5891, %v5889
    %v5948 = vpack.c.b16 %v5894, %v5892
    %v5949 = vpack.c.b16 %v5895, %v5893
    %v5950 = vpack.c.b16 %v5898, %v5896
    %v5951 = vpack.c.b16 %v5899, %v5897
    %v5952 = vpack.c.b16 %v5902, %v5900
    %v5953 = vpack.c.b16 %v5903, %v5901
    %v5954 = vpack.c.b16 %v5906, %v5904
    %v5955 = vpack.c.b16 %v5907, %v5905
    %v5956 = vpack.c.b16 %v5910, %v5908
    %v5957 = vpack.c.b16 %v5911, %v5909
    %v5958 = vpack.c.b16 %v5914, %v5912
    %v5959 = vpack.c.b16 %v5915, %v5913
    %v5960 = vpack.c.b16 %v5918, %v5916
    %v5961 = vpack.c.b16 %v5919, %v5917
    %v5962 = vpack.c.b16 %v5922, %v5920
    %v5963 = vpack.c.b16 %v5923, %v5921
    %v5964 = vpack.c.b16 %v5926, %v5924
    %v5965 = vpack.c.b16 %v5927, %v5925
    %v5966 = vpack.c.b16 %v5930, %v5928
    %v5967 = vpack.c.b16 %v5931, %v5929
    %v5968 = vpack.c.b16 %v5934, %v5932
    %v5969 = vpack.c.b16 %v5935, %v5933
    %v5970 = vpack.c.b16 %v5938, %v5936
    %v5971 = vpack.c.b16 %v5939, %v5937
    %6004 = vmatprep.subr.bf16.mxu0 %v5955
    %6005 = vmatpush1.bf16.msra.mxu0 %v5954
    %6006 = vmatprep.subr.bf16.mxu0 %v5953
    %6007 = vmatpush1.bf16.msra.mxu0 %v5952
    %6008 = vmatprep.subr.bf16.mxu0 %v5951
    %6009 = vmatpush1.bf16.msra.mxu0 %v5950
    %6010 = vmatprep.subr.bf16.mxu0 %v5949
    %6011 = vmatpush1.bf16.msra.mxu0 %v5948
    %6012 = vmatprep.subr.bf16.mxu0 %v5947
    %6013 = vmatpush1.bf16.msra.mxu0 %v5946
    %6014 = vmatprep.subr.bf16.mxu0 %v5945
    %6015 = vmatpush1.bf16.msra.mxu0 %v5944
    %6016 = vmatprep.subr.bf16.mxu0 %v5943
    %6017 = vmatpush1.bf16.msra.mxu0 %v5942
    %6018 = vmatprep.subr.bf16.mxu0 %v5941
    %6019 = vmatpush1.bf16.msra.mxu0 %v5940
    %6020 = vmatprep.subr.bf16.mxu0 %v5971
    %6021 = vmatpush2.bf16.msra.mxu0 %v5970
    %6022 = vmatprep.subr.bf16.mxu0 %v5969
    %6023 = vmatpush2.bf16.msra.mxu0 %v5968
    %6024 = vmatprep.subr.bf16.mxu0 %v5967
    %6025 = vmatpush2.bf16.msra.mxu0 %v5966
    %6026 = vmatprep.subr.bf16.mxu0 %v5965
    %6027 = vmatpush2.bf16.msra.mxu0 %v5964
    %6028 = vmatprep.subr.bf16.mxu0 %v5963
    %6029 = vmatpush2.bf16.msra.mxu0 %v5962
    %6030 = vmatprep.subr.bf16.mxu0 %v5961
    %6031 = vmatpush2.bf16.msra.mxu0 %v5960
    %6032 = vmatprep.subr.bf16.mxu0 %v5959
    %6033 = vmatpush2.bf16.msra.mxu0 %v5958
    %6034 = vmatprep.subr.bf16.mxu0 %v5957
    %6035 = vmatpush2.bf16.msra.mxu0 %v5956
    %6036 = vmatprep.mubr.bf16.mxu0 %v5841
    %6037 = vmatmul.mubr.bf16.gmra.mxu0 %v5824
    %v6038 = vpop.f32.mrf.mxu0
    %v6039 = vadd.f32 0.0, %v6038
    %v6040 = vpop.f32.mrf.mxu0
    %v6041 = vadd.f32 0.0, %v6040
    %v6042 = vpop.f32.mrf.mxu0
    %v6043 = vadd.f32 0.0, %v6042
    %v6044 = vpop.f32.mrf.mxu0
    %v6045 = vadd.f32 0.0, %v6044
    %6046 = vdwg.mxu0
    %v6047 = vadd.f32 %v5766, %v6039
    %v6048 = vadd.f32 %v5767, %v6041
    %v6049 = vadd.f32 %v5768, %v6043
    %v6050 = vadd.f32 %v5769, %v6045
    %6051 = vst [vmem:[#allocation2 + $0x20] sm:$0xff] %v6047
    %6052 = vst [vmem:[#allocation2 + $0x28] sm:$0xff] %v6048
    %6053 = vst [vmem:[#allocation2 + $0x30] sm:$0xff] %v6049
    %6054 = vst [vmem:[#allocation2 + $0x38] sm:$0xff] %v6050
    %v6055 = vadd.f32 %v6047, %v6049
    %v6056 = vrot.slane %v6055, 4
    %v6057 = vadd.f32 %v6055, %v6056
    %v6058 = vrot.slane %v6057, 2
    %v6059 = vadd.f32 %v6057, %v6058
    %v6060 = vrot.slane %v6059, 1
    %v6061 = vadd.f32 %v6059, %v6060
    %v6062 = vadd.f32 %v6048, %v6050
    %v6063 = vrot.slane %v6062, 4
    %v6064 = vadd.f32 %v6062, %v6063
    %v6065 = vrot.slane %v6064, 2
    %v6066 = vadd.f32 %v6064, %v6065
    %v6067 = vrot.slane %v6066, 1
    %v6068 = vadd.f32 %v6066, %v6067
    %v6069 = vadd.f32 %v4957, %v6061
    %v6070 = vadd.f32 %v4958, %v6068
    %v6071 = vmul.f32 %v6047, %v6047
    %v6072 = vmul.f32 %v6048, %v6048
    %v6073 = vmul.f32 %v6049, %v6049
    %v6074 = vmul.f32 %v6050, %v6050
    %v6075 = vadd.f32 %v6071, %v6073
    %v6076 = vrot.slane %v6075, 4
    %v6077 = vadd.f32 %v6075, %v6076
    %v6078 = vrot.slane %v6077, 2
    %v6079 = vadd.f32 %v6077, %v6078
    %v6080 = vrot.slane %v6079, 1
    %v6081 = vadd.f32 %v6079, %v6080
    %v6082 = vadd.f32 %v6072, %v6074
    %v6083 = vrot.slane %v6082, 4
    %v6084 = vadd.f32 %v6082, %v6083
    %v6085 = vrot.slane %v6084, 2
    %v6086 = vadd.f32 %v6084, %v6085
    %v6087 = vrot.slane %v6086, 1
    %v6088 = vadd.f32 %v6086, %v6087
    %v6089 = vadd.f32 %v4977, %v6081
    %v6090 = vadd.f32 %v4978, %v6088
    %s6091 = scalar_lea.vmem [#allocation10], 1024
    %v6092 = vld [vmem:[%s6091] sm:$0xff]
    %v6093 = vld [vmem:[%s6091 + $0x8] sm:$0xff]
    %v6094 = vld [vmem:[%s6091 + $0x10] sm:$0xff]
    %v6095 = vld [vmem:[%s6091 + $0x18] sm:$0xff]
    %v6096 = vld [vmem:[%s6091 + $0x20] sm:$0xff]
    %v6097 = vld [vmem:[%s6091 + $0x28] sm:$0xff]
    %v6098 = vld [vmem:[%s6091 + $0x30] sm:$0xff]
    %v6099 = vld [vmem:[%s6091 + $0x38] sm:$0xff]
    %v6100 = vld [vmem:[%s6091 + $0x40] sm:$0xff]
    %v6101 = vld [vmem:[%s6091 + $0x48] sm:$0xff]
    %v6102 = vld [vmem:[%s6091 + $0x50] sm:$0xff]
    %v6103 = vld [vmem:[%s6091 + $0x58] sm:$0xff]
    %v6104 = vld [vmem:[%s6091 + $0x60] sm:$0xff]
    %v6105 = vld [vmem:[%s6091 + $0x68] sm:$0xff]
    %v6106 = vld [vmem:[%s6091 + $0x70] sm:$0xff]
    %v6107 = vld [vmem:[%s6091 + $0x78] sm:$0xff]
    %v6108 = vld [vmem:[%s6091 + $0x80] sm:$0xff]
    %v6109 = vld [vmem:[%s6091 + $0x88] sm:$0xff]
    %v6110 = vld [vmem:[%s6091 + $0x90] sm:$0xff]
    %v6111 = vld [vmem:[%s6091 + $0x98] sm:$0xff]
    %v6112 = vld [vmem:[%s6091 + $0xa0] sm:$0xff]
    %v6113 = vld [vmem:[%s6091 + $0xa8] sm:$0xff]
    %v6114 = vld [vmem:[%s6091 + $0xb0] sm:$0xff]
    %v6115 = vld [vmem:[%s6091 + $0xb8] sm:$0xff]
    %v6116 = vld [vmem:[%s6091 + $0xc0] sm:$0xff]
    %v6117 = vld [vmem:[%s6091 + $0xc8] sm:$0xff]
    %v6118 = vld [vmem:[%s6091 + $0xd0] sm:$0xff]
    %v6119 = vld [vmem:[%s6091 + $0xd8] sm:$0xff]
    %v6120 = vld [vmem:[%s6091 + $0xe0] sm:$0xff]
    %v6121 = vld [vmem:[%s6091 + $0xe8] sm:$0xff]
    %v6122 = vld [vmem:[%s6091 + $0xf0] sm:$0xff]
    %v6123 = vld [vmem:[%s6091 + $0xf8] sm:$0xff]
    %v6124 = vld [vmem:[%s6091 + $0x100] sm:$0xff]
    %v6125 = vld [vmem:[%s6091 + $0x108] sm:$0xff]
    %v6126 = vld [vmem:[%s6091 + $0x110] sm:$0xff]
    %v6127 = vld [vmem:[%s6091 + $0x118] sm:$0xff]
    %v6128 = vld [vmem:[%s6091 + $0x120] sm:$0xff]
    %v6129 = vld [vmem:[%s6091 + $0x128] sm:$0xff]
    %v6130 = vld [vmem:[%s6091 + $0x130] sm:$0xff]
    %v6131 = vld [vmem:[%s6091 + $0x138] sm:$0xff]
    %v6132 = vld [vmem:[%s6091 + $0x140] sm:$0xff]
    %v6133 = vld [vmem:[%s6091 + $0x148] sm:$0xff]
    %v6134 = vld [vmem:[%s6091 + $0x150] sm:$0xff]
    %v6135 = vld [vmem:[%s6091 + $0x158] sm:$0xff]
    %v6136 = vld [vmem:[%s6091 + $0x160] sm:$0xff]
    %v6137 = vld [vmem:[%s6091 + $0x168] sm:$0xff]
    %v6138 = vld [vmem:[%s6091 + $0x170] sm:$0xff]
    %v6139 = vld [vmem:[%s6091 + $0x178] sm:$0xff]
    %v6140 = vld [vmem:[%s6091 + $0x180] sm:$0xff]
    %v6141 = vld [vmem:[%s6091 + $0x188] sm:$0xff]
    %v6142 = vld [vmem:[%s6091 + $0x190] sm:$0xff]
    %v6143 = vld [vmem:[%s6091 + $0x198] sm:$0xff]
    %v6144 = vld [vmem:[%s6091 + $0x1a0] sm:$0xff]
    %v6145 = vld [vmem:[%s6091 + $0x1a8] sm:$0xff]
    %v6146 = vld [vmem:[%s6091 + $0x1b0] sm:$0xff]
    %v6147 = vld [vmem:[%s6091 + $0x1b8] sm:$0xff]
    %v6148 = vld [vmem:[%s6091 + $0x1c0] sm:$0xff]
    %v6149 = vld [vmem:[%s6091 + $0x1c8] sm:$0xff]
    %v6150 = vld [vmem:[%s6091 + $0x1d0] sm:$0xff]
    %v6151 = vld [vmem:[%s6091 + $0x1d8] sm:$0xff]
    %v6152 = vld [vmem:[%s6091 + $0x1e0] sm:$0xff]
    %v6153 = vld [vmem:[%s6091 + $0x1e8] sm:$0xff]
    %v6154 = vld [vmem:[%s6091 + $0x1f0] sm:$0xff]
    %v6155 = vld [vmem:[%s6091 + $0x1f8] sm:$0xff]
    %6156 = vmatprep.subr.mxu0 %v6123
    %6157 = vmatpush1.msra.mxu0 %v6122
    %6158 = vmatprep.subr.mxu0 %v6121
    %6159 = vmatpush1.msra.mxu0 %v6120
    %6160 = vmatprep.subr.mxu0 %v6119
    %6161 = vmatpush1.msra.mxu0 %v6118
    %6162 = vmatprep.subr.mxu0 %v6117
    %6163 = vmatpush1.msra.mxu0 %v6116
    %6164 = vmatprep.subr.mxu0 %v6115
    %6165 = vmatpush1.msra.mxu0 %v6114
    %6166 = vmatprep.subr.mxu0 %v6113
    %6167 = vmatpush1.msra.mxu0 %v6112
    %6168 = vmatprep.subr.mxu0 %v6111
    %6169 = vmatpush1.msra.mxu0 %v6110
    %6170 = vmatprep.subr.mxu0 %v6109
    %6171 = vmatpush1.msra.mxu0 %v6108
    %6172 = vmatprep.subr.mxu0 %v6107
    %6173 = vmatpush1.msra.mxu0 %v6106
    %6174 = vmatprep.subr.mxu0 %v6105
    %6175 = vmatpush1.msra.mxu0 %v6104
    %6176 = vmatprep.subr.mxu0 %v6103
    %6177 = vmatpush1.msra.mxu0 %v6102
    %6178 = vmatprep.subr.mxu0 %v6101
    %6179 = vmatpush1.msra.mxu0 %v6100
    %6180 = vmatprep.subr.mxu0 %v6099
    %6181 = vmatpush1.msra.mxu0 %v6098
    %6182 = vmatprep.subr.mxu0 %v6097
    %6183 = vmatpush1.msra.mxu0 %v6096
    %6184 = vmatprep.subr.mxu0 %v6095
    %6185 = vmatpush1.msra.mxu0 %v6094
    %6186 = vmatprep.subr.mxu0 %v6093
    %6187 = vmatpush1.msra.mxu0 %v6092
    %6188 = vmatprep.subr.mxu0 %v6155
    %6189 = vmatpush2.msra.mxu0 %v6154
    %6190 = vmatprep.subr.mxu0 %v6153
    %6191 = vmatpush2.msra.mxu0 %v6152
    %6192 = vmatprep.subr.mxu0 %v6151
    %6193 = vmatpush2.msra.mxu0 %v6150
    %6194 = vmatprep.subr.mxu0 %v6149
    %6195 = vmatpush2.msra.mxu0 %v6148
    %6196 = vmatprep.subr.mxu0 %v6147
    %6197 = vmatpush2.msra.mxu0 %v6146
    %6198 = vmatprep.subr.mxu0 %v6145
    %6199 = vmatpush2.msra.mxu0 %v6144
    %6200 = vmatprep.subr.mxu0 %v6143
    %6201 = vmatpush2.msra.mxu0 %v6142
    %6202 = vmatprep.subr.mxu0 %v6141
    %6203 = vmatpush2.msra.mxu0 %v6140
    %6204 = vmatprep.subr.mxu0 %v6139
    %6205 = vmatpush2.msra.mxu0 %v6138
    %6206 = vmatprep.subr.mxu0 %v6137
    %6207 = vmatpush2.msra.mxu0 %v6136
    %6208 = vmatprep.subr.mxu0 %v6135
    %6209 = vmatpush2.msra.mxu0 %v6134
    %6210 = vmatprep.subr.mxu0 %v6133
    %6211 = vmatpush2.msra.mxu0 %v6132
    %6212 = vmatprep.subr.mxu0 %v6131
    %6213 = vmatpush2.msra.mxu0 %v6130
    %6214 = vmatprep.subr.mxu0 %v6129
    %6215 = vmatpush2.msra.mxu0 %v6128
    %6216 = vmatprep.subr.mxu0 %v6127
    %6217 = vmatpush2.msra.mxu0 %v6126
    %6218 = vmatprep.subr.mxu0 %v6125
    %6219 = vmatpush2.msra.mxu0 %v6124
    %6220 = vmatprep.mubr.f32.mxu0 %v6070
    %6221 = vmatmul.mubr.f32.gmra.mxu0 %v6069
    %v6222 = vpop.f32.mrf.mxu0
    %v6223 = vadd.f32 0.0, %v6222
    %v6224 = vpop.f32.mrf.mxu0
    %v6225 = vadd.f32 0.0, %v6224
    %6226 = vdwg.mxu0
    %v6227 = vmul.f32 %v6223, 0.001953125
    %v6228 = vmul.f32 %v6225, 0.001953125
    %6229 = vmatprep.subr.mxu0 %v6123
    %6230 = vmatpush1.msra.mxu0 %v6122
    %6231 = vmatprep.subr.mxu0 %v6121
    %6232 = vmatpush1.msra.mxu0 %v6120
    %6233 = vmatprep.subr.mxu0 %v6119
    %6234 = vmatpush1.msra.mxu0 %v6118
    %6235 = vmatprep.subr.mxu0 %v6117
    %6236 = vmatpush1.msra.mxu0 %v6116
    %6237 = vmatprep.subr.mxu0 %v6115
    %6238 = vmatpush1.msra.mxu0 %v6114
    %6239 = vmatprep.subr.mxu0 %v6113
    %6240 = vmatpush1.msra.mxu0 %v6112
    %6241 = vmatprep.subr.mxu0 %v6111
    %6242 = vmatpush1.msra.mxu0 %v6110
    %6243 = vmatprep.subr.mxu0 %v6109
    %6244 = vmatpush1.msra.mxu0 %v6108
    %6245 = vmatprep.subr.mxu0 %v6107
    %6246 = vmatpush1.msra.mxu0 %v6106
    %6247 = vmatprep.subr.mxu0 %v6105
    %6248 = vmatpush1.msra.mxu0 %v6104
    %6249 = vmatprep.subr.mxu0 %v6103
    %6250 = vmatpush1.msra.mxu0 %v6102
    %6251 = vmatprep.subr.mxu0 %v6101
    %6252 = vmatpush1.msra.mxu0 %v6100
    %6253 = vmatprep.subr.mxu0 %v6099
    %6254 = vmatpush1.msra.mxu0 %v6098
    %6255 = vmatprep.subr.mxu0 %v6097
    %6256 = vmatpush1.msra.mxu0 %v6096
    %6257 = vmatprep.subr.mxu0 %v6095
    %6258 = vmatpush1.msra.mxu0 %v6094
    %6259 = vmatprep.subr.mxu0 %v6093
    %6260 = vmatpush1.msra.mxu0 %v6092
    %6261 = vmatprep.subr.mxu0 %v6155
    %6262 = vmatpush2.msra.mxu0 %v6154
    %6263 = vmatprep.subr.mxu0 %v6153
    %6264 = vmatpush2.msra.mxu0 %v6152
    %6265 = vmatprep.subr.mxu0 %v6151
    %6266 = vmatpush2.msra.mxu0 %v6150
    %6267 = vmatprep.subr.mxu0 %v6149
    %6268 = vmatpush2.msra.mxu0 %v6148
    %6269 = vmatprep.subr.mxu0 %v6147
    %6270 = vmatpush2.msra.mxu0 %v6146
    %6271 = vmatprep.subr.mxu0 %v6145
    %6272 = vmatpush2.msra.mxu0 %v6144
    %6273 = vmatprep.subr.mxu0 %v6143
    %6274 = vmatpush2.msra.mxu0 %v6142
    %6275 = vmatprep.subr.mxu0 %v6141
    %6276 = vmatpush2.msra.mxu0 %v6140
    %6277 = vmatprep.subr.mxu0 %v6139
    %6278 = vmatpush2.msra.mxu0 %v6138
    %6279 = vmatprep.subr.mxu0 %v6137
    %6280 = vmatpush2.msra.mxu0 %v6136
    %6281 = vmatprep.subr.mxu0 %v6135
    %6282 = vmatpush2.msra.mxu0 %v6134
    %6283 = vmatprep.subr.mxu0 %v6133
    %6284 = vmatpush2.msra.mxu0 %v6132
    %6285 = vmatprep.subr.mxu0 %v6131
    %6286 = vmatpush2.msra.mxu0 %v6130
    %6287 = vmatprep.subr.mxu0 %v6129
    %6288 = vmatpush2.msra.mxu0 %v6128
    %6289 = vmatprep.subr.mxu0 %v6127
    %6290 = vmatpush2.msra.mxu0 %v6126
    %6291 = vmatprep.subr.mxu0 %v6125
    %6292 = vmatpush2.msra.mxu0 %v6124
    %6293 = vmatprep.mubr.f32.mxu0 %v6090
    %6294 = vmatmul.mubr.f32.gmra.mxu0 %v6089
    %v6295 = vpop.f32.mrf.mxu0
    %v6296 = vadd.f32 0.0, %v6295
    %v6297 = vpop.f32.mrf.mxu0
    %v6298 = vadd.f32 0.0, %v6297
    %6299 = vdwg.mxu0
    %v6300 = vmul.f32 %v6296, 0.001953125
    %v6301 = vmul.f32 %v6298, 0.001953125
    %v6302 = vmul.f32 %v6227, %v6227
    %v6303 = vmul.f32 %v6228, %v6228
    %v6304 = vsub.f32 %v6300, %v6302
    %v6305 = vsub.f32 %v6301, %v6303
    %s6306 = scalar_lea.vmem [#allocation11], 8
    %v6307 = vld [vmem:[%s6306] sm:$0xf]
    %v6308 = vadd.f32 %v6304, 1e-05
    %v6309 = vadd.f32 %v6305, 1e-05
    %v6310 = vrsqrt.pop %v6308
    %v6311 = vrsqrt.pop %v6309
    %v6314 = vcombine.low %v6310, %v6311
    %v6316 = vunpack.c.l.s4 1983009808
    %v6317 = vunpack.c.0.s8 %v6316
    %v6318 = vlaneseq
    %v6319 = vshrl.u32 %v6318, 7
    %v6320 = vsub.s32 %v6317, %v6319
    %v6321 = vrot.slane %v6314, %v6320
    %v6323 = vmul.f32 %v6307, %v6321
    %v6325 = vlaneseq
    %v6326 = vshrl.u32 %v6325, 7
    %v6327 = vsub.s32 0, %v6326
    %v6328 = vrot.slane %v6323, %v6327
    %v6329 = vlaneseq
    %v6330 = vshrl.u32 %v6329, 7
    %v6331 = vsub.s32 2, %v6330
    %v6332 = vrot.slane %v6323, %v6331
    %v6335 = vmul.f32 %v6227, %v6328
    %v6336 = vmul.f32 %v6228, %v6332
    %v6339 = vcombine.low %v6335, %v6336
    %v6341 = vunpack.c.l.s4 1983009808
    %v6342 = vunpack.c.0.s8 %v6341
    %v6343 = vlaneseq
    %v6344 = vshrl.u32 %v6343, 7
    %v6345 = vsub.s32 %v6342, %v6344
    %v6346 = vrot.slane %v6339, %v6345
    %v6347 = vrot.slane %v6346, 7
    %v6349 = vsub.f32 %v6307, %v6347
    %v6350 = vld [vmem:[#allocation2] ss:$8 sm:$0x3]
    %v6352 = vunpack.c.l.s4 1966171168
    %v6353 = vunpack.c.0.s8 %v6352
    %v6354 = vlaneseq
    %v6355 = vshrl.u32 %v6354, 7
    %v6356 = vsub.s32 %v6353, %v6355
    %v6357 = vrot.slane %v6323, %v6356
    %v6359 = vmul.f32 %v6350, %v6357
    %v6362 = vunpack.c.l.s4 1966171168
    %v6363 = vunpack.c.0.s8 %v6362
    %v6364 = vlaneseq
    %v6365 = vshrl.u32 %v6364, 7
    %v6366 = vsub.s32 %v6363, %v6365
    %v6367 = vrot.slane %v6349, %v6366
    %v6368 = vcombine.high %v6367, %v6367
    %v6370 = vadd.f32 %v6359, %v6368
    %v6371 = vmax.f32 %v6370, 0.0
    %v6373 = vlaneseq
    %v6374 = vshrl.u32 %v6373, 7
    %v6375 = vsub.s32 0, %v6374
    %v6376 = vrot.slane %v6371, %v6375
    %v6377 = vlaneseq
    %v6378 = vshrl.u32 %v6377, 7
    %v6379 = vsub.s32 1, %v6378
    %v6380 = vrot.slane %v6371, %v6379
    %v6383 = vpack.c.bf16 %v6376, %v6376
    %v6384 = vpack.c.bf16 %v6380, %v6380
    %v6387 = vunpack.c.l.b16 %v6383
    %v6388 = vunpack.c.l.b16 %v6384
    %v6389 = vpack.c.b16 %v6388, %v6387
    %v6390 = vrot.slane %v6389, 7
    %v6392 = vld [vmem:[#allocation5] sm:$0x22]
    %v6393 = vsel %vm809, %v6390, %v6392
    %6394 = vst [vmem:[#allocation5] sm:$0x22] %v6393
    %v6395 = vld [vmem:[%s917] ss:$8 sm:$0x3]
    %v6396 = vmul.f32 %v6395, %v6357
    %v6397 = vadd.f32 %v6396, %v6368
    %v6398 = vmax.f32 %v6397, 0.0
    %v6400 = vlaneseq
    %v6401 = vshrl.u32 %v6400, 7
    %v6402 = vsub.s32 0, %v6401
    %v6403 = vrot.slane %v6398, %v6402
    %v6404 = vlaneseq
    %v6405 = vshrl.u32 %v6404, 7
    %v6406 = vsub.s32 1, %v6405
    %v6407 = vrot.slane %v6398, %v6406
    %v6410 = vpack.c.bf16 %v6403, %v6403
    %v6411 = vpack.c.bf16 %v6407, %v6407
    %v6414 = vunpack.c.l.b16 %v6410
    %v6415 = vunpack.c.l.b16 %v6411
    %v6416 = vpack.c.b16 %v6415, %v6414
    %v6417 = vrot.slane %v6416, 6
    %v6419 = vld [vmem:[#allocation5] sm:$0x44]
    %v6420 = vsel %vm844, %v6417, %v6419
    %6421 = vst [vmem:[#allocation5] sm:$0x44] %v6420
    %v6422 = vld [vmem:[%s813] ss:$8 sm:$0x3]
    %v6423 = vmul.f32 %v6422, %v6357
    %v6424 = vadd.f32 %v6423, %v6368
    %v6425 = vmax.f32 %v6424, 0.0
    %v6427 = vlaneseq
    %v6428 = vshrl.u32 %v6427, 7
    %v6429 = vsub.s32 0, %v6428
    %v6430 = vrot.slane %v6425, %v6429
    %v6431 = vlaneseq
    %v6432 = vshrl.u32 %v6431, 7
    %v6433 = vsub.s32 1, %v6432
    %v6434 = vrot.slane %v6425, %v6433
    %v6437 = vpack.c.bf16 %v6430, %v6430
    %v6438 = vpack.c.bf16 %v6434, %v6434
    %v6441 = vunpack.c.l.b16 %v6437
    %v6442 = vunpack.c.l.b16 %v6438
    %v6443 = vpack.c.b16 %v6442, %v6441
    %v6444 = vrot.slane %v6443, 5
    %v6446 = vld [vmem:[#allocation5] sm:$0x88]
    %v6447 = vsel %vm879, %v6444, %v6446
    %6448 = vst [vmem:[#allocation5] sm:$0x88] %v6447
    %v6449 = vld [vmem:[%s953] ss:$8 sm:$0x3]
    %v6450 = vmul.f32 %v6449, %v6357
    %v6451 = vadd.f32 %v6450, %v6368
    %v6452 = vmax.f32 %v6451, 0.0
    %v6454 = vlaneseq
    %v6455 = vshrl.u32 %v6454, 7
    %v6456 = vsub.s32 0, %v6455
    %v6457 = vrot.slane %v6452, %v6456
    %v6458 = vlaneseq
    %v6459 = vshrl.u32 %v6458, 7
    %v6460 = vsub.s32 1, %v6459
    %v6461 = vrot.slane %v6452, %v6460
    %v6464 = vpack.c.bf16 %v6457, %v6457
    %v6465 = vpack.c.bf16 %v6461, %v6461
    %v6468 = vunpack.c.l.b16 %v6464
    %v6469 = vunpack.c.l.b16 %v6465
    %v6470 = vpack.c.b16 %v6469, %v6468
    %v6472 = vld [vmem:[#allocation5 + $0x8] sm:$0x11]
    %v6473 = vsel %vm913, %v6470, %v6472
    %6474 = vst [vmem:[#allocation5 + $0x8] sm:$0x11] %v6473
    %v6475 = vld [vmem:[%s848] ss:$8 sm:$0x3]
    %v6476 = vmul.f32 %v6475, %v6357
    %v6477 = vadd.f32 %v6476, %v6368
    %v6478 = vmax.f32 %v6477, 0.0
    %v6480 = vlaneseq
    %v6481 = vshrl.u32 %v6480, 7
    %v6482 = vsub.s32 0, %v6481
    %v6483 = vrot.slane %v6478, %v6482
    %v6484 = vlaneseq
    %v6485 = vshrl.u32 %v6484, 7
    %v6486 = vsub.s32 1, %v6485
    %v6487 = vrot.slane %v6478, %v6486
    %v6490 = vpack.c.bf16 %v6483, %v6483
    %v6491 = vpack.c.bf16 %v6487, %v6487
    %v6494 = vunpack.c.l.b16 %v6490
    %v6495 = vunpack.c.l.b16 %v6491
    %v6496 = vpack.c.b16 %v6495, %v6494
    %v6497 = vrot.slane %v6496, 7
    %v6499 = vld [vmem:[#allocation5 + $0x8] sm:$0x22]
    %v6500 = vsel %vm809, %v6497, %v6499
    %6501 = vst [vmem:[#allocation5 + $0x8] sm:$0x22] %v6500
    %v6502 = vld [vmem:[%s989] ss:$8 sm:$0x3]
    %v6503 = vmul.f32 %v6502, %v6357
    %v6504 = vadd.f32 %v6503, %v6368
    %v6505 = vmax.f32 %v6504, 0.0
    %v6507 = vlaneseq
    %v6508 = vshrl.u32 %v6507, 7
    %v6509 = vsub.s32 0, %v6508
    %v6510 = vrot.slane %v6505, %v6509
    %v6511 = vlaneseq
    %v6512 = vshrl.u32 %v6511, 7
    %v6513 = vsub.s32 1, %v6512
    %v6514 = vrot.slane %v6505, %v6513
    %v6517 = vpack.c.bf16 %v6510, %v6510
    %v6518 = vpack.c.bf16 %v6514, %v6514
    %v6521 = vunpack.c.l.b16 %v6517
    %v6522 = vunpack.c.l.b16 %v6518
    %v6523 = vpack.c.b16 %v6522, %v6521
    %v6524 = vrot.slane %v6523, 6
    %v6526 = vld [vmem:[#allocation5 + $0x8] sm:$0x44]
    %v6527 = vsel %vm844, %v6524, %v6526
    %6528 = vst [vmem:[#allocation5 + $0x8] sm:$0x44] %v6527
    %v6529 = vld [vmem:[%s883] ss:$8 sm:$0x3]
    %v6530 = vmul.f32 %v6529, %v6357
    %v6531 = vadd.f32 %v6530, %v6368
    %v6532 = vmax.f32 %v6531, 0.0
    %v6534 = vlaneseq
    %v6535 = vshrl.u32 %v6534, 7
    %v6536 = vsub.s32 0, %v6535
    %v6537 = vrot.slane %v6532, %v6536
    %v6538 = vlaneseq
    %v6539 = vshrl.u32 %v6538, 7
    %v6540 = vsub.s32 1, %v6539
    %v6541 = vrot.slane %v6532, %v6540
    %v6544 = vpack.c.bf16 %v6537, %v6537
    %v6545 = vpack.c.bf16 %v6541, %v6541
    %v6548 = vunpack.c.l.b16 %v6544
    %v6549 = vunpack.c.l.b16 %v6545
    %v6550 = vpack.c.b16 %v6549, %v6548
    %v6551 = vrot.slane %v6550, 5
    %v6553 = vld [vmem:[#allocation5 + $0x8] sm:$0x88]
    %v6554 = vsel %vm879, %v6551, %v6553
    %6555 = vst [vmem:[#allocation5 + $0x8] sm:$0x88] %v6554
    %v6556 = vld [vmem:[%s1024] ss:$8 sm:$0x3]
    %v6557 = vmul.f32 %v6556, %v6357
    %v6558 = vadd.f32 %v6557, %v6368
    %v6559 = vmax.f32 %v6558, 0.0
    %v6561 = vlaneseq
    %v6562 = vshrl.u32 %v6561, 7
    %v6563 = vsub.s32 0, %v6562
    %v6564 = vrot.slane %v6559, %v6563
    %v6565 = vlaneseq
    %v6566 = vshrl.u32 %v6565, 7
    %v6567 = vsub.s32 1, %v6566
    %v6568 = vrot.slane %v6559, %v6567
    %v6571 = vpack.c.bf16 %v6564, %v6564
    %v6572 = vpack.c.bf16 %v6568, %v6568
    %v6575 = vunpack.c.l.b16 %v6571
    %v6576 = vunpack.c.l.b16 %v6572
    %v6577 = vpack.c.b16 %v6576, %v6575
    %v6579 = vld [vmem:[#allocation5 + $0x10] sm:$0x11]
    %v6580 = vsel %vm913, %v6577, %v6579
    %6581 = vst [vmem:[#allocation5 + $0x10] sm:$0x11] %v6580
    %v6582 = vld [vmem:[%s3630] ss:$8 sm:$0x3]
    %v6583 = vmul.f32 %v6582, %v6357
    %v6584 = vadd.f32 %v6583, %v6368
    %v6585 = vmax.f32 %v6584, 0.0
    %v6587 = vlaneseq
    %v6588 = vshrl.u32 %v6587, 7
    %v6589 = vsub.s32 0, %v6588
    %v6590 = vrot.slane %v6585, %v6589
    %v6591 = vlaneseq
    %v6592 = vshrl.u32 %v6591, 7
    %v6593 = vsub.s32 1, %v6592
    %v6594 = vrot.slane %v6585, %v6593
    %v6597 = vpack.c.bf16 %v6590, %v6590
    %v6598 = vpack.c.bf16 %v6594, %v6594
    %v6601 = vunpack.c.l.b16 %v6597
    %v6602 = vunpack.c.l.b16 %v6598
    %v6603 = vpack.c.b16 %v6602, %v6601
    %v6604 = vrot.slane %v6603, 7
    %v6606 = vld [vmem:[#allocation5 + $0x10] sm:$0x22]
    %v6607 = vsel %vm809, %v6604, %v6606
    %6608 = vst [vmem:[#allocation5 + $0x10] sm:$0x22] %v6607
    %v6609 = vld [vmem:[%s3661] ss:$8 sm:$0x3]
    %v6610 = vmul.f32 %v6609, %v6357
    %v6611 = vadd.f32 %v6610, %v6368
    %v6612 = vmax.f32 %v6611, 0.0
    %v6614 = vlaneseq
    %v6615 = vshrl.u32 %v6614, 7
    %v6616 = vsub.s32 0, %v6615
    %v6617 = vrot.slane %v6612, %v6616
    %v6618 = vlaneseq
    %v6619 = vshrl.u32 %v6618, 7
    %v6620 = vsub.s32 1, %v6619
    %v6621 = vrot.slane %v6612, %v6620
    %v6624 = vpack.c.bf16 %v6617, %v6617
    %v6625 = vpack.c.bf16 %v6621, %v6621
    %v6628 = vunpack.c.l.b16 %v6624
    %v6629 = vunpack.c.l.b16 %v6625
    %v6630 = vpack.c.b16 %v6629, %v6628
    %v6631 = vrot.slane %v6630, 6
    %v6633 = vld [vmem:[#allocation5 + $0x10] sm:$0x44]
    %v6634 = vsel %vm844, %v6631, %v6633
    %6635 = vst [vmem:[#allocation5 + $0x10] sm:$0x44] %v6634
    %v6636 = vld [vmem:[%s3692] ss:$8 sm:$0x3]
    %v6637 = vmul.f32 %v6636, %v6357
    %v6638 = vadd.f32 %v6637, %v6368
    %v6639 = vmax.f32 %v6638, 0.0
    %v6641 = vlaneseq
    %v6642 = vshrl.u32 %v6641, 7
    %v6643 = vsub.s32 0, %v6642
    %v6644 = vrot.slane %v6639, %v6643
    %v6645 = vlaneseq
    %v6646 = vshrl.u32 %v6645, 7
    %v6647 = vsub.s32 1, %v6646
    %v6648 = vrot.slane %v6639, %v6647
    %v6651 = vpack.c.bf16 %v6644, %v6644
    %v6652 = vpack.c.bf16 %v6648, %v6648
    %v6655 = vunpack.c.l.b16 %v6651
    %v6656 = vunpack.c.l.b16 %v6652
    %v6657 = vpack.c.b16 %v6656, %v6655
    %v6658 = vrot.slane %v6657, 5
    %v6660 = vld [vmem:[#allocation5 + $0x10] sm:$0x88]
    %v6661 = vsel %vm879, %v6658, %v6660
    %6662 = vst [vmem:[#allocation5 + $0x10] sm:$0x88] %v6661
    %v6663 = vld [vmem:[%s3722] ss:$8 sm:$0x3]
    %v6664 = vmul.f32 %v6663, %v6357
    %v6665 = vadd.f32 %v6664, %v6368
    %v6666 = vmax.f32 %v6665, 0.0
    %v6668 = vlaneseq
    %v6669 = vshrl.u32 %v6668, 7
    %v6670 = vsub.s32 0, %v6669
    %v6671 = vrot.slane %v6666, %v6670
    %v6672 = vlaneseq
    %v6673 = vshrl.u32 %v6672, 7
    %v6674 = vsub.s32 1, %v6673
    %v6675 = vrot.slane %v6666, %v6674
    %v6678 = vpack.c.bf16 %v6671, %v6671
    %v6679 = vpack.c.bf16 %v6675, %v6675
    %v6682 = vunpack.c.l.b16 %v6678
    %v6683 = vunpack.c.l.b16 %v6679
    %v6684 = vpack.c.b16 %v6683, %v6682
    %v6686 = vld [vmem:[#allocation5 + $0x18] sm:$0x11]
    %v6687 = vsel %vm913, %v6684, %v6686
    %6688 = vst [vmem:[#allocation5 + $0x18] sm:$0x11] %v6687
    %v6689 = vld [vmem:[%s3753] ss:$8 sm:$0x3]
    %v6690 = vmul.f32 %v6689, %v6357
    %v6691 = vadd.f32 %v6690, %v6368
    %v6692 = vmax.f32 %v6691, 0.0
    %v6694 = vlaneseq
    %v6695 = vshrl.u32 %v6694, 7
    %v6696 = vsub.s32 0, %v6695
    %v6697 = vrot.slane %v6692, %v6696
    %v6698 = vlaneseq
    %v6699 = vshrl.u32 %v6698, 7
    %v6700 = vsub.s32 1, %v6699
    %v6701 = vrot.slane %v6692, %v6700
    %v6704 = vpack.c.bf16 %v6697, %v6697
    %v6705 = vpack.c.bf16 %v6701, %v6701
    %v6708 = vunpack.c.l.b16 %v6704
    %v6709 = vunpack.c.l.b16 %v6705
    %v6710 = vpack.c.b16 %v6709, %v6708
    %v6711 = vrot.slane %v6710, 7
    %v6713 = vld [vmem:[#allocation5 + $0x18] sm:$0x22]
    %v6714 = vsel %vm809, %v6711, %v6713
    %6715 = vst [vmem:[#allocation5 + $0x18] sm:$0x22] %v6714
    %v6716 = vld [vmem:[%s3784] ss:$8 sm:$0x3]
    %v6717 = vmul.f32 %v6716, %v6357
    %v6718 = vadd.f32 %v6717, %v6368
    %v6719 = vmax.f32 %v6718, 0.0
    %v6721 = vlaneseq
    %v6722 = vshrl.u32 %v6721, 7
    %v6723 = vsub.s32 0, %v6722
    %v6724 = vrot.slane %v6719, %v6723
    %v6725 = vlaneseq
    %v6726 = vshrl.u32 %v6725, 7
    %v6727 = vsub.s32 1, %v6726
    %v6728 = vrot.slane %v6719, %v6727
    %v6731 = vpack.c.bf16 %v6724, %v6724
    %v6732 = vpack.c.bf16 %v6728, %v6728
    %v6735 = vunpack.c.l.b16 %v6731
    %v6736 = vunpack.c.l.b16 %v6732
    %v6737 = vpack.c.b16 %v6736, %v6735
    %v6738 = vrot.slane %v6737, 6
    %v6740 = vld [vmem:[#allocation5 + $0x18] sm:$0x44]
    %v6741 = vsel %vm844, %v6738, %v6740
    %6742 = vst [vmem:[#allocation5 + $0x18] sm:$0x44] %v6741
    %v6743 = vld [vmem:[%s3815] ss:$8 sm:$0x3]
    %v6744 = vmul.f32 %v6743, %v6357
    %v6745 = vadd.f32 %v6744, %v6368
    %v6746 = vmax.f32 %v6745, 0.0
    %v6748 = vlaneseq
    %v6749 = vshrl.u32 %v6748, 7
    %v6750 = vsub.s32 0, %v6749
    %v6751 = vrot.slane %v6746, %v6750
    %v6752 = vlaneseq
    %v6753 = vshrl.u32 %v6752, 7
    %v6754 = vsub.s32 1, %v6753
    %v6755 = vrot.slane %v6746, %v6754
    %v6758 = vpack.c.bf16 %v6751, %v6751
    %v6759 = vpack.c.bf16 %v6755, %v6755
    %v6762 = vunpack.c.l.b16 %v6758
    %v6763 = vunpack.c.l.b16 %v6759
    %v6764 = vpack.c.b16 %v6763, %v6762
    %v6765 = vrot.slane %v6764, 5
    %v6767 = vld [vmem:[#allocation5 + $0x18] sm:$0x88]
    %v6768 = vsel %vm879, %v6765, %v6767
    %6769 = vst [vmem:[#allocation5 + $0x18] sm:$0x88] %v6768
    %v6770 = vld [vmem:[%s3845] ss:$8 sm:$0x3]
    %v6771 = vmul.f32 %v6770, %v6357
    %v6772 = vadd.f32 %v6771, %v6368
    %v6773 = vmax.f32 %v6772, 0.0
    %v6775 = vlaneseq
    %v6776 = vshrl.u32 %v6775, 7
    %v6777 = vsub.s32 0, %v6776
    %v6778 = vrot.slane %v6773, %v6777
    %v6779 = vlaneseq
    %v6780 = vshrl.u32 %v6779, 7
    %v6781 = vsub.s32 1, %v6780
    %v6782 = vrot.slane %v6773, %v6781
    %v6785 = vpack.c.bf16 %v6778, %v6778
    %v6786 = vpack.c.bf16 %v6782, %v6782
    %v6789 = vunpack.c.l.b16 %v6785
    %v6790 = vunpack.c.l.b16 %v6786
    %v6791 = vpack.c.b16 %v6790, %v6789
    %v6793 = vld [vmem:[#allocation5 + $0x20] sm:$0x11]
    %v6794 = vsel %vm913, %v6791, %v6793
    %6795 = vst [vmem:[#allocation5 + $0x20] sm:$0x11] %v6794
    %s6796 = scalar_lea.vmem [#allocation2], 32
    %v6797 = vld [vmem:[%s6796] ss:$8 sm:$0x3]
    %v6798 = vmul.f32 %v6797, %v6357
    %v6799 = vadd.f32 %v6798, %v6368
    %v6800 = vmax.f32 %v6799, 0.0
    %v6802 = vlaneseq
    %v6803 = vshrl.u32 %v6802, 7
    %v6804 = vsub.s32 0, %v6803
    %v6805 = vrot.slane %v6800, %v6804
    %v6806 = vlaneseq
    %v6807 = vshrl.u32 %v6806, 7
    %v6808 = vsub.s32 1, %v6807
    %v6809 = vrot.slane %v6800, %v6808
    %v6812 = vpack.c.bf16 %v6805, %v6805
    %v6813 = vpack.c.bf16 %v6809, %v6809
    %v6816 = vunpack.c.l.b16 %v6812
    %v6817 = vunpack.c.l.b16 %v6813
    %v6818 = vpack.c.b16 %v6817, %v6816
    %v6820 = vshll.u32 %v6818, 16
    %v6822 = vrot.slane %v6820, 6
    %v6824 = vld [vmem:[#allocation5 + $0x20] sm:$0x44]
    %v6825 = vsel %vm949, %v6822, %v6824
    %6826 = vst [vmem:[#allocation5 + $0x20] sm:$0x44] %v6825
    %s6827 = scalar_lea.vmem [#allocation2], 33
    %v6828 = vld [vmem:[%s6827] ss:$8 sm:$0x3]
    %v6829 = vmul.f32 %v6828, %v6357
    %v6830 = vadd.f32 %v6829, %v6368
    %v6831 = vmax.f32 %v6830, 0.0
    %v6833 = vlaneseq
    %v6834 = vshrl.u32 %v6833, 7
    %v6835 = vsub.s32 0, %v6834
    %v6836 = vrot.slane %v6831, %v6835
    %v6837 = vlaneseq
    %v6838 = vshrl.u32 %v6837, 7
    %v6839 = vsub.s32 1, %v6838
    %v6840 = vrot.slane %v6831, %v6839
    %v6843 = vpack.c.bf16 %v6836, %v6836
    %v6844 = vpack.c.bf16 %v6840, %v6840
    %v6847 = vunpack.c.l.b16 %v6843
    %v6848 = vunpack.c.l.b16 %v6844
    %v6849 = vpack.c.b16 %v6848, %v6847
    %v6851 = vshll.u32 %v6849, 16
    %v6853 = vrot.slane %v6851, 5
    %v6855 = vld [vmem:[#allocation5 + $0x20] sm:$0x88]
    %v6856 = vsel %vm985, %v6853, %v6855
    %6857 = vst [vmem:[#allocation5 + $0x20] sm:$0x88] %v6856
    %s6858 = scalar_lea.vmem [#allocation2], 34
    %v6859 = vld [vmem:[%s6858] ss:$8 sm:$0x3]
    %v6860 = vmul.f32 %v6859, %v6357
    %v6861 = vadd.f32 %v6860, %v6368
    %v6862 = vmax.f32 %v6861, 0.0
    %v6864 = vlaneseq
    %v6865 = vshrl.u32 %v6864, 7
    %v6866 = vsub.s32 0, %v6865
    %v6867 = vrot.slane %v6862, %v6866
    %v6868 = vlaneseq
    %v6869 = vshrl.u32 %v6868, 7
    %v6870 = vsub.s32 1, %v6869
    %v6871 = vrot.slane %v6862, %v6870
    %v6874 = vpack.c.bf16 %v6867, %v6867
    %v6875 = vpack.c.bf16 %v6871, %v6871
    %v6878 = vunpack.c.l.b16 %v6874
    %v6879 = vunpack.c.l.b16 %v6875
    %v6880 = vpack.c.b16 %v6879, %v6878
    %v6882 = vshll.u32 %v6880, 16
    %v6885 = vld [vmem:[#allocation5 + $0x28] sm:$0x11]
    %v6886 = vsel %vm1020, %v6882, %v6885
    %6887 = vst [vmem:[#allocation5 + $0x28] sm:$0x11] %v6886
    %s6888 = scalar_lea.vmem [#allocation2], 35
    %v6889 = vld [vmem:[%s6888] ss:$8 sm:$0x3]
    %v6890 = vmul.f32 %v6889, %v6357
    %v6891 = vadd.f32 %v6890, %v6368
    %v6892 = vmax.f32 %v6891, 0.0
    %v6894 = vlaneseq
    %v6895 = vshrl.u32 %v6894, 7
    %v6896 = vsub.s32 0, %v6895
    %v6897 = vrot.slane %v6892, %v6896
    %v6898 = vlaneseq
    %v6899 = vshrl.u32 %v6898, 7
    %v6900 = vsub.s32 1, %v6899
    %v6901 = vrot.slane %v6892, %v6900
    %v6904 = vpack.c.bf16 %v6897, %v6897
    %v6905 = vpack.c.bf16 %v6901, %v6901
    %v6908 = vunpack.c.l.b16 %v6904
    %v6909 = vunpack.c.l.b16 %v6905
    %v6910 = vpack.c.b16 %v6909, %v6908
    %v6912 = vshll.u32 %v6910, 16
    %v6914 = vrot.slane %v6912, 7
    %v6916 = vld [vmem:[#allocation5 + $0x28] sm:$0x22]
    %v6917 = vsel %vm1056, %v6914, %v6916
    %6918 = vst [vmem:[#allocation5 + $0x28] sm:$0x22] %v6917
    %s6919 = scalar_lea.vmem [#allocation2], 36
    %v6920 = vld [vmem:[%s6919] ss:$8 sm:$0x3]
    %v6921 = vmul.f32 %v6920, %v6357
    %v6922 = vadd.f32 %v6921, %v6368
    %v6923 = vmax.f32 %v6922, 0.0
    %v6925 = vlaneseq
    %v6926 = vshrl.u32 %v6925, 7
    %v6927 = vsub.s32 0, %v6926
    %v6928 = vrot.slane %v6923, %v6927
    %v6929 = vlaneseq
    %v6930 = vshrl.u32 %v6929, 7
    %v6931 = vsub.s32 1, %v6930
    %v6932 = vrot.slane %v6923, %v6931
    %v6935 = vpack.c.bf16 %v6928, %v6928
    %v6936 = vpack.c.bf16 %v6932, %v6932
    %v6939 = vunpack.c.l.b16 %v6935
    %v6940 = vunpack.c.l.b16 %v6936
    %v6941 = vpack.c.b16 %v6940, %v6939
    %v6943 = vshll.u32 %v6941, 16
    %v6945 = vrot.slane %v6943, 6
    %v6947 = vld [vmem:[#allocation5 + $0x28] sm:$0x44]
    %v6948 = vsel %vm949, %v6945, %v6947
    %6949 = vst [vmem:[#allocation5 + $0x28] sm:$0x44] %v6948
    %s6950 = scalar_lea.vmem [#allocation2], 37
    %v6951 = vld [vmem:[%s6950] ss:$8 sm:$0x3]
    %v6952 = vmul.f32 %v6951, %v6357
    %v6953 = vadd.f32 %v6952, %v6368
    %v6954 = vmax.f32 %v6953, 0.0
    %v6956 = vlaneseq
    %v6957 = vshrl.u32 %v6956, 7
    %v6958 = vsub.s32 0, %v6957
    %v6959 = vrot.slane %v6954, %v6958
    %v6960 = vlaneseq
    %v6961 = vshrl.u32 %v6960, 7
    %v6962 = vsub.s32 1, %v6961
    %v6963 = vrot.slane %v6954, %v6962
    %v6966 = vpack.c.bf16 %v6959, %v6959
    %v6967 = vpack.c.bf16 %v6963, %v6963
    %v6970 = vunpack.c.l.b16 %v6966
    %v6971 = vunpack.c.l.b16 %v6967
    %v6972 = vpack.c.b16 %v6971, %v6970
    %v6974 = vshll.u32 %v6972, 16
    %v6976 = vrot.slane %v6974, 5
    %v6978 = vld [vmem:[#allocation5 + $0x28] sm:$0x88]
    %v6979 = vsel %vm985, %v6976, %v6978
    %6980 = vst [vmem:[#allocation5 + $0x28] sm:$0x88] %v6979
    %s6981 = scalar_lea.vmem [#allocation2], 38
    %v6982 = vld [vmem:[%s6981] ss:$8 sm:$0x3]
    %v6983 = vmul.f32 %v6982, %v6357
    %v6984 = vadd.f32 %v6983, %v6368
    %v6985 = vmax.f32 %v6984, 0.0
    %v6987 = vlaneseq
    %v6988 = vshrl.u32 %v6987, 7
    %v6989 = vsub.s32 0, %v6988
    %v6990 = vrot.slane %v6985, %v6989
    %v6991 = vlaneseq
    %v6992 = vshrl.u32 %v6991, 7
    %v6993 = vsub.s32 1, %v6992
    %v6994 = vrot.slane %v6985, %v6993
    %v6997 = vpack.c.bf16 %v6990, %v6990
    %v6998 = vpack.c.bf16 %v6994, %v6994
    %v7001 = vunpack.c.l.b16 %v6997
    %v7002 = vunpack.c.l.b16 %v6998
    %v7003 = vpack.c.b16 %v7002, %v7001
    %v7005 = vshll.u32 %v7003, 16
    %v7008 = vld [vmem:[#allocation5 + $0x30] sm:$0x11]
    %v7009 = vsel %vm1020, %v7005, %v7008
    %7010 = vst [vmem:[#allocation5 + $0x30] sm:$0x11] %v7009
    %s7011 = scalar_lea.vmem [#allocation2], 39
    %v7012 = vld [vmem:[%s7011] ss:$8 sm:$0x3]
    %v7013 = vmul.f32 %v7012, %v6357
    %v7014 = vadd.f32 %v7013, %v6368
    %v7015 = vmax.f32 %v7014, 0.0
    %v7017 = vlaneseq
    %v7018 = vshrl.u32 %v7017, 7
    %v7019 = vsub.s32 0, %v7018
    %v7020 = vrot.slane %v7015, %v7019
    %v7021 = vlaneseq
    %v7022 = vshrl.u32 %v7021, 7
    %v7023 = vsub.s32 1, %v7022
    %v7024 = vrot.slane %v7015, %v7023
    %v7027 = vpack.c.bf16 %v7020, %v7020
    %v7028 = vpack.c.bf16 %v7024, %v7024
    %v7031 = vunpack.c.l.b16 %v7027
    %v7032 = vunpack.c.l.b16 %v7028
    %v7033 = vpack.c.b16 %v7032, %v7031
    %v7035 = vshll.u32 %v7033, 16
    %v7037 = vrot.slane %v7035, 7
    %v7039 = vld [vmem:[#allocation5 + $0x30] sm:$0x22]
    %v7040 = vsel %vm1056, %v7037, %v7039
    %7041 = vst [vmem:[#allocation5 + $0x30] sm:$0x22] %v7040
    %s7042 = scalar_lea.vmem [#allocation2], 48
    %v7043 = vld [vmem:[%s7042] ss:$8 sm:$0x3]
    %v7044 = vmul.f32 %v7043, %v6357
    %v7045 = vadd.f32 %v7044, %v6368
    %v7046 = vmax.f32 %v7045, 0.0
    %v7048 = vlaneseq
    %v7049 = vshrl.u32 %v7048, 7
    %v7050 = vsub.s32 0, %v7049
    %v7051 = vrot.slane %v7046, %v7050
    %v7052 = vlaneseq
    %v7053 = vshrl.u32 %v7052, 7
    %v7054 = vsub.s32 1, %v7053
    %v7055 = vrot.slane %v7046, %v7054
    %v7058 = vpack.c.bf16 %v7051, %v7051
    %v7059 = vpack.c.bf16 %v7055, %v7055
    %v7062 = vunpack.c.l.b16 %v7058
    %v7063 = vunpack.c.l.b16 %v7059
    %v7064 = vpack.c.b16 %v7063, %v7062
    %v7066 = vshll.u32 %v7064, 16
    %v7068 = vrot.slane %v7066, 6
    %v7070 = vld [vmem:[#allocation5 + $0x30] sm:$0x44]
    %v7071 = vsel %vm949, %v7068, %v7070
    %7072 = vst [vmem:[#allocation5 + $0x30] sm:$0x44] %v7071
    %s7073 = scalar_lea.vmem [#allocation2], 49
    %v7074 = vld [vmem:[%s7073] ss:$8 sm:$0x3]
    %v7075 = vmul.f32 %v7074, %v6357
    %v7076 = vadd.f32 %v7075, %v6368
    %v7077 = vmax.f32 %v7076, 0.0
    %v7079 = vlaneseq
    %v7080 = vshrl.u32 %v7079, 7
    %v7081 = vsub.s32 0, %v7080
    %v7082 = vrot.slane %v7077, %v7081
    %v7083 = vlaneseq
    %v7084 = vshrl.u32 %v7083, 7
    %v7085 = vsub.s32 1, %v7084
    %v7086 = vrot.slane %v7077, %v7085
    %v7089 = vpack.c.bf16 %v7082, %v7082
    %v7090 = vpack.c.bf16 %v7086, %v7086
    %v7093 = vunpack.c.l.b16 %v7089
    %v7094 = vunpack.c.l.b16 %v7090
    %v7095 = vpack.c.b16 %v7094, %v7093
    %v7097 = vshll.u32 %v7095, 16
    %v7099 = vrot.slane %v7097, 5
    %v7101 = vld [vmem:[#allocation5 + $0x30] sm:$0x88]
    %v7102 = vsel %vm985, %v7099, %v7101
    %7103 = vst [vmem:[#allocation5 + $0x30] sm:$0x88] %v7102
    %s7104 = scalar_lea.vmem [#allocation2], 50
    %v7105 = vld [vmem:[%s7104] ss:$8 sm:$0x3]
    %v7106 = vmul.f32 %v7105, %v6357
    %v7107 = vadd.f32 %v7106, %v6368
    %v7108 = vmax.f32 %v7107, 0.0
    %v7110 = vlaneseq
    %v7111 = vshrl.u32 %v7110, 7
    %v7112 = vsub.s32 0, %v7111
    %v7113 = vrot.slane %v7108, %v7112
    %v7114 = vlaneseq
    %v7115 = vshrl.u32 %v7114, 7
    %v7116 = vsub.s32 1, %v7115
    %v7117 = vrot.slane %v7108, %v7116
    %v7120 = vpack.c.bf16 %v7113, %v7113
    %v7121 = vpack.c.bf16 %v7117, %v7117
    %v7124 = vunpack.c.l.b16 %v7120
    %v7125 = vunpack.c.l.b16 %v7121
    %v7126 = vpack.c.b16 %v7125, %v7124
    %v7128 = vshll.u32 %v7126, 16
    %v7131 = vld [vmem:[#allocation5 + $0x38] sm:$0x11]
    %v7132 = vsel %vm1020, %v7128, %v7131
    %7133 = vst [vmem:[#allocation5 + $0x38] sm:$0x11] %v7132
    %s7134 = scalar_lea.vmem [#allocation2], 51
    %v7135 = vld [vmem:[%s7134] ss:$8 sm:$0x3]
    %v7136 = vmul.f32 %v7135, %v6357
    %v7137 = vadd.f32 %v7136, %v6368
    %v7138 = vmax.f32 %v7137, 0.0
    %v7140 = vlaneseq
    %v7141 = vshrl.u32 %v7140, 7
    %v7142 = vsub.s32 0, %v7141
    %v7143 = vrot.slane %v7138, %v7142
    %v7144 = vlaneseq
    %v7145 = vshrl.u32 %v7144, 7
    %v7146 = vsub.s32 1, %v7145
    %v7147 = vrot.slane %v7138, %v7146
    %v7150 = vpack.c.bf16 %v7143, %v7143
    %v7151 = vpack.c.bf16 %v7147, %v7147
    %v7154 = vunpack.c.l.b16 %v7150
    %v7155 = vunpack.c.l.b16 %v7151
    %v7156 = vpack.c.b16 %v7155, %v7154
    %v7158 = vshll.u32 %v7156, 16
    %v7160 = vrot.slane %v7158, 7
    %v7162 = vld [vmem:[#allocation5 + $0x38] sm:$0x22]
    %v7163 = vsel %vm1056, %v7160, %v7162
    %7164 = vst [vmem:[#allocation5 + $0x38] sm:$0x22] %v7163
    %s7165 = scalar_lea.vmem [#allocation2], 52
    %v7166 = vld [vmem:[%s7165] ss:$8 sm:$0x3]
    %v7167 = vmul.f32 %v7166, %v6357
    %v7168 = vadd.f32 %v7167, %v6368
    %v7169 = vmax.f32 %v7168, 0.0
    %v7171 = vlaneseq
    %v7172 = vshrl.u32 %v7171, 7
    %v7173 = vsub.s32 0, %v7172
    %v7174 = vrot.slane %v7169, %v7173
    %v7175 = vlaneseq
    %v7176 = vshrl.u32 %v7175, 7
    %v7177 = vsub.s32 1, %v7176
    %v7178 = vrot.slane %v7169, %v7177
    %v7181 = vpack.c.bf16 %v7174, %v7174
    %v7182 = vpack.c.bf16 %v7178, %v7178
    %v7185 = vunpack.c.l.b16 %v7181
    %v7186 = vunpack.c.l.b16 %v7182
    %v7187 = vpack.c.b16 %v7186, %v7185
    %v7189 = vshll.u32 %v7187, 16
    %v7191 = vrot.slane %v7189, 6
    %v7193 = vld [vmem:[#allocation5 + $0x38] sm:$0x44]
    %v7194 = vsel %vm949, %v7191, %v7193
    %7195 = vst [vmem:[#allocation5 + $0x38] sm:$0x44] %v7194
    %s7196 = scalar_lea.vmem [#allocation2], 53
    %v7197 = vld [vmem:[%s7196] ss:$8 sm:$0x3]
    %v7198 = vmul.f32 %v7197, %v6357
    %v7199 = vadd.f32 %v7198, %v6368
    %v7200 = vmax.f32 %v7199, 0.0
    %v7202 = vlaneseq
    %v7203 = vshrl.u32 %v7202, 7
    %v7204 = vsub.s32 0, %v7203
    %v7205 = vrot.slane %v7200, %v7204
    %v7206 = vlaneseq
    %v7207 = vshrl.u32 %v7206, 7
    %v7208 = vsub.s32 1, %v7207
    %v7209 = vrot.slane %v7200, %v7208
    %v7212 = vpack.c.bf16 %v7205, %v7205
    %v7213 = vpack.c.bf16 %v7209, %v7209
    %v7216 = vunpack.c.l.b16 %v7212
    %v7217 = vunpack.c.l.b16 %v7213
    %v7218 = vpack.c.b16 %v7217, %v7216
    %v7220 = vshll.u32 %v7218, 16
    %v7222 = vrot.slane %v7220, 5
    %v7224 = vld [vmem:[#allocation5 + $0x38] sm:$0x88]
    %v7225 = vsel %vm985, %v7222, %v7224
    %7226 = vst [vmem:[#allocation5 + $0x38] sm:$0x88] %v7225
    %s7227 = scalar_lea.vmem [#allocation2], 54
    %v7228 = vld [vmem:[%s7227] ss:$8 sm:$0x3]
    %v7229 = vmul.f32 %v7228, %v6357
    %v7230 = vadd.f32 %v7229, %v6368
    %v7231 = vmax.f32 %v7230, 0.0
    %v7233 = vlaneseq
    %v7234 = vshrl.u32 %v7233, 7
    %v7235 = vsub.s32 0, %v7234
    %v7236 = vrot.slane %v7231, %v7235
    %v7237 = vlaneseq
    %v7238 = vshrl.u32 %v7237, 7
    %v7239 = vsub.s32 1, %v7238
    %v7240 = vrot.slane %v7231, %v7239
    %v7243 = vpack.c.bf16 %v7236, %v7236
    %v7244 = vpack.c.bf16 %v7240, %v7240
    %v7247 = vunpack.c.l.b16 %v7243
    %v7248 = vunpack.c.l.b16 %v7244
    %v7249 = vpack.c.b16 %v7248, %v7247
    %v7251 = vshll.u32 %v7249, 16
    %v7254 = vld [vmem:[#allocation5 + $0x40] sm:$0x11]
    %v7255 = vsel %vm1020, %v7251, %v7254
    %7256 = vst [vmem:[#allocation5 + $0x40] sm:$0x11] %v7255
    %s7257 = scalar_lea.vmem [#allocation2], 55
    %v7258 = vld [vmem:[%s7257] ss:$8 sm:$0x3]
    %v7259 = vmul.f32 %v7258, %v6357
    %v7260 = vadd.f32 %v7259, %v6368
    %v7261 = vmax.f32 %v7260, 0.0
    %v7263 = vlaneseq
    %v7264 = vshrl.u32 %v7263, 7
    %v7265 = vsub.s32 0, %v7264
    %v7266 = vrot.slane %v7261, %v7265
    %v7267 = vlaneseq
    %v7268 = vshrl.u32 %v7267, 7
    %v7269 = vsub.s32 1, %v7268
    %v7270 = vrot.slane %v7261, %v7269
    %v7273 = vpack.c.bf16 %v7266, %v7266
    %v7274 = vpack.c.bf16 %v7270, %v7270
    %v7277 = vunpack.c.l.b16 %v7273
    %v7278 = vunpack.c.l.b16 %v7274
    %v7279 = vpack.c.b16 %v7278, %v7277
    %v7281 = vshll.u32 %v7279, 16
    %v7283 = vrot.slane %v7281, 7
    %v7285 = vld [vmem:[#allocation5 + $0x40] sm:$0x22]
    %v7286 = vsel %vm1056, %v7283, %v7285
    %7287 = vst [vmem:[#allocation5 + $0x40] sm:$0x22] %v7286
    %v7288 = vld [vmem:[#allocation5] sm:$0xee]
    %v7289 = vld [vmem:[#allocation5 + $0x8] sm:$0xff]
    %v7290 = vld [vmem:[#allocation5 + $0x10] sm:$0xff]
    %v7291 = vld [vmem:[#allocation5 + $0x18] sm:$0xff]
    %v7292 = vld [vmem:[#allocation5 + $0x20] sm:$0x33]
    %s7293 = scalar_lea.vmem [#allocation8], 2048
    %v7294 = vld [vmem:[%s7293] sm:$0xff]
    %v7295 = vld [vmem:[%s7293 + $0x8] sm:$0xff]
    %v7296 = vld [vmem:[%s7293 + $0x10] sm:$0xff]
    %v7297 = vld [vmem:[%s7293 + $0x18] sm:$0xff]
    %v7298 = vld [vmem:[%s7293 + $0x20] sm:$0xff]
    %v7299 = vld [vmem:[%s7293 + $0x28] sm:$0xff]
    %v7300 = vld [vmem:[%s7293 + $0x30] sm:$0xff]
    %v7301 = vld [vmem:[%s7293 + $0x38] sm:$0xff]
    %v7302 = vld [vmem:[%s7293 + $0x40] sm:$0xff]
    %v7303 = vld [vmem:[%s7293 + $0x48] sm:$0xff]
    %v7304 = vld [vmem:[%s7293 + $0x50] sm:$0xff]
    %v7305 = vld [vmem:[%s7293 + $0x58] sm:$0xff]
    %v7306 = vld [vmem:[%s7293 + $0x60] sm:$0xff]
    %v7307 = vld [vmem:[%s7293 + $0x68] sm:$0xff]
    %v7308 = vld [vmem:[%s7293 + $0x70] sm:$0xff]
    %v7309 = vld [vmem:[%s7293 + $0x78] sm:$0xff]
    %v7310 = vld [vmem:[%s7293 + $0x80] sm:$0xff]
    %v7311 = vld [vmem:[%s7293 + $0x88] sm:$0xff]
    %v7312 = vld [vmem:[%s7293 + $0x90] sm:$0xff]
    %v7313 = vld [vmem:[%s7293 + $0x98] sm:$0xff]
    %v7314 = vld [vmem:[%s7293 + $0xa0] sm:$0xff]
    %v7315 = vld [vmem:[%s7293 + $0xa8] sm:$0xff]
    %v7316 = vld [vmem:[%s7293 + $0xb0] sm:$0xff]
    %v7317 = vld [vmem:[%s7293 + $0xb8] sm:$0xff]
    %v7318 = vld [vmem:[%s7293 + $0xc0] sm:$0xff]
    %v7319 = vld [vmem:[%s7293 + $0xc8] sm:$0xff]
    %v7320 = vld [vmem:[%s7293 + $0xd0] sm:$0xff]
    %v7321 = vld [vmem:[%s7293 + $0xd8] sm:$0xff]
    %v7322 = vld [vmem:[%s7293 + $0xe0] sm:$0xff]
    %v7323 = vld [vmem:[%s7293 + $0xe8] sm:$0xff]
    %v7324 = vld [vmem:[%s7293 + $0xf0] sm:$0xff]
    %v7325 = vld [vmem:[%s7293 + $0xf8] sm:$0xff]
    %v7326 = vld [vmem:[#allocation5 + $0x20] sm:$0x11]
    %s7327 = scalar_lea.vmem [#allocation8], 2304
    %v7328 = vld [vmem:[%s7327] sm:$0xff]
    %v7329 = vld [vmem:[%s7327 + $0x8] sm:$0xff]
    %v7330 = vld [vmem:[%s7327 + $0x10] sm:$0xff]
    %v7331 = vld [vmem:[%s7327 + $0x18] sm:$0xff]
    %v7332 = vld [vmem:[%s7327 + $0x20] sm:$0xff]
    %v7333 = vld [vmem:[%s7327 + $0x28] sm:$0xff]
    %v7334 = vld [vmem:[%s7327 + $0x30] sm:$0xff]
    %v7335 = vld [vmem:[%s7327 + $0x38] sm:$0xff]
    %v7336 = vld [vmem:[%s7327 + $0x40] sm:$0xff]
    %v7337 = vld [vmem:[%s7327 + $0x48] sm:$0xff]
    %v7338 = vld [vmem:[%s7327 + $0x50] sm:$0xff]
    %v7339 = vld [vmem:[%s7327 + $0x58] sm:$0xff]
    %v7340 = vld [vmem:[%s7327 + $0x60] sm:$0xff]
    %v7341 = vld [vmem:[%s7327 + $0x68] sm:$0xff]
    %v7342 = vld [vmem:[%s7327 + $0x70] sm:$0xff]
    %v7343 = vld [vmem:[%s7327 + $0x78] sm:$0xff]
    %v7344 = vld [vmem:[%s7327 + $0x80] sm:$0xff]
    %v7345 = vld [vmem:[%s7327 + $0x88] sm:$0xff]
    %v7346 = vld [vmem:[%s7327 + $0x90] sm:$0xff]
    %v7347 = vld [vmem:[%s7327 + $0x98] sm:$0xff]
    %v7348 = vld [vmem:[%s7327 + $0xa0] sm:$0xff]
    %v7349 = vld [vmem:[%s7327 + $0xa8] sm:$0xff]
    %v7350 = vld [vmem:[%s7327 + $0xb0] sm:$0xff]
    %v7351 = vld [vmem:[%s7327 + $0xb8] sm:$0xff]
    %v7352 = vld [vmem:[%s7327 + $0xc0] sm:$0xff]
    %v7353 = vld [vmem:[%s7327 + $0xc8] sm:$0xff]
    %v7354 = vld [vmem:[%s7327 + $0xd0] sm:$0xff]
    %v7355 = vld [vmem:[%s7327 + $0xd8] sm:$0xff]
    %v7356 = vld [vmem:[%s7327 + $0xe0] sm:$0xff]
    %v7357 = vld [vmem:[%s7327 + $0xe8] sm:$0xff]
    %v7358 = vld [vmem:[%s7327 + $0xf0] sm:$0xff]
    %v7359 = vld [vmem:[%s7327 + $0xf8] sm:$0xff]
    %v7365 = vunpack.c.l.b16 %v7288
    %v7366 = vunpack.c.h.b16 %v7288
    %v7367 = vunpack.c.l.b16 %v7289
    %v7368 = vunpack.c.h.b16 %v7289
    %v7369 = vunpack.c.l.b16 %v7290
    %v7370 = vunpack.c.h.b16 %v7290
    %v7371 = vunpack.c.l.b16 %v7291
    %v7372 = vunpack.c.h.b16 %v7291
    %v7373 = vunpack.c.l.b16 %v7326
    %v7374 = vunpack.c.h.b16 %v7326
    %v7375 = vpack.c.b16 %v7367, %v7365
    %v7376 = vpack.c.b16 %v7368, %v7366
    %v7377 = vpack.c.b16 %v7371, %v7369
    %v7378 = vpack.c.b16 %v7372, %v7370
    %v7379 = vpack.c.b16 %v7373, %v7373
    %v7380 = vpack.c.b16 %v7374, %v7374
    %v7381 = vrot.slane %v7375, 1
    %v7382 = vrot.slane %v7377, 1
    %v7383 = vsel %vm3959, %v7381, %v7382
    %v7384 = vrot.slane %v7376, 1
    %v7385 = vrot.slane %v7378, 1
    %v7386 = vsel %vm3959, %v7384, %v7385
    %v7387 = vrot.slane %v7379, 1
    %v7388 = vsel %vm3959, %v7382, %v7387
    %v7389 = vrot.slane %v7380, 1
    %v7390 = vsel %vm3959, %v7385, %v7389
    %v7427 = vunpack.c.l.b16 %v7328
    %v7428 = vunpack.c.h.b16 %v7328
    %v7429 = vunpack.c.l.b16 %v7329
    %v7430 = vunpack.c.h.b16 %v7329
    %v7431 = vunpack.c.l.b16 %v7330
    %v7432 = vunpack.c.h.b16 %v7330
    %v7433 = vunpack.c.l.b16 %v7331
    %v7434 = vunpack.c.h.b16 %v7331
    %v7435 = vunpack.c.l.b16 %v7332
    %v7436 = vunpack.c.h.b16 %v7332
    %v7437 = vunpack.c.l.b16 %v7333
    %v7438 = vunpack.c.h.b16 %v7333
    %v7439 = vunpack.c.l.b16 %v7334
    %v7440 = vunpack.c.h.b16 %v7334
    %v7441 = vunpack.c.l.b16 %v7335
    %v7442 = vunpack.c.h.b16 %v7335
    %v7443 = vunpack.c.l.b16 %v7336
    %v7444 = vunpack.c.h.b16 %v7336
    %v7445 = vunpack.c.l.b16 %v7337
    %v7446 = vunpack.c.h.b16 %v7337
    %v7447 = vunpack.c.l.b16 %v7338
    %v7448 = vunpack.c.h.b16 %v7338
    %v7449 = vunpack.c.l.b16 %v7339
    %v7450 = vunpack.c.h.b16 %v7339
    %v7451 = vunpack.c.l.b16 %v7340
    %v7452 = vunpack.c.h.b16 %v7340
    %v7453 = vunpack.c.l.b16 %v7341
    %v7454 = vunpack.c.h.b16 %v7341
    %v7455 = vunpack.c.l.b16 %v7342
    %v7456 = vunpack.c.h.b16 %v7342
    %v7457 = vunpack.c.l.b16 %v7343
    %v7458 = vunpack.c.h.b16 %v7343
    %v7459 = vunpack.c.l.b16 %v7344
    %v7460 = vunpack.c.h.b16 %v7344
    %v7461 = vunpack.c.l.b16 %v7345
    %v7462 = vunpack.c.h.b16 %v7345
    %v7463 = vunpack.c.l.b16 %v7346
    %v7464 = vunpack.c.h.b16 %v7346
    %v7465 = vunpack.c.l.b16 %v7347
    %v7466 = vunpack.c.h.b16 %v7347
    %v7467 = vunpack.c.l.b16 %v7348
    %v7468 = vunpack.c.h.b16 %v7348
    %v7469 = vunpack.c.l.b16 %v7349
    %v7470 = vunpack.c.h.b16 %v7349
    %v7471 = vunpack.c.l.b16 %v7350
    %v7472 = vunpack.c.h.b16 %v7350
    %v7473 = vunpack.c.l.b16 %v7351
    %v7474 = vunpack.c.h.b16 %v7351
    %v7475 = vunpack.c.l.b16 %v7352
    %v7476 = vunpack.c.h.b16 %v7352
    %v7477 = vunpack.c.l.b16 %v7353
    %v7478 = vunpack.c.h.b16 %v7353
    %v7479 = vunpack.c.l.b16 %v7354
    %v7480 = vunpack.c.h.b16 %v7354
    %v7481 = vunpack.c.l.b16 %v7355
    %v7482 = vunpack.c.h.b16 %v7355
    %v7483 = vunpack.c.l.b16 %v7356
    %v7484 = vunpack.c.h.b16 %v7356
    %v7485 = vunpack.c.l.b16 %v7357
    %v7486 = vunpack.c.h.b16 %v7357
    %v7487 = vunpack.c.l.b16 %v7358
    %v7488 = vunpack.c.h.b16 %v7358
    %v7489 = vunpack.c.l.b16 %v7359
    %v7490 = vunpack.c.h.b16 %v7359
    %v7491 = vpack.c.b16 %v7429, %v7427
    %v7492 = vpack.c.b16 %v7430, %v7428
    %v7493 = vpack.c.b16 %v7433, %v7431
    %v7494 = vpack.c.b16 %v7434, %v7432
    %v7495 = vpack.c.b16 %v7437, %v7435
    %v7496 = vpack.c.b16 %v7438, %v7436
    %v7497 = vpack.c.b16 %v7441, %v7439
    %v7498 = vpack.c.b16 %v7442, %v7440
    %v7499 = vpack.c.b16 %v7445, %v7443
    %v7500 = vpack.c.b16 %v7446, %v7444
    %v7501 = vpack.c.b16 %v7449, %v7447
    %v7502 = vpack.c.b16 %v7450, %v7448
    %v7503 = vpack.c.b16 %v7453, %v7451
    %v7504 = vpack.c.b16 %v7454, %v7452
    %v7505 = vpack.c.b16 %v7457, %v7455
    %v7506 = vpack.c.b16 %v7458, %v7456
    %v7507 = vpack.c.b16 %v7461, %v7459
    %v7508 = vpack.c.b16 %v7462, %v7460
    %v7509 = vpack.c.b16 %v7465, %v7463
    %v7510 = vpack.c.b16 %v7466, %v7464
    %v7511 = vpack.c.b16 %v7469, %v7467
    %v7512 = vpack.c.b16 %v7470, %v7468
    %v7513 = vpack.c.b16 %v7473, %v7471
    %v7514 = vpack.c.b16 %v7474, %v7472
    %v7515 = vpack.c.b16 %v7477, %v7475
    %v7516 = vpack.c.b16 %v7478, %v7476
    %v7517 = vpack.c.b16 %v7481, %v7479
    %v7518 = vpack.c.b16 %v7482, %v7480
    %v7519 = vpack.c.b16 %v7485, %v7483
    %v7520 = vpack.c.b16 %v7486, %v7484
    %v7521 = vpack.c.b16 %v7489, %v7487
    %v7522 = vpack.c.b16 %v7490, %v7488
    %7555 = vmatprep.subr.bf16.mxu0 %v7506
    %7556 = vmatpush1.bf16.msra.mxu0 %v7505
    %7557 = vmatprep.subr.bf16.mxu0 %v7504
    %7558 = vmatpush1.bf16.msra.mxu0 %v7503
    %7559 = vmatprep.subr.bf16.mxu0 %v7502
    %7560 = vmatpush1.bf16.msra.mxu0 %v7501
    %7561 = vmatprep.subr.bf16.mxu0 %v7500
    %7562 = vmatpush1.bf16.msra.mxu0 %v7499
    %7563 = vmatprep.subr.bf16.mxu0 %v7498
    %7564 = vmatpush1.bf16.msra.mxu0 %v7497
    %7565 = vmatprep.subr.bf16.mxu0 %v7496
    %7566 = vmatpush1.bf16.msra.mxu0 %v7495
    %7567 = vmatprep.subr.bf16.mxu0 %v7494
    %7568 = vmatpush1.bf16.msra.mxu0 %v7493
    %7569 = vmatprep.subr.bf16.mxu0 %v7492
    %7570 = vmatpush1.bf16.msra.mxu0 %v7491
    %7571 = vmatprep.subr.bf16.mxu0 %v7522
    %7572 = vmatpush2.bf16.msra.mxu0 %v7521
    %7573 = vmatprep.subr.bf16.mxu0 %v7520
    %7574 = vmatpush2.bf16.msra.mxu0 %v7519
    %7575 = vmatprep.subr.bf16.mxu0 %v7518
    %7576 = vmatpush2.bf16.msra.mxu0 %v7517
    %7577 = vmatprep.subr.bf16.mxu0 %v7516
    %7578 = vmatpush2.bf16.msra.mxu0 %v7515
    %7579 = vmatprep.subr.bf16.mxu0 %v7514
    %7580 = vmatpush2.bf16.msra.mxu0 %v7513
    %7581 = vmatprep.subr.bf16.mxu0 %v7512
    %7582 = vmatpush2.bf16.msra.mxu0 %v7511
    %7583 = vmatprep.subr.bf16.mxu0 %v7510
    %7584 = vmatpush2.bf16.msra.mxu0 %v7509
    %7585 = vmatprep.subr.bf16.mxu0 %v7508
    %7586 = vmatpush2.bf16.msra.mxu0 %v7507
    %7587 = vmatprep.mubr.bf16.mxu0 %v7386
    %7588 = vmatmul.mubr.bf16.gmra.mxu0 %v7383
    %v7589 = vpop.f32.mrf.mxu0
    %v7590 = vadd.f32 0.0, %v7589
    %v7591 = vpop.f32.mrf.mxu0
    %v7592 = vadd.f32 0.0, %v7591
    %v7593 = vpop.f32.mrf.mxu0
    %v7594 = vadd.f32 0.0, %v7593
    %v7595 = vpop.f32.mrf.mxu0
    %v7596 = vadd.f32 0.0, %v7595
    %7597 = vmatprep.mubr.bf16.mxu0 %v7390
    %7598 = vmatmul.mubr.bf16.gmra.mxu0 %v7388
    %v7599 = vpop.f32.mrf.mxu0
    %v7600 = vadd.f32 0.0, %v7599
    %v7601 = vpop.f32.mrf.mxu0
    %v7602 = vadd.f32 0.0, %v7601
    %v7603 = vpop.f32.mrf.mxu0
    %v7604 = vadd.f32 0.0, %v7603
    %v7605 = vpop.f32.mrf.mxu0
    %v7606 = vadd.f32 0.0, %v7605
    %7607 = vdwg.mxu0
    %v7609 = vunpack.c.l.b16 %v7292
    %v7610 = vunpack.c.h.b16 %v7292
    %v7611 = vpack.c.b16 %v7609, %v7609
    %v7612 = vpack.c.b16 %v7610, %v7610
    %v7614 = vshrl.u32 %v7375, 16
    %v7616 = vrot.slane %v7614, 1
    %v7617 = vshll.u32 %v7375, 16
    %v7619 = vrot.slane %v7617, 2
    %v7620 = vor.u32 %v7616, %v7619
    %v7622 = vshrl.u32 %v7377, 16
    %v7624 = vrot.slane %v7622, 1
    %v7625 = vshll.u32 %v7377, 16
    %v7627 = vrot.slane %v7625, 2
    %v7628 = vor.u32 %v7624, %v7627
    %v7629 = vsel %vm842, %v7620, %v7628
    %v7631 = vshrl.u32 %v7376, 16
    %v7633 = vrot.slane %v7631, 1
    %v7634 = vshll.u32 %v7376, 16
    %v7636 = vrot.slane %v7634, 2
    %v7637 = vor.u32 %v7633, %v7636
    %v7639 = vshrl.u32 %v7378, 16
    %v7641 = vrot.slane %v7639, 1
    %v7642 = vshll.u32 %v7378, 16
    %v7644 = vrot.slane %v7642, 2
    %v7645 = vor.u32 %v7641, %v7644
    %v7646 = vsel %vm842, %v7637, %v7645
    %v7648 = vshrl.u32 %v7611, 16
    %v7650 = vrot.slane %v7648, 1
    %v7651 = vshll.u32 %v7611, 16
    %v7653 = vrot.slane %v7651, 2
    %v7654 = vor.u32 %v7650, %v7653
    %v7655 = vsel %vm842, %v7628, %v7654
    %v7657 = vshrl.u32 %v7612, 16
    %v7659 = vrot.slane %v7657, 1
    %v7660 = vshll.u32 %v7612, 16
    %v7662 = vrot.slane %v7660, 2
    %v7663 = vor.u32 %v7659, %v7662
    %v7664 = vsel %vm842, %v7645, %v7663
    %v7701 = vunpack.c.l.b16 %v7294
    %v7702 = vunpack.c.h.b16 %v7294
    %v7703 = vunpack.c.l.b16 %v7295
    %v7704 = vunpack.c.h.b16 %v7295
    %v7705 = vunpack.c.l.b16 %v7296
    %v7706 = vunpack.c.h.b16 %v7296
    %v7707 = vunpack.c.l.b16 %v7297
    %v7708 = vunpack.c.h.b16 %v7297
    %v7709 = vunpack.c.l.b16 %v7298
    %v7710 = vunpack.c.h.b16 %v7298
    %v7711 = vunpack.c.l.b16 %v7299
    %v7712 = vunpack.c.h.b16 %v7299
    %v7713 = vunpack.c.l.b16 %v7300
    %v7714 = vunpack.c.h.b16 %v7300
    %v7715 = vunpack.c.l.b16 %v7301
    %v7716 = vunpack.c.h.b16 %v7301
    %v7717 = vunpack.c.l.b16 %v7302
    %v7718 = vunpack.c.h.b16 %v7302
    %v7719 = vunpack.c.l.b16 %v7303
    %v7720 = vunpack.c.h.b16 %v7303
    %v7721 = vunpack.c.l.b16 %v7304
    %v7722 = vunpack.c.h.b16 %v7304
    %v7723 = vunpack.c.l.b16 %v7305
    %v7724 = vunpack.c.h.b16 %v7305
    %v7725 = vunpack.c.l.b16 %v7306
    %v7726 = vunpack.c.h.b16 %v7306
    %v7727 = vunpack.c.l.b16 %v7307
    %v7728 = vunpack.c.h.b16 %v7307
    %v7729 = vunpack.c.l.b16 %v7308
    %v7730 = vunpack.c.h.b16 %v7308
    %v7731 = vunpack.c.l.b16 %v7309
    %v7732 = vunpack.c.h.b16 %v7309
    %v7733 = vunpack.c.l.b16 %v7310
    %v7734 = vunpack.c.h.b16 %v7310
    %v7735 = vunpack.c.l.b16 %v7311
    %v7736 = vunpack.c.h.b16 %v7311
    %v7737 = vunpack.c.l.b16 %v7312
    %v7738 = vunpack.c.h.b16 %v7312
    %v7739 = vunpack.c.l.b16 %v7313
    %v7740 = vunpack.c.h.b16 %v7313
    %v7741 = vunpack.c.l.b16 %v7314
    %v7742 = vunpack.c.h.b16 %v7314
    %v7743 = vunpack.c.l.b16 %v7315
    %v7744 = vunpack.c.h.b16 %v7315
    %v7745 = vunpack.c.l.b16 %v7316
    %v7746 = vunpack.c.h.b16 %v7316
    %v7747 = vunpack.c.l.b16 %v7317
    %v7748 = vunpack.c.h.b16 %v7317
    %v7749 = vunpack.c.l.b16 %v7318
    %v7750 = vunpack.c.h.b16 %v7318
    %v7751 = vunpack.c.l.b16 %v7319
    %v7752 = vunpack.c.h.b16 %v7319
    %v7753 = vunpack.c.l.b16 %v7320
    %v7754 = vunpack.c.h.b16 %v7320
    %v7755 = vunpack.c.l.b16 %v7321
    %v7756 = vunpack.c.h.b16 %v7321
    %v7757 = vunpack.c.l.b16 %v7322
    %v7758 = vunpack.c.h.b16 %v7322
    %v7759 = vunpack.c.l.b16 %v7323
    %v7760 = vunpack.c.h.b16 %v7323
    %v7761 = vunpack.c.l.b16 %v7324
    %v7762 = vunpack.c.h.b16 %v7324
    %v7763 = vunpack.c.l.b16 %v7325
    %v7764 = vunpack.c.h.b16 %v7325
    %v7765 = vpack.c.b16 %v7703, %v7701
    %v7766 = vpack.c.b16 %v7704, %v7702
    %v7767 = vpack.c.b16 %v7707, %v7705
    %v7768 = vpack.c.b16 %v7708, %v7706
    %v7769 = vpack.c.b16 %v7711, %v7709
    %v7770 = vpack.c.b16 %v7712, %v7710
    %v7771 = vpack.c.b16 %v7715, %v7713
    %v7772 = vpack.c.b16 %v7716, %v7714
    %v7773 = vpack.c.b16 %v7719, %v7717
    %v7774 = vpack.c.b16 %v7720, %v7718
    %v7775 = vpack.c.b16 %v7723, %v7721
    %v7776 = vpack.c.b16 %v7724, %v7722
    %v7777 = vpack.c.b16 %v7727, %v7725
    %v7778 = vpack.c.b16 %v7728, %v7726
    %v7779 = vpack.c.b16 %v7731, %v7729
    %v7780 = vpack.c.b16 %v7732, %v7730
    %v7781 = vpack.c.b16 %v7735, %v7733
    %v7782 = vpack.c.b16 %v7736, %v7734
    %v7783 = vpack.c.b16 %v7739, %v7737
    %v7784 = vpack.c.b16 %v7740, %v7738
    %v7785 = vpack.c.b16 %v7743, %v7741
    %v7786 = vpack.c.b16 %v7744, %v7742
    %v7787 = vpack.c.b16 %v7747, %v7745
    %v7788 = vpack.c.b16 %v7748, %v7746
    %v7789 = vpack.c.b16 %v7751, %v7749
    %v7790 = vpack.c.b16 %v7752, %v7750
    %v7791 = vpack.c.b16 %v7755, %v7753
    %v7792 = vpack.c.b16 %v7756, %v7754
    %v7793 = vpack.c.b16 %v7759, %v7757
    %v7794 = vpack.c.b16 %v7760, %v7758
    %v7795 = vpack.c.b16 %v7763, %v7761
    %v7796 = vpack.c.b16 %v7764, %v7762
    %7829 = vmatprep.subr.bf16.mxu0 %v7780
    %7830 = vmatpush1.bf16.msra.mxu0 %v7779
    %7831 = vmatprep.subr.bf16.mxu0 %v7778
    %7832 = vmatpush1.bf16.msra.mxu0 %v7777
    %7833 = vmatprep.subr.bf16.mxu0 %v7776
    %7834 = vmatpush1.bf16.msra.mxu0 %v7775
    %7835 = vmatprep.subr.bf16.mxu0 %v7774
    %7836 = vmatpush1.bf16.msra.mxu0 %v7773
    %7837 = vmatprep.subr.bf16.mxu0 %v7772
    %7838 = vmatpush1.bf16.msra.mxu0 %v7771
    %7839 = vmatprep.subr.bf16.mxu0 %v7770
    %7840 = vmatpush1.bf16.msra.mxu0 %v7769
    %7841 = vmatprep.subr.bf16.mxu0 %v7768
    %7842 = vmatpush1.bf16.msra.mxu0 %v7767
    %7843 = vmatprep.subr.bf16.mxu0 %v7766
    %7844 = vmatpush1.bf16.msra.mxu0 %v7765
    %7845 = vmatprep.subr.bf16.mxu0 %v7796
    %7846 = vmatpush2.bf16.msra.mxu0 %v7795
    %7847 = vmatprep.subr.bf16.mxu0 %v7794
    %7848 = vmatpush2.bf16.msra.mxu0 %v7793
    %7849 = vmatprep.subr.bf16.mxu0 %v7792
    %7850 = vmatpush2.bf16.msra.mxu0 %v7791
    %7851 = vmatprep.subr.bf16.mxu0 %v7790
    %7852 = vmatpush2.bf16.msra.mxu0 %v7789
    %7853 = vmatprep.subr.bf16.mxu0 %v7788
    %7854 = vmatpush2.bf16.msra.mxu0 %v7787
    %7855 = vmatprep.subr.bf16.mxu0 %v7786
    %7856 = vmatpush2.bf16.msra.mxu0 %v7785
    %7857 = vmatprep.subr.bf16.mxu0 %v7784
    %7858 = vmatpush2.bf16.msra.mxu0 %v7783
    %7859 = vmatprep.subr.bf16.mxu0 %v7782
    %7860 = vmatpush2.bf16.msra.mxu0 %v7781
    %7861 = vmatprep.mubr.bf16.mxu0 %v7646
    %7862 = vmatmul.mubr.bf16.gmra.mxu0 %v7629
    %v7863 = vpop.f32.mrf.mxu0
    %v7864 = vadd.f32 %v7590, %v7863
    %v7865 = vpop.f32.mrf.mxu0
    %v7866 = vadd.f32 %v7592, %v7865
    %v7867 = vpop.f32.mrf.mxu0
    %v7868 = vadd.f32 %v7594, %v7867
    %v7869 = vpop.f32.mrf.mxu0
    %v7870 = vadd.f32 %v7596, %v7869
    %7871 = vmatprep.mubr.bf16.mxu0 %v7664
    %7872 = vmatmul.mubr.bf16.gmra.mxu0 %v7655
    %v7873 = vpop.f32.mrf.mxu0
    %v7874 = vadd.f32 %v7600, %v7873
    %v7875 = vpop.f32.mrf.mxu0
    %v7876 = vadd.f32 %v7602, %v7875
    %v7877 = vpop.f32.mrf.mxu0
    %v7878 = vadd.f32 %v7604, %v7877
    %v7879 = vpop.f32.mrf.mxu0
    %v7880 = vadd.f32 %v7606, %v7879
    %7881 = vdwg.mxu0
    %v7882 = vld [vmem:[#allocation5] sm:$0xff]
    %s7883 = scalar_lea.vmem [#allocation8], 2560
    %v7884 = vld [vmem:[%s7883] sm:$0xff]
    %v7885 = vld [vmem:[%s7883 + $0x8] sm:$0xff]
    %v7886 = vld [vmem:[%s7883 + $0x10] sm:$0xff]
    %v7887 = vld [vmem:[%s7883 + $0x18] sm:$0xff]
    %v7888 = vld [vmem:[%s7883 + $0x20] sm:$0xff]
    %v7889 = vld [vmem:[%s7883 + $0x28] sm:$0xff]
    %v7890 = vld [vmem:[%s7883 + $0x30] sm:$0xff]
    %v7891 = vld [vmem:[%s7883 + $0x38] sm:$0xff]
    %v7892 = vld [vmem:[%s7883 + $0x40] sm:$0xff]
    %v7893 = vld [vmem:[%s7883 + $0x48] sm:$0xff]
    %v7894 = vld [vmem:[%s7883 + $0x50] sm:$0xff]
    %v7895 = vld [vmem:[%s7883 + $0x58] sm:$0xff]
    %v7896 = vld [vmem:[%s7883 + $0x60] sm:$0xff]
    %v7897 = vld [vmem:[%s7883 + $0x68] sm:$0xff]
    %v7898 = vld [vmem:[%s7883 + $0x70] sm:$0xff]
    %v7899 = vld [vmem:[%s7883 + $0x78] sm:$0xff]
    %v7900 = vld [vmem:[%s7883 + $0x80] sm:$0xff]
    %v7901 = vld [vmem:[%s7883 + $0x88] sm:$0xff]
    %v7902 = vld [vmem:[%s7883 + $0x90] sm:$0xff]
    %v7903 = vld [vmem:[%s7883 + $0x98] sm:$0xff]
    %v7904 = vld [vmem:[%s7883 + $0xa0] sm:$0xff]
    %v7905 = vld [vmem:[%s7883 + $0xa8] sm:$0xff]
    %v7906 = vld [vmem:[%s7883 + $0xb0] sm:$0xff]
    %v7907 = vld [vmem:[%s7883 + $0xb8] sm:$0xff]
    %v7908 = vld [vmem:[%s7883 + $0xc0] sm:$0xff]
    %v7909 = vld [vmem:[%s7883 + $0xc8] sm:$0xff]
    %v7910 = vld [vmem:[%s7883 + $0xd0] sm:$0xff]
    %v7911 = vld [vmem:[%s7883 + $0xd8] sm:$0xff]
    %v7912 = vld [vmem:[%s7883 + $0xe0] sm:$0xff]
    %v7913 = vld [vmem:[%s7883 + $0xe8] sm:$0xff]
    %v7914 = vld [vmem:[%s7883 + $0xf0] sm:$0xff]
    %v7915 = vld [vmem:[%s7883 + $0xf8] sm:$0xff]
    %v7917 = vunpack.c.l.b16 %v7882
    %v7918 = vunpack.c.h.b16 %v7882
    %v7919 = vpack.c.b16 %v7367, %v7917
    %v7920 = vpack.c.b16 %v7368, %v7918
    %v7922 = vshrl.u32 %v7919, 16
    %v7924 = vshll.u32 %v7919, 16
    %v7926 = vrot.slane %v7924, 1
    %v7927 = vor.u32 %v7922, %v7926
    %v7928 = vrot.slane %v7625, 1
    %v7929 = vsel %vm877, %v7927, %v7928
    %v7931 = vshrl.u32 %v7920, 16
    %v7933 = vshll.u32 %v7920, 16
    %v7935 = vrot.slane %v7933, 1
    %v7936 = vor.u32 %v7931, %v7935
    %v7937 = vrot.slane %v7642, 1
    %v7938 = vsel %vm877, %v7936, %v7937
    %v7939 = vor.u32 %v7622, %v7928
    %v7941 = vshll.u32 %v7379, 16
    %v7943 = vrot.slane %v7941, 1
    %v7944 = vsel %vm877, %v7939, %v7943
    %v7945 = vor.u32 %v7639, %v7937
    %v7947 = vshll.u32 %v7380, 16
    %v7949 = vrot.slane %v7947, 1
    %v7950 = vsel %vm877, %v7945, %v7949
    %v7987 = vunpack.c.l.b16 %v7884
    %v7988 = vunpack.c.h.b16 %v7884
    %v7989 = vunpack.c.l.b16 %v7885
    %v7990 = vunpack.c.h.b16 %v7885
    %v7991 = vunpack.c.l.b16 %v7886
    %v7992 = vunpack.c.h.b16 %v7886
    %v7993 = vunpack.c.l.b16 %v7887
    %v7994 = vunpack.c.h.b16 %v7887
    %v7995 = vunpack.c.l.b16 %v7888
    %v7996 = vunpack.c.h.b16 %v7888
    %v7997 = vunpack.c.l.b16 %v7889
    %v7998 = vunpack.c.h.b16 %v7889
    %v7999 = vunpack.c.l.b16 %v7890
    %v8000 = vunpack.c.h.b16 %v7890
    %v8001 = vunpack.c.l.b16 %v7891
    %v8002 = vunpack.c.h.b16 %v7891
    %v8003 = vunpack.c.l.b16 %v7892
    %v8004 = vunpack.c.h.b16 %v7892
    %v8005 = vunpack.c.l.b16 %v7893
    %v8006 = vunpack.c.h.b16 %v7893
    %v8007 = vunpack.c.l.b16 %v7894
    %v8008 = vunpack.c.h.b16 %v7894
    %v8009 = vunpack.c.l.b16 %v7895
    %v8010 = vunpack.c.h.b16 %v7895
    %v8011 = vunpack.c.l.b16 %v7896
    %v8012 = vunpack.c.h.b16 %v7896
    %v8013 = vunpack.c.l.b16 %v7897
    %v8014 = vunpack.c.h.b16 %v7897
    %v8015 = vunpack.c.l.b16 %v7898
    %v8016 = vunpack.c.h.b16 %v7898
    %v8017 = vunpack.c.l.b16 %v7899
    %v8018 = vunpack.c.h.b16 %v7899
    %v8019 = vunpack.c.l.b16 %v7900
    %v8020 = vunpack.c.h.b16 %v7900
    %v8021 = vunpack.c.l.b16 %v7901
    %v8022 = vunpack.c.h.b16 %v7901
    %v8023 = vunpack.c.l.b16 %v7902
    %v8024 = vunpack.c.h.b16 %v7902
    %v8025 = vunpack.c.l.b16 %v7903
    %v8026 = vunpack.c.h.b16 %v7903
    %v8027 = vunpack.c.l.b16 %v7904
    %v8028 = vunpack.c.h.b16 %v7904
    %v8029 = vunpack.c.l.b16 %v7905
    %v8030 = vunpack.c.h.b16 %v7905
    %v8031 = vunpack.c.l.b16 %v7906
    %v8032 = vunpack.c.h.b16 %v7906
    %v8033 = vunpack.c.l.b16 %v7907
    %v8034 = vunpack.c.h.b16 %v7907
    %v8035 = vunpack.c.l.b16 %v7908
    %v8036 = vunpack.c.h.b16 %v7908
    %v8037 = vunpack.c.l.b16 %v7909
    %v8038 = vunpack.c.h.b16 %v7909
    %v8039 = vunpack.c.l.b16 %v7910
    %v8040 = vunpack.c.h.b16 %v7910
    %v8041 = vunpack.c.l.b16 %v7911
    %v8042 = vunpack.c.h.b16 %v7911
    %v8043 = vunpack.c.l.b16 %v7912
    %v8044 = vunpack.c.h.b16 %v7912
    %v8045 = vunpack.c.l.b16 %v7913
    %v8046 = vunpack.c.h.b16 %v7913
    %v8047 = vunpack.c.l.b16 %v7914
    %v8048 = vunpack.c.h.b16 %v7914
    %v8049 = vunpack.c.l.b16 %v7915
    %v8050 = vunpack.c.h.b16 %v7915
    %v8051 = vpack.c.b16 %v7989, %v7987
    %v8052 = vpack.c.b16 %v7990, %v7988
    %v8053 = vpack.c.b16 %v7993, %v7991
    %v8054 = vpack.c.b16 %v7994, %v7992
    %v8055 = vpack.c.b16 %v7997, %v7995
    %v8056 = vpack.c.b16 %v7998, %v7996
    %v8057 = vpack.c.b16 %v8001, %v7999
    %v8058 = vpack.c.b16 %v8002, %v8000
    %v8059 = vpack.c.b16 %v8005, %v8003
    %v8060 = vpack.c.b16 %v8006, %v8004
    %v8061 = vpack.c.b16 %v8009, %v8007
    %v8062 = vpack.c.b16 %v8010, %v8008
    %v8063 = vpack.c.b16 %v8013, %v8011
    %v8064 = vpack.c.b16 %v8014, %v8012
    %v8065 = vpack.c.b16 %v8017, %v8015
    %v8066 = vpack.c.b16 %v8018, %v8016
    %v8067 = vpack.c.b16 %v8021, %v8019
    %v8068 = vpack.c.b16 %v8022, %v8020
    %v8069 = vpack.c.b16 %v8025, %v8023
    %v8070 = vpack.c.b16 %v8026, %v8024
    %v8071 = vpack.c.b16 %v8029, %v8027
    %v8072 = vpack.c.b16 %v8030, %v8028
    %v8073 = vpack.c.b16 %v8033, %v8031
    %v8074 = vpack.c.b16 %v8034, %v8032
    %v8075 = vpack.c.b16 %v8037, %v8035
    %v8076 = vpack.c.b16 %v8038, %v8036
    %v8077 = vpack.c.b16 %v8041, %v8039
    %v8078 = vpack.c.b16 %v8042, %v8040
    %v8079 = vpack.c.b16 %v8045, %v8043
    %v8080 = vpack.c.b16 %v8046, %v8044
    %v8081 = vpack.c.b16 %v8049, %v8047
    %v8082 = vpack.c.b16 %v8050, %v8048
    %8115 = vmatprep.subr.bf16.mxu0 %v8066
    %8116 = vmatpush1.bf16.msra.mxu0 %v8065
    %8117 = vmatprep.subr.bf16.mxu0 %v8064
    %8118 = vmatpush1.bf16.msra.mxu0 %v8063
    %8119 = vmatprep.subr.bf16.mxu0 %v8062
    %8120 = vmatpush1.bf16.msra.mxu0 %v8061
    %8121 = vmatprep.subr.bf16.mxu0 %v8060
    %8122 = vmatpush1.bf16.msra.mxu0 %v8059
    %8123 = vmatprep.subr.bf16.mxu0 %v8058
    %8124 = vmatpush1.bf16.msra.mxu0 %v8057
    %8125 = vmatprep.subr.bf16.mxu0 %v8056
    %8126 = vmatpush1.bf16.msra.mxu0 %v8055
    %8127 = vmatprep.subr.bf16.mxu0 %v8054
    %8128 = vmatpush1.bf16.msra.mxu0 %v8053
    %8129 = vmatprep.subr.bf16.mxu0 %v8052
    %8130 = vmatpush1.bf16.msra.mxu0 %v8051
    %8131 = vmatprep.subr.bf16.mxu0 %v8082
    %8132 = vmatpush2.bf16.msra.mxu0 %v8081
    %8133 = vmatprep.subr.bf16.mxu0 %v8080
    %8134 = vmatpush2.bf16.msra.mxu0 %v8079
    %8135 = vmatprep.subr.bf16.mxu0 %v8078
    %8136 = vmatpush2.bf16.msra.mxu0 %v8077
    %8137 = vmatprep.subr.bf16.mxu0 %v8076
    %8138 = vmatpush2.bf16.msra.mxu0 %v8075
    %8139 = vmatprep.subr.bf16.mxu0 %v8074
    %8140 = vmatpush2.bf16.msra.mxu0 %v8073
    %8141 = vmatprep.subr.bf16.mxu0 %v8072
    %8142 = vmatpush2.bf16.msra.mxu0 %v8071
    %8143 = vmatprep.subr.bf16.mxu0 %v8070
    %8144 = vmatpush2.bf16.msra.mxu0 %v8069
    %8145 = vmatprep.subr.bf16.mxu0 %v8068
    %8146 = vmatpush2.bf16.msra.mxu0 %v8067
    %8147 = vmatprep.mubr.bf16.mxu0 %v7938
    %8148 = vmatmul.mubr.bf16.gmra.mxu0 %v7929
    %v8149 = vpop.f32.mrf.mxu0
    %v8150 = vadd.f32 0.0, %v8149
    %v8151 = vpop.f32.mrf.mxu0
    %v8152 = vadd.f32 0.0, %v8151
    %v8153 = vpop.f32.mrf.mxu0
    %v8154 = vadd.f32 0.0, %v8153
    %v8155 = vpop.f32.mrf.mxu0
    %v8156 = vadd.f32 0.0, %v8155
    %8157 = vmatprep.mubr.bf16.mxu0 %v7950
    %8158 = vmatmul.mubr.bf16.gmra.mxu0 %v7944
    %v8159 = vpop.f32.mrf.mxu0
    %v8160 = vadd.f32 0.0, %v8159
    %v8161 = vpop.f32.mrf.mxu0
    %v8162 = vadd.f32 0.0, %v8161
    %v8163 = vpop.f32.mrf.mxu0
    %v8164 = vadd.f32 0.0, %v8163
    %v8165 = vpop.f32.mrf.mxu0
    %v8166 = vadd.f32 0.0, %v8165
    %8167 = vdwg.mxu0
    %v8168 = vadd.f32 %v7864, %v8150
    %v8169 = vadd.f32 %v7866, %v8152
    %v8170 = vadd.f32 %v7868, %v8154
    %v8171 = vadd.f32 %v7870, %v8156
    %v8172 = vadd.f32 %v7874, %v8160
    %v8173 = vadd.f32 %v7876, %v8162
    %v8174 = vadd.f32 %v7878, %v8164
    %v8175 = vadd.f32 %v7880, %v8166
    %v8176 = vld [vmem:[#allocation5] sm:$0xff]
    %v8177 = vld [vmem:[#allocation5 + $0x8] sm:$0xff]
    %v8178 = vld [vmem:[#allocation5 + $0x10] sm:$0xff]
    %v8179 = vld [vmem:[#allocation5 + $0x18] sm:$0xff]
    %s8180 = scalar_lea.vmem [#allocation8], 2816
    %v8181 = vld [vmem:[%s8180] sm:$0xff]
    %v8182 = vld [vmem:[%s8180 + $0x8] sm:$0xff]
    %v8183 = vld [vmem:[%s8180 + $0x10] sm:$0xff]
    %v8184 = vld [vmem:[%s8180 + $0x18] sm:$0xff]
    %v8185 = vld [vmem:[%s8180 + $0x20] sm:$0xff]
    %v8186 = vld [vmem:[%s8180 + $0x28] sm:$0xff]
    %v8187 = vld [vmem:[%s8180 + $0x30] sm:$0xff]
    %v8188 = vld [vmem:[%s8180 + $0x38] sm:$0xff]
    %v8189 = vld [vmem:[%s8180 + $0x40] sm:$0xff]
    %v8190 = vld [vmem:[%s8180 + $0x48] sm:$0xff]
    %v8191 = vld [vmem:[%s8180 + $0x50] sm:$0xff]
    %v8192 = vld [vmem:[%s8180 + $0x58] sm:$0xff]
    %v8193 = vld [vmem:[%s8180 + $0x60] sm:$0xff]
    %v8194 = vld [vmem:[%s8180 + $0x68] sm:$0xff]
    %v8195 = vld [vmem:[%s8180 + $0x70] sm:$0xff]
    %v8196 = vld [vmem:[%s8180 + $0x78] sm:$0xff]
    %v8197 = vld [vmem:[%s8180 + $0x80] sm:$0xff]
    %v8198 = vld [vmem:[%s8180 + $0x88] sm:$0xff]
    %v8199 = vld [vmem:[%s8180 + $0x90] sm:$0xff]
    %v8200 = vld [vmem:[%s8180 + $0x98] sm:$0xff]
    %v8201 = vld [vmem:[%s8180 + $0xa0] sm:$0xff]
    %v8202 = vld [vmem:[%s8180 + $0xa8] sm:$0xff]
    %v8203 = vld [vmem:[%s8180 + $0xb0] sm:$0xff]
    %v8204 = vld [vmem:[%s8180 + $0xb8] sm:$0xff]
    %v8205 = vld [vmem:[%s8180 + $0xc0] sm:$0xff]
    %v8206 = vld [vmem:[%s8180 + $0xc8] sm:$0xff]
    %v8207 = vld [vmem:[%s8180 + $0xd0] sm:$0xff]
    %v8208 = vld [vmem:[%s8180 + $0xd8] sm:$0xff]
    %v8209 = vld [vmem:[%s8180 + $0xe0] sm:$0xff]
    %v8210 = vld [vmem:[%s8180 + $0xe8] sm:$0xff]
    %v8211 = vld [vmem:[%s8180 + $0xf0] sm:$0xff]
    %v8212 = vld [vmem:[%s8180 + $0xf8] sm:$0xff]
    %v8217 = vunpack.c.l.b16 %v8176
    %v8218 = vunpack.c.h.b16 %v8176
    %v8219 = vunpack.c.l.b16 %v8177
    %v8220 = vunpack.c.h.b16 %v8177
    %v8221 = vunpack.c.l.b16 %v8178
    %v8222 = vunpack.c.h.b16 %v8178
    %v8223 = vunpack.c.l.b16 %v8179
    %v8224 = vunpack.c.h.b16 %v8179
    %v8225 = vpack.c.b16 %v8219, %v8217
    %v8226 = vpack.c.b16 %v8220, %v8218
    %v8227 = vpack.c.b16 %v8223, %v8221
    %v8228 = vpack.c.b16 %v8224, %v8222
    %v8265 = vunpack.c.l.b16 %v8181
    %v8266 = vunpack.c.h.b16 %v8181
    %v8267 = vunpack.c.l.b16 %v8182
    %v8268 = vunpack.c.h.b16 %v8182
    %v8269 = vunpack.c.l.b16 %v8183
    %v8270 = vunpack.c.h.b16 %v8183
    %v8271 = vunpack.c.l.b16 %v8184
    %v8272 = vunpack.c.h.b16 %v8184
    %v8273 = vunpack.c.l.b16 %v8185
    %v8274 = vunpack.c.h.b16 %v8185
    %v8275 = vunpack.c.l.b16 %v8186
    %v8276 = vunpack.c.h.b16 %v8186
    %v8277 = vunpack.c.l.b16 %v8187
    %v8278 = vunpack.c.h.b16 %v8187
    %v8279 = vunpack.c.l.b16 %v8188
    %v8280 = vunpack.c.h.b16 %v8188
    %v8281 = vunpack.c.l.b16 %v8189
    %v8282 = vunpack.c.h.b16 %v8189
    %v8283 = vunpack.c.l.b16 %v8190
    %v8284 = vunpack.c.h.b16 %v8190
    %v8285 = vunpack.c.l.b16 %v8191
    %v8286 = vunpack.c.h.b16 %v8191
    %v8287 = vunpack.c.l.b16 %v8192
    %v8288 = vunpack.c.h.b16 %v8192
    %v8289 = vunpack.c.l.b16 %v8193
    %v8290 = vunpack.c.h.b16 %v8193
    %v8291 = vunpack.c.l.b16 %v8194
    %v8292 = vunpack.c.h.b16 %v8194
    %v8293 = vunpack.c.l.b16 %v8195
    %v8294 = vunpack.c.h.b16 %v8195
    %v8295 = vunpack.c.l.b16 %v8196
    %v8296 = vunpack.c.h.b16 %v8196
    %v8297 = vunpack.c.l.b16 %v8197
    %v8298 = vunpack.c.h.b16 %v8197
    %v8299 = vunpack.c.l.b16 %v8198
    %v8300 = vunpack.c.h.b16 %v8198
    %v8301 = vunpack.c.l.b16 %v8199
    %v8302 = vunpack.c.h.b16 %v8199
    %v8303 = vunpack.c.l.b16 %v8200
    %v8304 = vunpack.c.h.b16 %v8200
    %v8305 = vunpack.c.l.b16 %v8201
    %v8306 = vunpack.c.h.b16 %v8201
    %v8307 = vunpack.c.l.b16 %v8202
    %v8308 = vunpack.c.h.b16 %v8202
    %v8309 = vunpack.c.l.b16 %v8203
    %v8310 = vunpack.c.h.b16 %v8203
    %v8311 = vunpack.c.l.b16 %v8204
    %v8312 = vunpack.c.h.b16 %v8204
    %v8313 = vunpack.c.l.b16 %v8205
    %v8314 = vunpack.c.h.b16 %v8205
    %v8315 = vunpack.c.l.b16 %v8206
    %v8316 = vunpack.c.h.b16 %v8206
    %v8317 = vunpack.c.l.b16 %v8207
    %v8318 = vunpack.c.h.b16 %v8207
    %v8319 = vunpack.c.l.b16 %v8208
    %v8320 = vunpack.c.h.b16 %v8208
    %v8321 = vunpack.c.l.b16 %v8209
    %v8322 = vunpack.c.h.b16 %v8209
    %v8323 = vunpack.c.l.b16 %v8210
    %v8324 = vunpack.c.h.b16 %v8210
    %v8325 = vunpack.c.l.b16 %v8211
    %v8326 = vunpack.c.h.b16 %v8211
    %v8327 = vunpack.c.l.b16 %v8212
    %v8328 = vunpack.c.h.b16 %v8212
    %v8329 = vpack.c.b16 %v8267, %v8265
    %v8330 = vpack.c.b16 %v8268, %v8266
    %v8331 = vpack.c.b16 %v8271, %v8269
    %v8332 = vpack.c.b16 %v8272, %v8270
    %v8333 = vpack.c.b16 %v8275, %v8273
    %v8334 = vpack.c.b16 %v8276, %v8274
    %v8335 = vpack.c.b16 %v8279, %v8277
    %v8336 = vpack.c.b16 %v8280, %v8278
    %v8337 = vpack.c.b16 %v8283, %v8281
    %v8338 = vpack.c.b16 %v8284, %v8282
    %v8339 = vpack.c.b16 %v8287, %v8285
    %v8340 = vpack.c.b16 %v8288, %v8286
    %v8341 = vpack.c.b16 %v8291, %v8289
    %v8342 = vpack.c.b16 %v8292, %v8290
    %v8343 = vpack.c.b16 %v8295, %v8293
    %v8344 = vpack.c.b16 %v8296, %v8294
    %v8345 = vpack.c.b16 %v8299, %v8297
    %v8346 = vpack.c.b16 %v8300, %v8298
    %v8347 = vpack.c.b16 %v8303, %v8301
    %v8348 = vpack.c.b16 %v8304, %v8302
    %v8349 = vpack.c.b16 %v8307, %v8305
    %v8350 = vpack.c.b16 %v8308, %v8306
    %v8351 = vpack.c.b16 %v8311, %v8309
    %v8352 = vpack.c.b16 %v8312, %v8310
    %v8353 = vpack.c.b16 %v8315, %v8313
    %v8354 = vpack.c.b16 %v8316, %v8314
    %v8355 = vpack.c.b16 %v8319, %v8317
    %v8356 = vpack.c.b16 %v8320, %v8318
    %v8357 = vpack.c.b16 %v8323, %v8321
    %v8358 = vpack.c.b16 %v8324, %v8322
    %v8359 = vpack.c.b16 %v8327, %v8325
    %v8360 = vpack.c.b16 %v8328, %v8326
    %8393 = vmatprep.subr.bf16.mxu0 %v8344
    %8394 = vmatpush1.bf16.msra.mxu0 %v8343
    %8395 = vmatprep.subr.bf16.mxu0 %v8342
    %8396 = vmatpush1.bf16.msra.mxu0 %v8341
    %8397 = vmatprep.subr.bf16.mxu0 %v8340
    %8398 = vmatpush1.bf16.msra.mxu0 %v8339
    %8399 = vmatprep.subr.bf16.mxu0 %v8338
    %8400 = vmatpush1.bf16.msra.mxu0 %v8337
    %8401 = vmatprep.subr.bf16.mxu0 %v8336
    %8402 = vmatpush1.bf16.msra.mxu0 %v8335
    %8403 = vmatprep.subr.bf16.mxu0 %v8334
    %8404 = vmatpush1.bf16.msra.mxu0 %v8333
    %8405 = vmatprep.subr.bf16.mxu0 %v8332
    %8406 = vmatpush1.bf16.msra.mxu0 %v8331
    %8407 = vmatprep.subr.bf16.mxu0 %v8330
    %8408 = vmatpush1.bf16.msra.mxu0 %v8329
    %8409 = vmatprep.subr.bf16.mxu0 %v8360
    %8410 = vmatpush2.bf16.msra.mxu0 %v8359
    %8411 = vmatprep.subr.bf16.mxu0 %v8358
    %8412 = vmatpush2.bf16.msra.mxu0 %v8357
    %8413 = vmatprep.subr.bf16.mxu0 %v8356
    %8414 = vmatpush2.bf16.msra.mxu0 %v8355
    %8415 = vmatprep.subr.bf16.mxu0 %v8354
    %8416 = vmatpush2.bf16.msra.mxu0 %v8353
    %8417 = vmatprep.subr.bf16.mxu0 %v8352
    %8418 = vmatpush2.bf16.msra.mxu0 %v8351
    %8419 = vmatprep.subr.bf16.mxu0 %v8350
    %8420 = vmatpush2.bf16.msra.mxu0 %v8349
    %8421 = vmatprep.subr.bf16.mxu0 %v8348
    %8422 = vmatpush2.bf16.msra.mxu0 %v8347
    %8423 = vmatprep.subr.bf16.mxu0 %v8346
    %8424 = vmatpush2.bf16.msra.mxu0 %v8345
    %8425 = vmatprep.mubr.bf16.mxu0 %v8226
    %8426 = vmatmul.mubr.bf16.gmra.mxu0 %v8225
    %v8427 = vpop.f32.mrf.mxu0
    %v8428 = vadd.f32 0.0, %v8427
    %v8429 = vpop.f32.mrf.mxu0
    %v8430 = vadd.f32 0.0, %v8429
    %v8431 = vpop.f32.mrf.mxu0
    %v8432 = vadd.f32 0.0, %v8431
    %v8433 = vpop.f32.mrf.mxu0
    %v8434 = vadd.f32 0.0, %v8433
    %8435 = vmatprep.mubr.bf16.mxu0 %v8228
    %8436 = vmatmul.mubr.bf16.gmra.mxu0 %v8227
    %v8437 = vpop.f32.mrf.mxu0
    %v8438 = vadd.f32 0.0, %v8437
    %v8439 = vpop.f32.mrf.mxu0
    %v8440 = vadd.f32 0.0, %v8439
    %v8441 = vpop.f32.mrf.mxu0
    %v8442 = vadd.f32 0.0, %v8441
    %v8443 = vpop.f32.mrf.mxu0
    %v8444 = vadd.f32 0.0, %v8443
    %8445 = vdwg.mxu0
    %v8446 = vadd.f32 %v8168, %v8428
    %v8447 = vadd.f32 %v8169, %v8430
    %v8448 = vadd.f32 %v8170, %v8432
    %v8449 = vadd.f32 %v8171, %v8434
    %v8450 = vadd.f32 %v8172, %v8438
    %v8451 = vadd.f32 %v8173, %v8440
    %v8452 = vadd.f32 %v8174, %v8442
    %v8453 = vadd.f32 %v8175, %v8444
    %8454 = vst [vmem:[#allocation2] sm:$0xff] %v8446
    %8455 = vst [vmem:[#allocation2 + $0x8] sm:$0xff] %v8447
    %8456 = vst [vmem:[#allocation2 + $0x10] sm:$0xff] %v8448
    %8457 = vst [vmem:[#allocation2 + $0x18] sm:$0xff] %v8449
    %8458 = vst [vmem:[#allocation2 + $0x20] sm:$0xff] %v8450
    %8459 = vst [vmem:[#allocation2 + $0x28] sm:$0xff] %v8451
    %8460 = vst [vmem:[#allocation2 + $0x30] sm:$0xff] %v8452
    %8461 = vst [vmem:[#allocation2 + $0x38] sm:$0xff] %v8453
    %v8462 = vadd.f32 %v8446, %v8448
    %v8463 = vadd.f32 %v8462, %v8450
    %v8464 = vadd.f32 %v8463, %v8452
    %v8465 = vrot.slane %v8464, 4
    %v8466 = vadd.f32 %v8464, %v8465
    %v8467 = vrot.slane %v8466, 2
    %v8468 = vadd.f32 %v8466, %v8467
    %v8469 = vrot.slane %v8468, 1
    %v8470 = vadd.f32 %v8468, %v8469
    %v8471 = vadd.f32 %v8447, %v8449
    %v8472 = vadd.f32 %v8471, %v8451
    %v8473 = vadd.f32 %v8472, %v8453
    %v8474 = vrot.slane %v8473, 4
    %v8475 = vadd.f32 %v8473, %v8474
    %v8476 = vrot.slane %v8475, 2
    %v8477 = vadd.f32 %v8475, %v8476
    %v8478 = vrot.slane %v8477, 1
    %v8479 = vadd.f32 %v8477, %v8478
    %v8480 = vadd.f32 %v8470, 0.0
    %v8481 = vadd.f32 %v8479, 0.0
    %v8482 = vmul.f32 %v8446, %v8446
    %v8483 = vmul.f32 %v8447, %v8447
    %v8484 = vmul.f32 %v8448, %v8448
    %v8485 = vmul.f32 %v8449, %v8449
    %v8486 = vmul.f32 %v8450, %v8450
    %v8487 = vmul.f32 %v8451, %v8451
    %v8488 = vmul.f32 %v8452, %v8452
    %v8489 = vmul.f32 %v8453, %v8453
    %v8490 = vadd.f32 %v8482, %v8484
    %v8491 = vadd.f32 %v8490, %v8486
    %v8492 = vadd.f32 %v8491, %v8488
    %v8493 = vrot.slane %v8492, 4
    %v8494 = vadd.f32 %v8492, %v8493
    %v8495 = vrot.slane %v8494, 2
    %v8496 = vadd.f32 %v8494, %v8495
    %v8497 = vrot.slane %v8496, 1
    %v8498 = vadd.f32 %v8496, %v8497
    %v8499 = vadd.f32 %v8483, %v8485
    %v8500 = vadd.f32 %v8499, %v8487
    %v8501 = vadd.f32 %v8500, %v8489
    %v8502 = vrot.slane %v8501, 4
    %v8503 = vadd.f32 %v8501, %v8502
    %v8504 = vrot.slane %v8503, 2
    %v8505 = vadd.f32 %v8503, %v8504
    %v8506 = vrot.slane %v8505, 1
    %v8507 = vadd.f32 %v8505, %v8506
    %v8508 = vadd.f32 %v8498, 0.0
    %v8509 = vadd.f32 %v8507, 0.0
    %v8510 = vld [vmem:[#allocation5 + $0x20] sm:$0x88]
    %v8511 = vld [vmem:[#allocation5 + $0x28] sm:$0xff]
    %v8512 = vld [vmem:[#allocation5 + $0x30] sm:$0xff]
    %v8513 = vld [vmem:[#allocation5 + $0x38] sm:$0xff]
    %v8514 = vld [vmem:[#allocation5 + $0x40] sm:$0x77]
    %v8515 = vld [vmem:[%s7293] sm:$0xff]
    %v8516 = vld [vmem:[%s7293 + $0x8] sm:$0xff]
    %v8517 = vld [vmem:[%s7293 + $0x10] sm:$0xff]
    %v8518 = vld [vmem:[%s7293 + $0x18] sm:$0xff]
    %v8519 = vld [vmem:[%s7293 + $0x20] sm:$0xff]
    %v8520 = vld [vmem:[%s7293 + $0x28] sm:$0xff]
    %v8521 = vld [vmem:[%s7293 + $0x30] sm:$0xff]
    %v8522 = vld [vmem:[%s7293 + $0x38] sm:$0xff]
    %v8523 = vld [vmem:[%s7293 + $0x40] sm:$0xff]
    %v8524 = vld [vmem:[%s7293 + $0x48] sm:$0xff]
    %v8525 = vld [vmem:[%s7293 + $0x50] sm:$0xff]
    %v8526 = vld [vmem:[%s7293 + $0x58] sm:$0xff]
    %v8527 = vld [vmem:[%s7293 + $0x60] sm:$0xff]
    %v8528 = vld [vmem:[%s7293 + $0x68] sm:$0xff]
    %v8529 = vld [vmem:[%s7293 + $0x70] sm:$0xff]
    %v8530 = vld [vmem:[%s7293 + $0x78] sm:$0xff]
    %v8531 = vld [vmem:[%s7293 + $0x80] sm:$0xff]
    %v8532 = vld [vmem:[%s7293 + $0x88] sm:$0xff]
    %v8533 = vld [vmem:[%s7293 + $0x90] sm:$0xff]
    %v8534 = vld [vmem:[%s7293 + $0x98] sm:$0xff]
    %v8535 = vld [vmem:[%s7293 + $0xa0] sm:$0xff]
    %v8536 = vld [vmem:[%s7293 + $0xa8] sm:$0xff]
    %v8537 = vld [vmem:[%s7293 + $0xb0] sm:$0xff]
    %v8538 = vld [vmem:[%s7293 + $0xb8] sm:$0xff]
    %v8539 = vld [vmem:[%s7293 + $0xc0] sm:$0xff]
    %v8540 = vld [vmem:[%s7293 + $0xc8] sm:$0xff]
    %v8541 = vld [vmem:[%s7293 + $0xd0] sm:$0xff]
    %v8542 = vld [vmem:[%s7293 + $0xd8] sm:$0xff]
    %v8543 = vld [vmem:[%s7293 + $0xe0] sm:$0xff]
    %v8544 = vld [vmem:[%s7293 + $0xe8] sm:$0xff]
    %v8545 = vld [vmem:[%s7293 + $0xf0] sm:$0xff]
    %v8546 = vld [vmem:[%s7293 + $0xf8] sm:$0xff]
    %v8547 = vld [vmem:[#allocation5 + $0x20] sm:$0xcc]
    %v8548 = vld [vmem:[%s7327] sm:$0xff]
    %v8549 = vld [vmem:[%s7327 + $0x8] sm:$0xff]
    %v8550 = vld [vmem:[%s7327 + $0x10] sm:$0xff]
    %v8551 = vld [vmem:[%s7327 + $0x18] sm:$0xff]
    %v8552 = vld [vmem:[%s7327 + $0x20] sm:$0xff]
    %v8553 = vld [vmem:[%s7327 + $0x28] sm:$0xff]
    %v8554 = vld [vmem:[%s7327 + $0x30] sm:$0xff]
    %v8555 = vld [vmem:[%s7327 + $0x38] sm:$0xff]
    %v8556 = vld [vmem:[%s7327 + $0x40] sm:$0xff]
    %v8557 = vld [vmem:[%s7327 + $0x48] sm:$0xff]
    %v8558 = vld [vmem:[%s7327 + $0x50] sm:$0xff]
    %v8559 = vld [vmem:[%s7327 + $0x58] sm:$0xff]
    %v8560 = vld [vmem:[%s7327 + $0x60] sm:$0xff]
    %v8561 = vld [vmem:[%s7327 + $0x68] sm:$0xff]
    %v8562 = vld [vmem:[%s7327 + $0x70] sm:$0xff]
    %v8563 = vld [vmem:[%s7327 + $0x78] sm:$0xff]
    %v8564 = vld [vmem:[%s7327 + $0x80] sm:$0xff]
    %v8565 = vld [vmem:[%s7327 + $0x88] sm:$0xff]
    %v8566 = vld [vmem:[%s7327 + $0x90] sm:$0xff]
    %v8567 = vld [vmem:[%s7327 + $0x98] sm:$0xff]
    %v8568 = vld [vmem:[%s7327 + $0xa0] sm:$0xff]
    %v8569 = vld [vmem:[%s7327 + $0xa8] sm:$0xff]
    %v8570 = vld [vmem:[%s7327 + $0xb0] sm:$0xff]
    %v8571 = vld [vmem:[%s7327 + $0xb8] sm:$0xff]
    %v8572 = vld [vmem:[%s7327 + $0xc0] sm:$0xff]
    %v8573 = vld [vmem:[%s7327 + $0xc8] sm:$0xff]
    %v8574 = vld [vmem:[%s7327 + $0xd0] sm:$0xff]
    %v8575 = vld [vmem:[%s7327 + $0xd8] sm:$0xff]
    %v8576 = vld [vmem:[%s7327 + $0xe0] sm:$0xff]
    %v8577 = vld [vmem:[%s7327 + $0xe8] sm:$0xff]
    %v8578 = vld [vmem:[%s7327 + $0xf0] sm:$0xff]
    %v8579 = vld [vmem:[%s7327 + $0xf8] sm:$0xff]
    %v8585 = vunpack.c.l.b16 %v8547
    %v8586 = vunpack.c.h.b16 %v8547
    %v8587 = vunpack.c.l.b16 %v8511
    %v8588 = vunpack.c.h.b16 %v8511
    %v8589 = vunpack.c.l.b16 %v8512
    %v8590 = vunpack.c.h.b16 %v8512
    %v8591 = vunpack.c.l.b16 %v8513
    %v8592 = vunpack.c.h.b16 %v8513
    %v8593 = vunpack.c.l.b16 %v8514
    %v8594 = vunpack.c.h.b16 %v8514
    %v8595 = vpack.c.b16 %v8587, %v8585
    %v8596 = vpack.c.b16 %v8588, %v8586
    %v8597 = vpack.c.b16 %v8591, %v8589
    %v8598 = vpack.c.b16 %v8592, %v8590
    %v8599 = vpack.c.b16 %v8593, %v8593
    %v8600 = vpack.c.b16 %v8594, %v8594
    %v8602 = vshrl.u32 %v8595, 16
    %v8604 = vrot.slane %v8602, 2
    %v8605 = vshll.u32 %v8595, 16
    %v8607 = vrot.slane %v8605, 3
    %v8608 = vor.u32 %v8604, %v8607
    %v8610 = vshrl.u32 %v8597, 16
    %v8612 = vrot.slane %v8610, 2
    %v8613 = vshll.u32 %v8597, 16
    %v8615 = vrot.slane %v8613, 3
    %v8616 = vor.u32 %v8612, %v8615
    %v8617 = vsel %vm807, %v8608, %v8616
    %v8619 = vshrl.u32 %v8596, 16
    %v8621 = vrot.slane %v8619, 2
    %v8622 = vshll.u32 %v8596, 16
    %v8624 = vrot.slane %v8622, 3
    %v8625 = vor.u32 %v8621, %v8624
    %v8627 = vshrl.u32 %v8598, 16
    %v8629 = vrot.slane %v8627, 2
    %v8630 = vshll.u32 %v8598, 16
    %v8632 = vrot.slane %v8630, 3
    %v8633 = vor.u32 %v8629, %v8632
    %v8634 = vsel %vm807, %v8625, %v8633
    %v8636 = vshrl.u32 %v8599, 16
    %v8638 = vrot.slane %v8636, 2
    %v8639 = vshll.u32 %v8599, 16
    %v8641 = vrot.slane %v8639, 3
    %v8642 = vor.u32 %v8638, %v8641
    %v8643 = vsel %vm807, %v8616, %v8642
    %v8645 = vshrl.u32 %v8600, 16
    %v8647 = vrot.slane %v8645, 2
    %v8648 = vshll.u32 %v8600, 16
    %v8650 = vrot.slane %v8648, 3
    %v8651 = vor.u32 %v8647, %v8650
    %v8652 = vsel %vm807, %v8633, %v8651
    %v8689 = vunpack.c.l.b16 %v8548
    %v8690 = vunpack.c.h.b16 %v8548
    %v8691 = vunpack.c.l.b16 %v8549
    %v8692 = vunpack.c.h.b16 %v8549
    %v8693 = vunpack.c.l.b16 %v8550
    %v8694 = vunpack.c.h.b16 %v8550
    %v8695 = vunpack.c.l.b16 %v8551
    %v8696 = vunpack.c.h.b16 %v8551
    %v8697 = vunpack.c.l.b16 %v8552
    %v8698 = vunpack.c.h.b16 %v8552
    %v8699 = vunpack.c.l.b16 %v8553
    %v8700 = vunpack.c.h.b16 %v8553
    %v8701 = vunpack.c.l.b16 %v8554
    %v8702 = vunpack.c.h.b16 %v8554
    %v8703 = vunpack.c.l.b16 %v8555
    %v8704 = vunpack.c.h.b16 %v8555
    %v8705 = vunpack.c.l.b16 %v8556
    %v8706 = vunpack.c.h.b16 %v8556
    %v8707 = vunpack.c.l.b16 %v8557
    %v8708 = vunpack.c.h.b16 %v8557
    %v8709 = vunpack.c.l.b16 %v8558
    %v8710 = vunpack.c.h.b16 %v8558
    %v8711 = vunpack.c.l.b16 %v8559
    %v8712 = vunpack.c.h.b16 %v8559
    %v8713 = vunpack.c.l.b16 %v8560
    %v8714 = vunpack.c.h.b16 %v8560
    %v8715 = vunpack.c.l.b16 %v8561
    %v8716 = vunpack.c.h.b16 %v8561
    %v8717 = vunpack.c.l.b16 %v8562
    %v8718 = vunpack.c.h.b16 %v8562
    %v8719 = vunpack.c.l.b16 %v8563
    %v8720 = vunpack.c.h.b16 %v8563
    %v8721 = vunpack.c.l.b16 %v8564
    %v8722 = vunpack.c.h.b16 %v8564
    %v8723 = vunpack.c.l.b16 %v8565
    %v8724 = vunpack.c.h.b16 %v8565
    %v8725 = vunpack.c.l.b16 %v8566
    %v8726 = vunpack.c.h.b16 %v8566
    %v8727 = vunpack.c.l.b16 %v8567
    %v8728 = vunpack.c.h.b16 %v8567
    %v8729 = vunpack.c.l.b16 %v8568
    %v8730 = vunpack.c.h.b16 %v8568
    %v8731 = vunpack.c.l.b16 %v8569
    %v8732 = vunpack.c.h.b16 %v8569
    %v8733 = vunpack.c.l.b16 %v8570
    %v8734 = vunpack.c.h.b16 %v8570
    %v8735 = vunpack.c.l.b16 %v8571
    %v8736 = vunpack.c.h.b16 %v8571
    %v8737 = vunpack.c.l.b16 %v8572
    %v8738 = vunpack.c.h.b16 %v8572
    %v8739 = vunpack.c.l.b16 %v8573
    %v8740 = vunpack.c.h.b16 %v8573
    %v8741 = vunpack.c.l.b16 %v8574
    %v8742 = vunpack.c.h.b16 %v8574
    %v8743 = vunpack.c.l.b16 %v8575
    %v8744 = vunpack.c.h.b16 %v8575
    %v8745 = vunpack.c.l.b16 %v8576
    %v8746 = vunpack.c.h.b16 %v8576
    %v8747 = vunpack.c.l.b16 %v8577
    %v8748 = vunpack.c.h.b16 %v8577
    %v8749 = vunpack.c.l.b16 %v8578
    %v8750 = vunpack.c.h.b16 %v8578
    %v8751 = vunpack.c.l.b16 %v8579
    %v8752 = vunpack.c.h.b16 %v8579
    %v8753 = vpack.c.b16 %v8691, %v8689
    %v8754 = vpack.c.b16 %v8692, %v8690
    %v8755 = vpack.c.b16 %v8695, %v8693
    %v8756 = vpack.c.b16 %v8696, %v8694
    %v8757 = vpack.c.b16 %v8699, %v8697
    %v8758 = vpack.c.b16 %v8700, %v8698
    %v8759 = vpack.c.b16 %v8703, %v8701
    %v8760 = vpack.c.b16 %v8704, %v8702
    %v8761 = vpack.c.b16 %v8707, %v8705
    %v8762 = vpack.c.b16 %v8708, %v8706
    %v8763 = vpack.c.b16 %v8711, %v8709
    %v8764 = vpack.c.b16 %v8712, %v8710
    %v8765 = vpack.c.b16 %v8715, %v8713
    %v8766 = vpack.c.b16 %v8716, %v8714
    %v8767 = vpack.c.b16 %v8719, %v8717
    %v8768 = vpack.c.b16 %v8720, %v8718
    %v8769 = vpack.c.b16 %v8723, %v8721
    %v8770 = vpack.c.b16 %v8724, %v8722
    %v8771 = vpack.c.b16 %v8727, %v8725
    %v8772 = vpack.c.b16 %v8728, %v8726
    %v8773 = vpack.c.b16 %v8731, %v8729
    %v8774 = vpack.c.b16 %v8732, %v8730
    %v8775 = vpack.c.b16 %v8735, %v8733
    %v8776 = vpack.c.b16 %v8736, %v8734
    %v8777 = vpack.c.b16 %v8739, %v8737
    %v8778 = vpack.c.b16 %v8740, %v8738
    %v8779 = vpack.c.b16 %v8743, %v8741
    %v8780 = vpack.c.b16 %v8744, %v8742
    %v8781 = vpack.c.b16 %v8747, %v8745
    %v8782 = vpack.c.b16 %v8748, %v8746
    %v8783 = vpack.c.b16 %v8751, %v8749
    %v8784 = vpack.c.b16 %v8752, %v8750
    %8817 = vmatprep.subr.bf16.mxu0 %v8768
    %8818 = vmatpush1.bf16.msra.mxu0 %v8767
    %8819 = vmatprep.subr.bf16.mxu0 %v8766
    %8820 = vmatpush1.bf16.msra.mxu0 %v8765
    %8821 = vmatprep.subr.bf16.mxu0 %v8764
    %8822 = vmatpush1.bf16.msra.mxu0 %v8763
    %8823 = vmatprep.subr.bf16.mxu0 %v8762
    %8824 = vmatpush1.bf16.msra.mxu0 %v8761
    %8825 = vmatprep.subr.bf16.mxu0 %v8760
    %8826 = vmatpush1.bf16.msra.mxu0 %v8759
    %8827 = vmatprep.subr.bf16.mxu0 %v8758
    %8828 = vmatpush1.bf16.msra.mxu0 %v8757
    %8829 = vmatprep.subr.bf16.mxu0 %v8756
    %8830 = vmatpush1.bf16.msra.mxu0 %v8755
    %8831 = vmatprep.subr.bf16.mxu0 %v8754
    %8832 = vmatpush1.bf16.msra.mxu0 %v8753
    %8833 = vmatprep.subr.bf16.mxu0 %v8784
    %8834 = vmatpush2.bf16.msra.mxu0 %v8783
    %8835 = vmatprep.subr.bf16.mxu0 %v8782
    %8836 = vmatpush2.bf16.msra.mxu0 %v8781
    %8837 = vmatprep.subr.bf16.mxu0 %v8780
    %8838 = vmatpush2.bf16.msra.mxu0 %v8779
    %8839 = vmatprep.subr.bf16.mxu0 %v8778
    %8840 = vmatpush2.bf16.msra.mxu0 %v8777
    %8841 = vmatprep.subr.bf16.mxu0 %v8776
    %8842 = vmatpush2.bf16.msra.mxu0 %v8775
    %8843 = vmatprep.subr.bf16.mxu0 %v8774
    %8844 = vmatpush2.bf16.msra.mxu0 %v8773
    %8845 = vmatprep.subr.bf16.mxu0 %v8772
    %8846 = vmatpush2.bf16.msra.mxu0 %v8771
    %8847 = vmatprep.subr.bf16.mxu0 %v8770
    %8848 = vmatpush2.bf16.msra.mxu0 %v8769
    %8849 = vmatprep.mubr.bf16.mxu0 %v8634
    %8850 = vmatmul.mubr.bf16.gmra.mxu0 %v8617
    %v8851 = vpop.f32.mrf.mxu0
    %v8852 = vadd.f32 0.0, %v8851
    %v8853 = vpop.f32.mrf.mxu0
    %v8854 = vadd.f32 0.0, %v8853
    %v8855 = vpop.f32.mrf.mxu0
    %v8856 = vadd.f32 0.0, %v8855
    %v8857 = vpop.f32.mrf.mxu0
    %v8858 = vadd.f32 0.0, %v8857
    %8859 = vmatprep.mubr.bf16.mxu0 %v8652
    %8860 = vmatmul.mubr.bf16.gmra.mxu0 %v8643
    %v8861 = vpop.f32.mrf.mxu0
    %v8862 = vadd.f32 0.0, %v8861
    %v8863 = vpop.f32.mrf.mxu0
    %v8864 = vadd.f32 0.0, %v8863
    %v8865 = vpop.f32.mrf.mxu0
    %v8866 = vadd.f32 0.0, %v8865
    %v8867 = vpop.f32.mrf.mxu0
    %v8868 = vadd.f32 0.0, %v8867
    %8869 = vdwg.mxu0
    %v8871 = vunpack.c.l.b16 %v8510
    %v8872 = vunpack.c.h.b16 %v8510
    %v8873 = vpack.c.b16 %v8587, %v8871
    %v8874 = vpack.c.b16 %v8588, %v8872
    %v8875 = vrot.slane %v8873, 3
    %v8876 = vrot.slane %v8597, 3
    %v8877 = vsel %vm5304, %v8875, %v8876
    %v8878 = vrot.slane %v8874, 3
    %v8879 = vrot.slane %v8598, 3
    %v8880 = vsel %vm5304, %v8878, %v8879
    %v8881 = vrot.slane %v8599, 3
    %v8882 = vsel %vm5304, %v8876, %v8881
    %v8883 = vrot.slane %v8600, 3
    %v8884 = vsel %vm5304, %v8879, %v8883
    %v8921 = vunpack.c.l.b16 %v8515
    %v8922 = vunpack.c.h.b16 %v8515
    %v8923 = vunpack.c.l.b16 %v8516
    %v8924 = vunpack.c.h.b16 %v8516
    %v8925 = vunpack.c.l.b16 %v8517
    %v8926 = vunpack.c.h.b16 %v8517
    %v8927 = vunpack.c.l.b16 %v8518
    %v8928 = vunpack.c.h.b16 %v8518
    %v8929 = vunpack.c.l.b16 %v8519
    %v8930 = vunpack.c.h.b16 %v8519
    %v8931 = vunpack.c.l.b16 %v8520
    %v8932 = vunpack.c.h.b16 %v8520
    %v8933 = vunpack.c.l.b16 %v8521
    %v8934 = vunpack.c.h.b16 %v8521
    %v8935 = vunpack.c.l.b16 %v8522
    %v8936 = vunpack.c.h.b16 %v8522
    %v8937 = vunpack.c.l.b16 %v8523
    %v8938 = vunpack.c.h.b16 %v8523
    %v8939 = vunpack.c.l.b16 %v8524
    %v8940 = vunpack.c.h.b16 %v8524
    %v8941 = vunpack.c.l.b16 %v8525
    %v8942 = vunpack.c.h.b16 %v8525
    %v8943 = vunpack.c.l.b16 %v8526
    %v8944 = vunpack.c.h.b16 %v8526
    %v8945 = vunpack.c.l.b16 %v8527
    %v8946 = vunpack.c.h.b16 %v8527
    %v8947 = vunpack.c.l.b16 %v8528
    %v8948 = vunpack.c.h.b16 %v8528
    %v8949 = vunpack.c.l.b16 %v8529
    %v8950 = vunpack.c.h.b16 %v8529
    %v8951 = vunpack.c.l.b16 %v8530
    %v8952 = vunpack.c.h.b16 %v8530
    %v8953 = vunpack.c.l.b16 %v8531
    %v8954 = vunpack.c.h.b16 %v8531
    %v8955 = vunpack.c.l.b16 %v8532
    %v8956 = vunpack.c.h.b16 %v8532
    %v8957 = vunpack.c.l.b16 %v8533
    %v8958 = vunpack.c.h.b16 %v8533
    %v8959 = vunpack.c.l.b16 %v8534
    %v8960 = vunpack.c.h.b16 %v8534
    %v8961 = vunpack.c.l.b16 %v8535
    %v8962 = vunpack.c.h.b16 %v8535
    %v8963 = vunpack.c.l.b16 %v8536
    %v8964 = vunpack.c.h.b16 %v8536
    %v8965 = vunpack.c.l.b16 %v8537
    %v8966 = vunpack.c.h.b16 %v8537
    %v8967 = vunpack.c.l.b16 %v8538
    %v8968 = vunpack.c.h.b16 %v8538
    %v8969 = vunpack.c.l.b16 %v8539
    %v8970 = vunpack.c.h.b16 %v8539
    %v8971 = vunpack.c.l.b16 %v8540
    %v8972 = vunpack.c.h.b16 %v8540
    %v8973 = vunpack.c.l.b16 %v8541
    %v8974 = vunpack.c.h.b16 %v8541
    %v8975 = vunpack.c.l.b16 %v8542
    %v8976 = vunpack.c.h.b16 %v8542
    %v8977 = vunpack.c.l.b16 %v8543
    %v8978 = vunpack.c.h.b16 %v8543
    %v8979 = vunpack.c.l.b16 %v8544
    %v8980 = vunpack.c.h.b16 %v8544
    %v8981 = vunpack.c.l.b16 %v8545
    %v8982 = vunpack.c.h.b16 %v8545
    %v8983 = vunpack.c.l.b16 %v8546
    %v8984 = vunpack.c.h.b16 %v8546
    %v8985 = vpack.c.b16 %v8923, %v8921
    %v8986 = vpack.c.b16 %v8924, %v8922
    %v8987 = vpack.c.b16 %v8927, %v8925
    %v8988 = vpack.c.b16 %v8928, %v8926
    %v8989 = vpack.c.b16 %v8931, %v8929
    %v8990 = vpack.c.b16 %v8932, %v8930
    %v8991 = vpack.c.b16 %v8935, %v8933
    %v8992 = vpack.c.b16 %v8936, %v8934
    %v8993 = vpack.c.b16 %v8939, %v8937
    %v8994 = vpack.c.b16 %v8940, %v8938
    %v8995 = vpack.c.b16 %v8943, %v8941
    %v8996 = vpack.c.b16 %v8944, %v8942
    %v8997 = vpack.c.b16 %v8947, %v8945
    %v8998 = vpack.c.b16 %v8948, %v8946
    %v8999 = vpack.c.b16 %v8951, %v8949
    %v9000 = vpack.c.b16 %v8952, %v8950
    %v9001 = vpack.c.b16 %v8955, %v8953
    %v9002 = vpack.c.b16 %v8956, %v8954
    %v9003 = vpack.c.b16 %v8959, %v8957
    %v9004 = vpack.c.b16 %v8960, %v8958
    %v9005 = vpack.c.b16 %v8963, %v8961
    %v9006 = vpack.c.b16 %v8964, %v8962
    %v9007 = vpack.c.b16 %v8967, %v8965
    %v9008 = vpack.c.b16 %v8968, %v8966
    %v9009 = vpack.c.b16 %v8971, %v8969
    %v9010 = vpack.c.b16 %v8972, %v8970
    %v9011 = vpack.c.b16 %v8975, %v8973
    %v9012 = vpack.c.b16 %v8976, %v8974
    %v9013 = vpack.c.b16 %v8979, %v8977
    %v9014 = vpack.c.b16 %v8980, %v8978
    %v9015 = vpack.c.b16 %v8983, %v8981
    %v9016 = vpack.c.b16 %v8984, %v8982
    %9049 = vmatprep.subr.bf16.mxu0 %v9000
    %9050 = vmatpush1.bf16.msra.mxu0 %v8999
    %9051 = vmatprep.subr.bf16.mxu0 %v8998
    %9052 = vmatpush1.bf16.msra.mxu0 %v8997
    %9053 = vmatprep.subr.bf16.mxu0 %v8996
    %9054 = vmatpush1.bf16.msra.mxu0 %v8995
    %9055 = vmatprep.subr.bf16.mxu0 %v8994
    %9056 = vmatpush1.bf16.msra.mxu0 %v8993
    %9057 = vmatprep.subr.bf16.mxu0 %v8992
    %9058 = vmatpush1.bf16.msra.mxu0 %v8991
    %9059 = vmatprep.subr.bf16.mxu0 %v8990
    %9060 = vmatpush1.bf16.msra.mxu0 %v8989
    %9061 = vmatprep.subr.bf16.mxu0 %v8988
    %9062 = vmatpush1.bf16.msra.mxu0 %v8987
    %9063 = vmatprep.subr.bf16.mxu0 %v8986
    %9064 = vmatpush1.bf16.msra.mxu0 %v8985
    %9065 = vmatprep.subr.bf16.mxu0 %v9016
    %9066 = vmatpush2.bf16.msra.mxu0 %v9015
    %9067 = vmatprep.subr.bf16.mxu0 %v9014
    %9068 = vmatpush2.bf16.msra.mxu0 %v9013
    %9069 = vmatprep.subr.bf16.mxu0 %v9012
    %9070 = vmatpush2.bf16.msra.mxu0 %v9011
    %9071 = vmatprep.subr.bf16.mxu0 %v9010
    %9072 = vmatpush2.bf16.msra.mxu0 %v9009
    %9073 = vmatprep.subr.bf16.mxu0 %v9008
    %9074 = vmatpush2.bf16.msra.mxu0 %v9007
    %9075 = vmatprep.subr.bf16.mxu0 %v9006
    %9076 = vmatpush2.bf16.msra.mxu0 %v9005
    %9077 = vmatprep.subr.bf16.mxu0 %v9004
    %9078 = vmatpush2.bf16.msra.mxu0 %v9003
    %9079 = vmatprep.subr.bf16.mxu0 %v9002
    %9080 = vmatpush2.bf16.msra.mxu0 %v9001
    %9081 = vmatprep.mubr.bf16.mxu0 %v8880
    %9082 = vmatmul.mubr.bf16.gmra.mxu0 %v8877
    %v9083 = vpop.f32.mrf.mxu0
    %v9084 = vadd.f32 %v8852, %v9083
    %v9085 = vpop.f32.mrf.mxu0
    %v9086 = vadd.f32 %v8854, %v9085
    %v9087 = vpop.f32.mrf.mxu0
    %v9088 = vadd.f32 %v8856, %v9087
    %v9089 = vpop.f32.mrf.mxu0
    %v9090 = vadd.f32 %v8858, %v9089
    %9091 = vmatprep.mubr.bf16.mxu0 %v8884
    %9092 = vmatmul.mubr.bf16.gmra.mxu0 %v8882
    %v9093 = vpop.f32.mrf.mxu0
    %v9094 = vadd.f32 %v8862, %v9093
    %v9095 = vpop.f32.mrf.mxu0
    %v9096 = vadd.f32 %v8864, %v9095
    %v9097 = vpop.f32.mrf.mxu0
    %v9098 = vadd.f32 %v8866, %v9097
    %v9099 = vpop.f32.mrf.mxu0
    %v9100 = vadd.f32 %v8868, %v9099
    %9101 = vdwg.mxu0
    %v9102 = vld [vmem:[#allocation5 + $0x40] sm:$0x33]
    %v9103 = vld [vmem:[%s7883] sm:$0xff]
    %v9104 = vld [vmem:[%s7883 + $0x8] sm:$0xff]
    %v9105 = vld [vmem:[%s7883 + $0x10] sm:$0xff]
    %v9106 = vld [vmem:[%s7883 + $0x18] sm:$0xff]
    %v9107 = vld [vmem:[%s7883 + $0x20] sm:$0xff]
    %v9108 = vld [vmem:[%s7883 + $0x28] sm:$0xff]
    %v9109 = vld [vmem:[%s7883 + $0x30] sm:$0xff]
    %v9110 = vld [vmem:[%s7883 + $0x38] sm:$0xff]
    %v9111 = vld [vmem:[%s7883 + $0x40] sm:$0xff]
    %v9112 = vld [vmem:[%s7883 + $0x48] sm:$0xff]
    %v9113 = vld [vmem:[%s7883 + $0x50] sm:$0xff]
    %v9114 = vld [vmem:[%s7883 + $0x58] sm:$0xff]
    %v9115 = vld [vmem:[%s7883 + $0x60] sm:$0xff]
    %v9116 = vld [vmem:[%s7883 + $0x68] sm:$0xff]
    %v9117 = vld [vmem:[%s7883 + $0x70] sm:$0xff]
    %v9118 = vld [vmem:[%s7883 + $0x78] sm:$0xff]
    %v9119 = vld [vmem:[%s7883 + $0x80] sm:$0xff]
    %v9120 = vld [vmem:[%s7883 + $0x88] sm:$0xff]
    %v9121 = vld [vmem:[%s7883 + $0x90] sm:$0xff]
    %v9122 = vld [vmem:[%s7883 + $0x98] sm:$0xff]
    %v9123 = vld [vmem:[%s7883 + $0xa0] sm:$0xff]
    %v9124 = vld [vmem:[%s7883 + $0xa8] sm:$0xff]
    %v9125 = vld [vmem:[%s7883 + $0xb0] sm:$0xff]
    %v9126 = vld [vmem:[%s7883 + $0xb8] sm:$0xff]
    %v9127 = vld [vmem:[%s7883 + $0xc0] sm:$0xff]
    %v9128 = vld [vmem:[%s7883 + $0xc8] sm:$0xff]
    %v9129 = vld [vmem:[%s7883 + $0xd0] sm:$0xff]
    %v9130 = vld [vmem:[%s7883 + $0xd8] sm:$0xff]
    %v9131 = vld [vmem:[%s7883 + $0xe0] sm:$0xff]
    %v9132 = vld [vmem:[%s7883 + $0xe8] sm:$0xff]
    %v9133 = vld [vmem:[%s7883 + $0xf0] sm:$0xff]
    %v9134 = vld [vmem:[%s7883 + $0xf8] sm:$0xff]
    %v9136 = vunpack.c.l.b16 %v9102
    %v9137 = vunpack.c.h.b16 %v9102
    %v9138 = vpack.c.b16 %v9136, %v9136
    %v9139 = vpack.c.b16 %v9137, %v9137
    %v9140 = vrot.slane %v8595, 2
    %v9141 = vrot.slane %v8597, 2
    %v9142 = vsel %vm5554, %v9140, %v9141
    %v9143 = vrot.slane %v8596, 2
    %v9144 = vrot.slane %v8598, 2
    %v9145 = vsel %vm5554, %v9143, %v9144
    %v9146 = vrot.slane %v9138, 2
    %v9147 = vsel %vm5554, %v9141, %v9146
    %v9148 = vrot.slane %v9139, 2
    %v9149 = vsel %vm5554, %v9144, %v9148
    %v9186 = vunpack.c.l.b16 %v9103
    %v9187 = vunpack.c.h.b16 %v9103
    %v9188 = vunpack.c.l.b16 %v9104
    %v9189 = vunpack.c.h.b16 %v9104
    %v9190 = vunpack.c.l.b16 %v9105
    %v9191 = vunpack.c.h.b16 %v9105
    %v9192 = vunpack.c.l.b16 %v9106
    %v9193 = vunpack.c.h.b16 %v9106
    %v9194 = vunpack.c.l.b16 %v9107
    %v9195 = vunpack.c.h.b16 %v9107
    %v9196 = vunpack.c.l.b16 %v9108
    %v9197 = vunpack.c.h.b16 %v9108
    %v9198 = vunpack.c.l.b16 %v9109
    %v9199 = vunpack.c.h.b16 %v9109
    %v9200 = vunpack.c.l.b16 %v9110
    %v9201 = vunpack.c.h.b16 %v9110
    %v9202 = vunpack.c.l.b16 %v9111
    %v9203 = vunpack.c.h.b16 %v9111
    %v9204 = vunpack.c.l.b16 %v9112
    %v9205 = vunpack.c.h.b16 %v9112
    %v9206 = vunpack.c.l.b16 %v9113
    %v9207 = vunpack.c.h.b16 %v9113
    %v9208 = vunpack.c.l.b16 %v9114
    %v9209 = vunpack.c.h.b16 %v9114
    %v9210 = vunpack.c.l.b16 %v9115
    %v9211 = vunpack.c.h.b16 %v9115
    %v9212 = vunpack.c.l.b16 %v9116
    %v9213 = vunpack.c.h.b16 %v9116
    %v9214 = vunpack.c.l.b16 %v9117
    %v9215 = vunpack.c.h.b16 %v9117
    %v9216 = vunpack.c.l.b16 %v9118
    %v9217 = vunpack.c.h.b16 %v9118
    %v9218 = vunpack.c.l.b16 %v9119
    %v9219 = vunpack.c.h.b16 %v9119
    %v9220 = vunpack.c.l.b16 %v9120
    %v9221 = vunpack.c.h.b16 %v9120
    %v9222 = vunpack.c.l.b16 %v9121
    %v9223 = vunpack.c.h.b16 %v9121
    %v9224 = vunpack.c.l.b16 %v9122
    %v9225 = vunpack.c.h.b16 %v9122
    %v9226 = vunpack.c.l.b16 %v9123
    %v9227 = vunpack.c.h.b16 %v9123
    %v9228 = vunpack.c.l.b16 %v9124
    %v9229 = vunpack.c.h.b16 %v9124
    %v9230 = vunpack.c.l.b16 %v9125
    %v9231 = vunpack.c.h.b16 %v9125
    %v9232 = vunpack.c.l.b16 %v9126
    %v9233 = vunpack.c.h.b16 %v9126
    %v9234 = vunpack.c.l.b16 %v9127
    %v9235 = vunpack.c.h.b16 %v9127
    %v9236 = vunpack.c.l.b16 %v9128
    %v9237 = vunpack.c.h.b16 %v9128
    %v9238 = vunpack.c.l.b16 %v9129
    %v9239 = vunpack.c.h.b16 %v9129
    %v9240 = vunpack.c.l.b16 %v9130
    %v9241 = vunpack.c.h.b16 %v9130
    %v9242 = vunpack.c.l.b16 %v9131
    %v9243 = vunpack.c.h.b16 %v9131
    %v9244 = vunpack.c.l.b16 %v9132
    %v9245 = vunpack.c.h.b16 %v9132
    %v9246 = vunpack.c.l.b16 %v9133
    %v9247 = vunpack.c.h.b16 %v9133
    %v9248 = vunpack.c.l.b16 %v9134
    %v9249 = vunpack.c.h.b16 %v9134
    %v9250 = vpack.c.b16 %v9188, %v9186
    %v9251 = vpack.c.b16 %v9189, %v9187
    %v9252 = vpack.c.b16 %v9192, %v9190
    %v9253 = vpack.c.b16 %v9193, %v9191
    %v9254 = vpack.c.b16 %v9196, %v9194
    %v9255 = vpack.c.b16 %v9197, %v9195
    %v9256 = vpack.c.b16 %v9200, %v9198
    %v9257 = vpack.c.b16 %v9201, %v9199
    %v9258 = vpack.c.b16 %v9204, %v9202
    %v9259 = vpack.c.b16 %v9205, %v9203
    %v9260 = vpack.c.b16 %v9208, %v9206
    %v9261 = vpack.c.b16 %v9209, %v9207
    %v9262 = vpack.c.b16 %v9212, %v9210
    %v9263 = vpack.c.b16 %v9213, %v9211
    %v9264 = vpack.c.b16 %v9216, %v9214
    %v9265 = vpack.c.b16 %v9217, %v9215
    %v9266 = vpack.c.b16 %v9220, %v9218
    %v9267 = vpack.c.b16 %v9221, %v9219
    %v9268 = vpack.c.b16 %v9224, %v9222
    %v9269 = vpack.c.b16 %v9225, %v9223
    %v9270 = vpack.c.b16 %v9228, %v9226
    %v9271 = vpack.c.b16 %v9229, %v9227
    %v9272 = vpack.c.b16 %v9232, %v9230
    %v9273 = vpack.c.b16 %v9233, %v9231
    %v9274 = vpack.c.b16 %v9236, %v9234
    %v9275 = vpack.c.b16 %v9237, %v9235
    %v9276 = vpack.c.b16 %v9240, %v9238
    %v9277 = vpack.c.b16 %v9241, %v9239
    %v9278 = vpack.c.b16 %v9244, %v9242
    %v9279 = vpack.c.b16 %v9245, %v9243
    %v9280 = vpack.c.b16 %v9248, %v9246
    %v9281 = vpack.c.b16 %v9249, %v9247
    %9314 = vmatprep.subr.bf16.mxu0 %v9265
    %9315 = vmatpush1.bf16.msra.mxu0 %v9264
    %9316 = vmatprep.subr.bf16.mxu0 %v9263
    %9317 = vmatpush1.bf16.msra.mxu0 %v9262
    %9318 = vmatprep.subr.bf16.mxu0 %v9261
    %9319 = vmatpush1.bf16.msra.mxu0 %v9260
    %9320 = vmatprep.subr.bf16.mxu0 %v9259
    %9321 = vmatpush1.bf16.msra.mxu0 %v9258
    %9322 = vmatprep.subr.bf16.mxu0 %v9257
    %9323 = vmatpush1.bf16.msra.mxu0 %v9256
    %9324 = vmatprep.subr.bf16.mxu0 %v9255
    %9325 = vmatpush1.bf16.msra.mxu0 %v9254
    %9326 = vmatprep.subr.bf16.mxu0 %v9253
    %9327 = vmatpush1.bf16.msra.mxu0 %v9252
    %9328 = vmatprep.subr.bf16.mxu0 %v9251
    %9329 = vmatpush1.bf16.msra.mxu0 %v9250
    %9330 = vmatprep.subr.bf16.mxu0 %v9281
    %9331 = vmatpush2.bf16.msra.mxu0 %v9280
    %9332 = vmatprep.subr.bf16.mxu0 %v9279
    %9333 = vmatpush2.bf16.msra.mxu0 %v9278
    %9334 = vmatprep.subr.bf16.mxu0 %v9277
    %9335 = vmatpush2.bf16.msra.mxu0 %v9276
    %9336 = vmatprep.subr.bf16.mxu0 %v9275
    %9337 = vmatpush2.bf16.msra.mxu0 %v9274
    %9338 = vmatprep.subr.bf16.mxu0 %v9273
    %9339 = vmatpush2.bf16.msra.mxu0 %v9272
    %9340 = vmatprep.subr.bf16.mxu0 %v9271
    %9341 = vmatpush2.bf16.msra.mxu0 %v9270
    %9342 = vmatprep.subr.bf16.mxu0 %v9269
    %9343 = vmatpush2.bf16.msra.mxu0 %v9268
    %9344 = vmatprep.subr.bf16.mxu0 %v9267
    %9345 = vmatpush2.bf16.msra.mxu0 %v9266
    %9346 = vmatprep.mubr.bf16.mxu0 %v9145
    %9347 = vmatmul.mubr.bf16.gmra.mxu0 %v9142
    %v9348 = vpop.f32.mrf.mxu0
    %v9349 = vadd.f32 0.0, %v9348
    %v9350 = vpop.f32.mrf.mxu0
    %v9351 = vadd.f32 0.0, %v9350
    %v9352 = vpop.f32.mrf.mxu0
    %v9353 = vadd.f32 0.0, %v9352
    %v9354 = vpop.f32.mrf.mxu0
    %v9355 = vadd.f32 0.0, %v9354
    %9356 = vmatprep.mubr.bf16.mxu0 %v9149
    %9357 = vmatmul.mubr.bf16.gmra.mxu0 %v9147
    %v9358 = vpop.f32.mrf.mxu0
    %v9359 = vadd.f32 0.0, %v9358
    %v9360 = vpop.f32.mrf.mxu0
    %v9361 = vadd.f32 0.0, %v9360
    %v9362 = vpop.f32.mrf.mxu0
    %v9363 = vadd.f32 0.0, %v9362
    %v9364 = vpop.f32.mrf.mxu0
    %v9365 = vadd.f32 0.0, %v9364
    %9366 = vdwg.mxu0
    %v9367 = vadd.f32 %v9084, %v9349
    %v9368 = vadd.f32 %v9086, %v9351
    %v9369 = vadd.f32 %v9088, %v9353
    %v9370 = vadd.f32 %v9090, %v9355
    %v9371 = vadd.f32 %v9094, %v9359
    %v9372 = vadd.f32 %v9096, %v9361
    %v9373 = vadd.f32 %v9098, %v9363
    %v9374 = vadd.f32 %v9100, %v9365
    %v9375 = vld [vmem:[#allocation5 + $0x20] sm:$0xee]
    %v9376 = vld [vmem:[%s8180] sm:$0xff]
    %v9377 = vld [vmem:[%s8180 + $0x8] sm:$0xff]
    %v9378 = vld [vmem:[%s8180 + $0x10] sm:$0xff]
    %v9379 = vld [vmem:[%s8180 + $0x18] sm:$0xff]
    %v9380 = vld [vmem:[%s8180 + $0x20] sm:$0xff]
    %v9381 = vld [vmem:[%s8180 + $0x28] sm:$0xff]
    %v9382 = vld [vmem:[%s8180 + $0x30] sm:$0xff]
    %v9383 = vld [vmem:[%s8180 + $0x38] sm:$0xff]
    %v9384 = vld [vmem:[%s8180 + $0x40] sm:$0xff]
    %v9385 = vld [vmem:[%s8180 + $0x48] sm:$0xff]
    %v9386 = vld [vmem:[%s8180 + $0x50] sm:$0xff]
    %v9387 = vld [vmem:[%s8180 + $0x58] sm:$0xff]
    %v9388 = vld [vmem:[%s8180 + $0x60] sm:$0xff]
    %v9389 = vld [vmem:[%s8180 + $0x68] sm:$0xff]
    %v9390 = vld [vmem:[%s8180 + $0x70] sm:$0xff]
    %v9391 = vld [vmem:[%s8180 + $0x78] sm:$0xff]
    %v9392 = vld [vmem:[%s8180 + $0x80] sm:$0xff]
    %v9393 = vld [vmem:[%s8180 + $0x88] sm:$0xff]
    %v9394 = vld [vmem:[%s8180 + $0x90] sm:$0xff]
    %v9395 = vld [vmem:[%s8180 + $0x98] sm:$0xff]
    %v9396 = vld [vmem:[%s8180 + $0xa0] sm:$0xff]
    %v9397 = vld [vmem:[%s8180 + $0xa8] sm:$0xff]
    %v9398 = vld [vmem:[%s8180 + $0xb0] sm:$0xff]
    %v9399 = vld [vmem:[%s8180 + $0xb8] sm:$0xff]
    %v9400 = vld [vmem:[%s8180 + $0xc0] sm:$0xff]
    %v9401 = vld [vmem:[%s8180 + $0xc8] sm:$0xff]
    %v9402 = vld [vmem:[%s8180 + $0xd0] sm:$0xff]
    %v9403 = vld [vmem:[%s8180 + $0xd8] sm:$0xff]
    %v9404 = vld [vmem:[%s8180 + $0xe0] sm:$0xff]
    %v9405 = vld [vmem:[%s8180 + $0xe8] sm:$0xff]
    %v9406 = vld [vmem:[%s8180 + $0xf0] sm:$0xff]
    %v9407 = vld [vmem:[%s8180 + $0xf8] sm:$0xff]
    %v9409 = vunpack.c.l.b16 %v9375
    %v9410 = vunpack.c.h.b16 %v9375
    %v9411 = vpack.c.b16 %v8587, %v9409
    %v9412 = vpack.c.b16 %v8588, %v9410
    %v9414 = vshrl.u32 %v9411, 16
    %v9416 = vrot.slane %v9414, 1
    %v9417 = vshll.u32 %v9411, 16
    %v9419 = vrot.slane %v9417, 2
    %v9420 = vor.u32 %v9416, %v9419
    %v9421 = vrot.slane %v8610, 1
    %v9422 = vrot.slane %v8613, 2
    %v9423 = vor.u32 %v9421, %v9422
    %v9424 = vsel %vm842, %v9420, %v9423
    %v9426 = vshrl.u32 %v9412, 16
    %v9428 = vrot.slane %v9426, 1
    %v9429 = vshll.u32 %v9412, 16
    %v9431 = vrot.slane %v9429, 2
    %v9432 = vor.u32 %v9428, %v9431
    %v9433 = vrot.slane %v8627, 1
    %v9434 = vrot.slane %v8630, 2
    %v9435 = vor.u32 %v9433, %v9434
    %v9436 = vsel %vm842, %v9432, %v9435
    %v9438 = vshrl.u32 %v9138, 16
    %v9440 = vrot.slane %v9438, 1
    %v9441 = vshll.u32 %v9138, 16
    %v9443 = vrot.slane %v9441, 2
    %v9444 = vor.u32 %v9440, %v9443
    %v9445 = vsel %vm842, %v9423, %v9444
    %v9447 = vshrl.u32 %v9139, 16
    %v9449 = vrot.slane %v9447, 1
    %v9450 = vshll.u32 %v9139, 16
    %v9452 = vrot.slane %v9450, 2
    %v9453 = vor.u32 %v9449, %v9452
    %v9454 = vsel %vm842, %v9435, %v9453
    %v9491 = vunpack.c.l.b16 %v9376
    %v9492 = vunpack.c.h.b16 %v9376
    %v9493 = vunpack.c.l.b16 %v9377
    %v9494 = vunpack.c.h.b16 %v9377
    %v9495 = vunpack.c.l.b16 %v9378
    %v9496 = vunpack.c.h.b16 %v9378
    %v9497 = vunpack.c.l.b16 %v9379
    %v9498 = vunpack.c.h.b16 %v9379
    %v9499 = vunpack.c.l.b16 %v9380
    %v9500 = vunpack.c.h.b16 %v9380
    %v9501 = vunpack.c.l.b16 %v9381
    %v9502 = vunpack.c.h.b16 %v9381
    %v9503 = vunpack.c.l.b16 %v9382
    %v9504 = vunpack.c.h.b16 %v9382
    %v9505 = vunpack.c.l.b16 %v9383
    %v9506 = vunpack.c.h.b16 %v9383
    %v9507 = vunpack.c.l.b16 %v9384
    %v9508 = vunpack.c.h.b16 %v9384
    %v9509 = vunpack.c.l.b16 %v9385
    %v9510 = vunpack.c.h.b16 %v9385
    %v9511 = vunpack.c.l.b16 %v9386
    %v9512 = vunpack.c.h.b16 %v9386
    %v9513 = vunpack.c.l.b16 %v9387
    %v9514 = vunpack.c.h.b16 %v9387
    %v9515 = vunpack.c.l.b16 %v9388
    %v9516 = vunpack.c.h.b16 %v9388
    %v9517 = vunpack.c.l.b16 %v9389
    %v9518 = vunpack.c.h.b16 %v9389
    %v9519 = vunpack.c.l.b16 %v9390
    %v9520 = vunpack.c.h.b16 %v9390
    %v9521 = vunpack.c.l.b16 %v9391
    %v9522 = vunpack.c.h.b16 %v9391
    %v9523 = vunpack.c.l.b16 %v9392
    %v9524 = vunpack.c.h.b16 %v9392
    %v9525 = vunpack.c.l.b16 %v9393
    %v9526 = vunpack.c.h.b16 %v9393
    %v9527 = vunpack.c.l.b16 %v9394
    %v9528 = vunpack.c.h.b16 %v9394
    %v9529 = vunpack.c.l.b16 %v9395
    %v9530 = vunpack.c.h.b16 %v9395
    %v9531 = vunpack.c.l.b16 %v9396
    %v9532 = vunpack.c.h.b16 %v9396
    %v9533 = vunpack.c.l.b16 %v9397
    %v9534 = vunpack.c.h.b16 %v9397
    %v9535 = vunpack.c.l.b16 %v9398
    %v9536 = vunpack.c.h.b16 %v9398
    %v9537 = vunpack.c.l.b16 %v9399
    %v9538 = vunpack.c.h.b16 %v9399
    %v9539 = vunpack.c.l.b16 %v9400
    %v9540 = vunpack.c.h.b16 %v9400
    %v9541 = vunpack.c.l.b16 %v9401
    %v9542 = vunpack.c.h.b16 %v9401
    %v9543 = vunpack.c.l.b16 %v9402
    %v9544 = vunpack.c.h.b16 %v9402
    %v9545 = vunpack.c.l.b16 %v9403
    %v9546 = vunpack.c.h.b16 %v9403
    %v9547 = vunpack.c.l.b16 %v9404
    %v9548 = vunpack.c.h.b16 %v9404
    %v9549 = vunpack.c.l.b16 %v9405
    %v9550 = vunpack.c.h.b16 %v9405
    %v9551 = vunpack.c.l.b16 %v9406
    %v9552 = vunpack.c.h.b16 %v9406
    %v9553 = vunpack.c.l.b16 %v9407
    %v9554 = vunpack.c.h.b16 %v9407
    %v9555 = vpack.c.b16 %v9493, %v9491
    %v9556 = vpack.c.b16 %v9494, %v9492
    %v9557 = vpack.c.b16 %v9497, %v9495
    %v9558 = vpack.c.b16 %v9498, %v9496
    %v9559 = vpack.c.b16 %v9501, %v9499
    %v9560 = vpack.c.b16 %v9502, %v9500
    %v9561 = vpack.c.b16 %v9505, %v9503
    %v9562 = vpack.c.b16 %v9506, %v9504
    %v9563 = vpack.c.b16 %v9509, %v9507
    %v9564 = vpack.c.b16 %v9510, %v9508
    %v9565 = vpack.c.b16 %v9513, %v9511
    %v9566 = vpack.c.b16 %v9514, %v9512
    %v9567 = vpack.c.b16 %v9517, %v9515
    %v9568 = vpack.c.b16 %v9518, %v9516
    %v9569 = vpack.c.b16 %v9521, %v9519
    %v9570 = vpack.c.b16 %v9522, %v9520
    %v9571 = vpack.c.b16 %v9525, %v9523
    %v9572 = vpack.c.b16 %v9526, %v9524
    %v9573 = vpack.c.b16 %v9529, %v9527
    %v9574 = vpack.c.b16 %v9530, %v9528
    %v9575 = vpack.c.b16 %v9533, %v9531
    %v9576 = vpack.c.b16 %v9534, %v9532
    %v9577 = vpack.c.b16 %v9537, %v9535
    %v9578 = vpack.c.b16 %v9538, %v9536
    %v9579 = vpack.c.b16 %v9541, %v9539
    %v9580 = vpack.c.b16 %v9542, %v9540
    %v9581 = vpack.c.b16 %v9545, %v9543
    %v9582 = vpack.c.b16 %v9546, %v9544
    %v9583 = vpack.c.b16 %v9549, %v9547
    %v9584 = vpack.c.b16 %v9550, %v9548
    %v9585 = vpack.c.b16 %v9553, %v9551
    %v9586 = vpack.c.b16 %v9554, %v9552
    %9619 = vmatprep.subr.bf16.mxu0 %v9570
    %9620 = vmatpush1.bf16.msra.mxu0 %v9569
    %9621 = vmatprep.subr.bf16.mxu0 %v9568
    %9622 = vmatpush1.bf16.msra.mxu0 %v9567
    %9623 = vmatprep.subr.bf16.mxu0 %v9566
    %9624 = vmatpush1.bf16.msra.mxu0 %v9565
    %9625 = vmatprep.subr.bf16.mxu0 %v9564
    %9626 = vmatpush1.bf16.msra.mxu0 %v9563
    %9627 = vmatprep.subr.bf16.mxu0 %v9562
    %9628 = vmatpush1.bf16.msra.mxu0 %v9561
    %9629 = vmatprep.subr.bf16.mxu0 %v9560
    %9630 = vmatpush1.bf16.msra.mxu0 %v9559
    %9631 = vmatprep.subr.bf16.mxu0 %v9558
    %9632 = vmatpush1.bf16.msra.mxu0 %v9557
    %9633 = vmatprep.subr.bf16.mxu0 %v9556
    %9634 = vmatpush1.bf16.msra.mxu0 %v9555
    %9635 = vmatprep.subr.bf16.mxu0 %v9586
    %9636 = vmatpush2.bf16.msra.mxu0 %v9585
    %9637 = vmatprep.subr.bf16.mxu0 %v9584
    %9638 = vmatpush2.bf16.msra.mxu0 %v9583
    %9639 = vmatprep.subr.bf16.mxu0 %v9582
    %9640 = vmatpush2.bf16.msra.mxu0 %v9581
    %9641 = vmatprep.subr.bf16.mxu0 %v9580
    %9642 = vmatpush2.bf16.msra.mxu0 %v9579
    %9643 = vmatprep.subr.bf16.mxu0 %v9578
    %9644 = vmatpush2.bf16.msra.mxu0 %v9577
    %9645 = vmatprep.subr.bf16.mxu0 %v9576
    %9646 = vmatpush2.bf16.msra.mxu0 %v9575
    %9647 = vmatprep.subr.bf16.mxu0 %v9574
    %9648 = vmatpush2.bf16.msra.mxu0 %v9573
    %9649 = vmatprep.subr.bf16.mxu0 %v9572
    %9650 = vmatpush2.bf16.msra.mxu0 %v9571
    %9651 = vmatprep.mubr.bf16.mxu0 %v9436
    %9652 = vmatmul.mubr.bf16.gmra.mxu0 %v9424
    %v9653 = vpop.f32.mrf.mxu0
    %v9654 = vadd.f32 0.0, %v9653
    %v9655 = vpop.f32.mrf.mxu0
    %v9656 = vadd.f32 0.0, %v9655
    %v9657 = vpop.f32.mrf.mxu0
    %v9658 = vadd.f32 0.0, %v9657
    %v9659 = vpop.f32.mrf.mxu0
    %v9660 = vadd.f32 0.0, %v9659
    %9661 = vmatprep.mubr.bf16.mxu0 %v9454
    %9662 = vmatmul.mubr.bf16.gmra.mxu0 %v9445
    %v9663 = vpop.f32.mrf.mxu0
    %v9664 = vadd.f32 0.0, %v9663
    %v9665 = vpop.f32.mrf.mxu0
    %v9666 = vadd.f32 0.0, %v9665
    %v9667 = vpop.f32.mrf.mxu0
    %v9668 = vadd.f32 0.0, %v9667
    %v9669 = vpop.f32.mrf.mxu0
    %v9670 = vadd.f32 0.0, %v9669
    %9671 = vdwg.mxu0
    %v9672 = vadd.f32 %v9367, %v9654
    %v9673 = vadd.f32 %v9368, %v9656
    %v9674 = vadd.f32 %v9369, %v9658
    %v9675 = vadd.f32 %v9370, %v9660
    %v9676 = vadd.f32 %v9371, %v9664
    %v9677 = vadd.f32 %v9372, %v9666
    %v9678 = vadd.f32 %v9373, %v9668
    %v9679 = vadd.f32 %v9374, %v9670
    %9680 = vst [vmem:[#allocation2 + $0x40] sm:$0xff] %v9672
    %9681 = vst [vmem:[#allocation2 + $0x48] sm:$0xff] %v9673
    %9682 = vst [vmem:[#allocation2 + $0x50] sm:$0xff] %v9674
    %9683 = vst [vmem:[#allocation2 + $0x58] sm:$0xff] %v9675
    %9684 = vst [vmem:[#allocation2 + $0x60] sm:$0xff] %v9676
    %9685 = vst [vmem:[#allocation2 + $0x68] sm:$0xff] %v9677
    %9686 = vst [vmem:[#allocation2 + $0x70] sm:$0xff] %v9678
    %9687 = vst [vmem:[#allocation2 + $0x78] sm:$0xff] %v9679
    %v9688 = vadd.f32 %v9672, %v9674
    %v9689 = vadd.f32 %v9688, %v9676
    %v9690 = vadd.f32 %v9689, %v9678
    %v9691 = vrot.slane %v9690, 4
    %v9692 = vadd.f32 %v9690, %v9691
    %v9693 = vrot.slane %v9692, 2
    %v9694 = vadd.f32 %v9692, %v9693
    %v9695 = vrot.slane %v9694, 1
    %v9696 = vadd.f32 %v9694, %v9695
    %v9697 = vadd.f32 %v9673, %v9675
    %v9698 = vadd.f32 %v9697, %v9677
    %v9699 = vadd.f32 %v9698, %v9679
    %v9700 = vrot.slane %v9699, 4
    %v9701 = vadd.f32 %v9699, %v9700
    %v9702 = vrot.slane %v9701, 2
    %v9703 = vadd.f32 %v9701, %v9702
    %v9704 = vrot.slane %v9703, 1
    %v9705 = vadd.f32 %v9703, %v9704
    %v9706 = vadd.f32 %v8480, %v9696
    %v9707 = vadd.f32 %v8481, %v9705
    %v9708 = vmul.f32 %v9672, %v9672
    %v9709 = vmul.f32 %v9673, %v9673
    %v9710 = vmul.f32 %v9674, %v9674
    %v9711 = vmul.f32 %v9675, %v9675
    %v9712 = vmul.f32 %v9676, %v9676
    %v9713 = vmul.f32 %v9677, %v9677
    %v9714 = vmul.f32 %v9678, %v9678
    %v9715 = vmul.f32 %v9679, %v9679
    %v9716 = vadd.f32 %v9708, %v9710
    %v9717 = vadd.f32 %v9716, %v9712
    %v9718 = vadd.f32 %v9717, %v9714
    %v9719 = vrot.slane %v9718, 4
    %v9720 = vadd.f32 %v9718, %v9719
    %v9721 = vrot.slane %v9720, 2
    %v9722 = vadd.f32 %v9720, %v9721
    %v9723 = vrot.slane %v9722, 1
    %v9724 = vadd.f32 %v9722, %v9723
    %v9725 = vadd.f32 %v9709, %v9711
    %v9726 = vadd.f32 %v9725, %v9713
    %v9727 = vadd.f32 %v9726, %v9715
    %v9728 = vrot.slane %v9727, 4
    %v9729 = vadd.f32 %v9727, %v9728
    %v9730 = vrot.slane %v9729, 2
    %v9731 = vadd.f32 %v9729, %v9730
    %v9732 = vrot.slane %v9731, 1
    %v9733 = vadd.f32 %v9731, %v9732
    %v9734 = vadd.f32 %v8508, %v9724
    %v9735 = vadd.f32 %v8509, %v9733
    %s9736 = scalar_lea.vmem [#allocation10], 1536
    %v9737 = vld [vmem:[%s9736] sm:$0xff]
    %v9738 = vld [vmem:[%s9736 + $0x8] sm:$0xff]
    %v9739 = vld [vmem:[%s9736 + $0x10] sm:$0xff]
    %v9740 = vld [vmem:[%s9736 + $0x18] sm:$0xff]
    %v9741 = vld [vmem:[%s9736 + $0x20] sm:$0xff]
    %v9742 = vld [vmem:[%s9736 + $0x28] sm:$0xff]
    %v9743 = vld [vmem:[%s9736 + $0x30] sm:$0xff]
    %v9744 = vld [vmem:[%s9736 + $0x38] sm:$0xff]
    %v9745 = vld [vmem:[%s9736 + $0x40] sm:$0xff]
    %v9746 = vld [vmem:[%s9736 + $0x48] sm:$0xff]
    %v9747 = vld [vmem:[%s9736 + $0x50] sm:$0xff]
    %v9748 = vld [vmem:[%s9736 + $0x58] sm:$0xff]
    %v9749 = vld [vmem:[%s9736 + $0x60] sm:$0xff]
    %v9750 = vld [vmem:[%s9736 + $0x68] sm:$0xff]
    %v9751 = vld [vmem:[%s9736 + $0x70] sm:$0xff]
    %v9752 = vld [vmem:[%s9736 + $0x78] sm:$0xff]
    %v9753 = vld [vmem:[%s9736 + $0x80] sm:$0xff]
    %v9754 = vld [vmem:[%s9736 + $0x88] sm:$0xff]
    %v9755 = vld [vmem:[%s9736 + $0x90] sm:$0xff]
    %v9756 = vld [vmem:[%s9736 + $0x98] sm:$0xff]
    %v9757 = vld [vmem:[%s9736 + $0xa0] sm:$0xff]
    %v9758 = vld [vmem:[%s9736 + $0xa8] sm:$0xff]
    %v9759 = vld [vmem:[%s9736 + $0xb0] sm:$0xff]
    %v9760 = vld [vmem:[%s9736 + $0xb8] sm:$0xff]
    %v9761 = vld [vmem:[%s9736 + $0xc0] sm:$0xff]
    %v9762 = vld [vmem:[%s9736 + $0xc8] sm:$0xff]
    %v9763 = vld [vmem:[%s9736 + $0xd0] sm:$0xff]
    %v9764 = vld [vmem:[%s9736 + $0xd8] sm:$0xff]
    %v9765 = vld [vmem:[%s9736 + $0xe0] sm:$0xff]
    %v9766 = vld [vmem:[%s9736 + $0xe8] sm:$0xff]
    %v9767 = vld [vmem:[%s9736 + $0xf0] sm:$0xff]
    %v9768 = vld [vmem:[%s9736 + $0xf8] sm:$0xff]
    %v9769 = vld [vmem:[%s9736 + $0x100] sm:$0xff]
    %v9770 = vld [vmem:[%s9736 + $0x108] sm:$0xff]
    %v9771 = vld [vmem:[%s9736 + $0x110] sm:$0xff]
    %v9772 = vld [vmem:[%s9736 + $0x118] sm:$0xff]
    %v9773 = vld [vmem:[%s9736 + $0x120] sm:$0xff]
    %v9774 = vld [vmem:[%s9736 + $0x128] sm:$0xff]
    %v9775 = vld [vmem:[%s9736 + $0x130] sm:$0xff]
    %v9776 = vld [vmem:[%s9736 + $0x138] sm:$0xff]
    %v9777 = vld [vmem:[%s9736 + $0x140] sm:$0xff]
    %v9778 = vld [vmem:[%s9736 + $0x148] sm:$0xff]
    %v9779 = vld [vmem:[%s9736 + $0x150] sm:$0xff]
    %v9780 = vld [vmem:[%s9736 + $0x158] sm:$0xff]
    %v9781 = vld [vmem:[%s9736 + $0x160] sm:$0xff]
    %v9782 = vld [vmem:[%s9736 + $0x168] sm:$0xff]
    %v9783 = vld [vmem:[%s9736 + $0x170] sm:$0xff]
    %v9784 = vld [vmem:[%s9736 + $0x178] sm:$0xff]
    %v9785 = vld [vmem:[%s9736 + $0x180] sm:$0xff]
    %v9786 = vld [vmem:[%s9736 + $0x188] sm:$0xff]
    %v9787 = vld [vmem:[%s9736 + $0x190] sm:$0xff]
    %v9788 = vld [vmem:[%s9736 + $0x198] sm:$0xff]
    %v9789 = vld [vmem:[%s9736 + $0x1a0] sm:$0xff]
    %v9790 = vld [vmem:[%s9736 + $0x1a8] sm:$0xff]
    %v9791 = vld [vmem:[%s9736 + $0x1b0] sm:$0xff]
    %v9792 = vld [vmem:[%s9736 + $0x1b8] sm:$0xff]
    %v9793 = vld [vmem:[%s9736 + $0x1c0] sm:$0xff]
    %v9794 = vld [vmem:[%s9736 + $0x1c8] sm:$0xff]
    %v9795 = vld [vmem:[%s9736 + $0x1d0] sm:$0xff]
    %v9796 = vld [vmem:[%s9736 + $0x1d8] sm:$0xff]
    %v9797 = vld [vmem:[%s9736 + $0x1e0] sm:$0xff]
    %v9798 = vld [vmem:[%s9736 + $0x1e8] sm:$0xff]
    %v9799 = vld [vmem:[%s9736 + $0x1f0] sm:$0xff]
    %v9800 = vld [vmem:[%s9736 + $0x1f8] sm:$0xff]
    %9801 = vmatprep.subr.mxu0 %v9768
    %9802 = vmatpush1.msra.mxu0 %v9767
    %9803 = vmatprep.subr.mxu0 %v9766
    %9804 = vmatpush1.msra.mxu0 %v9765
    %9805 = vmatprep.subr.mxu0 %v9764
    %9806 = vmatpush1.msra.mxu0 %v9763
    %9807 = vmatprep.subr.mxu0 %v9762
    %9808 = vmatpush1.msra.mxu0 %v9761
    %9809 = vmatprep.subr.mxu0 %v9760
    %9810 = vmatpush1.msra.mxu0 %v9759
    %9811 = vmatprep.subr.mxu0 %v9758
    %9812 = vmatpush1.msra.mxu0 %v9757
    %9813 = vmatprep.subr.mxu0 %v9756
    %9814 = vmatpush1.msra.mxu0 %v9755
    %9815 = vmatprep.subr.mxu0 %v9754
    %9816 = vmatpush1.msra.mxu0 %v9753
    %9817 = vmatprep.subr.mxu0 %v9752
    %9818 = vmatpush1.msra.mxu0 %v9751
    %9819 = vmatprep.subr.mxu0 %v9750
    %9820 = vmatpush1.msra.mxu0 %v9749
    %9821 = vmatprep.subr.mxu0 %v9748
    %9822 = vmatpush1.msra.mxu0 %v9747
    %9823 = vmatprep.subr.mxu0 %v9746
    %9824 = vmatpush1.msra.mxu0 %v9745
    %9825 = vmatprep.subr.mxu0 %v9744
    %9826 = vmatpush1.msra.mxu0 %v9743
    %9827 = vmatprep.subr.mxu0 %v9742
    %9828 = vmatpush1.msra.mxu0 %v9741
    %9829 = vmatprep.subr.mxu0 %v9740
    %9830 = vmatpush1.msra.mxu0 %v9739
    %9831 = vmatprep.subr.mxu0 %v9738
    %9832 = vmatpush1.msra.mxu0 %v9737
    %9833 = vmatprep.subr.mxu0 %v9800
    %9834 = vmatpush2.msra.mxu0 %v9799
    %9835 = vmatprep.subr.mxu0 %v9798
    %9836 = vmatpush2.msra.mxu0 %v9797
    %9837 = vmatprep.subr.mxu0 %v9796
    %9838 = vmatpush2.msra.mxu0 %v9795
    %9839 = vmatprep.subr.mxu0 %v9794
    %9840 = vmatpush2.msra.mxu0 %v9793
    %9841 = vmatprep.subr.mxu0 %v9792
    %9842 = vmatpush2.msra.mxu0 %v9791
    %9843 = vmatprep.subr.mxu0 %v9790
    %9844 = vmatpush2.msra.mxu0 %v9789
    %9845 = vmatprep.subr.mxu0 %v9788
    %9846 = vmatpush2.msra.mxu0 %v9787
    %9847 = vmatprep.subr.mxu0 %v9786
    %9848 = vmatpush2.msra.mxu0 %v9785
    %9849 = vmatprep.subr.mxu0 %v9784
    %9850 = vmatpush2.msra.mxu0 %v9783
    %9851 = vmatprep.subr.mxu0 %v9782
    %9852 = vmatpush2.msra.mxu0 %v9781
    %9853 = vmatprep.subr.mxu0 %v9780
    %9854 = vmatpush2.msra.mxu0 %v9779
    %9855 = vmatprep.subr.mxu0 %v9778
    %9856 = vmatpush2.msra.mxu0 %v9777
    %9857 = vmatprep.subr.mxu0 %v9776
    %9858 = vmatpush2.msra.mxu0 %v9775
    %9859 = vmatprep.subr.mxu0 %v9774
    %9860 = vmatpush2.msra.mxu0 %v9773
    %9861 = vmatprep.subr.mxu0 %v9772
    %9862 = vmatpush2.msra.mxu0 %v9771
    %9863 = vmatprep.subr.mxu0 %v9770
    %9864 = vmatpush2.msra.mxu0 %v9769
    %9865 = vmatprep.mubr.f32.mxu0 %v9707
    %9866 = vmatmul.mubr.f32.gmra.mxu0 %v9706
    %v9867 = vpop.f32.mrf.mxu0
    %v9868 = vadd.f32 0.0, %v9867
    %v9869 = vpop.f32.mrf.mxu0
    %v9870 = vadd.f32 0.0, %v9869
    %9871 = vdwg.mxu0
    %v9872 = vmul.f32 %v9868, 0.00048828125
    %v9873 = vmul.f32 %v9870, 0.00048828125
    %9874 = vmatprep.subr.mxu0 %v9768
    %9875 = vmatpush1.msra.mxu0 %v9767
    %9876 = vmatprep.subr.mxu0 %v9766
    %9877 = vmatpush1.msra.mxu0 %v9765
    %9878 = vmatprep.subr.mxu0 %v9764
    %9879 = vmatpush1.msra.mxu0 %v9763
    %9880 = vmatprep.subr.mxu0 %v9762
    %9881 = vmatpush1.msra.mxu0 %v9761
    %9882 = vmatprep.subr.mxu0 %v9760
    %9883 = vmatpush1.msra.mxu0 %v9759
    %9884 = vmatprep.subr.mxu0 %v9758
    %9885 = vmatpush1.msra.mxu0 %v9757
    %9886 = vmatprep.subr.mxu0 %v9756
    %9887 = vmatpush1.msra.mxu0 %v9755
    %9888 = vmatprep.subr.mxu0 %v9754
    %9889 = vmatpush1.msra.mxu0 %v9753
    %9890 = vmatprep.subr.mxu0 %v9752
    %9891 = vmatpush1.msra.mxu0 %v9751
    %9892 = vmatprep.subr.mxu0 %v9750
    %9893 = vmatpush1.msra.mxu0 %v9749
    %9894 = vmatprep.subr.mxu0 %v9748
    %9895 = vmatpush1.msra.mxu0 %v9747
    %9896 = vmatprep.subr.mxu0 %v9746
    %9897 = vmatpush1.msra.mxu0 %v9745
    %9898 = vmatprep.subr.mxu0 %v9744
    %9899 = vmatpush1.msra.mxu0 %v9743
    %9900 = vmatprep.subr.mxu0 %v9742
    %9901 = vmatpush1.msra.mxu0 %v9741
    %9902 = vmatprep.subr.mxu0 %v9740
    %9903 = vmatpush1.msra.mxu0 %v9739
    %9904 = vmatprep.subr.mxu0 %v9738
    %9905 = vmatpush1.msra.mxu0 %v9737
    %9906 = vmatprep.subr.mxu0 %v9800
    %9907 = vmatpush2.msra.mxu0 %v9799
    %9908 = vmatprep.subr.mxu0 %v9798
    %9909 = vmatpush2.msra.mxu0 %v9797
    %9910 = vmatprep.subr.mxu0 %v9796
    %9911 = vmatpush2.msra.mxu0 %v9795
    %9912 = vmatprep.subr.mxu0 %v9794
    %9913 = vmatpush2.msra.mxu0 %v9793
    %9914 = vmatprep.subr.mxu0 %v9792
    %9915 = vmatpush2.msra.mxu0 %v9791
    %9916 = vmatprep.subr.mxu0 %v9790
    %9917 = vmatpush2.msra.mxu0 %v9789
    %9918 = vmatprep.subr.mxu0 %v9788
    %9919 = vmatpush2.msra.mxu0 %v9787
    %9920 = vmatprep.subr.mxu0 %v9786
    %9921 = vmatpush2.msra.mxu0 %v9785
    %9922 = vmatprep.subr.mxu0 %v9784
    %9923 = vmatpush2.msra.mxu0 %v9783
    %9924 = vmatprep.subr.mxu0 %v9782
    %9925 = vmatpush2.msra.mxu0 %v9781
    %9926 = vmatprep.subr.mxu0 %v9780
    %9927 = vmatpush2.msra.mxu0 %v9779
    %9928 = vmatprep.subr.mxu0 %v9778
    %9929 = vmatpush2.msra.mxu0 %v9777
    %9930 = vmatprep.subr.mxu0 %v9776
    %9931 = vmatpush2.msra.mxu0 %v9775
    %9932 = vmatprep.subr.mxu0 %v9774
    %9933 = vmatpush2.msra.mxu0 %v9773
    %9934 = vmatprep.subr.mxu0 %v9772
    %9935 = vmatpush2.msra.mxu0 %v9771
    %9936 = vmatprep.subr.mxu0 %v9770
    %9937 = vmatpush2.msra.mxu0 %v9769
    %9938 = vmatprep.mubr.f32.mxu0 %v9735
    %9939 = vmatmul.mubr.f32.gmra.mxu0 %v9734
    %v9940 = vpop.f32.mrf.mxu0
    %v9941 = vadd.f32 0.0, %v9940
    %v9942 = vpop.f32.mrf.mxu0
    %v9943 = vadd.f32 0.0, %v9942
    %9944 = vdwg.mxu0
    %v9945 = vmul.f32 %v9941, 0.00048828125
    %v9946 = vmul.f32 %v9943, 0.00048828125
    %v9947 = vmul.f32 %v9872, %v9872
    %v9948 = vmul.f32 %v9873, %v9873
    %v9949 = vsub.f32 %v9945, %v9947
    %v9950 = vsub.f32 %v9946, %v9948
    %s9951 = scalar_lea.vmem [#allocation11], 12
    %v9952 = vld [vmem:[%s9951] sm:$0xf]
    %v9953 = vadd.f32 %v9949, 1e-05
    %v9954 = vadd.f32 %v9950, 1e-05
    %v9955 = vrsqrt.pop %v9953
    %v9956 = vrsqrt.pop %v9954
    %v9959 = vcombine.low %v9955, %v9956
    %v9961 = vunpack.c.l.s4 1983009808
    %v9962 = vunpack.c.0.s8 %v9961
    %v9963 = vlaneseq
    %v9964 = vshrl.u32 %v9963, 7
    %v9965 = vsub.s32 %v9962, %v9964
    %v9966 = vrot.slane %v9959, %v9965
    %v9968 = vmul.f32 %v9952, %v9966
    %v9970 = vlaneseq
    %v9971 = vshrl.u32 %v9970, 7
    %v9972 = vsub.s32 0, %v9971
    %v9973 = vrot.slane %v9968, %v9972
    %v9974 = vlaneseq
    %v9975 = vshrl.u32 %v9974, 7
    %v9976 = vsub.s32 2, %v9975
    %v9977 = vrot.slane %v9968, %v9976
    %v9980 = vmul.f32 %v9872, %v9973
    %v9981 = vmul.f32 %v9873, %v9977
    %v9984 = vcombine.low %v9980, %v9981
    %v9986 = vunpack.c.l.s4 1983009808
    %v9987 = vunpack.c.0.s8 %v9986
    %v9988 = vlaneseq
    %v9989 = vshrl.u32 %v9988, 7
    %v9990 = vsub.s32 %v9987, %v9989
    %v9991 = vrot.slane %v9984, %v9990
    %v9992 = vrot.slane %v9991, 7
    %v9994 = vsub.f32 %v9952, %v9992
    %v9995 = vld [vmem:[#allocation2] sm:$0xff]
    %v9996 = vld [vmem:[#allocation2 + $0x8] sm:$0xff]
    %v9997 = vld [vmem:[#allocation2 + $0x10] sm:$0xff]
    %v9998 = vld [vmem:[#allocation2 + $0x18] sm:$0xff]
    %v9999 = vld [vmem:[#allocation2 + $0x20] sm:$0xff]
    %v10000 = vld [vmem:[#allocation2 + $0x28] sm:$0xff]
    %v10001 = vld [vmem:[#allocation2 + $0x30] sm:$0xff]
    %v10002 = vld [vmem:[#allocation2 + $0x38] sm:$0xff]
    %v10003 = vlaneseq
    %v10004 = vshrl.u32 %v10003, 7
    %v10005 = vsub.s32 0, %v10004
    %v10006 = vrot.slane %v9973, %v10005
    %v10007 = vlaneseq
    %v10008 = vshrl.u32 %v10007, 7
    %v10009 = vsub.s32 0, %v10008
    %v10010 = vrot.slane %v9977, %v10009
    %v10011 = vmul.f32 %v9995, %v10006
    %v10012 = vmul.f32 %v9996, %v10010
    %v10013 = vmul.f32 %v9997, %v10006
    %v10014 = vmul.f32 %v9998, %v10010
    %v10015 = vmul.f32 %v9999, %v10006
    %v10016 = vmul.f32 %v10000, %v10010
    %v10017 = vmul.f32 %v10001, %v10006
    %v10018 = vmul.f32 %v10002, %v10010
    %v10020 = vlaneseq
    %v10021 = vshrl.u32 %v10020, 7
    %v10022 = vsub.s32 1, %v10021
    %v10023 = vrot.slane %v9994, %v10022
    %v10024 = vlaneseq
    %v10025 = vshrl.u32 %v10024, 7
    %v10026 = vsub.s32 3, %v10025
    %v10027 = vrot.slane %v9994, %v10026
    %v10030 = vlaneseq
    %v10031 = vshrl.u32 %v10030, 7
    %v10032 = vsub.s32 1, %v10031
    %v10033 = vrot.slane %v10023, %v10032
    %v10034 = vlaneseq
    %v10035 = vshrl.u32 %v10034, 7
    %v10036 = vsub.s32 1, %v10035
    %v10037 = vrot.slane %v10027, %v10036
    %v10038 = vadd.f32 %v10011, %v10033
    %v10039 = vadd.f32 %v10012, %v10037
    %v10040 = vadd.f32 %v10013, %v10033
    %v10041 = vadd.f32 %v10014, %v10037
    %v10042 = vadd.f32 %v10015, %v10033
    %v10043 = vadd.f32 %v10016, %v10037
    %v10044 = vadd.f32 %v10017, %v10033
    %v10045 = vadd.f32 %v10018, %v10037
    %v10046 = vmax.f32 %v10038, 0.0
    %v10047 = vmax.f32 %v10039, 0.0
    %v10048 = vmax.f32 %v10040, 0.0
    %v10049 = vmax.f32 %v10041, 0.0
    %v10050 = vmax.f32 %v10042, 0.0
    %v10051 = vmax.f32 %v10043, 0.0
    %v10052 = vmax.f32 %v10044, 0.0
    %v10053 = vmax.f32 %v10045, 0.0
    %v10054 = vpack.c.bf16 %v10048, %v10046
    %v10055 = vpack.c.bf16 %v10049, %v10047
    %v10056 = vpack.c.bf16 %v10052, %v10050
    %v10057 = vpack.c.bf16 %v10053, %v10051
    %v10058 = vld [vmem:[#allocation13] sm:$0xf]
    %v10059 = vld [vmem:[#allocation13 + $0x4] sm:$0xf]
    %v10060 = vld [vmem:[#allocation13 + $0x8] sm:$0xf]
    %v10061 = vld [vmem:[#allocation13 + $0xc] sm:$0xf]
    %v10062 = vld [vmem:[#allocation13 + $0x10] sm:$0xf]
    %v10063 = vld [vmem:[#allocation13 + $0x14] sm:$0xf]
    %v10064 = vld [vmem:[#allocation13 + $0x18] sm:$0xf]
    %v10065 = vld [vmem:[#allocation13 + $0x1c] sm:$0xf]
    %v10066 = vld [vmem:[#allocation13 + $0x20] sm:$0xf]
    %v10067 = vld [vmem:[#allocation13 + $0x24] sm:$0xf]
    %v10068 = vld [vmem:[#allocation13 + $0x28] sm:$0xf]
    %v10069 = vld [vmem:[#allocation13 + $0x2c] sm:$0xf]
    %v10070 = vld [vmem:[#allocation13 + $0x30] sm:$0xf]
    %v10071 = vld [vmem:[#allocation13 + $0x34] sm:$0xf]
    %v10072 = vld [vmem:[#allocation13 + $0x38] sm:$0xf]
    %v10073 = vld [vmem:[#allocation13 + $0x3c] sm:$0xf]
    %v10074 = vld [vmem:[#allocation13 + $0x40] sm:$0xf]
    %v10075 = vld [vmem:[#allocation13 + $0x44] sm:$0xf]
    %v10076 = vld [vmem:[#allocation13 + $0x48] sm:$0xf]
    %v10077 = vld [vmem:[#allocation13 + $0x4c] sm:$0xf]
    %v10078 = vld [vmem:[#allocation13 + $0x50] sm:$0xf]
    %v10079 = vld [vmem:[#allocation13 + $0x54] sm:$0xf]
    %v10080 = vld [vmem:[#allocation13 + $0x58] sm:$0xf]
    %v10081 = vld [vmem:[#allocation13 + $0x5c] sm:$0xf]
    %v10082 = vld [vmem:[#allocation13 + $0x60] sm:$0xf]
    %v10083 = vld [vmem:[#allocation13 + $0x64] sm:$0xf]
    %v10084 = vld [vmem:[#allocation13 + $0x68] sm:$0xf]
    %v10085 = vld [vmem:[#allocation13 + $0x6c] sm:$0xf]
    %v10086 = vld [vmem:[#allocation13 + $0x70] sm:$0xf]
    %v10087 = vld [vmem:[#allocation13 + $0x74] sm:$0xf]
    %v10088 = vld [vmem:[#allocation13 + $0x78] sm:$0xf]
    %v10089 = vld [vmem:[#allocation13 + $0x7c] sm:$0xf]
    %v10122 = vunpack.c.l.b16 %v10058
    %v10123 = vunpack.c.l.b16 %v10059
    %v10124 = vunpack.c.l.b16 %v10060
    %v10125 = vunpack.c.l.b16 %v10061
    %v10126 = vunpack.c.l.b16 %v10062
    %v10127 = vunpack.c.l.b16 %v10063
    %v10128 = vunpack.c.l.b16 %v10064
    %v10129 = vunpack.c.l.b16 %v10065
    %v10130 = vunpack.c.l.b16 %v10066
    %v10131 = vunpack.c.l.b16 %v10067
    %v10132 = vunpack.c.l.b16 %v10068
    %v10133 = vunpack.c.l.b16 %v10069
    %v10134 = vunpack.c.l.b16 %v10070
    %v10135 = vunpack.c.l.b16 %v10071
    %v10136 = vunpack.c.l.b16 %v10072
    %v10137 = vunpack.c.l.b16 %v10073
    %v10138 = vunpack.c.l.b16 %v10074
    %v10139 = vunpack.c.l.b16 %v10075
    %v10140 = vunpack.c.l.b16 %v10076
    %v10141 = vunpack.c.l.b16 %v10077
    %v10142 = vunpack.c.l.b16 %v10078
    %v10143 = vunpack.c.l.b16 %v10079
    %v10144 = vunpack.c.l.b16 %v10080
    %v10145 = vunpack.c.l.b16 %v10081
    %v10146 = vunpack.c.l.b16 %v10082
    %v10147 = vunpack.c.l.b16 %v10083
    %v10148 = vunpack.c.l.b16 %v10084
    %v10149 = vunpack.c.l.b16 %v10085
    %v10150 = vunpack.c.l.b16 %v10086
    %v10151 = vunpack.c.l.b16 %v10087
    %v10152 = vunpack.c.l.b16 %v10088
    %v10153 = vunpack.c.l.b16 %v10089
    %v10154 = vpack.c.b16 %v10123, %v10122
    %v10155 = vpack.c.b16 %v10125, %v10124
    %v10156 = vpack.c.b16 %v10127, %v10126
    %v10157 = vpack.c.b16 %v10129, %v10128
    %v10158 = vpack.c.b16 %v10131, %v10130
    %v10159 = vpack.c.b16 %v10133, %v10132
    %v10160 = vpack.c.b16 %v10135, %v10134
    %v10161 = vpack.c.b16 %v10137, %v10136
    %v10162 = vpack.c.b16 %v10139, %v10138
    %v10163 = vpack.c.b16 %v10141, %v10140
    %v10164 = vpack.c.b16 %v10143, %v10142
    %v10165 = vpack.c.b16 %v10145, %v10144
    %v10166 = vpack.c.b16 %v10147, %v10146
    %v10167 = vpack.c.b16 %v10149, %v10148
    %v10168 = vpack.c.b16 %v10151, %v10150
    %v10169 = vpack.c.b16 %v10153, %v10152
    %10186 = vmatprep.subr.bf16.mxu0 0
    %10187 = vmatpush1.bf16.msra.mxu0 %v10161
    %10188 = vmatprep.subr.bf16.mxu0 0
    %10189 = vmatpush1.bf16.msra.mxu0 %v10160
    %10190 = vmatprep.subr.bf16.mxu0 0
    %10191 = vmatpush1.bf16.msra.mxu0 %v10159
    %10192 = vmatprep.subr.bf16.mxu0 0
    %10193 = vmatpush1.bf16.msra.mxu0 %v10158
    %10194 = vmatprep.subr.bf16.mxu0 0
    %10195 = vmatpush1.bf16.msra.mxu0 %v10157
    %10196 = vmatprep.subr.bf16.mxu0 0
    %10197 = vmatpush1.bf16.msra.mxu0 %v10156
    %10198 = vmatprep.subr.bf16.mxu0 0
    %10199 = vmatpush1.bf16.msra.mxu0 %v10155
    %10200 = vmatprep.subr.bf16.mxu0 0
    %10201 = vmatpush1.bf16.msra.mxu0 %v10154
    %10202 = vmatprep.subr.bf16.mxu0 0
    %10203 = vmatpush2.bf16.msra.mxu0 %v10169
    %10204 = vmatprep.subr.bf16.mxu0 0
    %10205 = vmatpush2.bf16.msra.mxu0 %v10168
    %10206 = vmatprep.subr.bf16.mxu0 0
    %10207 = vmatpush2.bf16.msra.mxu0 %v10167
    %10208 = vmatprep.subr.bf16.mxu0 0
    %10209 = vmatpush2.bf16.msra.mxu0 %v10166
    %10210 = vmatprep.subr.bf16.mxu0 0
    %10211 = vmatpush2.bf16.msra.mxu0 %v10165
    %10212 = vmatprep.subr.bf16.mxu0 0
    %10213 = vmatpush2.bf16.msra.mxu0 %v10164
    %10214 = vmatprep.subr.bf16.mxu0 0
    %10215 = vmatpush2.bf16.msra.mxu0 %v10163
    %10216 = vmatprep.subr.bf16.mxu0 0
    %10217 = vmatpush2.bf16.msra.mxu0 %v10162
    %10218 = vmatprep.mubr.bf16.mxu0 %v10055
    %10219 = vmatmul.mubr.bf16.gmra.mxu0 %v10054
    %v10220 = vpop.f32.mrf.mxu0
    %v10221 = vadd.f32 0.0, %v10220
    %v10222 = vpop.f32.mrf.mxu0
    %v10223 = vpop.f32.mrf.mxu0
    %v10224 = vadd.f32 0.0, %v10223
    %v10225 = vpop.f32.mrf.mxu0
    %10226 = vmatprep.mubr.bf16.mxu0 %v10057
    %10227 = vmatmul.mubr.bf16.gmra.mxu0 %v10056
    %v10228 = vpop.f32.mrf.mxu0
    %v10229 = vadd.f32 0.0, %v10228
    %v10230 = vpop.f32.mrf.mxu0
    %v10231 = vpop.f32.mrf.mxu0
    %v10232 = vadd.f32 0.0, %v10231
    %v10233 = vpop.f32.mrf.mxu0
    %10234 = vdwg.mxu0
    %v10235 = vtanh.pop %v10221
    %v10236 = vtanh.pop %v10224
    %v10237 = vtanh.pop %v10229
    %v10238 = vtanh.pop %v10232
    %10239 = vst [vmem:[%s6] sm:$0xff] %v10235
    %10240 = vst [vmem:[%s6 + $0x8] sm:$0xff] %v10236
    %10241 = vst [vmem:[%s6 + $0x10] sm:$0xff] %v10237
    %10242 = vst [vmem:[%s6 + $0x18] sm:$0xff] %v10238
    %v10243 = vld [vmem:[#allocation2 + $0x40] sm:$0xff]
    %v10244 = vld [vmem:[#allocation2 + $0x48] sm:$0xff]
    %v10245 = vld [vmem:[#allocation2 + $0x50] sm:$0xff]
    %v10246 = vld [vmem:[#allocation2 + $0x58] sm:$0xff]
    %v10247 = vld [vmem:[#allocation2 + $0x60] sm:$0xff]
    %v10248 = vld [vmem:[#allocation2 + $0x68] sm:$0xff]
    %v10249 = vld [vmem:[#allocation2 + $0x70] sm:$0xff]
    %v10250 = vld [vmem:[#allocation2 + $0x78] sm:$0xff]
    %v10251 = vmul.f32 %v10243, %v10006
    %v10252 = vmul.f32 %v10244, %v10010
    %v10253 = vmul.f32 %v10245, %v10006
    %v10254 = vmul.f32 %v10246, %v10010
    %v10255 = vmul.f32 %v10247, %v10006
    %v10256 = vmul.f32 %v10248, %v10010
    %v10257 = vmul.f32 %v10249, %v10006
    %v10258 = vmul.f32 %v10250, %v10010
    %v10259 = vadd.f32 %v10251, %v10033
    %v10260 = vadd.f32 %v10252, %v10037
    %v10261 = vadd.f32 %v10253, %v10033
    %v10262 = vadd.f32 %v10254, %v10037
    %v10263 = vadd.f32 %v10255, %v10033
    %v10264 = vadd.f32 %v10256, %v10037
    %v10265 = vadd.f32 %v10257, %v10033
    %v10266 = vadd.f32 %v10258, %v10037
    %v10267 = vmax.f32 %v10259, 0.0
    %v10268 = vmax.f32 %v10260, 0.0
    %v10269 = vmax.f32 %v10261, 0.0
    %v10270 = vmax.f32 %v10262, 0.0
    %v10271 = vmax.f32 %v10263, 0.0
    %v10272 = vmax.f32 %v10264, 0.0
    %v10273 = vmax.f32 %v10265, 0.0
    %v10274 = vmax.f32 %v10266, 0.0
    %v10275 = vpack.c.bf16 %v10269, %v10267
    %v10276 = vpack.c.bf16 %v10270, %v10268
    %v10277 = vpack.c.bf16 %v10273, %v10271
    %v10278 = vpack.c.bf16 %v10274, %v10272
    %v10279 = vld [vmem:[#allocation13] sm:$0xf]
    %v10280 = vld [vmem:[#allocation13 + $0x4] sm:$0xf]
    %v10281 = vld [vmem:[#allocation13 + $0x8] sm:$0xf]
    %v10282 = vld [vmem:[#allocation13 + $0xc] sm:$0xf]
    %v10283 = vld [vmem:[#allocation13 + $0x10] sm:$0xf]
    %v10284 = vld [vmem:[#allocation13 + $0x14] sm:$0xf]
    %v10285 = vld [vmem:[#allocation13 + $0x18] sm:$0xf]
    %v10286 = vld [vmem:[#allocation13 + $0x1c] sm:$0xf]
    %v10287 = vld [vmem:[#allocation13 + $0x20] sm:$0xf]
    %v10288 = vld [vmem:[#allocation13 + $0x24] sm:$0xf]
    %v10289 = vld [vmem:[#allocation13 + $0x28] sm:$0xf]
    %v10290 = vld [vmem:[#allocation13 + $0x2c] sm:$0xf]
    %v10291 = vld [vmem:[#allocation13 + $0x30] sm:$0xf]
    %v10292 = vld [vmem:[#allocation13 + $0x34] sm:$0xf]
    %v10293 = vld [vmem:[#allocation13 + $0x38] sm:$0xf]
    %v10294 = vld [vmem:[#allocation13 + $0x3c] sm:$0xf]
    %v10295 = vld [vmem:[#allocation13 + $0x40] sm:$0xf]
    %v10296 = vld [vmem:[#allocation13 + $0x44] sm:$0xf]
    %v10297 = vld [vmem:[#allocation13 + $0x48] sm:$0xf]
    %v10298 = vld [vmem:[#allocation13 + $0x4c] sm:$0xf]
    %v10299 = vld [vmem:[#allocation13 + $0x50] sm:$0xf]
    %v10300 = vld [vmem:[#allocation13 + $0x54] sm:$0xf]
    %v10301 = vld [vmem:[#allocation13 + $0x58] sm:$0xf]
    %v10302 = vld [vmem:[#allocation13 + $0x5c] sm:$0xf]
    %v10303 = vld [vmem:[#allocation13 + $0x60] sm:$0xf]
    %v10304 = vld [vmem:[#allocation13 + $0x64] sm:$0xf]
    %v10305 = vld [vmem:[#allocation13 + $0x68] sm:$0xf]
    %v10306 = vld [vmem:[#allocation13 + $0x6c] sm:$0xf]
    %v10307 = vld [vmem:[#allocation13 + $0x70] sm:$0xf]
    %v10308 = vld [vmem:[#allocation13 + $0x74] sm:$0xf]
    %v10309 = vld [vmem:[#allocation13 + $0x78] sm:$0xf]
    %v10310 = vld [vmem:[#allocation13 + $0x7c] sm:$0xf]
    %v10343 = vunpack.c.l.b16 %v10279
    %v10344 = vunpack.c.l.b16 %v10280
    %v10345 = vunpack.c.l.b16 %v10281
    %v10346 = vunpack.c.l.b16 %v10282
    %v10347 = vunpack.c.l.b16 %v10283
    %v10348 = vunpack.c.l.b16 %v10284
    %v10349 = vunpack.c.l.b16 %v10285
    %v10350 = vunpack.c.l.b16 %v10286
    %v10351 = vunpack.c.l.b16 %v10287
    %v10352 = vunpack.c.l.b16 %v10288
    %v10353 = vunpack.c.l.b16 %v10289
    %v10354 = vunpack.c.l.b16 %v10290
    %v10355 = vunpack.c.l.b16 %v10291
    %v10356 = vunpack.c.l.b16 %v10292
    %v10357 = vunpack.c.l.b16 %v10293
    %v10358 = vunpack.c.l.b16 %v10294
    %v10359 = vunpack.c.l.b16 %v10295
    %v10360 = vunpack.c.l.b16 %v10296
    %v10361 = vunpack.c.l.b16 %v10297
    %v10362 = vunpack.c.l.b16 %v10298
    %v10363 = vunpack.c.l.b16 %v10299
    %v10364 = vunpack.c.l.b16 %v10300
    %v10365 = vunpack.c.l.b16 %v10301
    %v10366 = vunpack.c.l.b16 %v10302
    %v10367 = vunpack.c.l.b16 %v10303
    %v10368 = vunpack.c.l.b16 %v10304
    %v10369 = vunpack.c.l.b16 %v10305
    %v10370 = vunpack.c.l.b16 %v10306
    %v10371 = vunpack.c.l.b16 %v10307
    %v10372 = vunpack.c.l.b16 %v10308
    %v10373 = vunpack.c.l.b16 %v10309
    %v10374 = vunpack.c.l.b16 %v10310
    %v10375 = vpack.c.b16 %v10344, %v10343
    %v10376 = vpack.c.b16 %v10346, %v10345
    %v10377 = vpack.c.b16 %v10348, %v10347
    %v10378 = vpack.c.b16 %v10350, %v10349
    %v10379 = vpack.c.b16 %v10352, %v10351
    %v10380 = vpack.c.b16 %v10354, %v10353
    %v10381 = vpack.c.b16 %v10356, %v10355
    %v10382 = vpack.c.b16 %v10358, %v10357
    %v10383 = vpack.c.b16 %v10360, %v10359
    %v10384 = vpack.c.b16 %v10362, %v10361
    %v10385 = vpack.c.b16 %v10364, %v10363
    %v10386 = vpack.c.b16 %v10366, %v10365
    %v10387 = vpack.c.b16 %v10368, %v10367
    %v10388 = vpack.c.b16 %v10370, %v10369
    %v10389 = vpack.c.b16 %v10372, %v10371
    %v10390 = vpack.c.b16 %v10374, %v10373
    %10407 = vmatprep.subr.bf16.mxu0 0
    %10408 = vmatpush1.bf16.msra.mxu0 %v10382
    %10409 = vmatprep.subr.bf16.mxu0 0
    %10410 = vmatpush1.bf16.msra.mxu0 %v10381
    %10411 = vmatprep.subr.bf16.mxu0 0
    %10412 = vmatpush1.bf16.msra.mxu0 %v10380
    %10413 = vmatprep.subr.bf16.mxu0 0
    %10414 = vmatpush1.bf16.msra.mxu0 %v10379
    %10415 = vmatprep.subr.bf16.mxu0 0
    %10416 = vmatpush1.bf16.msra.mxu0 %v10378
    %10417 = vmatprep.subr.bf16.mxu0 0
    %10418 = vmatpush1.bf16.msra.mxu0 %v10377
    %10419 = vmatprep.subr.bf16.mxu0 0
    %10420 = vmatpush1.bf16.msra.mxu0 %v10376
    %10421 = vmatprep.subr.bf16.mxu0 0
    %10422 = vmatpush1.bf16.msra.mxu0 %v10375
    %10423 = vmatprep.subr.bf16.mxu0 0
    %10424 = vmatpush2.bf16.msra.mxu0 %v10390
    %10425 = vmatprep.subr.bf16.mxu0 0
    %10426 = vmatpush2.bf16.msra.mxu0 %v10389
    %10427 = vmatprep.subr.bf16.mxu0 0
    %10428 = vmatpush2.bf16.msra.mxu0 %v10388
    %10429 = vmatprep.subr.bf16.mxu0 0
    %10430 = vmatpush2.bf16.msra.mxu0 %v10387
    %10431 = vmatprep.subr.bf16.mxu0 0
    %10432 = vmatpush2.bf16.msra.mxu0 %v10386
    %10433 = vmatprep.subr.bf16.mxu0 0
    %10434 = vmatpush2.bf16.msra.mxu0 %v10385
    %10435 = vmatprep.subr.bf16.mxu0 0
    %10436 = vmatpush2.bf16.msra.mxu0 %v10384
    %10437 = vmatprep.subr.bf16.mxu0 0
    %10438 = vmatpush2.bf16.msra.mxu0 %v10383
    %10439 = vmatprep.mubr.bf16.mxu0 %v10276
    %10440 = vmatmul.mubr.bf16.gmra.mxu0 %v10275
    %v10441 = vpop.f32.mrf.mxu0
    %v10442 = vadd.f32 0.0, %v10441
    %v10443 = vpop.f32.mrf.mxu0
    %v10444 = vpop.f32.mrf.mxu0
    %v10445 = vadd.f32 0.0, %v10444
    %v10446 = vpop.f32.mrf.mxu0
    %10447 = vmatprep.mubr.bf16.mxu0 %v10278
    %10448 = vmatmul.mubr.bf16.gmra.mxu0 %v10277
    %v10449 = vpop.f32.mrf.mxu0
    %v10450 = vadd.f32 0.0, %v10449
    %v10451 = vpop.f32.mrf.mxu0
    %v10452 = vpop.f32.mrf.mxu0
    %v10453 = vadd.f32 0.0, %v10452
    %v10454 = vpop.f32.mrf.mxu0
    %10455 = vdwg.mxu0
    %v10456 = vtanh.pop %v10442
    %v10457 = vtanh.pop %v10445
    %v10458 = vtanh.pop %v10450
    %v10459 = vtanh.pop %v10453
    %10460 = vst [vmem:[%s6 + $0x20] sm:$0xff] %v10456
    %10461 = vst [vmem:[%s6 + $0x28] sm:$0xff] %v10457
    %10462 = vst [vmem:[%s6 + $0x30] sm:$0xff] %v10458
    %10463 = vst [vmem:[%s6 + $0x38] sm:$0xff] %v10459
    // Predicated region
    $region46: #{generator_forward.1} parent=1 // pred_check
      _
    $region47: #{generator_forward.1} parent=1 // pred_check_branch
      %10465 = sbr.rel (0) target = $region49
    $region48: #{generator_forward.1} parent=1 // pred_region
      _
    $region49: #{generator_forward.1} parent=1 // pred_fallthru
      _
    // Predicated region
    $region50: #{generator_forward.1} parent=1 // pred_check
      _
    $region51: #{generator_forward.1} parent=1 // pred_check_branch
      %10467 = sbr.rel (0) target = $region53
    $region52: #{generator_forward.1} parent=1 // pred_region
      _
    $region53: #{generator_forward.1} parent=1 // pred_fallthru
      _
    %10468 = vsyncpa [#allocation7], 1
    %10469 = vsyncpa [#allocation9], 1
    %10470 = vsyncpa [#allocation12], 1

</llo_original>
